<compile_context>
chip_gen: v5e
topology: v5e:2x2
jax: 0.10.0
libtpu: 0.0.40
codegen_flags: <defaults>
</compile_context>

<pallas_src>
import jax
import jax.numpy as jnp
from jax.experimental import pallas as pl
from jax.experimental.pallas import tpu as pltpu

HIDDEN = 768
LN_EPS = 1e-12


def _round_up(x, m):
    return (x + m - 1) // m * m


def _dense_residual_ln_kernel(x_ref, res_ref, w_ref, p_ref, o_ref):
    # x_ref:   (tm, H)  attention/FFN output rows (native / matmul dtype)
    # res_ref: (tm, H)  residual rows (native dtype)
    # w_ref:   (H, H)   dense weight, (in, out) layout (resident block, constant index_map)
    # p_ref:   (3, H)   packed f32 [bias; gamma; beta]
    # Matmul in the operands' dtype (bf16 in production) with f32 accumulation on the MXU.
    h = jnp.dot(x_ref[...], w_ref[...], preferred_element_type=jnp.float32)
    p = p_ref[...]                                    # (3, H) f32
    y = h + p[0:1, :] + res_ref[...].astype(jnp.float32)
    # TODO(synk): dropout (p=0.1) is identity in eval mode; training-mode PRNG mask not implemented.
    inv_h = 1.0 / y.shape[-1]
    mean = jnp.sum(y, axis=-1, keepdims=True) * inv_h
    var = jnp.sum(y * y, axis=-1, keepdims=True) * inv_h - mean * mean
    var = jnp.maximum(var, 0.0)                       # guard f32 cancellation -> rsqrt(neg) NaN
    out = (y - mean) * jax.lax.rsqrt(var + LN_EPS) * p[1:2, :] + p[2:3, :]
    o_ref[...] = out.astype(o_ref.dtype)


def bert_self_output(hidden_states, input_tensor, w, b, gamma, beta, *,
                     tm=512, matmul_dtype=None):
    """Fused dense + residual + LayerNorm.

    hidden_states, input_tensor: [B, S, H]; w: [H, H] (in, out); b/gamma/beta: [H].
    matmul_dtype: optionally cast matmul operands (x, w) to this dtype (e.g. bf16 on v5e
    where the kernel is MXU-bound); LayerNorm math is always f32.
    """
    B, S, H = hidden_states.shape
    assert H == HIDDEN
    M = B * S

    x2 = hidden_states.reshape(M, H)
    r2 = input_tensor.reshape(M, H)

    if matmul_dtype is not None:
        x2 = x2.astype(matmul_dtype)
        w = w.astype(matmul_dtype)

    # Row tile: multiple of 8 sublanes, no bigger than the row count, and capped so the
    # (only parallel) grid axis keeps >= 2 steps -> both v7x TensorCores stay busy.
    tm_eff = min(_round_up(tm, 8), _round_up(M, 8))
    two_step_cap = max(8, _round_up(pl.cdiv(M, 2), 8))
    tm_eff = min(tm_eff, two_step_cap)

    grid = (pl.cdiv(M, tm_eff),)   # ragged last block handled by Pallas (masked writeback)

    # Pack bias / gamma / beta into one small f32 block (single tiny DMA).
    params = jnp.stack([b, gamma, beta], axis=0).astype(jnp.float32)  # (3, H)

    x_bytes = jnp.dtype(x2.dtype).itemsize
    r_bytes = jnp.dtype(r2.dtype).itemsize
    o_bytes = jnp.dtype(hidden_states.dtype).itemsize
    w_bytes_total = H * H * jnp.dtype(w.dtype).itemsize

    cost = pl.CostEstimate(
        flops=2 * M * H * H,
        transcendentals=0,
        bytes_accessed=M * H * (x_bytes + r_bytes + o_bytes) + w_bytes_total + 3 * H * 4,
    )

    # VMEM budget: double-buffered x/res/out streams + resident weight (kept at the
    # default double buffer; its constant index_map means it is never re-DMA'd) +
    # packed params + headroom for the compiler's f32 LN temporaries (h, y, y*y, out).
    vmem_need = (
        2 * tm_eff * H * (x_bytes + r_bytes + o_bytes)
        + 2 * w_bytes_total
        + 2 * 3 * H * 4
        + 4 * tm_eff * H * 4
    )
    try:
        vmem_cap = int(pltpu.get_tpu_info().vmem_capacity_bytes)
    except Exception:
        vmem_cap = 64 * 1024 * 1024   # conservative (v7x-sized) fallback
    vmem_limit = int(min(int(0.75 * vmem_cap),
                         max(32 * 1024 * 1024, vmem_need + (8 << 20))))

    out2 = pl.pallas_call(
        _dense_residual_ln_kernel,
        out_shape=jax.ShapeDtypeStruct((M, H), hidden_states.dtype),
        grid_spec=pltpu.PrefetchScalarGridSpec(
            num_scalar_prefetch=0,
            grid=grid,
            in_specs=[
                pl.BlockSpec((tm_eff, H), lambda i: (i, 0)),   # x rows (streamed)
                pl.BlockSpec((tm_eff, H), lambda i: (i, 0)),   # residual rows (streamed)
                pl.BlockSpec((H, H), lambda i: (0, 0)),        # weight (resident)
                pl.BlockSpec((3, H), lambda i: (0, 0)),        # packed bias/gamma/beta
            ],
            out_specs=pl.BlockSpec((tm_eff, H), lambda i: (i, 0)),
        ),
        compiler_params=pltpu.CompilerParams(
            dimension_semantics=("parallel",),
            vmem_limit_bytes=vmem_limit,
        ),
        cost_estimate=cost,
    )(x2, r2, w, params)

    return out2.reshape(B, S, H)


def _reference(hidden_states, input_tensor, w, b, gamma, beta):
    h = jnp.einsum("bsh,hk->bsk", hidden_states.astype(jnp.float32),
                   w.astype(jnp.float32)) + b
    y = h + input_tensor.astype(jnp.float32)
    mean = jnp.mean(y, axis=-1, keepdims=True)
    var = jnp.mean((y - mean) ** 2, axis=-1, keepdims=True)
    return (y - mean) * jax.lax.rsqrt(var + LN_EPS) * gamma + beta


if __name__ == "__main__":
    key = jax.random.PRNGKey(0)
    k1, k2, k3, k4, k5, k6 = jax.random.split(key, 6)

    # M = B*S = 386 -> two-step grid with a ragged last block (exercises the masked
    # writeback path that replaced the jnp.pad / slice path).
    B, S, H = 2, 193, HIDDEN
    hidden_states = jax.random.normal(k1, (B, S, H), dtype=jnp.float32)
    input_tensor = jax.random.normal(k2, (B, S, H), dtype=jnp.float32)

    # nn.Linear(768, 768): weight stored transposed to (in, out); init ~N(0, 0.02)
    w = 0.02 * jax.random.normal(k3, (H, H), dtype=jnp.float32)
    b = 0.02 * jax.random.normal(k4, (H,), dtype=jnp.float32)
    # LayerNorm params (perturbed from 1/0 so the affine part is exercised)
    gamma = 1.0 + 0.1 * jax.random.normal(k5, (H,), dtype=jnp.float32)
    beta = 0.1 * jax.random.normal(k6, (H,), dtype=jnp.float32)

    ref = _reference(hidden_states, input_tensor, w, b, gamma, beta)

    # f32 path (tight match vs reference).
    out = bert_self_output(hidden_states, input_tensor, w, b, gamma, beta)
    out = jax.block_until_ready(out)
    assert jnp.allclose(out, ref, atol=1e-4, rtol=1e-4), "f32 mismatch vs reference"

    # bf16 production path: bf16 streams + bf16 MXU operands, f32 accumulation / LN math.
    out_bf16 = bert_self_output(
        hidden_states.astype(jnp.bfloat16),
        input_tensor.astype(jnp.bfloat16),
        w.astype(jnp.bfloat16), b, gamma, beta)
    out_bf16 = jax.block_until_ready(out_bf16)
    assert jnp.allclose(out_bf16.astype(jnp.float32), ref, atol=1e-1, rtol=1e-1), \
        "bf16 mismatch vs reference"

    # v5e-style path: f32 activations, bf16 matmul operands only (LN stays f32).
    out_mx = bert_self_output(hidden_states, input_tensor, w, b, gamma, beta,
                              matmul_dtype=jnp.bfloat16)
    out_mx = jax.block_until_ready(out_mx)
    assert jnp.allclose(out_mx, ref, atol=1e-1, rtol=1e-1), \
        "bf16-matmul mismatch vs reference"

    print("KERNEL_OK")
</pallas_src>

<mosaic_0001>
module attributes {stable_mosaic.version = 11 : i64} {
  func.func @_dense_residual_ln_kernel(%arg0: i32, %arg1: memref<200x768xf32, #tpu.memory_space<vmem>>, %arg2: memref<200x768xf32, #tpu.memory_space<vmem>>, %arg3: memref<768x768xf32, #tpu.memory_space<vmem>>, %arg4: memref<3x768xf32, #tpu.memory_space<vmem>>, %arg5: memref<200x768xf32, #tpu.memory_space<vmem>>) attributes {dimension_semantics = [#tpu.dimension_semantics<parallel>], iteration_bounds = array<i64: 2>, scalar_prefetch = 0 : i64, scratch_operands = 0 : i64, tpu.core_type = #tpu.core_type<tc>, window_params = [{transform_indices = @transform_0, window_bounds = array<i64: 200, 768>}, {transform_indices = @transform_1, window_bounds = array<i64: 200, 768>}, {pipeline_mode = #tpu.pipeline_mode<synchronous>, transform_indices = @transform_2, window_bounds = array<i64: 768, 768>}, {pipeline_mode = #tpu.pipeline_mode<synchronous>, transform_indices = @transform_3, window_bounds = array<i64: 3, 768>}, {transform_indices = @transform_4, window_bounds = array<i64: 200, 768>}]} {
    %c0 = arith.constant 0 : index
    %c0_0 = arith.constant 0 : index
    %0 = vector.load %arg1[%c0, %c0_0] : memref<200x768xf32, #tpu.memory_space<vmem>>, vector<200x768xf32>
    %c0_1 = arith.constant 0 : index
    %c0_2 = arith.constant 0 : index
    %1 = vector.load %arg3[%c0_1, %c0_2] : memref<768x768xf32, #tpu.memory_space<vmem>>, vector<768x768xf32>
    %cst = arith.constant dense<0.000000e+00> : vector<200x768xf32>
    %2 = tpu.matmul %0, %1, %cst {dimension_numbers = #tpu.dot_dimension_numbers<[1], [0], [0], [1], [0, 0, 1, 1], [], []>} : vector<200x768xf32>, vector<768x768xf32>, vector<200x768xf32> -> vector<200x768xf32>
    %c0_3 = arith.constant 0 : index
    %c0_4 = arith.constant 0 : index
    %3 = vector.load %arg4[%c0_3, %c0_4] : memref<3x768xf32, #tpu.memory_space<vmem>>, vector<3x768xf32>
    %4 = vector.extract_strided_slice %3 {offsets = [0, 0], sizes = [1, 768], strides = [1, 1]} : vector<3x768xf32> to vector<1x768xf32>
    %5 = vector.broadcast %4 : vector<1x768xf32> to vector<200x768xf32>
    %6 = arith.addf %2, %5 : vector<200x768xf32>
    %c0_5 = arith.constant 0 : index
    %c0_6 = arith.constant 0 : index
    %7 = vector.load %arg2[%c0_5, %c0_6] : memref<200x768xf32, #tpu.memory_space<vmem>>, vector<200x768xf32>
    %8 = arith.addf %6, %7 : vector<200x768xf32>
    %cst_7 = arith.constant dense<0.000000e+00> : vector<200xf32>
    %9 = vector.multi_reduction <add>, %8, %cst_7 [1] : vector<200x768xf32> to vector<200xf32>
    %10 = vector.shape_cast %9 : vector<200xf32> to vector<200x1xf32>
    %cst_8 = arith.constant 0.00130208337 : f32
    %11 = vector.broadcast %cst_8 : f32 to vector<200x1xf32>
    %12 = arith.mulf %10, %11 : vector<200x1xf32>
    %13 = arith.mulf %8, %8 : vector<200x768xf32>
    %cst_9 = arith.constant dense<0.000000e+00> : vector<200xf32>
    %14 = vector.multi_reduction <add>, %13, %cst_9 [1] : vector<200x768xf32> to vector<200xf32>
    %15 = vector.shape_cast %14 : vector<200xf32> to vector<200x1xf32>
    %cst_10 = arith.constant 0.00130208337 : f32
    %16 = vector.broadcast %cst_10 : f32 to vector<200x1xf32>
    %17 = arith.mulf %15, %16 : vector<200x1xf32>
    %18 = arith.mulf %12, %12 : vector<200x1xf32>
    %19 = arith.subf %17, %18 : vector<200x1xf32>
    %cst_11 = arith.constant 0.000000e+00 : f32
    %20 = vector.broadcast %cst_11 : f32 to vector<200x1xf32>
    %21 = arith.maximumf %19, %20 : vector<200x1xf32>
    %22 = vector.broadcast %12 : vector<200x1xf32> to vector<200x768xf32>
    %23 = arith.subf %8, %22 : vector<200x768xf32>
    %cst_12 = arith.constant 9.99999996E-13 : f32
    %24 = vector.broadcast %cst_12 : f32 to vector<200x1xf32>
    %25 = arith.addf %21, %24 : vector<200x1xf32>
    %26 = math.rsqrt %25 : vector<200x1xf32>
    %27 = vector.broadcast %26 : vector<200x1xf32> to vector<200x768xf32>
    %28 = arith.mulf %23, %27 : vector<200x768xf32>
    %29 = vector.extract_strided_slice %3 {offsets = [1, 0], sizes = [1, 768], strides = [1, 1]} : vector<3x768xf32> to vector<1x768xf32>
    %30 = vector.broadcast %29 : vector<1x768xf32> to vector<200x768xf32>
    %31 = arith.mulf %28, %30 : vector<200x768xf32>
    %32 = vector.extract_strided_slice %3 {offsets = [2, 0], sizes = [1, 768], strides = [1, 1]} : vector<3x768xf32> to vector<1x768xf32>
    %33 = vector.broadcast %32 : vector<1x768xf32> to vector<200x768xf32>
    %34 = arith.addf %31, %33 : vector<200x768xf32>
    %c0_13 = arith.constant 0 : index
    %c0_14 = arith.constant 0 : index
    %35 = vector.load %arg5[%c0_13, %c0_14] : memref<200x768xf32, #tpu.memory_space<vmem>>, vector<200x768xf32>
    tpu.vector_store %arg5[%c0_13, %c0_14], %34 {strides = array<i32>} : memref<200x768xf32, #tpu.memory_space<vmem>>, vector<200x768xf32>,
    return
  }
  func.func @transform_0(%arg0: i32) -> (i32, i32) {
    %c0_i32 = arith.constant 0 : i32
    %c0_i32_0 = arith.constant 0 : i32
    return %arg0, %c0_i32 : i32, i32
  }
  func.func @transform_1(%arg0: i32) -> (i32, i32) {
    %c0_i32 = arith.constant 0 : i32
    %c0_i32_0 = arith.constant 0 : i32
    return %arg0, %c0_i32 : i32, i32
  }
  func.func @transform_2(%arg0: i32) -> (i32, i32) {
    %c0_i32 = arith.constant 0 : i32
    %c0_i32_0 = arith.constant 0 : i32
    %c0_i32_1 = arith.constant 0 : i32
    return %c0_i32, %c0_i32_0 : i32, i32
  }
  func.func @transform_3(%arg0: i32) -> (i32, i32) {
    %c0_i32 = arith.constant 0 : i32
    %c0_i32_0 = arith.constant 0 : i32
    %c0_i32_1 = arith.constant 0 : i32
    return %c0_i32, %c0_i32_0 : i32, i32
  }
  func.func @transform_4(%arg0: i32) -> (i32, i32) {
    %c0_i32 = arith.constant 0 : i32
    %c0_i32_0 = arith.constant 0 : i32
    return %arg0, %c0_i32 : i32, i32
  }
}

</mosaic_0001>

<llo_original>
// kernel: tpu_custom_call.1
$region0: #{tpu_custom_call.1}
  #allocation0 [shape = 'u32[]', space=smem, size = 0x4, offset = 0x4, fixed_abs, tag = 'smem constant byte address 0x4 - core index']
  #allocation1 [shape = 'u32[72,128]{1,0:T(1,128)}', space=vmem, size = 0x9000, scoped, tag = 'internal scratch']
  %s0 = inlined_call_operand.hbm [shape: f32[386,768], index: 0, kind: input, shape index: {}]
  %s1 = inlined_call_operand.hbm [shape: f32[386,768], index: 1, kind: input, shape index: {}]
  %s2 = inlined_call_operand.hbm [shape: f32[768,768], index: 2, kind: input, shape index: {}]
  %s3 = inlined_call_operand.hbm [shape: f32[3,768], index: 3, kind: input, shape index: {}]
  %s4 = inlined_call_operand.hbm [shape: f32[386,768], index: 4, kind: output, shape index: {}]
  %s5 = sld [smem:[#allocation0]]
  $region65: #{tpu_custom_call.1} parent=0
    _
  %s7 = ssub.s32 1, %s5
  %s8 = scalar_select 0, %s7, %s5
  $region1: #{tpu_custom_call.1} parent=0
    #allocation2 [shape = 'u8[1228800]{0}', space=vmem, size = 0x12c000, scoped, tag = 'input window, operand 0']
    #allocation3 [shape = 's32[2]{0}', space=sflag, size = 0x8, scoped, tag = 'scoped memory for tpu_custom_call.1']
    #allocation4 [shape = 's32[2]{0}', space=sflag, size = 0x8, scoped, tag = 'scoped memory for tpu_custom_call.1']
    #allocation5 [shape = 'u8[1228800]{0}', space=vmem, size = 0x12c000, scoped, tag = 'input window, operand 1']
    #allocation6 [shape = 's32[2]{0}', space=sflag, size = 0x8, scoped, tag = 'scoped memory for tpu_custom_call.1']
    #allocation7 [shape = 'u8[2359296]{0}', space=vmem, size = 0x240000, scoped, tag = 'input window, operand 2, single buffered']
    #allocation8 [shape = 'u8[12288]{0}', space=vmem, size = 0x3000, scoped, tag = 'input window, operand 3, single buffered']
    #allocation9 [shape = 's32[1]{0}', space=sflag, size = 0x4, scoped, tag = 'scoped memory for tpu_custom_call.1']
    #allocation10 [shape = 'u8[1228800]{0}', space=vmem, size = 0x12c000, scoped, tag = 'output window, operand 0']
    %9 = vsyncpa [#allocation3], 0
    %s10 = scalar_lea.sflag [#allocation3], 1
    %11 = vsyncpa %s10, 0
    %12 = vsyncpa [#allocation6], 0
    %s13 = scalar_lea.sflag [#allocation6], 1
    %14 = vsyncpa %s13, 0
    %15 = vsyncpa [#allocation9], 0
    %16 = vsyncpa [#allocation4], 0
    %s17 = scalar_lea.sflag [#allocation4], 1
    %18 = vsyncpa %s17, 0
    loop: start=0, step=1, limit=4
    $region2: #{tpu_custom_call.1} parent=1 // loop_pre_header
      _
    $region3: #{tpu_custom_call.1} parent=1 // loop_header
      %s20 = sphi 0, %s24
      %p21 = scmp.ge.s32.totalorder %s20, 4
      %s30 = sphi 0, %s32
      %s33 = sphi 0, %s30
      %s34 = sphi 0, %s33
      %s50 = sphi 0, %s34
      %s56 = sphi 0, %s58
      %s59 = sphi 0, %s56
      %s60 = sphi 0, %s59
      %s76 = sphi 0, %s60
      %s80 = sphi 0, %s80
      %s82 = sphi 0, %s80
      %s83 = sphi 0, %s82
      %s97 = sphi 0, %s83
      %s101 = sphi 0, %s101
      %s103 = sphi 0, %s101
      %s104 = sphi 0, %s103
      %s118 = sphi 0, %s104
      %s124 = sphi 0, %s126
      %s127 = sphi 0, %s124
      %s128 = sphi 0, %s127
      %s144 = sphi 0, %s128
    $region4: #{tpu_custom_call.1} parent=1 // loop_header_branch
      %23 = sbr.rel (%p21) target = $region8
    $region5: #{tpu_custom_call.1} parent=1 // loop_body
      %s25 = ssub.s32 %s20, 1
      %s26 = ssub.s32 %s20, 2
      %s27 = sadd.s32 %s20, 1
      %s28 = ssub.s32 %s20, %s27
      %p29 = scmp.eq.s32.totalorder %s28, 0
      %s31 = sadd.s32 %s30, 1
      %s32 = scalar_select %p29, %s30, %s31
      %p35 = pneg %p29
      %p36 = scmp.eq.s32.totalorder %s20, 1
      %p37 = por %p35, %p36
      %p38 = scmp.ne.s32.totalorder %s30, %s33
      %p39 = scmp.eq.s32.totalorder %s20, 0
      %p40 = por %p38, %p39
      %p41 = scmp.ne.s32.totalorder %s30, %s33
      %p42 = scmp.eq.s32.totalorder %s25, 1
      %p43 = por %p41, %p42
      %p44 = scmp.ne.s32.totalorder %s33, %s34
      %p45 = scmp.eq.s32.totalorder %s25, 0
      %p46 = por %p44, %p45
      %p47 = scmp.ne.s32.totalorder %s33, %s34
      %p48 = scmp.eq.s32.totalorder %s26, 1
      %p49 = por %p47, %p48
      %p51 = scmp.ne.s32.totalorder %s34, %s50
      %p52 = scmp.eq.s32.totalorder %s26, 0
      %p53 = por %p51, %p52
      %s54 = ssub.s32 %s20, %s27
      %p55 = scmp.eq.s32.totalorder %s54, 0
      %s57 = sadd.s32 %s56, 1
      %s58 = scalar_select %p55, %s56, %s57
      %p61 = pneg %p55
      %p62 = scmp.eq.s32.totalorder %s20, 1
      %p63 = por %p61, %p62
      %p64 = scmp.ne.s32.totalorder %s56, %s59
      %p65 = scmp.eq.s32.totalorder %s20, 0
      %p66 = por %p64, %p65
      %p67 = scmp.ne.s32.totalorder %s56, %s59
      %p68 = scmp.eq.s32.totalorder %s25, 1
      %p69 = por %p67, %p68
      %p70 = scmp.ne.s32.totalorder %s59, %s60
      %p71 = scmp.eq.s32.totalorder %s25, 0
      %p72 = por %p70, %p71
      %p73 = scmp.ne.s32.totalorder %s59, %s60
      %p74 = scmp.eq.s32.totalorder %s26, 1
      %p75 = por %p73, %p74
      %p77 = scmp.ne.s32.totalorder %s60, %s76
      %p78 = scmp.eq.s32.totalorder %s26, 0
      %p79 = por %p77, %p78
      %s81 = sadd.s32 %s80, 1
      %p84 = scmp.eq.s32.totalorder %s20, 1
      %p85 = scmp.ne.s32.totalorder %s80, %s82
      %p86 = scmp.eq.s32.totalorder %s20, 0
      %p87 = por %p85, %p86
      %p88 = scmp.ne.s32.totalorder %s80, %s82
      %p89 = scmp.eq.s32.totalorder %s25, 1
      %p90 = por %p88, %p89
      %p91 = scmp.ne.s32.totalorder %s82, %s83
      %p92 = scmp.eq.s32.totalorder %s25, 0
      %p93 = por %p91, %p92
      %p94 = scmp.ne.s32.totalorder %s82, %s83
      %p95 = scmp.eq.s32.totalorder %s26, 1
      %p96 = por %p94, %p95
      %p98 = scmp.ne.s32.totalorder %s83, %s97
      %p99 = scmp.eq.s32.totalorder %s26, 0
      %p100 = por %p98, %p99
      %s102 = sadd.s32 %s101, 1
      %p105 = scmp.eq.s32.totalorder %s20, 1
      %p106 = scmp.ne.s32.totalorder %s101, %s103
      %p107 = scmp.eq.s32.totalorder %s20, 0
      %p108 = por %p106, %p107
      %p109 = scmp.ne.s32.totalorder %s101, %s103
      %p110 = scmp.eq.s32.totalorder %s25, 1
      %p111 = por %p109, %p110
      %p112 = scmp.ne.s32.totalorder %s103, %s104
      %p113 = scmp.eq.s32.totalorder %s25, 0
      %p114 = por %p112, %p113
      %p115 = scmp.ne.s32.totalorder %s103, %s104
      %p116 = scmp.eq.s32.totalorder %s26, 1
      %p117 = por %p115, %p116
      %p119 = scmp.ne.s32.totalorder %s104, %s118
      %p120 = scmp.eq.s32.totalorder %s26, 0
      %p121 = por %p119, %p120
      %s122 = ssub.s32 %s20, %s27
      %p123 = scmp.eq.s32.totalorder %s122, 0
      %s125 = sadd.s32 %s124, 1
      %s126 = scalar_select %p123, %s124, %s125
      %p129 = pneg %p123
      %p130 = scmp.eq.s32.totalorder %s20, 1
      %p131 = por %p129, %p130
      %p132 = scmp.ne.s32.totalorder %s124, %s127
      %p133 = scmp.eq.s32.totalorder %s20, 0
      %p134 = por %p132, %p133
      %p135 = scmp.ne.s32.totalorder %s124, %s127
      %p136 = scmp.eq.s32.totalorder %s25, 1
      %p137 = por %p135, %p136
      %p138 = scmp.ne.s32.totalorder %s127, %s128
      %p139 = scmp.eq.s32.totalorder %s25, 0
      %p140 = por %p138, %p139
      %p141 = scmp.ne.s32.totalorder %s127, %s128
      %p142 = scmp.eq.s32.totalorder %s26, 1
      %p143 = por %p141, %p142
      %p145 = scmp.ne.s32.totalorder %s128, %s144
      %p146 = scmp.eq.s32.totalorder %s26, 0
      %p147 = por %p145, %p146
      %p148 = scmp.le.s32.totalorder 1, %s20
      %p149 = scmp.lt.s32.totalorder %s20, 3
      %p150 = pnand %p148, %p149
      %p151 = pneg %p150
      // Predicated region
      $region9: #{tpu_custom_call.1} parent=5 // pred_check
        _
      $region10: #{tpu_custom_call.1} parent=5 // pred_check_branch
        %153 = sbr.rel (%p150) target = $region12
      $region11: #{tpu_custom_call.1} parent=5 // pred_region
        %s154 = ssub.s32 %s20, 1
        // Predicated region
        $region13: #{tpu_custom_call.1} parent=11 // pred_check
          %p155 = pneg %p93
        $region14: #{tpu_custom_call.1} parent=11 // pred_check_branch
          %157 = sbr.rel (%p155) target = $region16
        $region15: #{tpu_custom_call.1} parent=11 // pred_region
          %159 = vsyncadd [#allocation6], 0
          %s160 = sshll.u32 %s2, 4
          %s161 = int_to_ptr.hbm [resolvable:$true] %s160
          %s162 = sshll.u32 [#allocation7], 4
          %s163 = int_to_ptr.vmem [resolvable:$true] %s162
          %168 = dma.hbm_to_vmem [thread:$0]  %s161, 73728, %s163, [#allocation6], 768, 768, 48
        $region16: #{tpu_custom_call.1} parent=11 // pred_fallthru
          _
        // Predicated region
        $region17: #{tpu_custom_call.1} parent=11 // pred_check
          %p169 = pneg %p114
        $region18: #{tpu_custom_call.1} parent=11 // pred_check_branch
          %171 = sbr.rel (%p169) target = $region20
        $region19: #{tpu_custom_call.1} parent=11 // pred_region
          %173 = vsyncadd [#allocation9], 0
          %s175 = sshll.u32 %s3, 4
          %s176 = int_to_ptr.hbm [resolvable:$true] %s175
          %s177 = sshll.u32 [#allocation8], 4
          %s178 = int_to_ptr.vmem [resolvable:$true] %s177
          %180 = dma.hbm_to_vmem [thread:$0]  %s176, 384, %s178, [#allocation9]
        $region20: #{tpu_custom_call.1} parent=11 // pred_fallthru
          _
      $region12: #{tpu_custom_call.1} parent=5 // pred_fallthru
        _
      %p181 = scmp.lt.s32.totalorder %s20, 2
      // Predicated region
      $region21: #{tpu_custom_call.1} parent=5 // pred_check
        %p182 = pneg %p181
      $region22: #{tpu_custom_call.1} parent=5 // pred_check_branch
        %184 = sbr.rel (%p182) target = $region24
      $region23: #{tpu_custom_call.1} parent=5 // pred_region
        // Predicated region
        $region25: #{tpu_custom_call.1} parent=23 // pred_check
          %p185 = pneg %p40
        $region26: #{tpu_custom_call.1} parent=23 // pred_check_branch
          %187 = sbr.rel (%p185) target = $region28
        $region27: #{tpu_custom_call.1} parent=23 // pred_region
          %s188 = sand.u32 %s30, 1
          %s189 = scalar_lea.sflag [#allocation3], %s188
          %s190 = sand.u32 %s30, 1
          %s191 = smul.addr %s190, 1200
          %s192 = scalar_lea.vmem [#allocation2], %s191
          %s193 = smul.u32 25, %s20
          %s194 = ssub.s32 49, %s193
          %p195 = scmp.lt.s32.totalorder %s194, 25
          %s196 = scalar_select %p195, %s194, 25
          %s197 = smul.u32 8, %s196
          %s198 = smul.u32 %s197, 6
          %s199 = ssub.s32 1200, %s198
          %s200 = sshll.u32 %s199, 4
          %201 = vsyncadd %s189, %s200
          %p202 = scmp.ne.s32.totalorder 0, %s198
          %s203 = smul.addr %s193, 6
          %s204 = smul.addr %s203, 8
          %s205 = scalar_lea.hbm %s0, %s204
          %s206 = smul.u32 48, %s196
          %s207 = sshll.u32 %s205, 4
          %s208 = int_to_ptr.hbm [resolvable:$true] %s207
          %s209 = sshll.u32 %s192, 4
          %s210 = int_to_ptr.vmem [resolvable:$true] %s209
          %s211 = sshll.u32 %s206, 4
          %215 = dma.hbm_to_vmem [thread:$0]  (%p202), %s208, %s211, %s210, %s189, 768, 768, 48
        $region28: #{tpu_custom_call.1} parent=23 // pred_fallthru
          _
        // Predicated region
        $region29: #{tpu_custom_call.1} parent=23 // pred_check
          %p216 = pneg %p66
        $region30: #{tpu_custom_call.1} parent=23 // pred_check_branch
          %218 = sbr.rel (%p216) target = $region32
        $region31: #{tpu_custom_call.1} parent=23 // pred_region
          %s219 = sand.u32 %s20, 1
          %s220 = scalar_lea.sflag [#allocation6], %s219
          %s221 = sand.u32 %s56, 1
          %s222 = smul.addr %s221, 1200
          %s223 = scalar_lea.vmem [#allocation5], %s222
          %s224 = smul.u32 25, %s20
          %s225 = ssub.s32 49, %s224
          %p226 = scmp.lt.s32.totalorder %s225, 25
          %s227 = scalar_select %p226, %s225, 25
          %s228 = smul.u32 8, %s227
          %s229 = smul.u32 %s228, 6
          %s230 = ssub.s32 1200, %s229
          %s231 = sshll.u32 %s230, 4
          %232 = vsyncadd %s220, %s231
          %p233 = scmp.ne.s32.totalorder 0, %s229
          %s234 = smul.addr %s224, 6
          %s235 = smul.addr %s234, 8
          %s236 = scalar_lea.hbm %s1, %s235
          %s237 = smul.u32 48, %s227
          %s238 = sshll.u32 %s236, 4
          %s239 = int_to_ptr.hbm [resolvable:$true] %s238
          %s240 = sshll.u32 %s223, 4
          %s241 = int_to_ptr.vmem [resolvable:$true] %s240
          %s242 = sshll.u32 %s237, 4
          %246 = dma.hbm_to_vmem [thread:$0]  (%p233), %s239, %s242, %s241, %s220, 768, 768, 48
        $region32: #{tpu_custom_call.1} parent=23 // pred_fallthru
          _
      $region24: #{tpu_custom_call.1} parent=5 // pred_fallthru
        _
      %p247 = scmp.le.s32.totalorder 1, %s20
      %p248 = scmp.lt.s32.totalorder %s20, 3
      %p249 = pnand %p247, %p248
      %p250 = pneg %p249
      // Predicated region
      $region33: #{tpu_custom_call.1} parent=5 // pred_check
        _
      $region34: #{tpu_custom_call.1} parent=5 // pred_check_branch
        %252 = sbr.rel (%p249) target = $region36
      $region35: #{tpu_custom_call.1} parent=5 // pred_region
        %s253 = ssub.s32 %s20, 1
        %s254 = sand.u32 %s33, 1
        %s255 = scalar_lea.sflag [#allocation3], %s254
        %s256 = sand.u32 %s33, 1
        %s257 = smul.addr %s256, 1200
        %s258 = scalar_lea.vmem [#allocation2], %s257
        // Predicated region
        $region37: #{tpu_custom_call.1} parent=35 // pred_check
          %p259 = pneg %p46
        $region38: #{tpu_custom_call.1} parent=35 // pred_check_branch
          %261 = sbr.rel (%p259) target = $region40
        $region39: #{tpu_custom_call.1} parent=35 // pred_region
          %263 = dma.done %s255, 19200
        $region40: #{tpu_custom_call.1} parent=35 // pred_fallthru
          _
        %s264 = sand.u32 %s25, 1
        %s265 = scalar_lea.sflag [#allocation6], %s264
        %s266 = sand.u32 %s59, 1
        %s267 = smul.addr %s266, 1200
        %s268 = scalar_lea.vmem [#allocation5], %s267
        // Predicated region
        $region41: #{tpu_custom_call.1} parent=35 // pred_check
          %p269 = pneg %p72
        $region42: #{tpu_custom_call.1} parent=35 // pred_check_branch
          %271 = sbr.rel (%p269) target = $region44
        $region43: #{tpu_custom_call.1} parent=35 // pred_region
          %273 = dma.done %s265, 19200
        $region44: #{tpu_custom_call.1} parent=35 // pred_fallthru
          _
        // Predicated region
        $region45: #{tpu_custom_call.1} parent=35 // pred_check
          %p274 = pneg %p93
        $region46: #{tpu_custom_call.1} parent=35 // pred_check_branch
          %276 = sbr.rel (%p274) target = $region48
        $region47: #{tpu_custom_call.1} parent=35 // pred_region
          %278 = dma.done [#allocation6], 73728
        $region48: #{tpu_custom_call.1} parent=35 // pred_fallthru
          _
        // Predicated region
        $region49: #{tpu_custom_call.1} parent=35 // pred_check
          %p279 = pneg %p114
        $region50: #{tpu_custom_call.1} parent=35 // pred_check_branch
          %281 = sbr.rel (%p279) target = $region52
        $region51: #{tpu_custom_call.1} parent=35 // pred_region
          %283 = dma.done [#allocation9], 384
        $region52: #{tpu_custom_call.1} parent=35 // pred_fallthru
          _
        %s284 = sand.u32 %s33, 1
        %s285 = scalar_lea.sflag [#allocation3], %s284
        %s286 = sand.u32 %s33, 1
        %s287 = smul.addr %s286, 1200
        %s288 = scalar_lea.vmem [#allocation2], %s287
        %p289 = pneg %p46
        %p290 = pneg %p43
        %s291 = sand.u32 %s25, 1
        %s292 = scalar_lea.sflag [#allocation6], %s291
        %s293 = sand.u32 %s59, 1
        %s294 = smul.addr %s293, 1200
        %s295 = scalar_lea.vmem [#allocation5], %s294
        %p296 = pneg %p72
        %p297 = pneg %p69
        %p298 = pneg %p93
        %p299 = pneg %p90
        %p300 = pneg %p114
        %p301 = pneg %p111
        %p302 = pneg %p140
        %p303 = pneg %p137
        %s304 = sand.u32 %s127, 1
        %s305 = scalar_lea.sflag [#allocation4], %s304
        %s306 = sand.u32 %s127, 1
        %s307 = smul.addr %s306, 1200
        %s308 = scalar_lea.vmem [#allocation10], %s307
        %s309 = smul.u32 25, %s25
        %s310 = ssub.s32 49, %s309
        %p311 = scmp.lt.s32.totalorder %s310, 25
        %s312 = scalar_select %p311, %s310, 25
        %s313 = smul.u32 8, %s312
        %s314 = smul.u32 %s313, 6
        %s315 = smul.u32 25, %s25
        %s316 = ssub.s32 49, %s315
        %p317 = scmp.lt.s32.totalorder %s316, 25
        %s318 = scalar_select %p317, %s316, 25
        %s319 = smul.u32 8, %s318
        %s320 = smul.u32 %s319, 6
        %s321 = smul.u32 25, %s25
        %s322 = ssub.s32 49, %s321
        %p323 = scmp.lt.s32.totalorder %s322, 25
        %s324 = scalar_select %p323, %s322, 25
        %s325 = smul.u32 8, %s324
        %s326 = smul.u32 %s325, 6
        %v327 = vld [vmem:[%s258] sm:$0xff]
        %v328 = vld [vmem:[%s258 + $0x8] sm:$0xff]
        %v329 = vld [vmem:[%s258 + $0x10] sm:$0xff]
        %v330 = vld [vmem:[%s258 + $0x18] sm:$0xff]
        %v331 = vld [vmem:[%s258 + $0x20] sm:$0xff]
        %v332 = vld [vmem:[%s258 + $0x28] sm:$0xff]
        %v333 = vld [vmem:[%s258 + $0x30] sm:$0xff]
        %v334 = vld [vmem:[%s258 + $0x38] sm:$0xff]
        %v335 = vld [vmem:[%s258 + $0x40] sm:$0xff]
        %v336 = vld [vmem:[%s258 + $0x48] sm:$0xff]
        %v337 = vld [vmem:[%s258 + $0x50] sm:$0xff]
        %v338 = vld [vmem:[%s258 + $0x58] sm:$0xff]
        %v339 = vld [vmem:[%s258 + $0x60] sm:$0xff]
        %v340 = vld [vmem:[%s258 + $0x68] sm:$0xff]
        %v341 = vld [vmem:[%s258 + $0x70] sm:$0xff]
        %v342 = vld [vmem:[%s258 + $0x78] sm:$0xff]
        %v343 = vld [vmem:[%s258 + $0x80] sm:$0xff]
        %v344 = vld [vmem:[%s258 + $0x88] sm:$0xff]
        %v345 = vld [vmem:[%s258 + $0x90] sm:$0xff]
        %v346 = vld [vmem:[%s258 + $0x98] sm:$0xff]
        %v347 = vld [vmem:[%s258 + $0xa0] sm:$0xff]
        %v348 = vld [vmem:[%s258 + $0xa8] sm:$0xff]
        %v349 = vld [vmem:[%s258 + $0xb0] sm:$0xff]
        %v350 = vld [vmem:[%s258 + $0xb8] sm:$0xff]
        %v351 = vld [vmem:[%s258 + $0xc0] sm:$0xff]
        %v352 = vld [vmem:[%s258 + $0xc8] sm:$0xff]
        %v353 = vld [vmem:[%s258 + $0xd0] sm:$0xff]
        %v354 = vld [vmem:[%s258 + $0xd8] sm:$0xff]
        %v355 = vld [vmem:[%s258 + $0xe0] sm:$0xff]
        %v356 = vld [vmem:[%s258 + $0xe8] sm:$0xff]
        %v357 = vld [vmem:[%s258 + $0xf0] sm:$0xff]
        %v358 = vld [vmem:[%s258 + $0xf8] sm:$0xff]
        %v359 = vld [vmem:[%s258 + $0x100] sm:$0xff]
        %v360 = vld [vmem:[%s258 + $0x108] sm:$0xff]
        %v361 = vld [vmem:[%s258 + $0x110] sm:$0xff]
        %v362 = vld [vmem:[%s258 + $0x118] sm:$0xff]
        %v363 = vld [vmem:[%s258 + $0x120] sm:$0xff]
        %v364 = vld [vmem:[%s258 + $0x128] sm:$0xff]
        %v365 = vld [vmem:[%s258 + $0x130] sm:$0xff]
        %v366 = vld [vmem:[%s258 + $0x138] sm:$0xff]
        %v367 = vld [vmem:[%s258 + $0x140] sm:$0xff]
        %v368 = vld [vmem:[%s258 + $0x148] sm:$0xff]
        %v369 = vld [vmem:[%s258 + $0x150] sm:$0xff]
        %v370 = vld [vmem:[%s258 + $0x158] sm:$0xff]
        %v371 = vld [vmem:[%s258 + $0x160] sm:$0xff]
        %v372 = vld [vmem:[%s258 + $0x168] sm:$0xff]
        %v373 = vld [vmem:[%s258 + $0x170] sm:$0xff]
        %v374 = vld [vmem:[%s258 + $0x178] sm:$0xff]
        %v375 = vld [vmem:[%s258 + $0x180] sm:$0xff]
        %v376 = vld [vmem:[%s258 + $0x188] sm:$0xff]
        %v377 = vld [vmem:[%s258 + $0x190] sm:$0xff]
        %v378 = vld [vmem:[%s258 + $0x198] sm:$0xff]
        %v379 = vld [vmem:[%s258 + $0x1a0] sm:$0xff]
        %v380 = vld [vmem:[%s258 + $0x1a8] sm:$0xff]
        %v381 = vld [vmem:[%s258 + $0x1b0] sm:$0xff]
        %v382 = vld [vmem:[%s258 + $0x1b8] sm:$0xff]
        %v383 = vld [vmem:[%s258 + $0x1c0] sm:$0xff]
        %v384 = vld [vmem:[%s258 + $0x1c8] sm:$0xff]
        %v385 = vld [vmem:[%s258 + $0x1d0] sm:$0xff]
        %v386 = vld [vmem:[%s258 + $0x1d8] sm:$0xff]
        %v387 = vld [vmem:[%s258 + $0x1e0] sm:$0xff]
        %v388 = vld [vmem:[%s258 + $0x1e8] sm:$0xff]
        %v389 = vld [vmem:[%s258 + $0x1f0] sm:$0xff]
        %v390 = vld [vmem:[%s258 + $0x1f8] sm:$0xff]
        %v391 = vld [vmem:[%s258 + $0x200] sm:$0xff]
        %v392 = vld [vmem:[%s258 + $0x208] sm:$0xff]
        %v393 = vld [vmem:[%s258 + $0x210] sm:$0xff]
        %v394 = vld [vmem:[%s258 + $0x218] sm:$0xff]
        %v395 = vld [vmem:[%s258 + $0x220] sm:$0xff]
        %v396 = vld [vmem:[%s258 + $0x228] sm:$0xff]
        %v397 = vld [vmem:[%s258 + $0x230] sm:$0xff]
        %v398 = vld [vmem:[%s258 + $0x238] sm:$0xff]
        %v399 = vld [vmem:[%s258 + $0x240] sm:$0xff]
        %v400 = vld [vmem:[%s258 + $0x248] sm:$0xff]
        %v401 = vld [vmem:[%s258 + $0x250] sm:$0xff]
        %v402 = vld [vmem:[%s258 + $0x258] sm:$0xff]
        %v403 = vld [vmem:[%s258 + $0x260] sm:$0xff]
        %v404 = vld [vmem:[%s258 + $0x268] sm:$0xff]
        %v405 = vld [vmem:[%s258 + $0x270] sm:$0xff]
        %v406 = vld [vmem:[%s258 + $0x278] sm:$0xff]
        %v407 = vld [vmem:[%s258 + $0x280] sm:$0xff]
        %v408 = vld [vmem:[%s258 + $0x288] sm:$0xff]
        %v409 = vld [vmem:[%s258 + $0x290] sm:$0xff]
        %v410 = vld [vmem:[%s258 + $0x298] sm:$0xff]
        %v411 = vld [vmem:[%s258 + $0x2a0] sm:$0xff]
        %v412 = vld [vmem:[%s258 + $0x2a8] sm:$0xff]
        %v413 = vld [vmem:[%s258 + $0x2b0] sm:$0xff]
        %v414 = vld [vmem:[%s258 + $0x2b8] sm:$0xff]
        %v415 = vld [vmem:[%s258 + $0x2c0] sm:$0xff]
        %v416 = vld [vmem:[%s258 + $0x2c8] sm:$0xff]
        %v417 = vld [vmem:[%s258 + $0x2d0] sm:$0xff]
        %v418 = vld [vmem:[%s258 + $0x2d8] sm:$0xff]
        %v419 = vld [vmem:[%s258 + $0x2e0] sm:$0xff]
        %v420 = vld [vmem:[%s258 + $0x2e8] sm:$0xff]
        %v421 = vld [vmem:[%s258 + $0x2f0] sm:$0xff]
        %v422 = vld [vmem:[%s258 + $0x2f8] sm:$0xff]
        %v423 = vld [vmem:[%s258 + $0x300] sm:$0xff]
        %v424 = vld [vmem:[%s258 + $0x308] sm:$0xff]
        %v425 = vld [vmem:[%s258 + $0x310] sm:$0xff]
        %v426 = vld [vmem:[%s258 + $0x318] sm:$0xff]
        %v427 = vld [vmem:[%s258 + $0x320] sm:$0xff]
        %v428 = vld [vmem:[%s258 + $0x328] sm:$0xff]
        %v429 = vld [vmem:[%s258 + $0x330] sm:$0xff]
        %v430 = vld [vmem:[%s258 + $0x338] sm:$0xff]
        %v431 = vld [vmem:[%s258 + $0x340] sm:$0xff]
        %v432 = vld [vmem:[%s258 + $0x348] sm:$0xff]
        %v433 = vld [vmem:[%s258 + $0x350] sm:$0xff]
        %v434 = vld [vmem:[%s258 + $0x358] sm:$0xff]
        %v435 = vld [vmem:[%s258 + $0x360] sm:$0xff]
        %v436 = vld [vmem:[%s258 + $0x368] sm:$0xff]
        %v437 = vld [vmem:[%s258 + $0x370] sm:$0xff]
        %v438 = vld [vmem:[%s258 + $0x378] sm:$0xff]
        %v439 = vld [vmem:[%s258 + $0x380] sm:$0xff]
        %v440 = vld [vmem:[%s258 + $0x388] sm:$0xff]
        %v441 = vld [vmem:[%s258 + $0x390] sm:$0xff]
        %v442 = vld [vmem:[%s258 + $0x398] sm:$0xff]
        %v443 = vld [vmem:[%s258 + $0x3a0] sm:$0xff]
        %v444 = vld [vmem:[%s258 + $0x3a8] sm:$0xff]
        %v445 = vld [vmem:[%s258 + $0x3b0] sm:$0xff]
        %v446 = vld [vmem:[%s258 + $0x3b8] sm:$0xff]
        %v447 = vld [vmem:[%s258 + $0x3c0] sm:$0xff]
        %v448 = vld [vmem:[%s258 + $0x3c8] sm:$0xff]
        %v449 = vld [vmem:[%s258 + $0x3d0] sm:$0xff]
        %v450 = vld [vmem:[%s258 + $0x3d8] sm:$0xff]
        %v451 = vld [vmem:[%s258 + $0x3e0] sm:$0xff]
        %v452 = vld [vmem:[%s258 + $0x3e8] sm:$0xff]
        %v453 = vld [vmem:[%s258 + $0x3f0] sm:$0xff]
        %v454 = vld [vmem:[%s258 + $0x3f8] sm:$0xff]
        %v455 = vld [vmem:[%s258 + $0x400] sm:$0xff]
        %v456 = vld [vmem:[%s258 + $0x408] sm:$0xff]
        %v457 = vld [vmem:[%s258 + $0x410] sm:$0xff]
        %v458 = vld [vmem:[%s258 + $0x418] sm:$0xff]
        %v459 = vld [vmem:[%s258 + $0x420] sm:$0xff]
        %v460 = vld [vmem:[%s258 + $0x428] sm:$0xff]
        %v461 = vld [vmem:[%s258 + $0x430] sm:$0xff]
        %v462 = vld [vmem:[%s258 + $0x438] sm:$0xff]
        %v463 = vld [vmem:[%s258 + $0x440] sm:$0xff]
        %v464 = vld [vmem:[%s258 + $0x448] sm:$0xff]
        %v465 = vld [vmem:[%s258 + $0x450] sm:$0xff]
        %v466 = vld [vmem:[%s258 + $0x458] sm:$0xff]
        %v467 = vld [vmem:[%s258 + $0x460] sm:$0xff]
        %v468 = vld [vmem:[%s258 + $0x468] sm:$0xff]
        %v469 = vld [vmem:[%s258 + $0x470] sm:$0xff]
        %v470 = vld [vmem:[%s258 + $0x478] sm:$0xff]
        %v471 = vld [vmem:[%s258 + $0x480] sm:$0xff]
        %v472 = vld [vmem:[%s258 + $0x488] sm:$0xff]
        %v473 = vld [vmem:[%s258 + $0x490] sm:$0xff]
        %v474 = vld [vmem:[%s258 + $0x498] sm:$0xff]
        %v475 = vld [vmem:[%s258 + $0x4a0] sm:$0xff]
        %v476 = vld [vmem:[%s258 + $0x4a8] sm:$0xff]
        %v477 = vld [vmem:[#allocation7] sm:$0xff]
        %v478 = vld [vmem:[#allocation7 + $0x8] sm:$0xff]
        %v479 = vld [vmem:[#allocation7 + $0x10] sm:$0xff]
        %v480 = vld [vmem:[#allocation7 + $0x18] sm:$0xff]
        %v481 = vld [vmem:[#allocation7 + $0x20] sm:$0xff]
        %v482 = vld [vmem:[#allocation7 + $0x28] sm:$0xff]
        %v483 = vld [vmem:[#allocation7 + $0x30] sm:$0xff]
        %v484 = vld [vmem:[#allocation7 + $0x38] sm:$0xff]
        %v485 = vld [vmem:[#allocation7 + $0x40] sm:$0xff]
        %v486 = vld [vmem:[#allocation7 + $0x48] sm:$0xff]
        %v487 = vld [vmem:[#allocation7 + $0x50] sm:$0xff]
        %v488 = vld [vmem:[#allocation7 + $0x58] sm:$0xff]
        %v489 = vld [vmem:[#allocation7 + $0x60] sm:$0xff]
        %v490 = vld [vmem:[#allocation7 + $0x68] sm:$0xff]
        %v491 = vld [vmem:[#allocation7 + $0x70] sm:$0xff]
        %v492 = vld [vmem:[#allocation7 + $0x78] sm:$0xff]
        %v493 = vld [vmem:[#allocation7 + $0x80] sm:$0xff]
        %v494 = vld [vmem:[#allocation7 + $0x88] sm:$0xff]
        %v495 = vld [vmem:[#allocation7 + $0x90] sm:$0xff]
        %v496 = vld [vmem:[#allocation7 + $0x98] sm:$0xff]
        %v497 = vld [vmem:[#allocation7 + $0xa0] sm:$0xff]
        %v498 = vld [vmem:[#allocation7 + $0xa8] sm:$0xff]
        %v499 = vld [vmem:[#allocation7 + $0xb0] sm:$0xff]
        %v500 = vld [vmem:[#allocation7 + $0xb8] sm:$0xff]
        %v501 = vld [vmem:[#allocation7 + $0xc0] sm:$0xff]
        %v502 = vld [vmem:[#allocation7 + $0xc8] sm:$0xff]
        %v503 = vld [vmem:[#allocation7 + $0xd0] sm:$0xff]
        %v504 = vld [vmem:[#allocation7 + $0xd8] sm:$0xff]
        %v505 = vld [vmem:[#allocation7 + $0xe0] sm:$0xff]
        %v506 = vld [vmem:[#allocation7 + $0xe8] sm:$0xff]
        %v507 = vld [vmem:[#allocation7 + $0xf0] sm:$0xff]
        %v508 = vld [vmem:[#allocation7 + $0xf8] sm:$0xff]
        %v509 = vld [vmem:[#allocation7 + $0x100] sm:$0xff]
        %v510 = vld [vmem:[#allocation7 + $0x108] sm:$0xff]
        %v511 = vld [vmem:[#allocation7 + $0x110] sm:$0xff]
        %v512 = vld [vmem:[#allocation7 + $0x118] sm:$0xff]
        %v513 = vld [vmem:[#allocation7 + $0x120] sm:$0xff]
        %v514 = vld [vmem:[#allocation7 + $0x128] sm:$0xff]
        %v515 = vld [vmem:[#allocation7 + $0x130] sm:$0xff]
        %v516 = vld [vmem:[#allocation7 + $0x138] sm:$0xff]
        %v517 = vld [vmem:[#allocation7 + $0x140] sm:$0xff]
        %v518 = vld [vmem:[#allocation7 + $0x148] sm:$0xff]
        %v519 = vld [vmem:[#allocation7 + $0x150] sm:$0xff]
        %v520 = vld [vmem:[#allocation7 + $0x158] sm:$0xff]
        %v521 = vld [vmem:[#allocation7 + $0x160] sm:$0xff]
        %v522 = vld [vmem:[#allocation7 + $0x168] sm:$0xff]
        %v523 = vld [vmem:[#allocation7 + $0x170] sm:$0xff]
        %v524 = vld [vmem:[#allocation7 + $0x178] sm:$0xff]
        %v525 = vld [vmem:[#allocation7 + $0x180] sm:$0xff]
        %v526 = vld [vmem:[#allocation7 + $0x188] sm:$0xff]
        %v527 = vld [vmem:[#allocation7 + $0x190] sm:$0xff]
        %v528 = vld [vmem:[#allocation7 + $0x198] sm:$0xff]
        %v529 = vld [vmem:[#allocation7 + $0x1a0] sm:$0xff]
        %v530 = vld [vmem:[#allocation7 + $0x1a8] sm:$0xff]
        %v531 = vld [vmem:[#allocation7 + $0x1b0] sm:$0xff]
        %v532 = vld [vmem:[#allocation7 + $0x1b8] sm:$0xff]
        %v533 = vld [vmem:[#allocation7 + $0x1c0] sm:$0xff]
        %v534 = vld [vmem:[#allocation7 + $0x1c8] sm:$0xff]
        %v535 = vld [vmem:[#allocation7 + $0x1d0] sm:$0xff]
        %v536 = vld [vmem:[#allocation7 + $0x1d8] sm:$0xff]
        %v537 = vld [vmem:[#allocation7 + $0x1e0] sm:$0xff]
        %v538 = vld [vmem:[#allocation7 + $0x1e8] sm:$0xff]
        %v539 = vld [vmem:[#allocation7 + $0x1f0] sm:$0xff]
        %v540 = vld [vmem:[#allocation7 + $0x1f8] sm:$0xff]
        %v541 = vld [vmem:[#allocation7 + $0x200] sm:$0xff]
        %v542 = vld [vmem:[#allocation7 + $0x208] sm:$0xff]
        %v543 = vld [vmem:[#allocation7 + $0x210] sm:$0xff]
        %v544 = vld [vmem:[#allocation7 + $0x218] sm:$0xff]
        %v545 = vld [vmem:[#allocation7 + $0x220] sm:$0xff]
        %v546 = vld [vmem:[#allocation7 + $0x228] sm:$0xff]
        %v547 = vld [vmem:[#allocation7 + $0x230] sm:$0xff]
        %v548 = vld [vmem:[#allocation7 + $0x238] sm:$0xff]
        %v549 = vld [vmem:[#allocation7 + $0x240] sm:$0xff]
        %v550 = vld [vmem:[#allocation7 + $0x248] sm:$0xff]
        %v551 = vld [vmem:[#allocation7 + $0x250] sm:$0xff]
        %v552 = vld [vmem:[#allocation7 + $0x258] sm:$0xff]
        %v553 = vld [vmem:[#allocation7 + $0x260] sm:$0xff]
        %v554 = vld [vmem:[#allocation7 + $0x268] sm:$0xff]
        %v555 = vld [vmem:[#allocation7 + $0x270] sm:$0xff]
        %v556 = vld [vmem:[#allocation7 + $0x278] sm:$0xff]
        %v557 = vld [vmem:[#allocation7 + $0x280] sm:$0xff]
        %v558 = vld [vmem:[#allocation7 + $0x288] sm:$0xff]
        %v559 = vld [vmem:[#allocation7 + $0x290] sm:$0xff]
        %v560 = vld [vmem:[#allocation7 + $0x298] sm:$0xff]
        %v561 = vld [vmem:[#allocation7 + $0x2a0] sm:$0xff]
        %v562 = vld [vmem:[#allocation7 + $0x2a8] sm:$0xff]
        %v563 = vld [vmem:[#allocation7 + $0x2b0] sm:$0xff]
        %v564 = vld [vmem:[#allocation7 + $0x2b8] sm:$0xff]
        %v565 = vld [vmem:[#allocation7 + $0x2c0] sm:$0xff]
        %v566 = vld [vmem:[#allocation7 + $0x2c8] sm:$0xff]
        %v567 = vld [vmem:[#allocation7 + $0x2d0] sm:$0xff]
        %v568 = vld [vmem:[#allocation7 + $0x2d8] sm:$0xff]
        %v569 = vld [vmem:[#allocation7 + $0x2e0] sm:$0xff]
        %v570 = vld [vmem:[#allocation7 + $0x2e8] sm:$0xff]
        %v571 = vld [vmem:[#allocation7 + $0x2f0] sm:$0xff]
        %v572 = vld [vmem:[#allocation7 + $0x2f8] sm:$0xff]
        %v573 = vld [vmem:[#allocation7 + $0x300] sm:$0xff]
        %v574 = vld [vmem:[#allocation7 + $0x308] sm:$0xff]
        %v575 = vld [vmem:[#allocation7 + $0x310] sm:$0xff]
        %v576 = vld [vmem:[#allocation7 + $0x318] sm:$0xff]
        %v577 = vld [vmem:[#allocation7 + $0x320] sm:$0xff]
        %v578 = vld [vmem:[#allocation7 + $0x328] sm:$0xff]
        %v579 = vld [vmem:[#allocation7 + $0x330] sm:$0xff]
        %v580 = vld [vmem:[#allocation7 + $0x338] sm:$0xff]
        %v581 = vld [vmem:[#allocation7 + $0x340] sm:$0xff]
        %v582 = vld [vmem:[#allocation7 + $0x348] sm:$0xff]
        %v583 = vld [vmem:[#allocation7 + $0x350] sm:$0xff]
        %v584 = vld [vmem:[#allocation7 + $0x358] sm:$0xff]
        %v585 = vld [vmem:[#allocation7 + $0x360] sm:$0xff]
        %v586 = vld [vmem:[#allocation7 + $0x368] sm:$0xff]
        %v587 = vld [vmem:[#allocation7 + $0x370] sm:$0xff]
        %v588 = vld [vmem:[#allocation7 + $0x378] sm:$0xff]
        %v589 = vld [vmem:[#allocation7 + $0x380] sm:$0xff]
        %v590 = vld [vmem:[#allocation7 + $0x388] sm:$0xff]
        %v591 = vld [vmem:[#allocation7 + $0x390] sm:$0xff]
        %v592 = vld [vmem:[#allocation7 + $0x398] sm:$0xff]
        %v593 = vld [vmem:[#allocation7 + $0x3a0] sm:$0xff]
        %v594 = vld [vmem:[#allocation7 + $0x3a8] sm:$0xff]
        %v595 = vld [vmem:[#allocation7 + $0x3b0] sm:$0xff]
        %v596 = vld [vmem:[#allocation7 + $0x3b8] sm:$0xff]
        %v597 = vld [vmem:[#allocation7 + $0x3c0] sm:$0xff]
        %v598 = vld [vmem:[#allocation7 + $0x3c8] sm:$0xff]
        %v599 = vld [vmem:[#allocation7 + $0x3d0] sm:$0xff]
        %v600 = vld [vmem:[#allocation7 + $0x3d8] sm:$0xff]
        %v601 = vld [vmem:[#allocation7 + $0x3e0] sm:$0xff]
        %v602 = vld [vmem:[#allocation7 + $0x3e8] sm:$0xff]
        %v603 = vld [vmem:[#allocation7 + $0x3f0] sm:$0xff]
        %v604 = vld [vmem:[#allocation7 + $0x3f8] sm:$0xff]
        %v605 = vld [vmem:[#allocation7 + $0x400] sm:$0xff]
        %v606 = vld [vmem:[#allocation7 + $0x408] sm:$0xff]
        %v607 = vld [vmem:[#allocation7 + $0x410] sm:$0xff]
        %v608 = vld [vmem:[#allocation7 + $0x418] sm:$0xff]
        %v609 = vld [vmem:[#allocation7 + $0x420] sm:$0xff]
        %v610 = vld [vmem:[#allocation7 + $0x428] sm:$0xff]
        %v611 = vld [vmem:[#allocation7 + $0x430] sm:$0xff]
        %v612 = vld [vmem:[#allocation7 + $0x438] sm:$0xff]
        %v613 = vld [vmem:[#allocation7 + $0x440] sm:$0xff]
        %v614 = vld [vmem:[#allocation7 + $0x448] sm:$0xff]
        %v615 = vld [vmem:[#allocation7 + $0x450] sm:$0xff]
        %v616 = vld [vmem:[#allocation7 + $0x458] sm:$0xff]
        %v617 = vld [vmem:[#allocation7 + $0x460] sm:$0xff]
        %v618 = vld [vmem:[#allocation7 + $0x468] sm:$0xff]
        %v619 = vld [vmem:[#allocation7 + $0x470] sm:$0xff]
        %v620 = vld [vmem:[#allocation7 + $0x478] sm:$0xff]
        %v621 = vld [vmem:[#allocation7 + $0x480] sm:$0xff]
        %v622 = vld [vmem:[#allocation7 + $0x488] sm:$0xff]
        %v623 = vld [vmem:[#allocation7 + $0x490] sm:$0xff]
        %v624 = vld [vmem:[#allocation7 + $0x498] sm:$0xff]
        %v625 = vld [vmem:[#allocation7 + $0x4a0] sm:$0xff]
        %v626 = vld [vmem:[#allocation7 + $0x4a8] sm:$0xff]
        %v627 = vld [vmem:[#allocation7 + $0x4b0] sm:$0xff]
        %v628 = vld [vmem:[#allocation7 + $0x4b8] sm:$0xff]
        %v629 = vld [vmem:[#allocation7 + $0x4c0] sm:$0xff]
        %v630 = vld [vmem:[#allocation7 + $0x4c8] sm:$0xff]
        %v631 = vld [vmem:[#allocation7 + $0x4d0] sm:$0xff]
        %v632 = vld [vmem:[#allocation7 + $0x4d8] sm:$0xff]
        %v633 = vld [vmem:[#allocation7 + $0x4e0] sm:$0xff]
        %v634 = vld [vmem:[#allocation7 + $0x4e8] sm:$0xff]
        %v635 = vld [vmem:[#allocation7 + $0x4f0] sm:$0xff]
        %v636 = vld [vmem:[#allocation7 + $0x4f8] sm:$0xff]
        %v637 = vld [vmem:[#allocation7 + $0x500] sm:$0xff]
        %v638 = vld [vmem:[#allocation7 + $0x508] sm:$0xff]
        %v639 = vld [vmem:[#allocation7 + $0x510] sm:$0xff]
        %v640 = vld [vmem:[#allocation7 + $0x518] sm:$0xff]
        %v641 = vld [vmem:[#allocation7 + $0x520] sm:$0xff]
        %v642 = vld [vmem:[#allocation7 + $0x528] sm:$0xff]
        %v643 = vld [vmem:[#allocation7 + $0x530] sm:$0xff]
        %v644 = vld [vmem:[#allocation7 + $0x538] sm:$0xff]
        %v645 = vld [vmem:[#allocation7 + $0x540] sm:$0xff]
        %v646 = vld [vmem:[#allocation7 + $0x548] sm:$0xff]
        %v647 = vld [vmem:[#allocation7 + $0x550] sm:$0xff]
        %v648 = vld [vmem:[#allocation7 + $0x558] sm:$0xff]
        %v649 = vld [vmem:[#allocation7 + $0x560] sm:$0xff]
        %v650 = vld [vmem:[#allocation7 + $0x568] sm:$0xff]
        %v651 = vld [vmem:[#allocation7 + $0x570] sm:$0xff]
        %v652 = vld [vmem:[#allocation7 + $0x578] sm:$0xff]
        %v653 = vld [vmem:[#allocation7 + $0x580] sm:$0xff]
        %v654 = vld [vmem:[#allocation7 + $0x588] sm:$0xff]
        %v655 = vld [vmem:[#allocation7 + $0x590] sm:$0xff]
        %v656 = vld [vmem:[#allocation7 + $0x598] sm:$0xff]
        %v657 = vld [vmem:[#allocation7 + $0x5a0] sm:$0xff]
        %v658 = vld [vmem:[#allocation7 + $0x5a8] sm:$0xff]
        %v659 = vld [vmem:[#allocation7 + $0x5b0] sm:$0xff]
        %v660 = vld [vmem:[#allocation7 + $0x5b8] sm:$0xff]
        %v661 = vld [vmem:[#allocation7 + $0x5c0] sm:$0xff]
        %v662 = vld [vmem:[#allocation7 + $0x5c8] sm:$0xff]
        %v663 = vld [vmem:[#allocation7 + $0x5d0] sm:$0xff]
        %v664 = vld [vmem:[#allocation7 + $0x5d8] sm:$0xff]
        %v665 = vld [vmem:[#allocation7 + $0x5e0] sm:$0xff]
        %v666 = vld [vmem:[#allocation7 + $0x5e8] sm:$0xff]
        %v667 = vld [vmem:[#allocation7 + $0x5f0] sm:$0xff]
        %v668 = vld [vmem:[#allocation7 + $0x5f8] sm:$0xff]
        %v669 = vld [vmem:[#allocation7 + $0x600] sm:$0xff]
        %v670 = vld [vmem:[#allocation7 + $0x608] sm:$0xff]
        %v671 = vld [vmem:[#allocation7 + $0x610] sm:$0xff]
        %v672 = vld [vmem:[#allocation7 + $0x618] sm:$0xff]
        %v673 = vld [vmem:[#allocation7 + $0x620] sm:$0xff]
        %v674 = vld [vmem:[#allocation7 + $0x628] sm:$0xff]
        %v675 = vld [vmem:[#allocation7 + $0x630] sm:$0xff]
        %v676 = vld [vmem:[#allocation7 + $0x638] sm:$0xff]
        %v677 = vld [vmem:[#allocation7 + $0x640] sm:$0xff]
        %v678 = vld [vmem:[#allocation7 + $0x648] sm:$0xff]
        %v679 = vld [vmem:[#allocation7 + $0x650] sm:$0xff]
        %v680 = vld [vmem:[#allocation7 + $0x658] sm:$0xff]
        %v681 = vld [vmem:[#allocation7 + $0x660] sm:$0xff]
        %v682 = vld [vmem:[#allocation7 + $0x668] sm:$0xff]
        %v683 = vld [vmem:[#allocation7 + $0x670] sm:$0xff]
        %v684 = vld [vmem:[#allocation7 + $0x678] sm:$0xff]
        %v685 = vld [vmem:[#allocation7 + $0x680] sm:$0xff]
        %v686 = vld [vmem:[#allocation7 + $0x688] sm:$0xff]
        %v687 = vld [vmem:[#allocation7 + $0x690] sm:$0xff]
        %v688 = vld [vmem:[#allocation7 + $0x698] sm:$0xff]
        %v689 = vld [vmem:[#allocation7 + $0x6a0] sm:$0xff]
        %v690 = vld [vmem:[#allocation7 + $0x6a8] sm:$0xff]
        %v691 = vld [vmem:[#allocation7 + $0x6b0] sm:$0xff]
        %v692 = vld [vmem:[#allocation7 + $0x6b8] sm:$0xff]
        %v693 = vld [vmem:[#allocation7 + $0x6c0] sm:$0xff]
        %v694 = vld [vmem:[#allocation7 + $0x6c8] sm:$0xff]
        %v695 = vld [vmem:[#allocation7 + $0x6d0] sm:$0xff]
        %v696 = vld [vmem:[#allocation7 + $0x6d8] sm:$0xff]
        %v697 = vld [vmem:[#allocation7 + $0x6e0] sm:$0xff]
        %v698 = vld [vmem:[#allocation7 + $0x6e8] sm:$0xff]
        %v699 = vld [vmem:[#allocation7 + $0x6f0] sm:$0xff]
        %v700 = vld [vmem:[#allocation7 + $0x6f8] sm:$0xff]
        %v701 = vld [vmem:[#allocation7 + $0x700] sm:$0xff]
        %v702 = vld [vmem:[#allocation7 + $0x708] sm:$0xff]
        %v703 = vld [vmem:[#allocation7 + $0x710] sm:$0xff]
        %v704 = vld [vmem:[#allocation7 + $0x718] sm:$0xff]
        %v705 = vld [vmem:[#allocation7 + $0x720] sm:$0xff]
        %v706 = vld [vmem:[#allocation7 + $0x728] sm:$0xff]
        %v707 = vld [vmem:[#allocation7 + $0x730] sm:$0xff]
        %v708 = vld [vmem:[#allocation7 + $0x738] sm:$0xff]
        %v709 = vld [vmem:[#allocation7 + $0x740] sm:$0xff]
        %v710 = vld [vmem:[#allocation7 + $0x748] sm:$0xff]
        %v711 = vld [vmem:[#allocation7 + $0x750] sm:$0xff]
        %v712 = vld [vmem:[#allocation7 + $0x758] sm:$0xff]
        %v713 = vld [vmem:[#allocation7 + $0x760] sm:$0xff]
        %v714 = vld [vmem:[#allocation7 + $0x768] sm:$0xff]
        %v715 = vld [vmem:[#allocation7 + $0x770] sm:$0xff]
        %v716 = vld [vmem:[#allocation7 + $0x778] sm:$0xff]
        %v717 = vld [vmem:[#allocation7 + $0x780] sm:$0xff]
        %v718 = vld [vmem:[#allocation7 + $0x788] sm:$0xff]
        %v719 = vld [vmem:[#allocation7 + $0x790] sm:$0xff]
        %v720 = vld [vmem:[#allocation7 + $0x798] sm:$0xff]
        %v721 = vld [vmem:[#allocation7 + $0x7a0] sm:$0xff]
        %v722 = vld [vmem:[#allocation7 + $0x7a8] sm:$0xff]
        %v723 = vld [vmem:[#allocation7 + $0x7b0] sm:$0xff]
        %v724 = vld [vmem:[#allocation7 + $0x7b8] sm:$0xff]
        %v725 = vld [vmem:[#allocation7 + $0x7c0] sm:$0xff]
        %v726 = vld [vmem:[#allocation7 + $0x7c8] sm:$0xff]
        %v727 = vld [vmem:[#allocation7 + $0x7d0] sm:$0xff]
        %v728 = vld [vmem:[#allocation7 + $0x7d8] sm:$0xff]
        %v729 = vld [vmem:[#allocation7 + $0x7e0] sm:$0xff]
        %v730 = vld [vmem:[#allocation7 + $0x7e8] sm:$0xff]
        %v731 = vld [vmem:[#allocation7 + $0x7f0] sm:$0xff]
        %v732 = vld [vmem:[#allocation7 + $0x7f8] sm:$0xff]
        %v733 = vld [vmem:[#allocation7 + $0x800] sm:$0xff]
        %v734 = vld [vmem:[#allocation7 + $0x808] sm:$0xff]
        %v735 = vld [vmem:[#allocation7 + $0x810] sm:$0xff]
        %v736 = vld [vmem:[#allocation7 + $0x818] sm:$0xff]
        %v737 = vld [vmem:[#allocation7 + $0x820] sm:$0xff]
        %v738 = vld [vmem:[#allocation7 + $0x828] sm:$0xff]
        %v739 = vld [vmem:[#allocation7 + $0x830] sm:$0xff]
        %v740 = vld [vmem:[#allocation7 + $0x838] sm:$0xff]
        %v741 = vld [vmem:[#allocation7 + $0x840] sm:$0xff]
        %v742 = vld [vmem:[#allocation7 + $0x848] sm:$0xff]
        %v743 = vld [vmem:[#allocation7 + $0x850] sm:$0xff]
        %v744 = vld [vmem:[#allocation7 + $0x858] sm:$0xff]
        %v745 = vld [vmem:[#allocation7 + $0x860] sm:$0xff]
        %v746 = vld [vmem:[#allocation7 + $0x868] sm:$0xff]
        %v747 = vld [vmem:[#allocation7 + $0x870] sm:$0xff]
        %v748 = vld [vmem:[#allocation7 + $0x878] sm:$0xff]
        %v749 = vld [vmem:[#allocation7 + $0x880] sm:$0xff]
        %v750 = vld [vmem:[#allocation7 + $0x888] sm:$0xff]
        %v751 = vld [vmem:[#allocation7 + $0x890] sm:$0xff]
        %v752 = vld [vmem:[#allocation7 + $0x898] sm:$0xff]
        %v753 = vld [vmem:[#allocation7 + $0x8a0] sm:$0xff]
        %v754 = vld [vmem:[#allocation7 + $0x8a8] sm:$0xff]
        %v755 = vld [vmem:[#allocation7 + $0x8b0] sm:$0xff]
        %v756 = vld [vmem:[#allocation7 + $0x8b8] sm:$0xff]
        %v757 = vld [vmem:[#allocation7 + $0x8c0] sm:$0xff]
        %v758 = vld [vmem:[#allocation7 + $0x8c8] sm:$0xff]
        %v759 = vld [vmem:[#allocation7 + $0x8d0] sm:$0xff]
        %v760 = vld [vmem:[#allocation7 + $0x8d8] sm:$0xff]
        %v761 = vld [vmem:[#allocation7 + $0x8e0] sm:$0xff]
        %v762 = vld [vmem:[#allocation7 + $0x8e8] sm:$0xff]
        %v763 = vld [vmem:[#allocation7 + $0x8f0] sm:$0xff]
        %v764 = vld [vmem:[#allocation7 + $0x8f8] sm:$0xff]
        %v765 = vld [vmem:[#allocation7 + $0x900] sm:$0xff]
        %v766 = vld [vmem:[#allocation7 + $0x908] sm:$0xff]
        %v767 = vld [vmem:[#allocation7 + $0x910] sm:$0xff]
        %v768 = vld [vmem:[#allocation7 + $0x918] sm:$0xff]
        %v769 = vld [vmem:[#allocation7 + $0x920] sm:$0xff]
        %v770 = vld [vmem:[#allocation7 + $0x928] sm:$0xff]
        %v771 = vld [vmem:[#allocation7 + $0x930] sm:$0xff]
        %v772 = vld [vmem:[#allocation7 + $0x938] sm:$0xff]
        %v773 = vld [vmem:[#allocation7 + $0x940] sm:$0xff]
        %v774 = vld [vmem:[#allocation7 + $0x948] sm:$0xff]
        %v775 = vld [vmem:[#allocation7 + $0x950] sm:$0xff]
        %v776 = vld [vmem:[#allocation7 + $0x958] sm:$0xff]
        %v777 = vld [vmem:[#allocation7 + $0x960] sm:$0xff]
        %v778 = vld [vmem:[#allocation7 + $0x968] sm:$0xff]
        %v779 = vld [vmem:[#allocation7 + $0x970] sm:$0xff]
        %v780 = vld [vmem:[#allocation7 + $0x978] sm:$0xff]
        %v781 = vld [vmem:[#allocation7 + $0x980] sm:$0xff]
        %v782 = vld [vmem:[#allocation7 + $0x988] sm:$0xff]
        %v783 = vld [vmem:[#allocation7 + $0x990] sm:$0xff]
        %v784 = vld [vmem:[#allocation7 + $0x998] sm:$0xff]
        %v785 = vld [vmem:[#allocation7 + $0x9a0] sm:$0xff]
        %v786 = vld [vmem:[#allocation7 + $0x9a8] sm:$0xff]
        %v787 = vld [vmem:[#allocation7 + $0x9b0] sm:$0xff]
        %v788 = vld [vmem:[#allocation7 + $0x9b8] sm:$0xff]
        %v789 = vld [vmem:[#allocation7 + $0x9c0] sm:$0xff]
        %v790 = vld [vmem:[#allocation7 + $0x9c8] sm:$0xff]
        %v791 = vld [vmem:[#allocation7 + $0x9d0] sm:$0xff]
        %v792 = vld [vmem:[#allocation7 + $0x9d8] sm:$0xff]
        %v793 = vld [vmem:[#allocation7 + $0x9e0] sm:$0xff]
        %v794 = vld [vmem:[#allocation7 + $0x9e8] sm:$0xff]
        %v795 = vld [vmem:[#allocation7 + $0x9f0] sm:$0xff]
        %v796 = vld [vmem:[#allocation7 + $0x9f8] sm:$0xff]
        %v797 = vld [vmem:[#allocation7 + $0xa00] sm:$0xff]
        %v798 = vld [vmem:[#allocation7 + $0xa08] sm:$0xff]
        %v799 = vld [vmem:[#allocation7 + $0xa10] sm:$0xff]
        %v800 = vld [vmem:[#allocation7 + $0xa18] sm:$0xff]
        %v801 = vld [vmem:[#allocation7 + $0xa20] sm:$0xff]
        %v802 = vld [vmem:[#allocation7 + $0xa28] sm:$0xff]
        %v803 = vld [vmem:[#allocation7 + $0xa30] sm:$0xff]
        %v804 = vld [vmem:[#allocation7 + $0xa38] sm:$0xff]
        %v805 = vld [vmem:[#allocation7 + $0xa40] sm:$0xff]
        %v806 = vld [vmem:[#allocation7 + $0xa48] sm:$0xff]
        %v807 = vld [vmem:[#allocation7 + $0xa50] sm:$0xff]
        %v808 = vld [vmem:[#allocation7 + $0xa58] sm:$0xff]
        %v809 = vld [vmem:[#allocation7 + $0xa60] sm:$0xff]
        %v810 = vld [vmem:[#allocation7 + $0xa68] sm:$0xff]
        %v811 = vld [vmem:[#allocation7 + $0xa70] sm:$0xff]
        %v812 = vld [vmem:[#allocation7 + $0xa78] sm:$0xff]
        %v813 = vld [vmem:[#allocation7 + $0xa80] sm:$0xff]
        %v814 = vld [vmem:[#allocation7 + $0xa88] sm:$0xff]
        %v815 = vld [vmem:[#allocation7 + $0xa90] sm:$0xff]
        %v816 = vld [vmem:[#allocation7 + $0xa98] sm:$0xff]
        %v817 = vld [vmem:[#allocation7 + $0xaa0] sm:$0xff]
        %v818 = vld [vmem:[#allocation7 + $0xaa8] sm:$0xff]
        %v819 = vld [vmem:[#allocation7 + $0xab0] sm:$0xff]
        %v820 = vld [vmem:[#allocation7 + $0xab8] sm:$0xff]
        %v821 = vld [vmem:[#allocation7 + $0xac0] sm:$0xff]
        %v822 = vld [vmem:[#allocation7 + $0xac8] sm:$0xff]
        %v823 = vld [vmem:[#allocation7 + $0xad0] sm:$0xff]
        %v824 = vld [vmem:[#allocation7 + $0xad8] sm:$0xff]
        %v825 = vld [vmem:[#allocation7 + $0xae0] sm:$0xff]
        %v826 = vld [vmem:[#allocation7 + $0xae8] sm:$0xff]
        %v827 = vld [vmem:[#allocation7 + $0xaf0] sm:$0xff]
        %v828 = vld [vmem:[#allocation7 + $0xaf8] sm:$0xff]
        %v829 = vld [vmem:[#allocation7 + $0xb00] sm:$0xff]
        %v830 = vld [vmem:[#allocation7 + $0xb08] sm:$0xff]
        %v831 = vld [vmem:[#allocation7 + $0xb10] sm:$0xff]
        %v832 = vld [vmem:[#allocation7 + $0xb18] sm:$0xff]
        %v833 = vld [vmem:[#allocation7 + $0xb20] sm:$0xff]
        %v834 = vld [vmem:[#allocation7 + $0xb28] sm:$0xff]
        %v835 = vld [vmem:[#allocation7 + $0xb30] sm:$0xff]
        %v836 = vld [vmem:[#allocation7 + $0xb38] sm:$0xff]
        %v837 = vld [vmem:[#allocation7 + $0xb40] sm:$0xff]
        %v838 = vld [vmem:[#allocation7 + $0xb48] sm:$0xff]
        %v839 = vld [vmem:[#allocation7 + $0xb50] sm:$0xff]
        %v840 = vld [vmem:[#allocation7 + $0xb58] sm:$0xff]
        %v841 = vld [vmem:[#allocation7 + $0xb60] sm:$0xff]
        %v842 = vld [vmem:[#allocation7 + $0xb68] sm:$0xff]
        %v843 = vld [vmem:[#allocation7 + $0xb70] sm:$0xff]
        %v844 = vld [vmem:[#allocation7 + $0xb78] sm:$0xff]
        %v845 = vld [vmem:[#allocation7 + $0xb80] sm:$0xff]
        %v846 = vld [vmem:[#allocation7 + $0xb88] sm:$0xff]
        %v847 = vld [vmem:[#allocation7 + $0xb90] sm:$0xff]
        %v848 = vld [vmem:[#allocation7 + $0xb98] sm:$0xff]
        %v849 = vld [vmem:[#allocation7 + $0xba0] sm:$0xff]
        %v850 = vld [vmem:[#allocation7 + $0xba8] sm:$0xff]
        %v851 = vld [vmem:[#allocation7 + $0xbb0] sm:$0xff]
        %v852 = vld [vmem:[#allocation7 + $0xbb8] sm:$0xff]
        %v853 = vld [vmem:[#allocation7 + $0xbc0] sm:$0xff]
        %v854 = vld [vmem:[#allocation7 + $0xbc8] sm:$0xff]
        %v855 = vld [vmem:[#allocation7 + $0xbd0] sm:$0xff]
        %v856 = vld [vmem:[#allocation7 + $0xbd8] sm:$0xff]
        %v857 = vld [vmem:[#allocation7 + $0xbe0] sm:$0xff]
        %v858 = vld [vmem:[#allocation7 + $0xbe8] sm:$0xff]
        %v859 = vld [vmem:[#allocation7 + $0xbf0] sm:$0xff]
        %v860 = vld [vmem:[#allocation7 + $0xbf8] sm:$0xff]
        %v861 = vld [vmem:[#allocation7 + $0xc00] sm:$0xff]
        %v862 = vld [vmem:[#allocation7 + $0xc08] sm:$0xff]
        %v863 = vld [vmem:[#allocation7 + $0xc10] sm:$0xff]
        %v864 = vld [vmem:[#allocation7 + $0xc18] sm:$0xff]
        %v865 = vld [vmem:[#allocation7 + $0xc20] sm:$0xff]
        %v866 = vld [vmem:[#allocation7 + $0xc28] sm:$0xff]
        %v867 = vld [vmem:[#allocation7 + $0xc30] sm:$0xff]
        %v868 = vld [vmem:[#allocation7 + $0xc38] sm:$0xff]
        %v869 = vld [vmem:[#allocation7 + $0xc40] sm:$0xff]
        %v870 = vld [vmem:[#allocation7 + $0xc48] sm:$0xff]
        %v871 = vld [vmem:[#allocation7 + $0xc50] sm:$0xff]
        %v872 = vld [vmem:[#allocation7 + $0xc58] sm:$0xff]
        %v873 = vld [vmem:[#allocation7 + $0xc60] sm:$0xff]
        %v874 = vld [vmem:[#allocation7 + $0xc68] sm:$0xff]
        %v875 = vld [vmem:[#allocation7 + $0xc70] sm:$0xff]
        %v876 = vld [vmem:[#allocation7 + $0xc78] sm:$0xff]
        %v877 = vld [vmem:[#allocation7 + $0xc80] sm:$0xff]
        %v878 = vld [vmem:[#allocation7 + $0xc88] sm:$0xff]
        %v879 = vld [vmem:[#allocation7 + $0xc90] sm:$0xff]
        %v880 = vld [vmem:[#allocation7 + $0xc98] sm:$0xff]
        %v881 = vld [vmem:[#allocation7 + $0xca0] sm:$0xff]
        %v882 = vld [vmem:[#allocation7 + $0xca8] sm:$0xff]
        %v883 = vld [vmem:[#allocation7 + $0xcb0] sm:$0xff]
        %v884 = vld [vmem:[#allocation7 + $0xcb8] sm:$0xff]
        %v885 = vld [vmem:[#allocation7 + $0xcc0] sm:$0xff]
        %v886 = vld [vmem:[#allocation7 + $0xcc8] sm:$0xff]
        %v887 = vld [vmem:[#allocation7 + $0xcd0] sm:$0xff]
        %v888 = vld [vmem:[#allocation7 + $0xcd8] sm:$0xff]
        %v889 = vld [vmem:[#allocation7 + $0xce0] sm:$0xff]
        %v890 = vld [vmem:[#allocation7 + $0xce8] sm:$0xff]
        %v891 = vld [vmem:[#allocation7 + $0xcf0] sm:$0xff]
        %v892 = vld [vmem:[#allocation7 + $0xcf8] sm:$0xff]
        %v893 = vld [vmem:[#allocation7 + $0xd00] sm:$0xff]
        %v894 = vld [vmem:[#allocation7 + $0xd08] sm:$0xff]
        %v895 = vld [vmem:[#allocation7 + $0xd10] sm:$0xff]
        %v896 = vld [vmem:[#allocation7 + $0xd18] sm:$0xff]
        %v897 = vld [vmem:[#allocation7 + $0xd20] sm:$0xff]
        %v898 = vld [vmem:[#allocation7 + $0xd28] sm:$0xff]
        %v899 = vld [vmem:[#allocation7 + $0xd30] sm:$0xff]
        %v900 = vld [vmem:[#allocation7 + $0xd38] sm:$0xff]
        %v901 = vld [vmem:[#allocation7 + $0xd40] sm:$0xff]
        %v902 = vld [vmem:[#allocation7 + $0xd48] sm:$0xff]
        %v903 = vld [vmem:[#allocation7 + $0xd50] sm:$0xff]
        %v904 = vld [vmem:[#allocation7 + $0xd58] sm:$0xff]
        %v905 = vld [vmem:[#allocation7 + $0xd60] sm:$0xff]
        %v906 = vld [vmem:[#allocation7 + $0xd68] sm:$0xff]
        %v907 = vld [vmem:[#allocation7 + $0xd70] sm:$0xff]
        %v908 = vld [vmem:[#allocation7 + $0xd78] sm:$0xff]
        %v909 = vld [vmem:[#allocation7 + $0xd80] sm:$0xff]
        %v910 = vld [vmem:[#allocation7 + $0xd88] sm:$0xff]
        %v911 = vld [vmem:[#allocation7 + $0xd90] sm:$0xff]
        %v912 = vld [vmem:[#allocation7 + $0xd98] sm:$0xff]
        %v913 = vld [vmem:[#allocation7 + $0xda0] sm:$0xff]
        %v914 = vld [vmem:[#allocation7 + $0xda8] sm:$0xff]
        %v915 = vld [vmem:[#allocation7 + $0xdb0] sm:$0xff]
        %v916 = vld [vmem:[#allocation7 + $0xdb8] sm:$0xff]
        %v917 = vld [vmem:[#allocation7 + $0xdc0] sm:$0xff]
        %v918 = vld [vmem:[#allocation7 + $0xdc8] sm:$0xff]
        %v919 = vld [vmem:[#allocation7 + $0xdd0] sm:$0xff]
        %v920 = vld [vmem:[#allocation7 + $0xdd8] sm:$0xff]
        %v921 = vld [vmem:[#allocation7 + $0xde0] sm:$0xff]
        %v922 = vld [vmem:[#allocation7 + $0xde8] sm:$0xff]
        %v923 = vld [vmem:[#allocation7 + $0xdf0] sm:$0xff]
        %v924 = vld [vmem:[#allocation7 + $0xdf8] sm:$0xff]
        %v925 = vld [vmem:[#allocation7 + $0xe00] sm:$0xff]
        %v926 = vld [vmem:[#allocation7 + $0xe08] sm:$0xff]
        %v927 = vld [vmem:[#allocation7 + $0xe10] sm:$0xff]
        %v928 = vld [vmem:[#allocation7 + $0xe18] sm:$0xff]
        %v929 = vld [vmem:[#allocation7 + $0xe20] sm:$0xff]
        %v930 = vld [vmem:[#allocation7 + $0xe28] sm:$0xff]
        %v931 = vld [vmem:[#allocation7 + $0xe30] sm:$0xff]
        %v932 = vld [vmem:[#allocation7 + $0xe38] sm:$0xff]
        %v933 = vld [vmem:[#allocation7 + $0xe40] sm:$0xff]
        %v934 = vld [vmem:[#allocation7 + $0xe48] sm:$0xff]
        %v935 = vld [vmem:[#allocation7 + $0xe50] sm:$0xff]
        %v936 = vld [vmem:[#allocation7 + $0xe58] sm:$0xff]
        %v937 = vld [vmem:[#allocation7 + $0xe60] sm:$0xff]
        %v938 = vld [vmem:[#allocation7 + $0xe68] sm:$0xff]
        %v939 = vld [vmem:[#allocation7 + $0xe70] sm:$0xff]
        %v940 = vld [vmem:[#allocation7 + $0xe78] sm:$0xff]
        %v941 = vld [vmem:[#allocation7 + $0xe80] sm:$0xff]
        %v942 = vld [vmem:[#allocation7 + $0xe88] sm:$0xff]
        %v943 = vld [vmem:[#allocation7 + $0xe90] sm:$0xff]
        %v944 = vld [vmem:[#allocation7 + $0xe98] sm:$0xff]
        %v945 = vld [vmem:[#allocation7 + $0xea0] sm:$0xff]
        %v946 = vld [vmem:[#allocation7 + $0xea8] sm:$0xff]
        %v947 = vld [vmem:[#allocation7 + $0xeb0] sm:$0xff]
        %v948 = vld [vmem:[#allocation7 + $0xeb8] sm:$0xff]
        %v949 = vld [vmem:[#allocation7 + $0xec0] sm:$0xff]
        %v950 = vld [vmem:[#allocation7 + $0xec8] sm:$0xff]
        %v951 = vld [vmem:[#allocation7 + $0xed0] sm:$0xff]
        %v952 = vld [vmem:[#allocation7 + $0xed8] sm:$0xff]
        %v953 = vld [vmem:[#allocation7 + $0xee0] sm:$0xff]
        %v954 = vld [vmem:[#allocation7 + $0xee8] sm:$0xff]
        %v955 = vld [vmem:[#allocation7 + $0xef0] sm:$0xff]
        %v956 = vld [vmem:[#allocation7 + $0xef8] sm:$0xff]
        %v957 = vld [vmem:[#allocation7 + $0xf00] sm:$0xff]
        %v958 = vld [vmem:[#allocation7 + $0xf08] sm:$0xff]
        %v959 = vld [vmem:[#allocation7 + $0xf10] sm:$0xff]
        %v960 = vld [vmem:[#allocation7 + $0xf18] sm:$0xff]
        %v961 = vld [vmem:[#allocation7 + $0xf20] sm:$0xff]
        %v962 = vld [vmem:[#allocation7 + $0xf28] sm:$0xff]
        %v963 = vld [vmem:[#allocation7 + $0xf30] sm:$0xff]
        %v964 = vld [vmem:[#allocation7 + $0xf38] sm:$0xff]
        %v965 = vld [vmem:[#allocation7 + $0xf40] sm:$0xff]
        %v966 = vld [vmem:[#allocation7 + $0xf48] sm:$0xff]
        %v967 = vld [vmem:[#allocation7 + $0xf50] sm:$0xff]
        %v968 = vld [vmem:[#allocation7 + $0xf58] sm:$0xff]
        %v969 = vld [vmem:[#allocation7 + $0xf60] sm:$0xff]
        %v970 = vld [vmem:[#allocation7 + $0xf68] sm:$0xff]
        %v971 = vld [vmem:[#allocation7 + $0xf70] sm:$0xff]
        %v972 = vld [vmem:[#allocation7 + $0xf78] sm:$0xff]
        %v973 = vld [vmem:[#allocation7 + $0xf80] sm:$0xff]
        %v974 = vld [vmem:[#allocation7 + $0xf88] sm:$0xff]
        %v975 = vld [vmem:[#allocation7 + $0xf90] sm:$0xff]
        %v976 = vld [vmem:[#allocation7 + $0xf98] sm:$0xff]
        %v977 = vld [vmem:[#allocation7 + $0xfa0] sm:$0xff]
        %v978 = vld [vmem:[#allocation7 + $0xfa8] sm:$0xff]
        %v979 = vld [vmem:[#allocation7 + $0xfb0] sm:$0xff]
        %v980 = vld [vmem:[#allocation7 + $0xfb8] sm:$0xff]
        %v981 = vld [vmem:[#allocation7 + $0xfc0] sm:$0xff]
        %v982 = vld [vmem:[#allocation7 + $0xfc8] sm:$0xff]
        %v983 = vld [vmem:[#allocation7 + $0xfd0] sm:$0xff]
        %v984 = vld [vmem:[#allocation7 + $0xfd8] sm:$0xff]
        %v985 = vld [vmem:[#allocation7 + $0xfe0] sm:$0xff]
        %v986 = vld [vmem:[#allocation7 + $0xfe8] sm:$0xff]
        %v987 = vld [vmem:[#allocation7 + $0xff0] sm:$0xff]
        %v988 = vld [vmem:[#allocation7 + $0xff8] sm:$0xff]
        %v989 = vld [vmem:[#allocation7 + $0x1000] sm:$0xff]
        %v990 = vld [vmem:[#allocation7 + $0x1008] sm:$0xff]
        %v991 = vld [vmem:[#allocation7 + $0x1010] sm:$0xff]
        %v992 = vld [vmem:[#allocation7 + $0x1018] sm:$0xff]
        %v993 = vld [vmem:[#allocation7 + $0x1020] sm:$0xff]
        %v994 = vld [vmem:[#allocation7 + $0x1028] sm:$0xff]
        %v995 = vld [vmem:[#allocation7 + $0x1030] sm:$0xff]
        %v996 = vld [vmem:[#allocation7 + $0x1038] sm:$0xff]
        %v997 = vld [vmem:[#allocation7 + $0x1040] sm:$0xff]
        %v998 = vld [vmem:[#allocation7 + $0x1048] sm:$0xff]
        %v999 = vld [vmem:[#allocation7 + $0x1050] sm:$0xff]
        %v1000 = vld [vmem:[#allocation7 + $0x1058] sm:$0xff]
        %v1001 = vld [vmem:[#allocation7 + $0x1060] sm:$0xff]
        %v1002 = vld [vmem:[#allocation7 + $0x1068] sm:$0xff]
        %v1003 = vld [vmem:[#allocation7 + $0x1070] sm:$0xff]
        %v1004 = vld [vmem:[#allocation7 + $0x1078] sm:$0xff]
        %v1005 = vld [vmem:[#allocation7 + $0x1080] sm:$0xff]
        %v1006 = vld [vmem:[#allocation7 + $0x1088] sm:$0xff]
        %v1007 = vld [vmem:[#allocation7 + $0x1090] sm:$0xff]
        %v1008 = vld [vmem:[#allocation7 + $0x1098] sm:$0xff]
        %v1009 = vld [vmem:[#allocation7 + $0x10a0] sm:$0xff]
        %v1010 = vld [vmem:[#allocation7 + $0x10a8] sm:$0xff]
        %v1011 = vld [vmem:[#allocation7 + $0x10b0] sm:$0xff]
        %v1012 = vld [vmem:[#allocation7 + $0x10b8] sm:$0xff]
        %v1013 = vld [vmem:[#allocation7 + $0x10c0] sm:$0xff]
        %v1014 = vld [vmem:[#allocation7 + $0x10c8] sm:$0xff]
        %v1015 = vld [vmem:[#allocation7 + $0x10d0] sm:$0xff]
        %v1016 = vld [vmem:[#allocation7 + $0x10d8] sm:$0xff]
        %v1017 = vld [vmem:[#allocation7 + $0x10e0] sm:$0xff]
        %v1018 = vld [vmem:[#allocation7 + $0x10e8] sm:$0xff]
        %v1019 = vld [vmem:[#allocation7 + $0x10f0] sm:$0xff]
        %v1020 = vld [vmem:[#allocation7 + $0x10f8] sm:$0xff]
        %v1021 = vld [vmem:[#allocation7 + $0x1100] sm:$0xff]
        %v1022 = vld [vmem:[#allocation7 + $0x1108] sm:$0xff]
        %v1023 = vld [vmem:[#allocation7 + $0x1110] sm:$0xff]
        %v1024 = vld [vmem:[#allocation7 + $0x1118] sm:$0xff]
        %v1025 = vld [vmem:[#allocation7 + $0x1120] sm:$0xff]
        %v1026 = vld [vmem:[#allocation7 + $0x1128] sm:$0xff]
        %v1027 = vld [vmem:[#allocation7 + $0x1130] sm:$0xff]
        %v1028 = vld [vmem:[#allocation7 + $0x1138] sm:$0xff]
        %v1029 = vld [vmem:[#allocation7 + $0x1140] sm:$0xff]
        %v1030 = vld [vmem:[#allocation7 + $0x1148] sm:$0xff]
        %v1031 = vld [vmem:[#allocation7 + $0x1150] sm:$0xff]
        %v1032 = vld [vmem:[#allocation7 + $0x1158] sm:$0xff]
        %v1033 = vld [vmem:[#allocation7 + $0x1160] sm:$0xff]
        %v1034 = vld [vmem:[#allocation7 + $0x1168] sm:$0xff]
        %v1035 = vld [vmem:[#allocation7 + $0x1170] sm:$0xff]
        %v1036 = vld [vmem:[#allocation7 + $0x1178] sm:$0xff]
        %v1037 = vld [vmem:[#allocation7 + $0x1180] sm:$0xff]
        %v1038 = vld [vmem:[#allocation7 + $0x1188] sm:$0xff]
        %v1039 = vld [vmem:[#allocation7 + $0x1190] sm:$0xff]
        %v1040 = vld [vmem:[#allocation7 + $0x1198] sm:$0xff]
        %v1041 = vld [vmem:[#allocation7 + $0x11a0] sm:$0xff]
        %v1042 = vld [vmem:[#allocation7 + $0x11a8] sm:$0xff]
        %v1043 = vld [vmem:[#allocation7 + $0x11b0] sm:$0xff]
        %v1044 = vld [vmem:[#allocation7 + $0x11b8] sm:$0xff]
        %v1045 = vld [vmem:[#allocation7 + $0x11c0] sm:$0xff]
        %v1046 = vld [vmem:[#allocation7 + $0x11c8] sm:$0xff]
        %v1047 = vld [vmem:[#allocation7 + $0x11d0] sm:$0xff]
        %v1048 = vld [vmem:[#allocation7 + $0x11d8] sm:$0xff]
        %v1049 = vld [vmem:[#allocation7 + $0x11e0] sm:$0xff]
        %v1050 = vld [vmem:[#allocation7 + $0x11e8] sm:$0xff]
        %v1051 = vld [vmem:[#allocation7 + $0x11f0] sm:$0xff]
        %v1052 = vld [vmem:[#allocation7 + $0x11f8] sm:$0xff]
        %v1053 = vld [vmem:[#allocation8] sm:$0x77]
        %v1054 = vld [vmem:[#allocation8 + $0x8] sm:$0x77]
        %v1055 = vld [vmem:[#allocation8 + $0x10] sm:$0x77]
        %v1059 = vperm.slane %v1053, 0
        %v1060 = vperm.slane %v1053, 4
        %v1061 = vperm.slane %v1054, 0
        %v1062 = vperm.slane %v1054, 4
        %v1063 = vperm.slane %v1055, 0
        %v1064 = vperm.slane %v1055, 4
        %v1071 = vperm.slane %v1059, 0
        %v1072 = vperm.slane %v1060, 0
        %v1073 = vperm.slane %v1061, 0
        %v1074 = vperm.slane %v1062, 0
        %v1075 = vperm.slane %v1063, 0
        %v1076 = vperm.slane %v1064, 0
        %1077 = vmatpush.msra.mxu0 %v567
        %1078 = vmatpush.msra.mxu0 %v561
        %1079 = vmatpush.msra.mxu0 %v555
        %1080 = vmatpush.msra.mxu0 %v549
        %1081 = vmatpush.msra.mxu0 %v543
        %1082 = vmatpush.msra.mxu0 %v537
        %1083 = vmatpush.msra.mxu0 %v531
        %1084 = vmatpush.msra.mxu0 %v525
        %1085 = vmatpush.msra.mxu0 %v519
        %1086 = vmatpush.msra.mxu0 %v513
        %1087 = vmatpush.msra.mxu0 %v507
        %1088 = vmatpush.msra.mxu0 %v501
        %1089 = vmatpush.msra.mxu0 %v495
        %1090 = vmatpush.msra.mxu0 %v489
        %1091 = vmatpush.msra.mxu0 %v483
        %1092 = vmatpush.msra.mxu0 %v477
        %1093 = vmatmul.f32.gmra.mxu0 %v327
        %v1094 = vpop.f32.mrf.mxu0
        %v1095 = vadd.f32 %v1071, %v1094
        %1096 = vmatmul.f32.gmra.mxu0 %v333
        %v1097 = vpop.f32.mrf.mxu0
        %v1098 = vadd.f32 %v1071, %v1097
        %1099 = vmatmul.f32.gmra.mxu0 %v339
        %v1100 = vpop.f32.mrf.mxu0
        %v1101 = vadd.f32 %v1071, %v1100
        %1102 = vmatmul.f32.gmra.mxu0 %v345
        %v1103 = vpop.f32.mrf.mxu0
        %v1104 = vadd.f32 %v1071, %v1103
        %1105 = vmatmul.f32.gmra.mxu0 %v351
        %v1106 = vpop.f32.mrf.mxu0
        %v1107 = vadd.f32 %v1071, %v1106
        %1108 = vmatmul.f32.gmra.mxu0 %v357
        %v1109 = vpop.f32.mrf.mxu0
        %v1110 = vadd.f32 %v1071, %v1109
        %1111 = vmatmul.f32.gmra.mxu0 %v363
        %v1112 = vpop.f32.mrf.mxu0
        %v1113 = vadd.f32 %v1071, %v1112
        %1114 = vmatmul.f32.gmra.mxu0 %v369
        %v1115 = vpop.f32.mrf.mxu0
        %v1116 = vadd.f32 %v1071, %v1115
        %1117 = vmatmul.f32.gmra.mxu0 %v375
        %v1118 = vpop.f32.mrf.mxu0
        %v1119 = vadd.f32 %v1071, %v1118
        %1120 = vmatmul.f32.gmra.mxu0 %v381
        %v1121 = vpop.f32.mrf.mxu0
        %v1122 = vadd.f32 %v1071, %v1121
        %1123 = vmatmul.f32.gmra.mxu0 %v387
        %v1124 = vpop.f32.mrf.mxu0
        %v1125 = vadd.f32 %v1071, %v1124
        %1126 = vmatmul.f32.gmra.mxu0 %v393
        %v1127 = vpop.f32.mrf.mxu0
        %v1128 = vadd.f32 %v1071, %v1127
        %1129 = vmatmul.f32.gmra.mxu0 %v399
        %v1130 = vpop.f32.mrf.mxu0
        %v1131 = vadd.f32 %v1071, %v1130
        %1132 = vmatmul.f32.gmra.mxu0 %v405
        %v1133 = vpop.f32.mrf.mxu0
        %v1134 = vadd.f32 %v1071, %v1133
        %1135 = vmatmul.f32.gmra.mxu0 %v411
        %v1136 = vpop.f32.mrf.mxu0
        %v1137 = vadd.f32 %v1071, %v1136
        %1138 = vmatmul.f32.gmra.mxu0 %v417
        %v1139 = vpop.f32.mrf.mxu0
        %v1140 = vadd.f32 %v1071, %v1139
        %1141 = vmatmul.f32.gmra.mxu0 %v423
        %v1142 = vpop.f32.mrf.mxu0
        %v1143 = vadd.f32 %v1071, %v1142
        %1144 = vmatmul.f32.gmra.mxu0 %v429
        %v1145 = vpop.f32.mrf.mxu0
        %v1146 = vadd.f32 %v1071, %v1145
        %1147 = vmatmul.f32.gmra.mxu0 %v435
        %v1148 = vpop.f32.mrf.mxu0
        %v1149 = vadd.f32 %v1071, %v1148
        %1150 = vmatmul.f32.gmra.mxu0 %v441
        %v1151 = vpop.f32.mrf.mxu0
        %v1152 = vadd.f32 %v1071, %v1151
        %1153 = vmatmul.f32.gmra.mxu0 %v447
        %v1154 = vpop.f32.mrf.mxu0
        %v1155 = vadd.f32 %v1071, %v1154
        %1156 = vmatmul.f32.gmra.mxu0 %v453
        %v1157 = vpop.f32.mrf.mxu0
        %v1158 = vadd.f32 %v1071, %v1157
        %1159 = vmatmul.f32.gmra.mxu0 %v459
        %v1160 = vpop.f32.mrf.mxu0
        %v1161 = vadd.f32 %v1071, %v1160
        %1162 = vmatmul.f32.gmra.mxu0 %v465
        %v1163 = vpop.f32.mrf.mxu0
        %v1164 = vadd.f32 %v1071, %v1163
        %1165 = vmatmul.f32.gmra.mxu0 %v471
        %v1166 = vpop.f32.mrf.mxu0
        %v1167 = vadd.f32 %v1071, %v1166
        %1168 = vdwg.mxu0
        %1169 = vmatpush.msra.mxu0 %v663
        %1170 = vmatpush.msra.mxu0 %v657
        %1171 = vmatpush.msra.mxu0 %v651
        %1172 = vmatpush.msra.mxu0 %v645
        %1173 = vmatpush.msra.mxu0 %v639
        %1174 = vmatpush.msra.mxu0 %v633
        %1175 = vmatpush.msra.mxu0 %v627
        %1176 = vmatpush.msra.mxu0 %v621
        %1177 = vmatpush.msra.mxu0 %v615
        %1178 = vmatpush.msra.mxu0 %v609
        %1179 = vmatpush.msra.mxu0 %v603
        %1180 = vmatpush.msra.mxu0 %v597
        %1181 = vmatpush.msra.mxu0 %v591
        %1182 = vmatpush.msra.mxu0 %v585
        %1183 = vmatpush.msra.mxu0 %v579
        %1184 = vmatpush.msra.mxu0 %v573
        %1185 = vmatmul.f32.gmra.mxu0 %v328
        %v1186 = vpop.f32.mrf.mxu0
        %v1187 = vadd.f32 %v1095, %v1186
        %1188 = vmatmul.f32.gmra.mxu0 %v334
        %v1189 = vpop.f32.mrf.mxu0
        %v1190 = vadd.f32 %v1098, %v1189
        %1191 = vmatmul.f32.gmra.mxu0 %v340
        %v1192 = vpop.f32.mrf.mxu0
        %v1193 = vadd.f32 %v1101, %v1192
        %1194 = vmatmul.f32.gmra.mxu0 %v346
        %v1195 = vpop.f32.mrf.mxu0
        %v1196 = vadd.f32 %v1104, %v1195
        %1197 = vmatmul.f32.gmra.mxu0 %v352
        %v1198 = vpop.f32.mrf.mxu0
        %v1199 = vadd.f32 %v1107, %v1198
        %1200 = vmatmul.f32.gmra.mxu0 %v358
        %v1201 = vpop.f32.mrf.mxu0
        %v1202 = vadd.f32 %v1110, %v1201
        %1203 = vmatmul.f32.gmra.mxu0 %v364
        %v1204 = vpop.f32.mrf.mxu0
        %v1205 = vadd.f32 %v1113, %v1204
        %1206 = vmatmul.f32.gmra.mxu0 %v370
        %v1207 = vpop.f32.mrf.mxu0
        %v1208 = vadd.f32 %v1116, %v1207
        %1209 = vmatmul.f32.gmra.mxu0 %v376
        %v1210 = vpop.f32.mrf.mxu0
        %v1211 = vadd.f32 %v1119, %v1210
        %1212 = vmatmul.f32.gmra.mxu0 %v382
        %v1213 = vpop.f32.mrf.mxu0
        %v1214 = vadd.f32 %v1122, %v1213
        %1215 = vmatmul.f32.gmra.mxu0 %v388
        %v1216 = vpop.f32.mrf.mxu0
        %v1217 = vadd.f32 %v1125, %v1216
        %1218 = vmatmul.f32.gmra.mxu0 %v394
        %v1219 = vpop.f32.mrf.mxu0
        %v1220 = vadd.f32 %v1128, %v1219
        %1221 = vmatmul.f32.gmra.mxu0 %v400
        %v1222 = vpop.f32.mrf.mxu0
        %v1223 = vadd.f32 %v1131, %v1222
        %1224 = vmatmul.f32.gmra.mxu0 %v406
        %v1225 = vpop.f32.mrf.mxu0
        %v1226 = vadd.f32 %v1134, %v1225
        %1227 = vmatmul.f32.gmra.mxu0 %v412
        %v1228 = vpop.f32.mrf.mxu0
        %v1229 = vadd.f32 %v1137, %v1228
        %1230 = vmatmul.f32.gmra.mxu0 %v418
        %v1231 = vpop.f32.mrf.mxu0
        %v1232 = vadd.f32 %v1140, %v1231
        %1233 = vmatmul.f32.gmra.mxu0 %v424
        %v1234 = vpop.f32.mrf.mxu0
        %v1235 = vadd.f32 %v1143, %v1234
        %1236 = vmatmul.f32.gmra.mxu0 %v430
        %v1237 = vpop.f32.mrf.mxu0
        %v1238 = vadd.f32 %v1146, %v1237
        %1239 = vmatmul.f32.gmra.mxu0 %v436
        %v1240 = vpop.f32.mrf.mxu0
        %v1241 = vadd.f32 %v1149, %v1240
        %1242 = vmatmul.f32.gmra.mxu0 %v442
        %v1243 = vpop.f32.mrf.mxu0
        %v1244 = vadd.f32 %v1152, %v1243
        %1245 = vmatmul.f32.gmra.mxu0 %v448
        %v1246 = vpop.f32.mrf.mxu0
        %v1247 = vadd.f32 %v1155, %v1246
        %1248 = vmatmul.f32.gmra.mxu0 %v454
        %v1249 = vpop.f32.mrf.mxu0
        %v1250 = vadd.f32 %v1158, %v1249
        %1251 = vmatmul.f32.gmra.mxu0 %v460
        %v1252 = vpop.f32.mrf.mxu0
        %v1253 = vadd.f32 %v1161, %v1252
        %1254 = vmatmul.f32.gmra.mxu0 %v466
        %v1255 = vpop.f32.mrf.mxu0
        %v1256 = vadd.f32 %v1164, %v1255
        %1257 = vmatmul.f32.gmra.mxu0 %v472
        %v1258 = vpop.f32.mrf.mxu0
        %v1259 = vadd.f32 %v1167, %v1258
        %1260 = vdwg.mxu0
        %1261 = vmatpush.msra.mxu0 %v759
        %1262 = vmatpush.msra.mxu0 %v753
        %1263 = vmatpush.msra.mxu0 %v747
        %1264 = vmatpush.msra.mxu0 %v741
        %1265 = vmatpush.msra.mxu0 %v735
        %1266 = vmatpush.msra.mxu0 %v729
        %1267 = vmatpush.msra.mxu0 %v723
        %1268 = vmatpush.msra.mxu0 %v717
        %1269 = vmatpush.msra.mxu0 %v711
        %1270 = vmatpush.msra.mxu0 %v705
        %1271 = vmatpush.msra.mxu0 %v699
        %1272 = vmatpush.msra.mxu0 %v693
        %1273 = vmatpush.msra.mxu0 %v687
        %1274 = vmatpush.msra.mxu0 %v681
        %1275 = vmatpush.msra.mxu0 %v675
        %1276 = vmatpush.msra.mxu0 %v669
        %1277 = vmatmul.f32.gmra.mxu0 %v329
        %v1278 = vpop.f32.mrf.mxu0
        %v1279 = vadd.f32 %v1187, %v1278
        %1280 = vmatmul.f32.gmra.mxu0 %v335
        %v1281 = vpop.f32.mrf.mxu0
        %v1282 = vadd.f32 %v1190, %v1281
        %1283 = vmatmul.f32.gmra.mxu0 %v341
        %v1284 = vpop.f32.mrf.mxu0
        %v1285 = vadd.f32 %v1193, %v1284
        %1286 = vmatmul.f32.gmra.mxu0 %v347
        %v1287 = vpop.f32.mrf.mxu0
        %v1288 = vadd.f32 %v1196, %v1287
        %1289 = vmatmul.f32.gmra.mxu0 %v353
        %v1290 = vpop.f32.mrf.mxu0
        %v1291 = vadd.f32 %v1199, %v1290
        %1292 = vmatmul.f32.gmra.mxu0 %v359
        %v1293 = vpop.f32.mrf.mxu0
        %v1294 = vadd.f32 %v1202, %v1293
        %1295 = vmatmul.f32.gmra.mxu0 %v365
        %v1296 = vpop.f32.mrf.mxu0
        %v1297 = vadd.f32 %v1205, %v1296
        %1298 = vmatmul.f32.gmra.mxu0 %v371
        %v1299 = vpop.f32.mrf.mxu0
        %v1300 = vadd.f32 %v1208, %v1299
        %1301 = vmatmul.f32.gmra.mxu0 %v377
        %v1302 = vpop.f32.mrf.mxu0
        %v1303 = vadd.f32 %v1211, %v1302
        %1304 = vmatmul.f32.gmra.mxu0 %v383
        %v1305 = vpop.f32.mrf.mxu0
        %v1306 = vadd.f32 %v1214, %v1305
        %1307 = vmatmul.f32.gmra.mxu0 %v389
        %v1308 = vpop.f32.mrf.mxu0
        %v1309 = vadd.f32 %v1217, %v1308
        %1310 = vmatmul.f32.gmra.mxu0 %v395
        %v1311 = vpop.f32.mrf.mxu0
        %v1312 = vadd.f32 %v1220, %v1311
        %1313 = vmatmul.f32.gmra.mxu0 %v401
        %v1314 = vpop.f32.mrf.mxu0
        %v1315 = vadd.f32 %v1223, %v1314
        %1316 = vmatmul.f32.gmra.mxu0 %v407
        %v1317 = vpop.f32.mrf.mxu0
        %v1318 = vadd.f32 %v1226, %v1317
        %1319 = vmatmul.f32.gmra.mxu0 %v413
        %v1320 = vpop.f32.mrf.mxu0
        %v1321 = vadd.f32 %v1229, %v1320
        %1322 = vmatmul.f32.gmra.mxu0 %v419
        %v1323 = vpop.f32.mrf.mxu0
        %v1324 = vadd.f32 %v1232, %v1323
        %1325 = vmatmul.f32.gmra.mxu0 %v425
        %v1326 = vpop.f32.mrf.mxu0
        %v1327 = vadd.f32 %v1235, %v1326
        %1328 = vmatmul.f32.gmra.mxu0 %v431
        %v1329 = vpop.f32.mrf.mxu0
        %v1330 = vadd.f32 %v1238, %v1329
        %1331 = vmatmul.f32.gmra.mxu0 %v437
        %v1332 = vpop.f32.mrf.mxu0
        %v1333 = vadd.f32 %v1241, %v1332
        %1334 = vmatmul.f32.gmra.mxu0 %v443
        %v1335 = vpop.f32.mrf.mxu0
        %v1336 = vadd.f32 %v1244, %v1335
        %1337 = vmatmul.f32.gmra.mxu0 %v449
        %v1338 = vpop.f32.mrf.mxu0
        %v1339 = vadd.f32 %v1247, %v1338
        %1340 = vmatmul.f32.gmra.mxu0 %v455
        %v1341 = vpop.f32.mrf.mxu0
        %v1342 = vadd.f32 %v1250, %v1341
        %1343 = vmatmul.f32.gmra.mxu0 %v461
        %v1344 = vpop.f32.mrf.mxu0
        %v1345 = vadd.f32 %v1253, %v1344
        %1346 = vmatmul.f32.gmra.mxu0 %v467
        %v1347 = vpop.f32.mrf.mxu0
        %v1348 = vadd.f32 %v1256, %v1347
        %1349 = vmatmul.f32.gmra.mxu0 %v473
        %v1350 = vpop.f32.mrf.mxu0
        %v1351 = vadd.f32 %v1259, %v1350
        %1352 = vdwg.mxu0
        %1353 = vmatpush.msra.mxu0 %v855
        %1354 = vmatpush.msra.mxu0 %v849
        %1355 = vmatpush.msra.mxu0 %v843
        %1356 = vmatpush.msra.mxu0 %v837
        %1357 = vmatpush.msra.mxu0 %v831
        %1358 = vmatpush.msra.mxu0 %v825
        %1359 = vmatpush.msra.mxu0 %v819
        %1360 = vmatpush.msra.mxu0 %v813
        %1361 = vmatpush.msra.mxu0 %v807
        %1362 = vmatpush.msra.mxu0 %v801
        %1363 = vmatpush.msra.mxu0 %v795
        %1364 = vmatpush.msra.mxu0 %v789
        %1365 = vmatpush.msra.mxu0 %v783
        %1366 = vmatpush.msra.mxu0 %v777
        %1367 = vmatpush.msra.mxu0 %v771
        %1368 = vmatpush.msra.mxu0 %v765
        %1369 = vmatmul.f32.gmra.mxu0 %v330
        %v1370 = vpop.f32.mrf.mxu0
        %v1371 = vadd.f32 %v1279, %v1370
        %1372 = vmatmul.f32.gmra.mxu0 %v336
        %v1373 = vpop.f32.mrf.mxu0
        %v1374 = vadd.f32 %v1282, %v1373
        %1375 = vmatmul.f32.gmra.mxu0 %v342
        %v1376 = vpop.f32.mrf.mxu0
        %v1377 = vadd.f32 %v1285, %v1376
        %1378 = vmatmul.f32.gmra.mxu0 %v348
        %v1379 = vpop.f32.mrf.mxu0
        %v1380 = vadd.f32 %v1288, %v1379
        %1381 = vmatmul.f32.gmra.mxu0 %v354
        %v1382 = vpop.f32.mrf.mxu0
        %v1383 = vadd.f32 %v1291, %v1382
        %1384 = vmatmul.f32.gmra.mxu0 %v360
        %v1385 = vpop.f32.mrf.mxu0
        %v1386 = vadd.f32 %v1294, %v1385
        %1387 = vmatmul.f32.gmra.mxu0 %v366
        %v1388 = vpop.f32.mrf.mxu0
        %v1389 = vadd.f32 %v1297, %v1388
        %1390 = vmatmul.f32.gmra.mxu0 %v372
        %v1391 = vpop.f32.mrf.mxu0
        %v1392 = vadd.f32 %v1300, %v1391
        %1393 = vmatmul.f32.gmra.mxu0 %v378
        %v1394 = vpop.f32.mrf.mxu0
        %v1395 = vadd.f32 %v1303, %v1394
        %1396 = vmatmul.f32.gmra.mxu0 %v384
        %v1397 = vpop.f32.mrf.mxu0
        %v1398 = vadd.f32 %v1306, %v1397
        %1399 = vmatmul.f32.gmra.mxu0 %v390
        %v1400 = vpop.f32.mrf.mxu0
        %v1401 = vadd.f32 %v1309, %v1400
        %1402 = vmatmul.f32.gmra.mxu0 %v396
        %v1403 = vpop.f32.mrf.mxu0
        %v1404 = vadd.f32 %v1312, %v1403
        %1405 = vmatmul.f32.gmra.mxu0 %v402
        %v1406 = vpop.f32.mrf.mxu0
        %v1407 = vadd.f32 %v1315, %v1406
        %1408 = vmatmul.f32.gmra.mxu0 %v408
        %v1409 = vpop.f32.mrf.mxu0
        %v1410 = vadd.f32 %v1318, %v1409
        %1411 = vmatmul.f32.gmra.mxu0 %v414
        %v1412 = vpop.f32.mrf.mxu0
        %v1413 = vadd.f32 %v1321, %v1412
        %1414 = vmatmul.f32.gmra.mxu0 %v420
        %v1415 = vpop.f32.mrf.mxu0
        %v1416 = vadd.f32 %v1324, %v1415
        %1417 = vmatmul.f32.gmra.mxu0 %v426
        %v1418 = vpop.f32.mrf.mxu0
        %v1419 = vadd.f32 %v1327, %v1418
        %1420 = vmatmul.f32.gmra.mxu0 %v432
        %v1421 = vpop.f32.mrf.mxu0
        %v1422 = vadd.f32 %v1330, %v1421
        %1423 = vmatmul.f32.gmra.mxu0 %v438
        %v1424 = vpop.f32.mrf.mxu0
        %v1425 = vadd.f32 %v1333, %v1424
        %1426 = vmatmul.f32.gmra.mxu0 %v444
        %v1427 = vpop.f32.mrf.mxu0
        %v1428 = vadd.f32 %v1336, %v1427
        %1429 = vmatmul.f32.gmra.mxu0 %v450
        %v1430 = vpop.f32.mrf.mxu0
        %v1431 = vadd.f32 %v1339, %v1430
        %1432 = vmatmul.f32.gmra.mxu0 %v456
        %v1433 = vpop.f32.mrf.mxu0
        %v1434 = vadd.f32 %v1342, %v1433
        %1435 = vmatmul.f32.gmra.mxu0 %v462
        %v1436 = vpop.f32.mrf.mxu0
        %v1437 = vadd.f32 %v1345, %v1436
        %1438 = vmatmul.f32.gmra.mxu0 %v468
        %v1439 = vpop.f32.mrf.mxu0
        %v1440 = vadd.f32 %v1348, %v1439
        %1441 = vmatmul.f32.gmra.mxu0 %v474
        %v1442 = vpop.f32.mrf.mxu0
        %v1443 = vadd.f32 %v1351, %v1442
        %1444 = vdwg.mxu0
        %1445 = vmatpush.msra.mxu0 %v951
        %1446 = vmatpush.msra.mxu0 %v945
        %1447 = vmatpush.msra.mxu0 %v939
        %1448 = vmatpush.msra.mxu0 %v933
        %1449 = vmatpush.msra.mxu0 %v927
        %1450 = vmatpush.msra.mxu0 %v921
        %1451 = vmatpush.msra.mxu0 %v915
        %1452 = vmatpush.msra.mxu0 %v909
        %1453 = vmatpush.msra.mxu0 %v903
        %1454 = vmatpush.msra.mxu0 %v897
        %1455 = vmatpush.msra.mxu0 %v891
        %1456 = vmatpush.msra.mxu0 %v885
        %1457 = vmatpush.msra.mxu0 %v879
        %1458 = vmatpush.msra.mxu0 %v873
        %1459 = vmatpush.msra.mxu0 %v867
        %1460 = vmatpush.msra.mxu0 %v861
        %1461 = vmatmul.f32.gmra.mxu0 %v331
        %v1462 = vpop.f32.mrf.mxu0
        %v1463 = vadd.f32 %v1371, %v1462
        %1464 = vmatmul.f32.gmra.mxu0 %v337
        %v1465 = vpop.f32.mrf.mxu0
        %v1466 = vadd.f32 %v1374, %v1465
        %1467 = vmatmul.f32.gmra.mxu0 %v343
        %v1468 = vpop.f32.mrf.mxu0
        %v1469 = vadd.f32 %v1377, %v1468
        %1470 = vmatmul.f32.gmra.mxu0 %v349
        %v1471 = vpop.f32.mrf.mxu0
        %v1472 = vadd.f32 %v1380, %v1471
        %1473 = vmatmul.f32.gmra.mxu0 %v355
        %v1474 = vpop.f32.mrf.mxu0
        %v1475 = vadd.f32 %v1383, %v1474
        %1476 = vmatmul.f32.gmra.mxu0 %v361
        %v1477 = vpop.f32.mrf.mxu0
        %v1478 = vadd.f32 %v1386, %v1477
        %1479 = vmatmul.f32.gmra.mxu0 %v367
        %v1480 = vpop.f32.mrf.mxu0
        %v1481 = vadd.f32 %v1389, %v1480
        %1482 = vmatmul.f32.gmra.mxu0 %v373
        %v1483 = vpop.f32.mrf.mxu0
        %v1484 = vadd.f32 %v1392, %v1483
        %1485 = vmatmul.f32.gmra.mxu0 %v379
        %v1486 = vpop.f32.mrf.mxu0
        %v1487 = vadd.f32 %v1395, %v1486
        %1488 = vmatmul.f32.gmra.mxu0 %v385
        %v1489 = vpop.f32.mrf.mxu0
        %v1490 = vadd.f32 %v1398, %v1489
        %1491 = vmatmul.f32.gmra.mxu0 %v391
        %v1492 = vpop.f32.mrf.mxu0
        %v1493 = vadd.f32 %v1401, %v1492
        %1494 = vmatmul.f32.gmra.mxu0 %v397
        %v1495 = vpop.f32.mrf.mxu0
        %v1496 = vadd.f32 %v1404, %v1495
        %1497 = vmatmul.f32.gmra.mxu0 %v403
        %v1498 = vpop.f32.mrf.mxu0
        %v1499 = vadd.f32 %v1407, %v1498
        %1500 = vmatmul.f32.gmra.mxu0 %v409
        %v1501 = vpop.f32.mrf.mxu0
        %v1502 = vadd.f32 %v1410, %v1501
        %1503 = vmatmul.f32.gmra.mxu0 %v415
        %v1504 = vpop.f32.mrf.mxu0
        %v1505 = vadd.f32 %v1413, %v1504
        %1506 = vmatmul.f32.gmra.mxu0 %v421
        %v1507 = vpop.f32.mrf.mxu0
        %v1508 = vadd.f32 %v1416, %v1507
        %1509 = vmatmul.f32.gmra.mxu0 %v427
        %v1510 = vpop.f32.mrf.mxu0
        %v1511 = vadd.f32 %v1419, %v1510
        %1512 = vmatmul.f32.gmra.mxu0 %v433
        %v1513 = vpop.f32.mrf.mxu0
        %v1514 = vadd.f32 %v1422, %v1513
        %1515 = vmatmul.f32.gmra.mxu0 %v439
        %v1516 = vpop.f32.mrf.mxu0
        %v1517 = vadd.f32 %v1425, %v1516
        %1518 = vmatmul.f32.gmra.mxu0 %v445
        %v1519 = vpop.f32.mrf.mxu0
        %v1520 = vadd.f32 %v1428, %v1519
        %1521 = vmatmul.f32.gmra.mxu0 %v451
        %v1522 = vpop.f32.mrf.mxu0
        %v1523 = vadd.f32 %v1431, %v1522
        %1524 = vmatmul.f32.gmra.mxu0 %v457
        %v1525 = vpop.f32.mrf.mxu0
        %v1526 = vadd.f32 %v1434, %v1525
        %1527 = vmatmul.f32.gmra.mxu0 %v463
        %v1528 = vpop.f32.mrf.mxu0
        %v1529 = vadd.f32 %v1437, %v1528
        %1530 = vmatmul.f32.gmra.mxu0 %v469
        %v1531 = vpop.f32.mrf.mxu0
        %v1532 = vadd.f32 %v1440, %v1531
        %1533 = vmatmul.f32.gmra.mxu0 %v475
        %v1534 = vpop.f32.mrf.mxu0
        %v1535 = vadd.f32 %v1443, %v1534
        %1536 = vdwg.mxu0
        %1537 = vmatpush.msra.mxu0 %v1047
        %1538 = vmatpush.msra.mxu0 %v1041
        %1539 = vmatpush.msra.mxu0 %v1035
        %1540 = vmatpush.msra.mxu0 %v1029
        %1541 = vmatpush.msra.mxu0 %v1023
        %1542 = vmatpush.msra.mxu0 %v1017
        %1543 = vmatpush.msra.mxu0 %v1011
        %1544 = vmatpush.msra.mxu0 %v1005
        %1545 = vmatpush.msra.mxu0 %v999
        %1546 = vmatpush.msra.mxu0 %v993
        %1547 = vmatpush.msra.mxu0 %v987
        %1548 = vmatpush.msra.mxu0 %v981
        %1549 = vmatpush.msra.mxu0 %v975
        %1550 = vmatpush.msra.mxu0 %v969
        %1551 = vmatpush.msra.mxu0 %v963
        %1552 = vmatpush.msra.mxu0 %v957
        %1553 = vmatmul.f32.gmra.mxu0 %v332
        %v1554 = vpop.f32.mrf.mxu0
        %v1555 = vadd.f32 %v1463, %v1554
        %1556 = vmatmul.f32.gmra.mxu0 %v338
        %v1557 = vpop.f32.mrf.mxu0
        %v1558 = vadd.f32 %v1466, %v1557
        %1559 = vmatmul.f32.gmra.mxu0 %v344
        %v1560 = vpop.f32.mrf.mxu0
        %v1561 = vadd.f32 %v1469, %v1560
        %1562 = vmatmul.f32.gmra.mxu0 %v350
        %v1563 = vpop.f32.mrf.mxu0
        %v1564 = vadd.f32 %v1472, %v1563
        %1565 = vmatmul.f32.gmra.mxu0 %v356
        %v1566 = vpop.f32.mrf.mxu0
        %v1567 = vadd.f32 %v1475, %v1566
        %1568 = vmatmul.f32.gmra.mxu0 %v362
        %v1569 = vpop.f32.mrf.mxu0
        %v1570 = vadd.f32 %v1478, %v1569
        %1571 = vmatmul.f32.gmra.mxu0 %v368
        %v1572 = vpop.f32.mrf.mxu0
        %v1573 = vadd.f32 %v1481, %v1572
        %1574 = vmatmul.f32.gmra.mxu0 %v374
        %v1575 = vpop.f32.mrf.mxu0
        %v1576 = vadd.f32 %v1484, %v1575
        %1577 = vmatmul.f32.gmra.mxu0 %v380
        %v1578 = vpop.f32.mrf.mxu0
        %v1579 = vadd.f32 %v1487, %v1578
        %1580 = vmatmul.f32.gmra.mxu0 %v386
        %v1581 = vpop.f32.mrf.mxu0
        %v1582 = vadd.f32 %v1490, %v1581
        %1583 = vmatmul.f32.gmra.mxu0 %v392
        %v1584 = vpop.f32.mrf.mxu0
        %v1585 = vadd.f32 %v1493, %v1584
        %1586 = vmatmul.f32.gmra.mxu0 %v398
        %v1587 = vpop.f32.mrf.mxu0
        %v1588 = vadd.f32 %v1496, %v1587
        %1589 = vmatmul.f32.gmra.mxu0 %v404
        %v1590 = vpop.f32.mrf.mxu0
        %v1591 = vadd.f32 %v1499, %v1590
        %1592 = vmatmul.f32.gmra.mxu0 %v410
        %v1593 = vpop.f32.mrf.mxu0
        %v1594 = vadd.f32 %v1502, %v1593
        %1595 = vmatmul.f32.gmra.mxu0 %v416
        %v1596 = vpop.f32.mrf.mxu0
        %v1597 = vadd.f32 %v1505, %v1596
        %1598 = vmatmul.f32.gmra.mxu0 %v422
        %v1599 = vpop.f32.mrf.mxu0
        %v1600 = vadd.f32 %v1508, %v1599
        %1601 = vmatmul.f32.gmra.mxu0 %v428
        %v1602 = vpop.f32.mrf.mxu0
        %v1603 = vadd.f32 %v1511, %v1602
        %1604 = vmatmul.f32.gmra.mxu0 %v434
        %v1605 = vpop.f32.mrf.mxu0
        %v1606 = vadd.f32 %v1514, %v1605
        %1607 = vmatmul.f32.gmra.mxu0 %v440
        %v1608 = vpop.f32.mrf.mxu0
        %v1609 = vadd.f32 %v1517, %v1608
        %1610 = vmatmul.f32.gmra.mxu0 %v446
        %v1611 = vpop.f32.mrf.mxu0
        %v1612 = vadd.f32 %v1520, %v1611
        %1613 = vmatmul.f32.gmra.mxu0 %v452
        %v1614 = vpop.f32.mrf.mxu0
        %v1615 = vadd.f32 %v1523, %v1614
        %1616 = vmatmul.f32.gmra.mxu0 %v458
        %v1617 = vpop.f32.mrf.mxu0
        %v1618 = vadd.f32 %v1526, %v1617
        %1619 = vmatmul.f32.gmra.mxu0 %v464
        %v1620 = vpop.f32.mrf.mxu0
        %v1621 = vadd.f32 %v1529, %v1620
        %1622 = vmatmul.f32.gmra.mxu0 %v470
        %v1623 = vpop.f32.mrf.mxu0
        %v1624 = vadd.f32 %v1532, %v1623
        %1625 = vmatmul.f32.gmra.mxu0 %v476
        %v1626 = vpop.f32.mrf.mxu0
        %v1627 = vadd.f32 %v1535, %v1626
        %1628 = vdwg.mxu0
        %1629 = vmatpush.msra.mxu0 %v568
        %1630 = vmatpush.msra.mxu0 %v562
        %1631 = vmatpush.msra.mxu0 %v556
        %1632 = vmatpush.msra.mxu0 %v550
        %1633 = vmatpush.msra.mxu0 %v544
        %1634 = vmatpush.msra.mxu0 %v538
        %1635 = vmatpush.msra.mxu0 %v532
        %1636 = vmatpush.msra.mxu0 %v526
        %1637 = vmatpush.msra.mxu0 %v520
        %1638 = vmatpush.msra.mxu0 %v514
        %1639 = vmatpush.msra.mxu0 %v508
        %1640 = vmatpush.msra.mxu0 %v502
        %1641 = vmatpush.msra.mxu0 %v496
        %1642 = vmatpush.msra.mxu0 %v490
        %1643 = vmatpush.msra.mxu0 %v484
        %1644 = vmatpush.msra.mxu0 %v478
        %1645 = vmatmul.f32.gmra.mxu0 %v327
        %v1646 = vpop.f32.mrf.mxu0
        %v1647 = vadd.f32 %v1072, %v1646
        %1648 = vmatmul.f32.gmra.mxu0 %v333
        %v1649 = vpop.f32.mrf.mxu0
        %v1650 = vadd.f32 %v1072, %v1649
        %1651 = vmatmul.f32.gmra.mxu0 %v339
        %v1652 = vpop.f32.mrf.mxu0
        %v1653 = vadd.f32 %v1072, %v1652
        %1654 = vmatmul.f32.gmra.mxu0 %v345
        %v1655 = vpop.f32.mrf.mxu0
        %v1656 = vadd.f32 %v1072, %v1655
        %1657 = vmatmul.f32.gmra.mxu0 %v351
        %v1658 = vpop.f32.mrf.mxu0
        %v1659 = vadd.f32 %v1072, %v1658
        %1660 = vmatmul.f32.gmra.mxu0 %v357
        %v1661 = vpop.f32.mrf.mxu0
        %v1662 = vadd.f32 %v1072, %v1661
        %1663 = vmatmul.f32.gmra.mxu0 %v363
        %v1664 = vpop.f32.mrf.mxu0
        %v1665 = vadd.f32 %v1072, %v1664
        %1666 = vmatmul.f32.gmra.mxu0 %v369
        %v1667 = vpop.f32.mrf.mxu0
        %v1668 = vadd.f32 %v1072, %v1667
        %1669 = vmatmul.f32.gmra.mxu0 %v375
        %v1670 = vpop.f32.mrf.mxu0
        %v1671 = vadd.f32 %v1072, %v1670
        %1672 = vmatmul.f32.gmra.mxu0 %v381
        %v1673 = vpop.f32.mrf.mxu0
        %v1674 = vadd.f32 %v1072, %v1673
        %1675 = vmatmul.f32.gmra.mxu0 %v387
        %v1676 = vpop.f32.mrf.mxu0
        %v1677 = vadd.f32 %v1072, %v1676
        %1678 = vmatmul.f32.gmra.mxu0 %v393
        %v1679 = vpop.f32.mrf.mxu0
        %v1680 = vadd.f32 %v1072, %v1679
        %1681 = vmatmul.f32.gmra.mxu0 %v399
        %v1682 = vpop.f32.mrf.mxu0
        %v1683 = vadd.f32 %v1072, %v1682
        %1684 = vmatmul.f32.gmra.mxu0 %v405
        %v1685 = vpop.f32.mrf.mxu0
        %v1686 = vadd.f32 %v1072, %v1685
        %1687 = vmatmul.f32.gmra.mxu0 %v411
        %v1688 = vpop.f32.mrf.mxu0
        %v1689 = vadd.f32 %v1072, %v1688
        %1690 = vmatmul.f32.gmra.mxu0 %v417
        %v1691 = vpop.f32.mrf.mxu0
        %v1692 = vadd.f32 %v1072, %v1691
        %1693 = vmatmul.f32.gmra.mxu0 %v423
        %v1694 = vpop.f32.mrf.mxu0
        %v1695 = vadd.f32 %v1072, %v1694
        %1696 = vmatmul.f32.gmra.mxu0 %v429
        %v1697 = vpop.f32.mrf.mxu0
        %v1698 = vadd.f32 %v1072, %v1697
        %1699 = vmatmul.f32.gmra.mxu0 %v435
        %v1700 = vpop.f32.mrf.mxu0
        %v1701 = vadd.f32 %v1072, %v1700
        %1702 = vmatmul.f32.gmra.mxu0 %v441
        %v1703 = vpop.f32.mrf.mxu0
        %v1704 = vadd.f32 %v1072, %v1703
        %1705 = vmatmul.f32.gmra.mxu0 %v447
        %v1706 = vpop.f32.mrf.mxu0
        %v1707 = vadd.f32 %v1072, %v1706
        %1708 = vmatmul.f32.gmra.mxu0 %v453
        %v1709 = vpop.f32.mrf.mxu0
        %v1710 = vadd.f32 %v1072, %v1709
        %1711 = vmatmul.f32.gmra.mxu0 %v459
        %v1712 = vpop.f32.mrf.mxu0
        %v1713 = vadd.f32 %v1072, %v1712
        %1714 = vmatmul.f32.gmra.mxu0 %v465
        %v1715 = vpop.f32.mrf.mxu0
        %v1716 = vadd.f32 %v1072, %v1715
        %1717 = vmatmul.f32.gmra.mxu0 %v471
        %v1718 = vpop.f32.mrf.mxu0
        %v1719 = vadd.f32 %v1072, %v1718
        %1720 = vdwg.mxu0
        %1721 = vmatpush.msra.mxu0 %v664
        %1722 = vmatpush.msra.mxu0 %v658
        %1723 = vmatpush.msra.mxu0 %v652
        %1724 = vmatpush.msra.mxu0 %v646
        %1725 = vmatpush.msra.mxu0 %v640
        %1726 = vmatpush.msra.mxu0 %v634
        %1727 = vmatpush.msra.mxu0 %v628
        %1728 = vmatpush.msra.mxu0 %v622
        %1729 = vmatpush.msra.mxu0 %v616
        %1730 = vmatpush.msra.mxu0 %v610
        %1731 = vmatpush.msra.mxu0 %v604
        %1732 = vmatpush.msra.mxu0 %v598
        %1733 = vmatpush.msra.mxu0 %v592
        %1734 = vmatpush.msra.mxu0 %v586
        %1735 = vmatpush.msra.mxu0 %v580
        %1736 = vmatpush.msra.mxu0 %v574
        %1737 = vmatmul.f32.gmra.mxu0 %v328
        %v1738 = vpop.f32.mrf.mxu0
        %v1739 = vadd.f32 %v1647, %v1738
        %1740 = vmatmul.f32.gmra.mxu0 %v334
        %v1741 = vpop.f32.mrf.mxu0
        %v1742 = vadd.f32 %v1650, %v1741
        %1743 = vmatmul.f32.gmra.mxu0 %v340
        %v1744 = vpop.f32.mrf.mxu0
        %v1745 = vadd.f32 %v1653, %v1744
        %1746 = vmatmul.f32.gmra.mxu0 %v346
        %v1747 = vpop.f32.mrf.mxu0
        %v1748 = vadd.f32 %v1656, %v1747
        %1749 = vmatmul.f32.gmra.mxu0 %v352
        %v1750 = vpop.f32.mrf.mxu0
        %v1751 = vadd.f32 %v1659, %v1750
        %1752 = vmatmul.f32.gmra.mxu0 %v358
        %v1753 = vpop.f32.mrf.mxu0
        %v1754 = vadd.f32 %v1662, %v1753
        %1755 = vmatmul.f32.gmra.mxu0 %v364
        %v1756 = vpop.f32.mrf.mxu0
        %v1757 = vadd.f32 %v1665, %v1756
        %1758 = vmatmul.f32.gmra.mxu0 %v370
        %v1759 = vpop.f32.mrf.mxu0
        %v1760 = vadd.f32 %v1668, %v1759
        %1761 = vmatmul.f32.gmra.mxu0 %v376
        %v1762 = vpop.f32.mrf.mxu0
        %v1763 = vadd.f32 %v1671, %v1762
        %1764 = vmatmul.f32.gmra.mxu0 %v382
        %v1765 = vpop.f32.mrf.mxu0
        %v1766 = vadd.f32 %v1674, %v1765
        %1767 = vmatmul.f32.gmra.mxu0 %v388
        %v1768 = vpop.f32.mrf.mxu0
        %v1769 = vadd.f32 %v1677, %v1768
        %1770 = vmatmul.f32.gmra.mxu0 %v394
        %v1771 = vpop.f32.mrf.mxu0
        %v1772 = vadd.f32 %v1680, %v1771
        %1773 = vmatmul.f32.gmra.mxu0 %v400
        %v1774 = vpop.f32.mrf.mxu0
        %v1775 = vadd.f32 %v1683, %v1774
        %1776 = vmatmul.f32.gmra.mxu0 %v406
        %v1777 = vpop.f32.mrf.mxu0
        %v1778 = vadd.f32 %v1686, %v1777
        %1779 = vmatmul.f32.gmra.mxu0 %v412
        %v1780 = vpop.f32.mrf.mxu0
        %v1781 = vadd.f32 %v1689, %v1780
        %1782 = vmatmul.f32.gmra.mxu0 %v418
        %v1783 = vpop.f32.mrf.mxu0
        %v1784 = vadd.f32 %v1692, %v1783
        %1785 = vmatmul.f32.gmra.mxu0 %v424
        %v1786 = vpop.f32.mrf.mxu0
        %v1787 = vadd.f32 %v1695, %v1786
        %1788 = vmatmul.f32.gmra.mxu0 %v430
        %v1789 = vpop.f32.mrf.mxu0
        %v1790 = vadd.f32 %v1698, %v1789
        %1791 = vmatmul.f32.gmra.mxu0 %v436
        %v1792 = vpop.f32.mrf.mxu0
        %v1793 = vadd.f32 %v1701, %v1792
        %1794 = vmatmul.f32.gmra.mxu0 %v442
        %v1795 = vpop.f32.mrf.mxu0
        %v1796 = vadd.f32 %v1704, %v1795
        %1797 = vmatmul.f32.gmra.mxu0 %v448
        %v1798 = vpop.f32.mrf.mxu0
        %v1799 = vadd.f32 %v1707, %v1798
        %1800 = vmatmul.f32.gmra.mxu0 %v454
        %v1801 = vpop.f32.mrf.mxu0
        %v1802 = vadd.f32 %v1710, %v1801
        %1803 = vmatmul.f32.gmra.mxu0 %v460
        %v1804 = vpop.f32.mrf.mxu0
        %v1805 = vadd.f32 %v1713, %v1804
        %1806 = vmatmul.f32.gmra.mxu0 %v466
        %v1807 = vpop.f32.mrf.mxu0
        %v1808 = vadd.f32 %v1716, %v1807
        %1809 = vmatmul.f32.gmra.mxu0 %v472
        %v1810 = vpop.f32.mrf.mxu0
        %v1811 = vadd.f32 %v1719, %v1810
        %1812 = vdwg.mxu0
        %1813 = vmatpush.msra.mxu0 %v760
        %1814 = vmatpush.msra.mxu0 %v754
        %1815 = vmatpush.msra.mxu0 %v748
        %1816 = vmatpush.msra.mxu0 %v742
        %1817 = vmatpush.msra.mxu0 %v736
        %1818 = vmatpush.msra.mxu0 %v730
        %1819 = vmatpush.msra.mxu0 %v724
        %1820 = vmatpush.msra.mxu0 %v718
        %1821 = vmatpush.msra.mxu0 %v712
        %1822 = vmatpush.msra.mxu0 %v706
        %1823 = vmatpush.msra.mxu0 %v700
        %1824 = vmatpush.msra.mxu0 %v694
        %1825 = vmatpush.msra.mxu0 %v688
        %1826 = vmatpush.msra.mxu0 %v682
        %1827 = vmatpush.msra.mxu0 %v676
        %1828 = vmatpush.msra.mxu0 %v670
        %1829 = vmatmul.f32.gmra.mxu0 %v329
        %v1830 = vpop.f32.mrf.mxu0
        %v1831 = vadd.f32 %v1739, %v1830
        %1832 = vmatmul.f32.gmra.mxu0 %v335
        %v1833 = vpop.f32.mrf.mxu0
        %v1834 = vadd.f32 %v1742, %v1833
        %1835 = vmatmul.f32.gmra.mxu0 %v341
        %v1836 = vpop.f32.mrf.mxu0
        %v1837 = vadd.f32 %v1745, %v1836
        %1838 = vmatmul.f32.gmra.mxu0 %v347
        %v1839 = vpop.f32.mrf.mxu0
        %v1840 = vadd.f32 %v1748, %v1839
        %1841 = vmatmul.f32.gmra.mxu0 %v353
        %v1842 = vpop.f32.mrf.mxu0
        %v1843 = vadd.f32 %v1751, %v1842
        %1844 = vmatmul.f32.gmra.mxu0 %v359
        %v1845 = vpop.f32.mrf.mxu0
        %v1846 = vadd.f32 %v1754, %v1845
        %1847 = vmatmul.f32.gmra.mxu0 %v365
        %v1848 = vpop.f32.mrf.mxu0
        %v1849 = vadd.f32 %v1757, %v1848
        %1850 = vmatmul.f32.gmra.mxu0 %v371
        %v1851 = vpop.f32.mrf.mxu0
        %v1852 = vadd.f32 %v1760, %v1851
        %1853 = vmatmul.f32.gmra.mxu0 %v377
        %v1854 = vpop.f32.mrf.mxu0
        %v1855 = vadd.f32 %v1763, %v1854
        %1856 = vmatmul.f32.gmra.mxu0 %v383
        %v1857 = vpop.f32.mrf.mxu0
        %v1858 = vadd.f32 %v1766, %v1857
        %1859 = vmatmul.f32.gmra.mxu0 %v389
        %v1860 = vpop.f32.mrf.mxu0
        %v1861 = vadd.f32 %v1769, %v1860
        %1862 = vmatmul.f32.gmra.mxu0 %v395
        %v1863 = vpop.f32.mrf.mxu0
        %v1864 = vadd.f32 %v1772, %v1863
        %1865 = vmatmul.f32.gmra.mxu0 %v401
        %v1866 = vpop.f32.mrf.mxu0
        %v1867 = vadd.f32 %v1775, %v1866
        %1868 = vmatmul.f32.gmra.mxu0 %v407
        %v1869 = vpop.f32.mrf.mxu0
        %v1870 = vadd.f32 %v1778, %v1869
        %1871 = vmatmul.f32.gmra.mxu0 %v413
        %v1872 = vpop.f32.mrf.mxu0
        %v1873 = vadd.f32 %v1781, %v1872
        %1874 = vmatmul.f32.gmra.mxu0 %v419
        %v1875 = vpop.f32.mrf.mxu0
        %v1876 = vadd.f32 %v1784, %v1875
        %1877 = vmatmul.f32.gmra.mxu0 %v425
        %v1878 = vpop.f32.mrf.mxu0
        %v1879 = vadd.f32 %v1787, %v1878
        %1880 = vmatmul.f32.gmra.mxu0 %v431
        %v1881 = vpop.f32.mrf.mxu0
        %v1882 = vadd.f32 %v1790, %v1881
        %1883 = vmatmul.f32.gmra.mxu0 %v437
        %v1884 = vpop.f32.mrf.mxu0
        %v1885 = vadd.f32 %v1793, %v1884
        %1886 = vmatmul.f32.gmra.mxu0 %v443
        %v1887 = vpop.f32.mrf.mxu0
        %v1888 = vadd.f32 %v1796, %v1887
        %1889 = vmatmul.f32.gmra.mxu0 %v449
        %v1890 = vpop.f32.mrf.mxu0
        %v1891 = vadd.f32 %v1799, %v1890
        %1892 = vmatmul.f32.gmra.mxu0 %v455
        %v1893 = vpop.f32.mrf.mxu0
        %v1894 = vadd.f32 %v1802, %v1893
        %1895 = vmatmul.f32.gmra.mxu0 %v461
        %v1896 = vpop.f32.mrf.mxu0
        %v1897 = vadd.f32 %v1805, %v1896
        %1898 = vmatmul.f32.gmra.mxu0 %v467
        %v1899 = vpop.f32.mrf.mxu0
        %v1900 = vadd.f32 %v1808, %v1899
        %1901 = vmatmul.f32.gmra.mxu0 %v473
        %v1902 = vpop.f32.mrf.mxu0
        %v1903 = vadd.f32 %v1811, %v1902
        %1904 = vdwg.mxu0
        %1905 = vmatpush.msra.mxu0 %v856
        %1906 = vmatpush.msra.mxu0 %v850
        %1907 = vmatpush.msra.mxu0 %v844
        %1908 = vmatpush.msra.mxu0 %v838
        %1909 = vmatpush.msra.mxu0 %v832
        %1910 = vmatpush.msra.mxu0 %v826
        %1911 = vmatpush.msra.mxu0 %v820
        %1912 = vmatpush.msra.mxu0 %v814
        %1913 = vmatpush.msra.mxu0 %v808
        %1914 = vmatpush.msra.mxu0 %v802
        %1915 = vmatpush.msra.mxu0 %v796
        %1916 = vmatpush.msra.mxu0 %v790
        %1917 = vmatpush.msra.mxu0 %v784
        %1918 = vmatpush.msra.mxu0 %v778
        %1919 = vmatpush.msra.mxu0 %v772
        %1920 = vmatpush.msra.mxu0 %v766
        %1921 = vmatmul.f32.gmra.mxu0 %v330
        %v1922 = vpop.f32.mrf.mxu0
        %v1923 = vadd.f32 %v1831, %v1922
        %1924 = vmatmul.f32.gmra.mxu0 %v336
        %v1925 = vpop.f32.mrf.mxu0
        %v1926 = vadd.f32 %v1834, %v1925
        %1927 = vmatmul.f32.gmra.mxu0 %v342
        %v1928 = vpop.f32.mrf.mxu0
        %v1929 = vadd.f32 %v1837, %v1928
        %1930 = vmatmul.f32.gmra.mxu0 %v348
        %v1931 = vpop.f32.mrf.mxu0
        %v1932 = vadd.f32 %v1840, %v1931
        %1933 = vmatmul.f32.gmra.mxu0 %v354
        %v1934 = vpop.f32.mrf.mxu0
        %v1935 = vadd.f32 %v1843, %v1934
        %1936 = vmatmul.f32.gmra.mxu0 %v360
        %v1937 = vpop.f32.mrf.mxu0
        %v1938 = vadd.f32 %v1846, %v1937
        %1939 = vmatmul.f32.gmra.mxu0 %v366
        %v1940 = vpop.f32.mrf.mxu0
        %v1941 = vadd.f32 %v1849, %v1940
        %1942 = vmatmul.f32.gmra.mxu0 %v372
        %v1943 = vpop.f32.mrf.mxu0
        %v1944 = vadd.f32 %v1852, %v1943
        %1945 = vmatmul.f32.gmra.mxu0 %v378
        %v1946 = vpop.f32.mrf.mxu0
        %v1947 = vadd.f32 %v1855, %v1946
        %1948 = vmatmul.f32.gmra.mxu0 %v384
        %v1949 = vpop.f32.mrf.mxu0
        %v1950 = vadd.f32 %v1858, %v1949
        %1951 = vmatmul.f32.gmra.mxu0 %v390
        %v1952 = vpop.f32.mrf.mxu0
        %v1953 = vadd.f32 %v1861, %v1952
        %1954 = vmatmul.f32.gmra.mxu0 %v396
        %v1955 = vpop.f32.mrf.mxu0
        %v1956 = vadd.f32 %v1864, %v1955
        %1957 = vmatmul.f32.gmra.mxu0 %v402
        %v1958 = vpop.f32.mrf.mxu0
        %v1959 = vadd.f32 %v1867, %v1958
        %1960 = vmatmul.f32.gmra.mxu0 %v408
        %v1961 = vpop.f32.mrf.mxu0
        %v1962 = vadd.f32 %v1870, %v1961
        %1963 = vmatmul.f32.gmra.mxu0 %v414
        %v1964 = vpop.f32.mrf.mxu0
        %v1965 = vadd.f32 %v1873, %v1964
        %1966 = vmatmul.f32.gmra.mxu0 %v420
        %v1967 = vpop.f32.mrf.mxu0
        %v1968 = vadd.f32 %v1876, %v1967
        %1969 = vmatmul.f32.gmra.mxu0 %v426
        %v1970 = vpop.f32.mrf.mxu0
        %v1971 = vadd.f32 %v1879, %v1970
        %1972 = vmatmul.f32.gmra.mxu0 %v432
        %v1973 = vpop.f32.mrf.mxu0
        %v1974 = vadd.f32 %v1882, %v1973
        %1975 = vmatmul.f32.gmra.mxu0 %v438
        %v1976 = vpop.f32.mrf.mxu0
        %v1977 = vadd.f32 %v1885, %v1976
        %1978 = vmatmul.f32.gmra.mxu0 %v444
        %v1979 = vpop.f32.mrf.mxu0
        %v1980 = vadd.f32 %v1888, %v1979
        %1981 = vmatmul.f32.gmra.mxu0 %v450
        %v1982 = vpop.f32.mrf.mxu0
        %v1983 = vadd.f32 %v1891, %v1982
        %1984 = vmatmul.f32.gmra.mxu0 %v456
        %v1985 = vpop.f32.mrf.mxu0
        %v1986 = vadd.f32 %v1894, %v1985
        %1987 = vmatmul.f32.gmra.mxu0 %v462
        %v1988 = vpop.f32.mrf.mxu0
        %v1989 = vadd.f32 %v1897, %v1988
        %1990 = vmatmul.f32.gmra.mxu0 %v468
        %v1991 = vpop.f32.mrf.mxu0
        %v1992 = vadd.f32 %v1900, %v1991
        %1993 = vmatmul.f32.gmra.mxu0 %v474
        %v1994 = vpop.f32.mrf.mxu0
        %v1995 = vadd.f32 %v1903, %v1994
        %1996 = vdwg.mxu0
        %1997 = vmatpush.msra.mxu0 %v952
        %1998 = vmatpush.msra.mxu0 %v946
        %1999 = vmatpush.msra.mxu0 %v940
        %2000 = vmatpush.msra.mxu0 %v934
        %2001 = vmatpush.msra.mxu0 %v928
        %2002 = vmatpush.msra.mxu0 %v922
        %2003 = vmatpush.msra.mxu0 %v916
        %2004 = vmatpush.msra.mxu0 %v910
        %2005 = vmatpush.msra.mxu0 %v904
        %2006 = vmatpush.msra.mxu0 %v898
        %2007 = vmatpush.msra.mxu0 %v892
        %2008 = vmatpush.msra.mxu0 %v886
        %2009 = vmatpush.msra.mxu0 %v880
        %2010 = vmatpush.msra.mxu0 %v874
        %2011 = vmatpush.msra.mxu0 %v868
        %2012 = vmatpush.msra.mxu0 %v862
        %2013 = vmatmul.f32.gmra.mxu0 %v331
        %v2014 = vpop.f32.mrf.mxu0
        %v2015 = vadd.f32 %v1923, %v2014
        %2016 = vmatmul.f32.gmra.mxu0 %v337
        %v2017 = vpop.f32.mrf.mxu0
        %v2018 = vadd.f32 %v1926, %v2017
        %2019 = vmatmul.f32.gmra.mxu0 %v343
        %v2020 = vpop.f32.mrf.mxu0
        %v2021 = vadd.f32 %v1929, %v2020
        %2022 = vmatmul.f32.gmra.mxu0 %v349
        %v2023 = vpop.f32.mrf.mxu0
        %v2024 = vadd.f32 %v1932, %v2023
        %2025 = vmatmul.f32.gmra.mxu0 %v355
        %v2026 = vpop.f32.mrf.mxu0
        %v2027 = vadd.f32 %v1935, %v2026
        %2028 = vmatmul.f32.gmra.mxu0 %v361
        %v2029 = vpop.f32.mrf.mxu0
        %v2030 = vadd.f32 %v1938, %v2029
        %2031 = vmatmul.f32.gmra.mxu0 %v367
        %v2032 = vpop.f32.mrf.mxu0
        %v2033 = vadd.f32 %v1941, %v2032
        %2034 = vmatmul.f32.gmra.mxu0 %v373
        %v2035 = vpop.f32.mrf.mxu0
        %v2036 = vadd.f32 %v1944, %v2035
        %2037 = vmatmul.f32.gmra.mxu0 %v379
        %v2038 = vpop.f32.mrf.mxu0
        %v2039 = vadd.f32 %v1947, %v2038
        %2040 = vmatmul.f32.gmra.mxu0 %v385
        %v2041 = vpop.f32.mrf.mxu0
        %v2042 = vadd.f32 %v1950, %v2041
        %2043 = vmatmul.f32.gmra.mxu0 %v391
        %v2044 = vpop.f32.mrf.mxu0
        %v2045 = vadd.f32 %v1953, %v2044
        %2046 = vmatmul.f32.gmra.mxu0 %v397
        %v2047 = vpop.f32.mrf.mxu0
        %v2048 = vadd.f32 %v1956, %v2047
        %2049 = vmatmul.f32.gmra.mxu0 %v403
        %v2050 = vpop.f32.mrf.mxu0
        %v2051 = vadd.f32 %v1959, %v2050
        %2052 = vmatmul.f32.gmra.mxu0 %v409
        %v2053 = vpop.f32.mrf.mxu0
        %v2054 = vadd.f32 %v1962, %v2053
        %2055 = vmatmul.f32.gmra.mxu0 %v415
        %v2056 = vpop.f32.mrf.mxu0
        %v2057 = vadd.f32 %v1965, %v2056
        %2058 = vmatmul.f32.gmra.mxu0 %v421
        %v2059 = vpop.f32.mrf.mxu0
        %v2060 = vadd.f32 %v1968, %v2059
        %2061 = vmatmul.f32.gmra.mxu0 %v427
        %v2062 = vpop.f32.mrf.mxu0
        %v2063 = vadd.f32 %v1971, %v2062
        %2064 = vmatmul.f32.gmra.mxu0 %v433
        %v2065 = vpop.f32.mrf.mxu0
        %v2066 = vadd.f32 %v1974, %v2065
        %2067 = vmatmul.f32.gmra.mxu0 %v439
        %v2068 = vpop.f32.mrf.mxu0
        %v2069 = vadd.f32 %v1977, %v2068
        %2070 = vmatmul.f32.gmra.mxu0 %v445
        %v2071 = vpop.f32.mrf.mxu0
        %v2072 = vadd.f32 %v1980, %v2071
        %2073 = vmatmul.f32.gmra.mxu0 %v451
        %v2074 = vpop.f32.mrf.mxu0
        %v2075 = vadd.f32 %v1983, %v2074
        %2076 = vmatmul.f32.gmra.mxu0 %v457
        %v2077 = vpop.f32.mrf.mxu0
        %v2078 = vadd.f32 %v1986, %v2077
        %2079 = vmatmul.f32.gmra.mxu0 %v463
        %v2080 = vpop.f32.mrf.mxu0
        %v2081 = vadd.f32 %v1989, %v2080
        %2082 = vmatmul.f32.gmra.mxu0 %v469
        %v2083 = vpop.f32.mrf.mxu0
        %v2084 = vadd.f32 %v1992, %v2083
        %2085 = vmatmul.f32.gmra.mxu0 %v475
        %v2086 = vpop.f32.mrf.mxu0
        %v2087 = vadd.f32 %v1995, %v2086
        %2088 = vdwg.mxu0
        %2089 = vmatpush.msra.mxu0 %v1048
        %2090 = vmatpush.msra.mxu0 %v1042
        %2091 = vmatpush.msra.mxu0 %v1036
        %2092 = vmatpush.msra.mxu0 %v1030
        %2093 = vmatpush.msra.mxu0 %v1024
        %2094 = vmatpush.msra.mxu0 %v1018
        %2095 = vmatpush.msra.mxu0 %v1012
        %2096 = vmatpush.msra.mxu0 %v1006
        %2097 = vmatpush.msra.mxu0 %v1000
        %2098 = vmatpush.msra.mxu0 %v994
        %2099 = vmatpush.msra.mxu0 %v988
        %2100 = vmatpush.msra.mxu0 %v982
        %2101 = vmatpush.msra.mxu0 %v976
        %2102 = vmatpush.msra.mxu0 %v970
        %2103 = vmatpush.msra.mxu0 %v964
        %2104 = vmatpush.msra.mxu0 %v958
        %2105 = vmatmul.f32.gmra.mxu0 %v332
        %v2106 = vpop.f32.mrf.mxu0
        %v2107 = vadd.f32 %v2015, %v2106
        %2108 = vmatmul.f32.gmra.mxu0 %v338
        %v2109 = vpop.f32.mrf.mxu0
        %v2110 = vadd.f32 %v2018, %v2109
        %2111 = vmatmul.f32.gmra.mxu0 %v344
        %v2112 = vpop.f32.mrf.mxu0
        %v2113 = vadd.f32 %v2021, %v2112
        %2114 = vmatmul.f32.gmra.mxu0 %v350
        %v2115 = vpop.f32.mrf.mxu0
        %v2116 = vadd.f32 %v2024, %v2115
        %2117 = vmatmul.f32.gmra.mxu0 %v356
        %v2118 = vpop.f32.mrf.mxu0
        %v2119 = vadd.f32 %v2027, %v2118
        %2120 = vmatmul.f32.gmra.mxu0 %v362
        %v2121 = vpop.f32.mrf.mxu0
        %v2122 = vadd.f32 %v2030, %v2121
        %2123 = vmatmul.f32.gmra.mxu0 %v368
        %v2124 = vpop.f32.mrf.mxu0
        %v2125 = vadd.f32 %v2033, %v2124
        %2126 = vmatmul.f32.gmra.mxu0 %v374
        %v2127 = vpop.f32.mrf.mxu0
        %v2128 = vadd.f32 %v2036, %v2127
        %2129 = vmatmul.f32.gmra.mxu0 %v380
        %v2130 = vpop.f32.mrf.mxu0
        %v2131 = vadd.f32 %v2039, %v2130
        %2132 = vmatmul.f32.gmra.mxu0 %v386
        %v2133 = vpop.f32.mrf.mxu0
        %v2134 = vadd.f32 %v2042, %v2133
        %2135 = vmatmul.f32.gmra.mxu0 %v392
        %v2136 = vpop.f32.mrf.mxu0
        %v2137 = vadd.f32 %v2045, %v2136
        %2138 = vmatmul.f32.gmra.mxu0 %v398
        %v2139 = vpop.f32.mrf.mxu0
        %v2140 = vadd.f32 %v2048, %v2139
        %2141 = vmatmul.f32.gmra.mxu0 %v404
        %v2142 = vpop.f32.mrf.mxu0
        %v2143 = vadd.f32 %v2051, %v2142
        %2144 = vmatmul.f32.gmra.mxu0 %v410
        %v2145 = vpop.f32.mrf.mxu0
        %v2146 = vadd.f32 %v2054, %v2145
        %2147 = vmatmul.f32.gmra.mxu0 %v416
        %v2148 = vpop.f32.mrf.mxu0
        %v2149 = vadd.f32 %v2057, %v2148
        %2150 = vmatmul.f32.gmra.mxu0 %v422
        %v2151 = vpop.f32.mrf.mxu0
        %v2152 = vadd.f32 %v2060, %v2151
        %2153 = vmatmul.f32.gmra.mxu0 %v428
        %v2154 = vpop.f32.mrf.mxu0
        %v2155 = vadd.f32 %v2063, %v2154
        %2156 = vmatmul.f32.gmra.mxu0 %v434
        %v2157 = vpop.f32.mrf.mxu0
        %v2158 = vadd.f32 %v2066, %v2157
        %2159 = vmatmul.f32.gmra.mxu0 %v440
        %v2160 = vpop.f32.mrf.mxu0
        %v2161 = vadd.f32 %v2069, %v2160
        %2162 = vmatmul.f32.gmra.mxu0 %v446
        %v2163 = vpop.f32.mrf.mxu0
        %v2164 = vadd.f32 %v2072, %v2163
        %2165 = vmatmul.f32.gmra.mxu0 %v452
        %v2166 = vpop.f32.mrf.mxu0
        %v2167 = vadd.f32 %v2075, %v2166
        %2168 = vmatmul.f32.gmra.mxu0 %v458
        %v2169 = vpop.f32.mrf.mxu0
        %v2170 = vadd.f32 %v2078, %v2169
        %2171 = vmatmul.f32.gmra.mxu0 %v464
        %v2172 = vpop.f32.mrf.mxu0
        %v2173 = vadd.f32 %v2081, %v2172
        %2174 = vmatmul.f32.gmra.mxu0 %v470
        %v2175 = vpop.f32.mrf.mxu0
        %v2176 = vadd.f32 %v2084, %v2175
        %2177 = vmatmul.f32.gmra.mxu0 %v476
        %v2178 = vpop.f32.mrf.mxu0
        %v2179 = vadd.f32 %v2087, %v2178
        %2180 = vdwg.mxu0
        %2181 = vmatpush.msra.mxu0 %v569
        %2182 = vmatpush.msra.mxu0 %v563
        %2183 = vmatpush.msra.mxu0 %v557
        %2184 = vmatpush.msra.mxu0 %v551
        %2185 = vmatpush.msra.mxu0 %v545
        %2186 = vmatpush.msra.mxu0 %v539
        %2187 = vmatpush.msra.mxu0 %v533
        %2188 = vmatpush.msra.mxu0 %v527
        %2189 = vmatpush.msra.mxu0 %v521
        %2190 = vmatpush.msra.mxu0 %v515
        %2191 = vmatpush.msra.mxu0 %v509
        %2192 = vmatpush.msra.mxu0 %v503
        %2193 = vmatpush.msra.mxu0 %v497
        %2194 = vmatpush.msra.mxu0 %v491
        %2195 = vmatpush.msra.mxu0 %v485
        %2196 = vmatpush.msra.mxu0 %v479
        %2197 = vmatmul.f32.gmra.mxu0 %v327
        %v2198 = vpop.f32.mrf.mxu0
        %v2199 = vadd.f32 %v1073, %v2198
        %2200 = vmatmul.f32.gmra.mxu0 %v333
        %v2201 = vpop.f32.mrf.mxu0
        %v2202 = vadd.f32 %v1073, %v2201
        %2203 = vmatmul.f32.gmra.mxu0 %v339
        %v2204 = vpop.f32.mrf.mxu0
        %v2205 = vadd.f32 %v1073, %v2204
        %2206 = vmatmul.f32.gmra.mxu0 %v345
        %v2207 = vpop.f32.mrf.mxu0
        %v2208 = vadd.f32 %v1073, %v2207
        %2209 = vmatmul.f32.gmra.mxu0 %v351
        %v2210 = vpop.f32.mrf.mxu0
        %v2211 = vadd.f32 %v1073, %v2210
        %2212 = vmatmul.f32.gmra.mxu0 %v357
        %v2213 = vpop.f32.mrf.mxu0
        %v2214 = vadd.f32 %v1073, %v2213
        %2215 = vmatmul.f32.gmra.mxu0 %v363
        %v2216 = vpop.f32.mrf.mxu0
        %v2217 = vadd.f32 %v1073, %v2216
        %2218 = vmatmul.f32.gmra.mxu0 %v369
        %v2219 = vpop.f32.mrf.mxu0
        %v2220 = vadd.f32 %v1073, %v2219
        %2221 = vmatmul.f32.gmra.mxu0 %v375
        %v2222 = vpop.f32.mrf.mxu0
        %v2223 = vadd.f32 %v1073, %v2222
        %2224 = vmatmul.f32.gmra.mxu0 %v381
        %v2225 = vpop.f32.mrf.mxu0
        %v2226 = vadd.f32 %v1073, %v2225
        %2227 = vmatmul.f32.gmra.mxu0 %v387
        %v2228 = vpop.f32.mrf.mxu0
        %v2229 = vadd.f32 %v1073, %v2228
        %2230 = vmatmul.f32.gmra.mxu0 %v393
        %v2231 = vpop.f32.mrf.mxu0
        %v2232 = vadd.f32 %v1073, %v2231
        %2233 = vmatmul.f32.gmra.mxu0 %v399
        %v2234 = vpop.f32.mrf.mxu0
        %v2235 = vadd.f32 %v1073, %v2234
        %2236 = vmatmul.f32.gmra.mxu0 %v405
        %v2237 = vpop.f32.mrf.mxu0
        %v2238 = vadd.f32 %v1073, %v2237
        %2239 = vmatmul.f32.gmra.mxu0 %v411
        %v2240 = vpop.f32.mrf.mxu0
        %v2241 = vadd.f32 %v1073, %v2240
        %2242 = vmatmul.f32.gmra.mxu0 %v417
        %v2243 = vpop.f32.mrf.mxu0
        %v2244 = vadd.f32 %v1073, %v2243
        %2245 = vmatmul.f32.gmra.mxu0 %v423
        %v2246 = vpop.f32.mrf.mxu0
        %v2247 = vadd.f32 %v1073, %v2246
        %2248 = vmatmul.f32.gmra.mxu0 %v429
        %v2249 = vpop.f32.mrf.mxu0
        %v2250 = vadd.f32 %v1073, %v2249
        %2251 = vmatmul.f32.gmra.mxu0 %v435
        %v2252 = vpop.f32.mrf.mxu0
        %v2253 = vadd.f32 %v1073, %v2252
        %2254 = vmatmul.f32.gmra.mxu0 %v441
        %v2255 = vpop.f32.mrf.mxu0
        %v2256 = vadd.f32 %v1073, %v2255
        %2257 = vmatmul.f32.gmra.mxu0 %v447
        %v2258 = vpop.f32.mrf.mxu0
        %v2259 = vadd.f32 %v1073, %v2258
        %2260 = vmatmul.f32.gmra.mxu0 %v453
        %v2261 = vpop.f32.mrf.mxu0
        %v2262 = vadd.f32 %v1073, %v2261
        %2263 = vmatmul.f32.gmra.mxu0 %v459
        %v2264 = vpop.f32.mrf.mxu0
        %v2265 = vadd.f32 %v1073, %v2264
        %2266 = vmatmul.f32.gmra.mxu0 %v465
        %v2267 = vpop.f32.mrf.mxu0
        %v2268 = vadd.f32 %v1073, %v2267
        %2269 = vmatmul.f32.gmra.mxu0 %v471
        %v2270 = vpop.f32.mrf.mxu0
        %v2271 = vadd.f32 %v1073, %v2270
        %2272 = vdwg.mxu0
        %2273 = vmatpush.msra.mxu0 %v665
        %2274 = vmatpush.msra.mxu0 %v659
        %2275 = vmatpush.msra.mxu0 %v653
        %2276 = vmatpush.msra.mxu0 %v647
        %2277 = vmatpush.msra.mxu0 %v641
        %2278 = vmatpush.msra.mxu0 %v635
        %2279 = vmatpush.msra.mxu0 %v629
        %2280 = vmatpush.msra.mxu0 %v623
        %2281 = vmatpush.msra.mxu0 %v617
        %2282 = vmatpush.msra.mxu0 %v611
        %2283 = vmatpush.msra.mxu0 %v605
        %2284 = vmatpush.msra.mxu0 %v599
        %2285 = vmatpush.msra.mxu0 %v593
        %2286 = vmatpush.msra.mxu0 %v587
        %2287 = vmatpush.msra.mxu0 %v581
        %2288 = vmatpush.msra.mxu0 %v575
        %2289 = vmatmul.f32.gmra.mxu0 %v328
        %v2290 = vpop.f32.mrf.mxu0
        %v2291 = vadd.f32 %v2199, %v2290
        %2292 = vmatmul.f32.gmra.mxu0 %v334
        %v2293 = vpop.f32.mrf.mxu0
        %v2294 = vadd.f32 %v2202, %v2293
        %2295 = vmatmul.f32.gmra.mxu0 %v340
        %v2296 = vpop.f32.mrf.mxu0
        %v2297 = vadd.f32 %v2205, %v2296
        %2298 = vmatmul.f32.gmra.mxu0 %v346
        %v2299 = vpop.f32.mrf.mxu0
        %v2300 = vadd.f32 %v2208, %v2299
        %2301 = vmatmul.f32.gmra.mxu0 %v352
        %v2302 = vpop.f32.mrf.mxu0
        %v2303 = vadd.f32 %v2211, %v2302
        %2304 = vmatmul.f32.gmra.mxu0 %v358
        %v2305 = vpop.f32.mrf.mxu0
        %v2306 = vadd.f32 %v2214, %v2305
        %2307 = vmatmul.f32.gmra.mxu0 %v364
        %v2308 = vpop.f32.mrf.mxu0
        %v2309 = vadd.f32 %v2217, %v2308
        %2310 = vmatmul.f32.gmra.mxu0 %v370
        %v2311 = vpop.f32.mrf.mxu0
        %v2312 = vadd.f32 %v2220, %v2311
        %2313 = vmatmul.f32.gmra.mxu0 %v376
        %v2314 = vpop.f32.mrf.mxu0
        %v2315 = vadd.f32 %v2223, %v2314
        %2316 = vmatmul.f32.gmra.mxu0 %v382
        %v2317 = vpop.f32.mrf.mxu0
        %v2318 = vadd.f32 %v2226, %v2317
        %2319 = vmatmul.f32.gmra.mxu0 %v388
        %v2320 = vpop.f32.mrf.mxu0
        %v2321 = vadd.f32 %v2229, %v2320
        %2322 = vmatmul.f32.gmra.mxu0 %v394
        %v2323 = vpop.f32.mrf.mxu0
        %v2324 = vadd.f32 %v2232, %v2323
        %2325 = vmatmul.f32.gmra.mxu0 %v400
        %v2326 = vpop.f32.mrf.mxu0
        %v2327 = vadd.f32 %v2235, %v2326
        %2328 = vmatmul.f32.gmra.mxu0 %v406
        %v2329 = vpop.f32.mrf.mxu0
        %v2330 = vadd.f32 %v2238, %v2329
        %2331 = vmatmul.f32.gmra.mxu0 %v412
        %v2332 = vpop.f32.mrf.mxu0
        %v2333 = vadd.f32 %v2241, %v2332
        %2334 = vmatmul.f32.gmra.mxu0 %v418
        %v2335 = vpop.f32.mrf.mxu0
        %v2336 = vadd.f32 %v2244, %v2335
        %2337 = vmatmul.f32.gmra.mxu0 %v424
        %v2338 = vpop.f32.mrf.mxu0
        %v2339 = vadd.f32 %v2247, %v2338
        %2340 = vmatmul.f32.gmra.mxu0 %v430
        %v2341 = vpop.f32.mrf.mxu0
        %v2342 = vadd.f32 %v2250, %v2341
        %2343 = vmatmul.f32.gmra.mxu0 %v436
        %v2344 = vpop.f32.mrf.mxu0
        %v2345 = vadd.f32 %v2253, %v2344
        %2346 = vmatmul.f32.gmra.mxu0 %v442
        %v2347 = vpop.f32.mrf.mxu0
        %v2348 = vadd.f32 %v2256, %v2347
        %2349 = vmatmul.f32.gmra.mxu0 %v448
        %v2350 = vpop.f32.mrf.mxu0
        %v2351 = vadd.f32 %v2259, %v2350
        %2352 = vmatmul.f32.gmra.mxu0 %v454
        %v2353 = vpop.f32.mrf.mxu0
        %v2354 = vadd.f32 %v2262, %v2353
        %2355 = vmatmul.f32.gmra.mxu0 %v460
        %v2356 = vpop.f32.mrf.mxu0
        %v2357 = vadd.f32 %v2265, %v2356
        %2358 = vmatmul.f32.gmra.mxu0 %v466
        %v2359 = vpop.f32.mrf.mxu0
        %v2360 = vadd.f32 %v2268, %v2359
        %2361 = vmatmul.f32.gmra.mxu0 %v472
        %v2362 = vpop.f32.mrf.mxu0
        %v2363 = vadd.f32 %v2271, %v2362
        %2364 = vdwg.mxu0
        %2365 = vmatpush.msra.mxu0 %v761
        %2366 = vmatpush.msra.mxu0 %v755
        %2367 = vmatpush.msra.mxu0 %v749
        %2368 = vmatpush.msra.mxu0 %v743
        %2369 = vmatpush.msra.mxu0 %v737
        %2370 = vmatpush.msra.mxu0 %v731
        %2371 = vmatpush.msra.mxu0 %v725
        %2372 = vmatpush.msra.mxu0 %v719
        %2373 = vmatpush.msra.mxu0 %v713
        %2374 = vmatpush.msra.mxu0 %v707
        %2375 = vmatpush.msra.mxu0 %v701
        %2376 = vmatpush.msra.mxu0 %v695
        %2377 = vmatpush.msra.mxu0 %v689
        %2378 = vmatpush.msra.mxu0 %v683
        %2379 = vmatpush.msra.mxu0 %v677
        %2380 = vmatpush.msra.mxu0 %v671
        %2381 = vmatmul.f32.gmra.mxu0 %v329
        %v2382 = vpop.f32.mrf.mxu0
        %v2383 = vadd.f32 %v2291, %v2382
        %2384 = vmatmul.f32.gmra.mxu0 %v335
        %v2385 = vpop.f32.mrf.mxu0
        %v2386 = vadd.f32 %v2294, %v2385
        %2387 = vmatmul.f32.gmra.mxu0 %v341
        %v2388 = vpop.f32.mrf.mxu0
        %v2389 = vadd.f32 %v2297, %v2388
        %2390 = vmatmul.f32.gmra.mxu0 %v347
        %v2391 = vpop.f32.mrf.mxu0
        %v2392 = vadd.f32 %v2300, %v2391
        %2393 = vmatmul.f32.gmra.mxu0 %v353
        %v2394 = vpop.f32.mrf.mxu0
        %v2395 = vadd.f32 %v2303, %v2394
        %2396 = vmatmul.f32.gmra.mxu0 %v359
        %v2397 = vpop.f32.mrf.mxu0
        %v2398 = vadd.f32 %v2306, %v2397
        %2399 = vmatmul.f32.gmra.mxu0 %v365
        %v2400 = vpop.f32.mrf.mxu0
        %v2401 = vadd.f32 %v2309, %v2400
        %2402 = vmatmul.f32.gmra.mxu0 %v371
        %v2403 = vpop.f32.mrf.mxu0
        %v2404 = vadd.f32 %v2312, %v2403
        %2405 = vmatmul.f32.gmra.mxu0 %v377
        %v2406 = vpop.f32.mrf.mxu0
        %v2407 = vadd.f32 %v2315, %v2406
        %2408 = vmatmul.f32.gmra.mxu0 %v383
        %v2409 = vpop.f32.mrf.mxu0
        %v2410 = vadd.f32 %v2318, %v2409
        %2411 = vmatmul.f32.gmra.mxu0 %v389
        %v2412 = vpop.f32.mrf.mxu0
        %v2413 = vadd.f32 %v2321, %v2412
        %2414 = vmatmul.f32.gmra.mxu0 %v395
        %v2415 = vpop.f32.mrf.mxu0
        %v2416 = vadd.f32 %v2324, %v2415
        %2417 = vmatmul.f32.gmra.mxu0 %v401
        %v2418 = vpop.f32.mrf.mxu0
        %v2419 = vadd.f32 %v2327, %v2418
        %2420 = vmatmul.f32.gmra.mxu0 %v407
        %v2421 = vpop.f32.mrf.mxu0
        %v2422 = vadd.f32 %v2330, %v2421
        %2423 = vmatmul.f32.gmra.mxu0 %v413
        %v2424 = vpop.f32.mrf.mxu0
        %v2425 = vadd.f32 %v2333, %v2424
        %2426 = vmatmul.f32.gmra.mxu0 %v419
        %v2427 = vpop.f32.mrf.mxu0
        %v2428 = vadd.f32 %v2336, %v2427
        %2429 = vmatmul.f32.gmra.mxu0 %v425
        %v2430 = vpop.f32.mrf.mxu0
        %v2431 = vadd.f32 %v2339, %v2430
        %2432 = vmatmul.f32.gmra.mxu0 %v431
        %v2433 = vpop.f32.mrf.mxu0
        %v2434 = vadd.f32 %v2342, %v2433
        %2435 = vmatmul.f32.gmra.mxu0 %v437
        %v2436 = vpop.f32.mrf.mxu0
        %v2437 = vadd.f32 %v2345, %v2436
        %2438 = vmatmul.f32.gmra.mxu0 %v443
        %v2439 = vpop.f32.mrf.mxu0
        %v2440 = vadd.f32 %v2348, %v2439
        %2441 = vmatmul.f32.gmra.mxu0 %v449
        %v2442 = vpop.f32.mrf.mxu0
        %v2443 = vadd.f32 %v2351, %v2442
        %2444 = vmatmul.f32.gmra.mxu0 %v455
        %v2445 = vpop.f32.mrf.mxu0
        %v2446 = vadd.f32 %v2354, %v2445
        %2447 = vmatmul.f32.gmra.mxu0 %v461
        %v2448 = vpop.f32.mrf.mxu0
        %v2449 = vadd.f32 %v2357, %v2448
        %2450 = vmatmul.f32.gmra.mxu0 %v467
        %v2451 = vpop.f32.mrf.mxu0
        %v2452 = vadd.f32 %v2360, %v2451
        %2453 = vmatmul.f32.gmra.mxu0 %v473
        %v2454 = vpop.f32.mrf.mxu0
        %v2455 = vadd.f32 %v2363, %v2454
        %2456 = vdwg.mxu0
        %2457 = vmatpush.msra.mxu0 %v857
        %2458 = vmatpush.msra.mxu0 %v851
        %2459 = vmatpush.msra.mxu0 %v845
        %2460 = vmatpush.msra.mxu0 %v839
        %2461 = vmatpush.msra.mxu0 %v833
        %2462 = vmatpush.msra.mxu0 %v827
        %2463 = vmatpush.msra.mxu0 %v821
        %2464 = vmatpush.msra.mxu0 %v815
        %2465 = vmatpush.msra.mxu0 %v809
        %2466 = vmatpush.msra.mxu0 %v803
        %2467 = vmatpush.msra.mxu0 %v797
        %2468 = vmatpush.msra.mxu0 %v791
        %2469 = vmatpush.msra.mxu0 %v785
        %2470 = vmatpush.msra.mxu0 %v779
        %2471 = vmatpush.msra.mxu0 %v773
        %2472 = vmatpush.msra.mxu0 %v767
        %2473 = vmatmul.f32.gmra.mxu0 %v330
        %v2474 = vpop.f32.mrf.mxu0
        %v2475 = vadd.f32 %v2383, %v2474
        %2476 = vmatmul.f32.gmra.mxu0 %v336
        %v2477 = vpop.f32.mrf.mxu0
        %v2478 = vadd.f32 %v2386, %v2477
        %2479 = vmatmul.f32.gmra.mxu0 %v342
        %v2480 = vpop.f32.mrf.mxu0
        %v2481 = vadd.f32 %v2389, %v2480
        %2482 = vmatmul.f32.gmra.mxu0 %v348
        %v2483 = vpop.f32.mrf.mxu0
        %v2484 = vadd.f32 %v2392, %v2483
        %2485 = vmatmul.f32.gmra.mxu0 %v354
        %v2486 = vpop.f32.mrf.mxu0
        %v2487 = vadd.f32 %v2395, %v2486
        %2488 = vmatmul.f32.gmra.mxu0 %v360
        %v2489 = vpop.f32.mrf.mxu0
        %v2490 = vadd.f32 %v2398, %v2489
        %2491 = vmatmul.f32.gmra.mxu0 %v366
        %v2492 = vpop.f32.mrf.mxu0
        %v2493 = vadd.f32 %v2401, %v2492
        %2494 = vmatmul.f32.gmra.mxu0 %v372
        %v2495 = vpop.f32.mrf.mxu0
        %v2496 = vadd.f32 %v2404, %v2495
        %2497 = vmatmul.f32.gmra.mxu0 %v378
        %v2498 = vpop.f32.mrf.mxu0
        %v2499 = vadd.f32 %v2407, %v2498
        %2500 = vmatmul.f32.gmra.mxu0 %v384
        %v2501 = vpop.f32.mrf.mxu0
        %v2502 = vadd.f32 %v2410, %v2501
        %2503 = vmatmul.f32.gmra.mxu0 %v390
        %v2504 = vpop.f32.mrf.mxu0
        %v2505 = vadd.f32 %v2413, %v2504
        %2506 = vmatmul.f32.gmra.mxu0 %v396
        %v2507 = vpop.f32.mrf.mxu0
        %v2508 = vadd.f32 %v2416, %v2507
        %2509 = vmatmul.f32.gmra.mxu0 %v402
        %v2510 = vpop.f32.mrf.mxu0
        %v2511 = vadd.f32 %v2419, %v2510
        %2512 = vmatmul.f32.gmra.mxu0 %v408
        %v2513 = vpop.f32.mrf.mxu0
        %v2514 = vadd.f32 %v2422, %v2513
        %2515 = vmatmul.f32.gmra.mxu0 %v414
        %v2516 = vpop.f32.mrf.mxu0
        %v2517 = vadd.f32 %v2425, %v2516
        %2518 = vmatmul.f32.gmra.mxu0 %v420
        %v2519 = vpop.f32.mrf.mxu0
        %v2520 = vadd.f32 %v2428, %v2519
        %2521 = vmatmul.f32.gmra.mxu0 %v426
        %v2522 = vpop.f32.mrf.mxu0
        %v2523 = vadd.f32 %v2431, %v2522
        %2524 = vmatmul.f32.gmra.mxu0 %v432
        %v2525 = vpop.f32.mrf.mxu0
        %v2526 = vadd.f32 %v2434, %v2525
        %2527 = vmatmul.f32.gmra.mxu0 %v438
        %v2528 = vpop.f32.mrf.mxu0
        %v2529 = vadd.f32 %v2437, %v2528
        %2530 = vmatmul.f32.gmra.mxu0 %v444
        %v2531 = vpop.f32.mrf.mxu0
        %v2532 = vadd.f32 %v2440, %v2531
        %2533 = vmatmul.f32.gmra.mxu0 %v450
        %v2534 = vpop.f32.mrf.mxu0
        %v2535 = vadd.f32 %v2443, %v2534
        %2536 = vmatmul.f32.gmra.mxu0 %v456
        %v2537 = vpop.f32.mrf.mxu0
        %v2538 = vadd.f32 %v2446, %v2537
        %2539 = vmatmul.f32.gmra.mxu0 %v462
        %v2540 = vpop.f32.mrf.mxu0
        %v2541 = vadd.f32 %v2449, %v2540
        %2542 = vmatmul.f32.gmra.mxu0 %v468
        %v2543 = vpop.f32.mrf.mxu0
        %v2544 = vadd.f32 %v2452, %v2543
        %2545 = vmatmul.f32.gmra.mxu0 %v474
        %v2546 = vpop.f32.mrf.mxu0
        %v2547 = vadd.f32 %v2455, %v2546
        %2548 = vdwg.mxu0
        %2549 = vmatpush.msra.mxu0 %v953
        %2550 = vmatpush.msra.mxu0 %v947
        %2551 = vmatpush.msra.mxu0 %v941
        %2552 = vmatpush.msra.mxu0 %v935
        %2553 = vmatpush.msra.mxu0 %v929
        %2554 = vmatpush.msra.mxu0 %v923
        %2555 = vmatpush.msra.mxu0 %v917
        %2556 = vmatpush.msra.mxu0 %v911
        %2557 = vmatpush.msra.mxu0 %v905
        %2558 = vmatpush.msra.mxu0 %v899
        %2559 = vmatpush.msra.mxu0 %v893
        %2560 = vmatpush.msra.mxu0 %v887
        %2561 = vmatpush.msra.mxu0 %v881
        %2562 = vmatpush.msra.mxu0 %v875
        %2563 = vmatpush.msra.mxu0 %v869
        %2564 = vmatpush.msra.mxu0 %v863
        %2565 = vmatmul.f32.gmra.mxu0 %v331
        %v2566 = vpop.f32.mrf.mxu0
        %v2567 = vadd.f32 %v2475, %v2566
        %2568 = vmatmul.f32.gmra.mxu0 %v337
        %v2569 = vpop.f32.mrf.mxu0
        %v2570 = vadd.f32 %v2478, %v2569
        %2571 = vmatmul.f32.gmra.mxu0 %v343
        %v2572 = vpop.f32.mrf.mxu0
        %v2573 = vadd.f32 %v2481, %v2572
        %2574 = vmatmul.f32.gmra.mxu0 %v349
        %v2575 = vpop.f32.mrf.mxu0
        %v2576 = vadd.f32 %v2484, %v2575
        %2577 = vmatmul.f32.gmra.mxu0 %v355
        %v2578 = vpop.f32.mrf.mxu0
        %v2579 = vadd.f32 %v2487, %v2578
        %2580 = vmatmul.f32.gmra.mxu0 %v361
        %v2581 = vpop.f32.mrf.mxu0
        %v2582 = vadd.f32 %v2490, %v2581
        %2583 = vmatmul.f32.gmra.mxu0 %v367
        %v2584 = vpop.f32.mrf.mxu0
        %v2585 = vadd.f32 %v2493, %v2584
        %2586 = vmatmul.f32.gmra.mxu0 %v373
        %v2587 = vpop.f32.mrf.mxu0
        %v2588 = vadd.f32 %v2496, %v2587
        %2589 = vmatmul.f32.gmra.mxu0 %v379
        %v2590 = vpop.f32.mrf.mxu0
        %v2591 = vadd.f32 %v2499, %v2590
        %2592 = vmatmul.f32.gmra.mxu0 %v385
        %v2593 = vpop.f32.mrf.mxu0
        %v2594 = vadd.f32 %v2502, %v2593
        %2595 = vmatmul.f32.gmra.mxu0 %v391
        %v2596 = vpop.f32.mrf.mxu0
        %v2597 = vadd.f32 %v2505, %v2596
        %2598 = vmatmul.f32.gmra.mxu0 %v397
        %v2599 = vpop.f32.mrf.mxu0
        %v2600 = vadd.f32 %v2508, %v2599
        %2601 = vmatmul.f32.gmra.mxu0 %v403
        %v2602 = vpop.f32.mrf.mxu0
        %v2603 = vadd.f32 %v2511, %v2602
        %2604 = vmatmul.f32.gmra.mxu0 %v409
        %v2605 = vpop.f32.mrf.mxu0
        %v2606 = vadd.f32 %v2514, %v2605
        %2607 = vmatmul.f32.gmra.mxu0 %v415
        %v2608 = vpop.f32.mrf.mxu0
        %v2609 = vadd.f32 %v2517, %v2608
        %2610 = vmatmul.f32.gmra.mxu0 %v421
        %v2611 = vpop.f32.mrf.mxu0
        %v2612 = vadd.f32 %v2520, %v2611
        %2613 = vmatmul.f32.gmra.mxu0 %v427
        %v2614 = vpop.f32.mrf.mxu0
        %v2615 = vadd.f32 %v2523, %v2614
        %2616 = vmatmul.f32.gmra.mxu0 %v433
        %v2617 = vpop.f32.mrf.mxu0
        %v2618 = vadd.f32 %v2526, %v2617
        %2619 = vmatmul.f32.gmra.mxu0 %v439
        %v2620 = vpop.f32.mrf.mxu0
        %v2621 = vadd.f32 %v2529, %v2620
        %2622 = vmatmul.f32.gmra.mxu0 %v445
        %v2623 = vpop.f32.mrf.mxu0
        %v2624 = vadd.f32 %v2532, %v2623
        %2625 = vmatmul.f32.gmra.mxu0 %v451
        %v2626 = vpop.f32.mrf.mxu0
        %v2627 = vadd.f32 %v2535, %v2626
        %2628 = vmatmul.f32.gmra.mxu0 %v457
        %v2629 = vpop.f32.mrf.mxu0
        %v2630 = vadd.f32 %v2538, %v2629
        %2631 = vmatmul.f32.gmra.mxu0 %v463
        %v2632 = vpop.f32.mrf.mxu0
        %v2633 = vadd.f32 %v2541, %v2632
        %2634 = vmatmul.f32.gmra.mxu0 %v469
        %v2635 = vpop.f32.mrf.mxu0
        %v2636 = vadd.f32 %v2544, %v2635
        %2637 = vmatmul.f32.gmra.mxu0 %v475
        %v2638 = vpop.f32.mrf.mxu0
        %v2639 = vadd.f32 %v2547, %v2638
        %2640 = vdwg.mxu0
        %2641 = vmatpush.msra.mxu0 %v1049
        %2642 = vmatpush.msra.mxu0 %v1043
        %2643 = vmatpush.msra.mxu0 %v1037
        %2644 = vmatpush.msra.mxu0 %v1031
        %2645 = vmatpush.msra.mxu0 %v1025
        %2646 = vmatpush.msra.mxu0 %v1019
        %2647 = vmatpush.msra.mxu0 %v1013
        %2648 = vmatpush.msra.mxu0 %v1007
        %2649 = vmatpush.msra.mxu0 %v1001
        %2650 = vmatpush.msra.mxu0 %v995
        %2651 = vmatpush.msra.mxu0 %v989
        %2652 = vmatpush.msra.mxu0 %v983
        %2653 = vmatpush.msra.mxu0 %v977
        %2654 = vmatpush.msra.mxu0 %v971
        %2655 = vmatpush.msra.mxu0 %v965
        %2656 = vmatpush.msra.mxu0 %v959
        %2657 = vmatmul.f32.gmra.mxu0 %v332
        %v2658 = vpop.f32.mrf.mxu0
        %v2659 = vadd.f32 %v2567, %v2658
        %2660 = vmatmul.f32.gmra.mxu0 %v338
        %v2661 = vpop.f32.mrf.mxu0
        %v2662 = vadd.f32 %v2570, %v2661
        %2663 = vmatmul.f32.gmra.mxu0 %v344
        %v2664 = vpop.f32.mrf.mxu0
        %v2665 = vadd.f32 %v2573, %v2664
        %2666 = vmatmul.f32.gmra.mxu0 %v350
        %v2667 = vpop.f32.mrf.mxu0
        %v2668 = vadd.f32 %v2576, %v2667
        %2669 = vmatmul.f32.gmra.mxu0 %v356
        %v2670 = vpop.f32.mrf.mxu0
        %v2671 = vadd.f32 %v2579, %v2670
        %2672 = vmatmul.f32.gmra.mxu0 %v362
        %v2673 = vpop.f32.mrf.mxu0
        %v2674 = vadd.f32 %v2582, %v2673
        %2675 = vmatmul.f32.gmra.mxu0 %v368
        %v2676 = vpop.f32.mrf.mxu0
        %v2677 = vadd.f32 %v2585, %v2676
        %2678 = vmatmul.f32.gmra.mxu0 %v374
        %v2679 = vpop.f32.mrf.mxu0
        %v2680 = vadd.f32 %v2588, %v2679
        %2681 = vmatmul.f32.gmra.mxu0 %v380
        %v2682 = vpop.f32.mrf.mxu0
        %v2683 = vadd.f32 %v2591, %v2682
        %2684 = vmatmul.f32.gmra.mxu0 %v386
        %v2685 = vpop.f32.mrf.mxu0
        %v2686 = vadd.f32 %v2594, %v2685
        %2687 = vmatmul.f32.gmra.mxu0 %v392
        %v2688 = vpop.f32.mrf.mxu0
        %v2689 = vadd.f32 %v2597, %v2688
        %2690 = vmatmul.f32.gmra.mxu0 %v398
        %v2691 = vpop.f32.mrf.mxu0
        %v2692 = vadd.f32 %v2600, %v2691
        %2693 = vmatmul.f32.gmra.mxu0 %v404
        %v2694 = vpop.f32.mrf.mxu0
        %v2695 = vadd.f32 %v2603, %v2694
        %2696 = vmatmul.f32.gmra.mxu0 %v410
        %v2697 = vpop.f32.mrf.mxu0
        %v2698 = vadd.f32 %v2606, %v2697
        %2699 = vmatmul.f32.gmra.mxu0 %v416
        %v2700 = vpop.f32.mrf.mxu0
        %v2701 = vadd.f32 %v2609, %v2700
        %2702 = vmatmul.f32.gmra.mxu0 %v422
        %v2703 = vpop.f32.mrf.mxu0
        %v2704 = vadd.f32 %v2612, %v2703
        %2705 = vmatmul.f32.gmra.mxu0 %v428
        %v2706 = vpop.f32.mrf.mxu0
        %v2707 = vadd.f32 %v2615, %v2706
        %2708 = vmatmul.f32.gmra.mxu0 %v434
        %v2709 = vpop.f32.mrf.mxu0
        %v2710 = vadd.f32 %v2618, %v2709
        %2711 = vmatmul.f32.gmra.mxu0 %v440
        %v2712 = vpop.f32.mrf.mxu0
        %v2713 = vadd.f32 %v2621, %v2712
        %2714 = vmatmul.f32.gmra.mxu0 %v446
        %v2715 = vpop.f32.mrf.mxu0
        %v2716 = vadd.f32 %v2624, %v2715
        %2717 = vmatmul.f32.gmra.mxu0 %v452
        %v2718 = vpop.f32.mrf.mxu0
        %v2719 = vadd.f32 %v2627, %v2718
        %2720 = vmatmul.f32.gmra.mxu0 %v458
        %v2721 = vpop.f32.mrf.mxu0
        %v2722 = vadd.f32 %v2630, %v2721
        %2723 = vmatmul.f32.gmra.mxu0 %v464
        %v2724 = vpop.f32.mrf.mxu0
        %v2725 = vadd.f32 %v2633, %v2724
        %2726 = vmatmul.f32.gmra.mxu0 %v470
        %v2727 = vpop.f32.mrf.mxu0
        %v2728 = vadd.f32 %v2636, %v2727
        %2729 = vmatmul.f32.gmra.mxu0 %v476
        %v2730 = vpop.f32.mrf.mxu0
        %v2731 = vadd.f32 %v2639, %v2730
        %2732 = vdwg.mxu0
        %2733 = vmatpush.msra.mxu0 %v570
        %2734 = vmatpush.msra.mxu0 %v564
        %2735 = vmatpush.msra.mxu0 %v558
        %2736 = vmatpush.msra.mxu0 %v552
        %2737 = vmatpush.msra.mxu0 %v546
        %2738 = vmatpush.msra.mxu0 %v540
        %2739 = vmatpush.msra.mxu0 %v534
        %2740 = vmatpush.msra.mxu0 %v528
        %2741 = vmatpush.msra.mxu0 %v522
        %2742 = vmatpush.msra.mxu0 %v516
        %2743 = vmatpush.msra.mxu0 %v510
        %2744 = vmatpush.msra.mxu0 %v504
        %2745 = vmatpush.msra.mxu0 %v498
        %2746 = vmatpush.msra.mxu0 %v492
        %2747 = vmatpush.msra.mxu0 %v486
        %2748 = vmatpush.msra.mxu0 %v480
        %2749 = vmatmul.f32.gmra.mxu0 %v327
        %v2750 = vpop.f32.mrf.mxu0
        %v2751 = vadd.f32 %v1074, %v2750
        %2752 = vmatmul.f32.gmra.mxu0 %v333
        %v2753 = vpop.f32.mrf.mxu0
        %v2754 = vadd.f32 %v1074, %v2753
        %2755 = vmatmul.f32.gmra.mxu0 %v339
        %v2756 = vpop.f32.mrf.mxu0
        %v2757 = vadd.f32 %v1074, %v2756
        %2758 = vmatmul.f32.gmra.mxu0 %v345
        %v2759 = vpop.f32.mrf.mxu0
        %v2760 = vadd.f32 %v1074, %v2759
        %2761 = vmatmul.f32.gmra.mxu0 %v351
        %v2762 = vpop.f32.mrf.mxu0
        %v2763 = vadd.f32 %v1074, %v2762
        %2764 = vmatmul.f32.gmra.mxu0 %v357
        %v2765 = vpop.f32.mrf.mxu0
        %v2766 = vadd.f32 %v1074, %v2765
        %2767 = vmatmul.f32.gmra.mxu0 %v363
        %v2768 = vpop.f32.mrf.mxu0
        %v2769 = vadd.f32 %v1074, %v2768
        %2770 = vmatmul.f32.gmra.mxu0 %v369
        %v2771 = vpop.f32.mrf.mxu0
        %v2772 = vadd.f32 %v1074, %v2771
        %2773 = vmatmul.f32.gmra.mxu0 %v375
        %v2774 = vpop.f32.mrf.mxu0
        %v2775 = vadd.f32 %v1074, %v2774
        %2776 = vmatmul.f32.gmra.mxu0 %v381
        %v2777 = vpop.f32.mrf.mxu0
        %v2778 = vadd.f32 %v1074, %v2777
        %2779 = vmatmul.f32.gmra.mxu0 %v387
        %v2780 = vpop.f32.mrf.mxu0
        %v2781 = vadd.f32 %v1074, %v2780
        %2782 = vmatmul.f32.gmra.mxu0 %v393
        %v2783 = vpop.f32.mrf.mxu0
        %v2784 = vadd.f32 %v1074, %v2783
        %2785 = vmatmul.f32.gmra.mxu0 %v399
        %v2786 = vpop.f32.mrf.mxu0
        %v2787 = vadd.f32 %v1074, %v2786
        %2788 = vmatmul.f32.gmra.mxu0 %v405
        %v2789 = vpop.f32.mrf.mxu0
        %v2790 = vadd.f32 %v1074, %v2789
        %2791 = vmatmul.f32.gmra.mxu0 %v411
        %v2792 = vpop.f32.mrf.mxu0
        %v2793 = vadd.f32 %v1074, %v2792
        %2794 = vmatmul.f32.gmra.mxu0 %v417
        %v2795 = vpop.f32.mrf.mxu0
        %v2796 = vadd.f32 %v1074, %v2795
        %2797 = vmatmul.f32.gmra.mxu0 %v423
        %v2798 = vpop.f32.mrf.mxu0
        %v2799 = vadd.f32 %v1074, %v2798
        %2800 = vmatmul.f32.gmra.mxu0 %v429
        %v2801 = vpop.f32.mrf.mxu0
        %v2802 = vadd.f32 %v1074, %v2801
        %2803 = vmatmul.f32.gmra.mxu0 %v435
        %v2804 = vpop.f32.mrf.mxu0
        %v2805 = vadd.f32 %v1074, %v2804
        %2806 = vmatmul.f32.gmra.mxu0 %v441
        %v2807 = vpop.f32.mrf.mxu0
        %v2808 = vadd.f32 %v1074, %v2807
        %2809 = vmatmul.f32.gmra.mxu0 %v447
        %v2810 = vpop.f32.mrf.mxu0
        %v2811 = vadd.f32 %v1074, %v2810
        %2812 = vmatmul.f32.gmra.mxu0 %v453
        %v2813 = vpop.f32.mrf.mxu0
        %v2814 = vadd.f32 %v1074, %v2813
        %2815 = vmatmul.f32.gmra.mxu0 %v459
        %v2816 = vpop.f32.mrf.mxu0
        %v2817 = vadd.f32 %v1074, %v2816
        %2818 = vmatmul.f32.gmra.mxu0 %v465
        %v2819 = vpop.f32.mrf.mxu0
        %v2820 = vadd.f32 %v1074, %v2819
        %2821 = vmatmul.f32.gmra.mxu0 %v471
        %v2822 = vpop.f32.mrf.mxu0
        %v2823 = vadd.f32 %v1074, %v2822
        %2824 = vdwg.mxu0
        %2825 = vmatpush.msra.mxu0 %v666
        %2826 = vmatpush.msra.mxu0 %v660
        %2827 = vmatpush.msra.mxu0 %v654
        %2828 = vmatpush.msra.mxu0 %v648
        %2829 = vmatpush.msra.mxu0 %v642
        %2830 = vmatpush.msra.mxu0 %v636
        %2831 = vmatpush.msra.mxu0 %v630
        %2832 = vmatpush.msra.mxu0 %v624
        %2833 = vmatpush.msra.mxu0 %v618
        %2834 = vmatpush.msra.mxu0 %v612
        %2835 = vmatpush.msra.mxu0 %v606
        %2836 = vmatpush.msra.mxu0 %v600
        %2837 = vmatpush.msra.mxu0 %v594
        %2838 = vmatpush.msra.mxu0 %v588
        %2839 = vmatpush.msra.mxu0 %v582
        %2840 = vmatpush.msra.mxu0 %v576
        %2841 = vmatmul.f32.gmra.mxu0 %v328
        %v2842 = vpop.f32.mrf.mxu0
        %v2843 = vadd.f32 %v2751, %v2842
        %2844 = vmatmul.f32.gmra.mxu0 %v334
        %v2845 = vpop.f32.mrf.mxu0
        %v2846 = vadd.f32 %v2754, %v2845
        %2847 = vmatmul.f32.gmra.mxu0 %v340
        %v2848 = vpop.f32.mrf.mxu0
        %v2849 = vadd.f32 %v2757, %v2848
        %2850 = vmatmul.f32.gmra.mxu0 %v346
        %v2851 = vpop.f32.mrf.mxu0
        %v2852 = vadd.f32 %v2760, %v2851
        %2853 = vmatmul.f32.gmra.mxu0 %v352
        %v2854 = vpop.f32.mrf.mxu0
        %v2855 = vadd.f32 %v2763, %v2854
        %2856 = vmatmul.f32.gmra.mxu0 %v358
        %v2857 = vpop.f32.mrf.mxu0
        %v2858 = vadd.f32 %v2766, %v2857
        %2859 = vmatmul.f32.gmra.mxu0 %v364
        %v2860 = vpop.f32.mrf.mxu0
        %v2861 = vadd.f32 %v2769, %v2860
        %2862 = vmatmul.f32.gmra.mxu0 %v370
        %v2863 = vpop.f32.mrf.mxu0
        %v2864 = vadd.f32 %v2772, %v2863
        %2865 = vmatmul.f32.gmra.mxu0 %v376
        %v2866 = vpop.f32.mrf.mxu0
        %v2867 = vadd.f32 %v2775, %v2866
        %2868 = vmatmul.f32.gmra.mxu0 %v382
        %v2869 = vpop.f32.mrf.mxu0
        %v2870 = vadd.f32 %v2778, %v2869
        %2871 = vmatmul.f32.gmra.mxu0 %v388
        %v2872 = vpop.f32.mrf.mxu0
        %v2873 = vadd.f32 %v2781, %v2872
        %2874 = vmatmul.f32.gmra.mxu0 %v394
        %v2875 = vpop.f32.mrf.mxu0
        %v2876 = vadd.f32 %v2784, %v2875
        %2877 = vmatmul.f32.gmra.mxu0 %v400
        %v2878 = vpop.f32.mrf.mxu0
        %v2879 = vadd.f32 %v2787, %v2878
        %2880 = vmatmul.f32.gmra.mxu0 %v406
        %v2881 = vpop.f32.mrf.mxu0
        %v2882 = vadd.f32 %v2790, %v2881
        %2883 = vmatmul.f32.gmra.mxu0 %v412
        %v2884 = vpop.f32.mrf.mxu0
        %v2885 = vadd.f32 %v2793, %v2884
        %2886 = vmatmul.f32.gmra.mxu0 %v418
        %v2887 = vpop.f32.mrf.mxu0
        %v2888 = vadd.f32 %v2796, %v2887
        %2889 = vmatmul.f32.gmra.mxu0 %v424
        %v2890 = vpop.f32.mrf.mxu0
        %v2891 = vadd.f32 %v2799, %v2890
        %2892 = vmatmul.f32.gmra.mxu0 %v430
        %v2893 = vpop.f32.mrf.mxu0
        %v2894 = vadd.f32 %v2802, %v2893
        %2895 = vmatmul.f32.gmra.mxu0 %v436
        %v2896 = vpop.f32.mrf.mxu0
        %v2897 = vadd.f32 %v2805, %v2896
        %2898 = vmatmul.f32.gmra.mxu0 %v442
        %v2899 = vpop.f32.mrf.mxu0
        %v2900 = vadd.f32 %v2808, %v2899
        %2901 = vmatmul.f32.gmra.mxu0 %v448
        %v2902 = vpop.f32.mrf.mxu0
        %v2903 = vadd.f32 %v2811, %v2902
        %2904 = vmatmul.f32.gmra.mxu0 %v454
        %v2905 = vpop.f32.mrf.mxu0
        %v2906 = vadd.f32 %v2814, %v2905
        %2907 = vmatmul.f32.gmra.mxu0 %v460
        %v2908 = vpop.f32.mrf.mxu0
        %v2909 = vadd.f32 %v2817, %v2908
        %2910 = vmatmul.f32.gmra.mxu0 %v466
        %v2911 = vpop.f32.mrf.mxu0
        %v2912 = vadd.f32 %v2820, %v2911
        %2913 = vmatmul.f32.gmra.mxu0 %v472
        %v2914 = vpop.f32.mrf.mxu0
        %v2915 = vadd.f32 %v2823, %v2914
        %2916 = vdwg.mxu0
        %2917 = vmatpush.msra.mxu0 %v762
        %2918 = vmatpush.msra.mxu0 %v756
        %2919 = vmatpush.msra.mxu0 %v750
        %2920 = vmatpush.msra.mxu0 %v744
        %2921 = vmatpush.msra.mxu0 %v738
        %2922 = vmatpush.msra.mxu0 %v732
        %2923 = vmatpush.msra.mxu0 %v726
        %2924 = vmatpush.msra.mxu0 %v720
        %2925 = vmatpush.msra.mxu0 %v714
        %2926 = vmatpush.msra.mxu0 %v708
        %2927 = vmatpush.msra.mxu0 %v702
        %2928 = vmatpush.msra.mxu0 %v696
        %2929 = vmatpush.msra.mxu0 %v690
        %2930 = vmatpush.msra.mxu0 %v684
        %2931 = vmatpush.msra.mxu0 %v678
        %2932 = vmatpush.msra.mxu0 %v672
        %2933 = vmatmul.f32.gmra.mxu0 %v329
        %v2934 = vpop.f32.mrf.mxu0
        %v2935 = vadd.f32 %v2843, %v2934
        %2936 = vmatmul.f32.gmra.mxu0 %v335
        %v2937 = vpop.f32.mrf.mxu0
        %v2938 = vadd.f32 %v2846, %v2937
        %2939 = vmatmul.f32.gmra.mxu0 %v341
        %v2940 = vpop.f32.mrf.mxu0
        %v2941 = vadd.f32 %v2849, %v2940
        %2942 = vmatmul.f32.gmra.mxu0 %v347
        %v2943 = vpop.f32.mrf.mxu0
        %v2944 = vadd.f32 %v2852, %v2943
        %2945 = vmatmul.f32.gmra.mxu0 %v353
        %v2946 = vpop.f32.mrf.mxu0
        %v2947 = vadd.f32 %v2855, %v2946
        %2948 = vmatmul.f32.gmra.mxu0 %v359
        %v2949 = vpop.f32.mrf.mxu0
        %v2950 = vadd.f32 %v2858, %v2949
        %2951 = vmatmul.f32.gmra.mxu0 %v365
        %v2952 = vpop.f32.mrf.mxu0
        %v2953 = vadd.f32 %v2861, %v2952
        %2954 = vmatmul.f32.gmra.mxu0 %v371
        %v2955 = vpop.f32.mrf.mxu0
        %v2956 = vadd.f32 %v2864, %v2955
        %2957 = vmatmul.f32.gmra.mxu0 %v377
        %v2958 = vpop.f32.mrf.mxu0
        %v2959 = vadd.f32 %v2867, %v2958
        %2960 = vmatmul.f32.gmra.mxu0 %v383
        %v2961 = vpop.f32.mrf.mxu0
        %v2962 = vadd.f32 %v2870, %v2961
        %2963 = vmatmul.f32.gmra.mxu0 %v389
        %v2964 = vpop.f32.mrf.mxu0
        %v2965 = vadd.f32 %v2873, %v2964
        %2966 = vmatmul.f32.gmra.mxu0 %v395
        %v2967 = vpop.f32.mrf.mxu0
        %v2968 = vadd.f32 %v2876, %v2967
        %2969 = vmatmul.f32.gmra.mxu0 %v401
        %v2970 = vpop.f32.mrf.mxu0
        %v2971 = vadd.f32 %v2879, %v2970
        %2972 = vmatmul.f32.gmra.mxu0 %v407
        %v2973 = vpop.f32.mrf.mxu0
        %v2974 = vadd.f32 %v2882, %v2973
        %2975 = vmatmul.f32.gmra.mxu0 %v413
        %v2976 = vpop.f32.mrf.mxu0
        %v2977 = vadd.f32 %v2885, %v2976
        %2978 = vmatmul.f32.gmra.mxu0 %v419
        %v2979 = vpop.f32.mrf.mxu0
        %v2980 = vadd.f32 %v2888, %v2979
        %2981 = vmatmul.f32.gmra.mxu0 %v425
        %v2982 = vpop.f32.mrf.mxu0
        %v2983 = vadd.f32 %v2891, %v2982
        %2984 = vmatmul.f32.gmra.mxu0 %v431
        %v2985 = vpop.f32.mrf.mxu0
        %v2986 = vadd.f32 %v2894, %v2985
        %2987 = vmatmul.f32.gmra.mxu0 %v437
        %v2988 = vpop.f32.mrf.mxu0
        %v2989 = vadd.f32 %v2897, %v2988
        %2990 = vmatmul.f32.gmra.mxu0 %v443
        %v2991 = vpop.f32.mrf.mxu0
        %v2992 = vadd.f32 %v2900, %v2991
        %2993 = vmatmul.f32.gmra.mxu0 %v449
        %v2994 = vpop.f32.mrf.mxu0
        %v2995 = vadd.f32 %v2903, %v2994
        %2996 = vmatmul.f32.gmra.mxu0 %v455
        %v2997 = vpop.f32.mrf.mxu0
        %v2998 = vadd.f32 %v2906, %v2997
        %2999 = vmatmul.f32.gmra.mxu0 %v461
        %v3000 = vpop.f32.mrf.mxu0
        %v3001 = vadd.f32 %v2909, %v3000
        %3002 = vmatmul.f32.gmra.mxu0 %v467
        %v3003 = vpop.f32.mrf.mxu0
        %v3004 = vadd.f32 %v2912, %v3003
        %3005 = vmatmul.f32.gmra.mxu0 %v473
        %v3006 = vpop.f32.mrf.mxu0
        %v3007 = vadd.f32 %v2915, %v3006
        %3008 = vdwg.mxu0
        %3009 = vmatpush.msra.mxu0 %v858
        %3010 = vmatpush.msra.mxu0 %v852
        %3011 = vmatpush.msra.mxu0 %v846
        %3012 = vmatpush.msra.mxu0 %v840
        %3013 = vmatpush.msra.mxu0 %v834
        %3014 = vmatpush.msra.mxu0 %v828
        %3015 = vmatpush.msra.mxu0 %v822
        %3016 = vmatpush.msra.mxu0 %v816
        %3017 = vmatpush.msra.mxu0 %v810
        %3018 = vmatpush.msra.mxu0 %v804
        %3019 = vmatpush.msra.mxu0 %v798
        %3020 = vmatpush.msra.mxu0 %v792
        %3021 = vmatpush.msra.mxu0 %v786
        %3022 = vmatpush.msra.mxu0 %v780
        %3023 = vmatpush.msra.mxu0 %v774
        %3024 = vmatpush.msra.mxu0 %v768
        %3025 = vmatmul.f32.gmra.mxu0 %v330
        %v3026 = vpop.f32.mrf.mxu0
        %v3027 = vadd.f32 %v2935, %v3026
        %3028 = vmatmul.f32.gmra.mxu0 %v336
        %v3029 = vpop.f32.mrf.mxu0
        %v3030 = vadd.f32 %v2938, %v3029
        %3031 = vmatmul.f32.gmra.mxu0 %v342
        %v3032 = vpop.f32.mrf.mxu0
        %v3033 = vadd.f32 %v2941, %v3032
        %3034 = vmatmul.f32.gmra.mxu0 %v348
        %v3035 = vpop.f32.mrf.mxu0
        %v3036 = vadd.f32 %v2944, %v3035
        %3037 = vmatmul.f32.gmra.mxu0 %v354
        %v3038 = vpop.f32.mrf.mxu0
        %v3039 = vadd.f32 %v2947, %v3038
        %3040 = vmatmul.f32.gmra.mxu0 %v360
        %v3041 = vpop.f32.mrf.mxu0
        %v3042 = vadd.f32 %v2950, %v3041
        %3043 = vmatmul.f32.gmra.mxu0 %v366
        %v3044 = vpop.f32.mrf.mxu0
        %v3045 = vadd.f32 %v2953, %v3044
        %3046 = vmatmul.f32.gmra.mxu0 %v372
        %v3047 = vpop.f32.mrf.mxu0
        %v3048 = vadd.f32 %v2956, %v3047
        %3049 = vmatmul.f32.gmra.mxu0 %v378
        %v3050 = vpop.f32.mrf.mxu0
        %v3051 = vadd.f32 %v2959, %v3050
        %3052 = vmatmul.f32.gmra.mxu0 %v384
        %v3053 = vpop.f32.mrf.mxu0
        %v3054 = vadd.f32 %v2962, %v3053
        %3055 = vmatmul.f32.gmra.mxu0 %v390
        %v3056 = vpop.f32.mrf.mxu0
        %v3057 = vadd.f32 %v2965, %v3056
        %3058 = vmatmul.f32.gmra.mxu0 %v396
        %v3059 = vpop.f32.mrf.mxu0
        %v3060 = vadd.f32 %v2968, %v3059
        %3061 = vmatmul.f32.gmra.mxu0 %v402
        %v3062 = vpop.f32.mrf.mxu0
        %v3063 = vadd.f32 %v2971, %v3062
        %3064 = vmatmul.f32.gmra.mxu0 %v408
        %v3065 = vpop.f32.mrf.mxu0
        %v3066 = vadd.f32 %v2974, %v3065
        %3067 = vmatmul.f32.gmra.mxu0 %v414
        %v3068 = vpop.f32.mrf.mxu0
        %v3069 = vadd.f32 %v2977, %v3068
        %3070 = vmatmul.f32.gmra.mxu0 %v420
        %v3071 = vpop.f32.mrf.mxu0
        %v3072 = vadd.f32 %v2980, %v3071
        %3073 = vmatmul.f32.gmra.mxu0 %v426
        %v3074 = vpop.f32.mrf.mxu0
        %v3075 = vadd.f32 %v2983, %v3074
        %3076 = vmatmul.f32.gmra.mxu0 %v432
        %v3077 = vpop.f32.mrf.mxu0
        %v3078 = vadd.f32 %v2986, %v3077
        %3079 = vmatmul.f32.gmra.mxu0 %v438
        %v3080 = vpop.f32.mrf.mxu0
        %v3081 = vadd.f32 %v2989, %v3080
        %3082 = vmatmul.f32.gmra.mxu0 %v444
        %v3083 = vpop.f32.mrf.mxu0
        %v3084 = vadd.f32 %v2992, %v3083
        %3085 = vmatmul.f32.gmra.mxu0 %v450
        %v3086 = vpop.f32.mrf.mxu0
        %v3087 = vadd.f32 %v2995, %v3086
        %3088 = vmatmul.f32.gmra.mxu0 %v456
        %v3089 = vpop.f32.mrf.mxu0
        %v3090 = vadd.f32 %v2998, %v3089
        %3091 = vmatmul.f32.gmra.mxu0 %v462
        %v3092 = vpop.f32.mrf.mxu0
        %v3093 = vadd.f32 %v3001, %v3092
        %3094 = vmatmul.f32.gmra.mxu0 %v468
        %v3095 = vpop.f32.mrf.mxu0
        %v3096 = vadd.f32 %v3004, %v3095
        %3097 = vmatmul.f32.gmra.mxu0 %v474
        %v3098 = vpop.f32.mrf.mxu0
        %v3099 = vadd.f32 %v3007, %v3098
        %3100 = vdwg.mxu0
        %3101 = vmatpush.msra.mxu0 %v954
        %3102 = vmatpush.msra.mxu0 %v948
        %3103 = vmatpush.msra.mxu0 %v942
        %3104 = vmatpush.msra.mxu0 %v936
        %3105 = vmatpush.msra.mxu0 %v930
        %3106 = vmatpush.msra.mxu0 %v924
        %3107 = vmatpush.msra.mxu0 %v918
        %3108 = vmatpush.msra.mxu0 %v912
        %3109 = vmatpush.msra.mxu0 %v906
        %3110 = vmatpush.msra.mxu0 %v900
        %3111 = vmatpush.msra.mxu0 %v894
        %3112 = vmatpush.msra.mxu0 %v888
        %3113 = vmatpush.msra.mxu0 %v882
        %3114 = vmatpush.msra.mxu0 %v876
        %3115 = vmatpush.msra.mxu0 %v870
        %3116 = vmatpush.msra.mxu0 %v864
        %3117 = vmatmul.f32.gmra.mxu0 %v331
        %v3118 = vpop.f32.mrf.mxu0
        %v3119 = vadd.f32 %v3027, %v3118
        %3120 = vmatmul.f32.gmra.mxu0 %v337
        %v3121 = vpop.f32.mrf.mxu0
        %v3122 = vadd.f32 %v3030, %v3121
        %3123 = vmatmul.f32.gmra.mxu0 %v343
        %v3124 = vpop.f32.mrf.mxu0
        %v3125 = vadd.f32 %v3033, %v3124
        %3126 = vmatmul.f32.gmra.mxu0 %v349
        %v3127 = vpop.f32.mrf.mxu0
        %v3128 = vadd.f32 %v3036, %v3127
        %3129 = vmatmul.f32.gmra.mxu0 %v355
        %v3130 = vpop.f32.mrf.mxu0
        %v3131 = vadd.f32 %v3039, %v3130
        %3132 = vmatmul.f32.gmra.mxu0 %v361
        %v3133 = vpop.f32.mrf.mxu0
        %v3134 = vadd.f32 %v3042, %v3133
        %3135 = vmatmul.f32.gmra.mxu0 %v367
        %v3136 = vpop.f32.mrf.mxu0
        %v3137 = vadd.f32 %v3045, %v3136
        %3138 = vmatmul.f32.gmra.mxu0 %v373
        %v3139 = vpop.f32.mrf.mxu0
        %v3140 = vadd.f32 %v3048, %v3139
        %3141 = vmatmul.f32.gmra.mxu0 %v379
        %v3142 = vpop.f32.mrf.mxu0
        %v3143 = vadd.f32 %v3051, %v3142
        %3144 = vmatmul.f32.gmra.mxu0 %v385
        %v3145 = vpop.f32.mrf.mxu0
        %v3146 = vadd.f32 %v3054, %v3145
        %3147 = vmatmul.f32.gmra.mxu0 %v391
        %v3148 = vpop.f32.mrf.mxu0
        %v3149 = vadd.f32 %v3057, %v3148
        %3150 = vmatmul.f32.gmra.mxu0 %v397
        %v3151 = vpop.f32.mrf.mxu0
        %v3152 = vadd.f32 %v3060, %v3151
        %3153 = vmatmul.f32.gmra.mxu0 %v403
        %v3154 = vpop.f32.mrf.mxu0
        %v3155 = vadd.f32 %v3063, %v3154
        %3156 = vmatmul.f32.gmra.mxu0 %v409
        %v3157 = vpop.f32.mrf.mxu0
        %v3158 = vadd.f32 %v3066, %v3157
        %3159 = vmatmul.f32.gmra.mxu0 %v415
        %v3160 = vpop.f32.mrf.mxu0
        %v3161 = vadd.f32 %v3069, %v3160
        %3162 = vmatmul.f32.gmra.mxu0 %v421
        %v3163 = vpop.f32.mrf.mxu0
        %v3164 = vadd.f32 %v3072, %v3163
        %3165 = vmatmul.f32.gmra.mxu0 %v427
        %v3166 = vpop.f32.mrf.mxu0
        %v3167 = vadd.f32 %v3075, %v3166
        %3168 = vmatmul.f32.gmra.mxu0 %v433
        %v3169 = vpop.f32.mrf.mxu0
        %v3170 = vadd.f32 %v3078, %v3169
        %3171 = vmatmul.f32.gmra.mxu0 %v439
        %v3172 = vpop.f32.mrf.mxu0
        %v3173 = vadd.f32 %v3081, %v3172
        %3174 = vmatmul.f32.gmra.mxu0 %v445
        %v3175 = vpop.f32.mrf.mxu0
        %v3176 = vadd.f32 %v3084, %v3175
        %3177 = vmatmul.f32.gmra.mxu0 %v451
        %v3178 = vpop.f32.mrf.mxu0
        %v3179 = vadd.f32 %v3087, %v3178
        %3180 = vmatmul.f32.gmra.mxu0 %v457
        %v3181 = vpop.f32.mrf.mxu0
        %v3182 = vadd.f32 %v3090, %v3181
        %3183 = vmatmul.f32.gmra.mxu0 %v463
        %v3184 = vpop.f32.mrf.mxu0
        %v3185 = vadd.f32 %v3093, %v3184
        %3186 = vmatmul.f32.gmra.mxu0 %v469
        %v3187 = vpop.f32.mrf.mxu0
        %v3188 = vadd.f32 %v3096, %v3187
        %3189 = vmatmul.f32.gmra.mxu0 %v475
        %v3190 = vpop.f32.mrf.mxu0
        %v3191 = vadd.f32 %v3099, %v3190
        %3192 = vdwg.mxu0
        %3193 = vmatpush.msra.mxu0 %v1050
        %3194 = vmatpush.msra.mxu0 %v1044
        %3195 = vmatpush.msra.mxu0 %v1038
        %3196 = vmatpush.msra.mxu0 %v1032
        %3197 = vmatpush.msra.mxu0 %v1026
        %3198 = vmatpush.msra.mxu0 %v1020
        %3199 = vmatpush.msra.mxu0 %v1014
        %3200 = vmatpush.msra.mxu0 %v1008
        %3201 = vmatpush.msra.mxu0 %v1002
        %3202 = vmatpush.msra.mxu0 %v996
        %3203 = vmatpush.msra.mxu0 %v990
        %3204 = vmatpush.msra.mxu0 %v984
        %3205 = vmatpush.msra.mxu0 %v978
        %3206 = vmatpush.msra.mxu0 %v972
        %3207 = vmatpush.msra.mxu0 %v966
        %3208 = vmatpush.msra.mxu0 %v960
        %3209 = vmatmul.f32.gmra.mxu0 %v332
        %v3210 = vpop.f32.mrf.mxu0
        %v3211 = vadd.f32 %v3119, %v3210
        %3212 = vmatmul.f32.gmra.mxu0 %v338
        %v3213 = vpop.f32.mrf.mxu0
        %v3214 = vadd.f32 %v3122, %v3213
        %3215 = vmatmul.f32.gmra.mxu0 %v344
        %v3216 = vpop.f32.mrf.mxu0
        %v3217 = vadd.f32 %v3125, %v3216
        %3218 = vmatmul.f32.gmra.mxu0 %v350
        %v3219 = vpop.f32.mrf.mxu0
        %v3220 = vadd.f32 %v3128, %v3219
        %3221 = vmatmul.f32.gmra.mxu0 %v356
        %v3222 = vpop.f32.mrf.mxu0
        %v3223 = vadd.f32 %v3131, %v3222
        %3224 = vmatmul.f32.gmra.mxu0 %v362
        %v3225 = vpop.f32.mrf.mxu0
        %v3226 = vadd.f32 %v3134, %v3225
        %3227 = vmatmul.f32.gmra.mxu0 %v368
        %v3228 = vpop.f32.mrf.mxu0
        %v3229 = vadd.f32 %v3137, %v3228
        %3230 = vmatmul.f32.gmra.mxu0 %v374
        %v3231 = vpop.f32.mrf.mxu0
        %v3232 = vadd.f32 %v3140, %v3231
        %3233 = vmatmul.f32.gmra.mxu0 %v380
        %v3234 = vpop.f32.mrf.mxu0
        %v3235 = vadd.f32 %v3143, %v3234
        %3236 = vmatmul.f32.gmra.mxu0 %v386
        %v3237 = vpop.f32.mrf.mxu0
        %v3238 = vadd.f32 %v3146, %v3237
        %3239 = vmatmul.f32.gmra.mxu0 %v392
        %v3240 = vpop.f32.mrf.mxu0
        %v3241 = vadd.f32 %v3149, %v3240
        %3242 = vmatmul.f32.gmra.mxu0 %v398
        %v3243 = vpop.f32.mrf.mxu0
        %v3244 = vadd.f32 %v3152, %v3243
        %3245 = vmatmul.f32.gmra.mxu0 %v404
        %v3246 = vpop.f32.mrf.mxu0
        %v3247 = vadd.f32 %v3155, %v3246
        %3248 = vmatmul.f32.gmra.mxu0 %v410
        %v3249 = vpop.f32.mrf.mxu0
        %v3250 = vadd.f32 %v3158, %v3249
        %3251 = vmatmul.f32.gmra.mxu0 %v416
        %v3252 = vpop.f32.mrf.mxu0
        %v3253 = vadd.f32 %v3161, %v3252
        %3254 = vmatmul.f32.gmra.mxu0 %v422
        %v3255 = vpop.f32.mrf.mxu0
        %v3256 = vadd.f32 %v3164, %v3255
        %3257 = vmatmul.f32.gmra.mxu0 %v428
        %v3258 = vpop.f32.mrf.mxu0
        %v3259 = vadd.f32 %v3167, %v3258
        %3260 = vmatmul.f32.gmra.mxu0 %v434
        %v3261 = vpop.f32.mrf.mxu0
        %v3262 = vadd.f32 %v3170, %v3261
        %3263 = vmatmul.f32.gmra.mxu0 %v440
        %v3264 = vpop.f32.mrf.mxu0
        %v3265 = vadd.f32 %v3173, %v3264
        %3266 = vmatmul.f32.gmra.mxu0 %v446
        %v3267 = vpop.f32.mrf.mxu0
        %v3268 = vadd.f32 %v3176, %v3267
        %3269 = vmatmul.f32.gmra.mxu0 %v452
        %v3270 = vpop.f32.mrf.mxu0
        %v3271 = vadd.f32 %v3179, %v3270
        %3272 = vmatmul.f32.gmra.mxu0 %v458
        %v3273 = vpop.f32.mrf.mxu0
        %v3274 = vadd.f32 %v3182, %v3273
        %3275 = vmatmul.f32.gmra.mxu0 %v464
        %v3276 = vpop.f32.mrf.mxu0
        %v3277 = vadd.f32 %v3185, %v3276
        %3278 = vmatmul.f32.gmra.mxu0 %v470
        %v3279 = vpop.f32.mrf.mxu0
        %v3280 = vadd.f32 %v3188, %v3279
        %3281 = vmatmul.f32.gmra.mxu0 %v476
        %v3282 = vpop.f32.mrf.mxu0
        %v3283 = vadd.f32 %v3191, %v3282
        %3284 = vdwg.mxu0
        %3285 = vmatpush.msra.mxu0 %v571
        %3286 = vmatpush.msra.mxu0 %v565
        %3287 = vmatpush.msra.mxu0 %v559
        %3288 = vmatpush.msra.mxu0 %v553
        %3289 = vmatpush.msra.mxu0 %v547
        %3290 = vmatpush.msra.mxu0 %v541
        %3291 = vmatpush.msra.mxu0 %v535
        %3292 = vmatpush.msra.mxu0 %v529
        %3293 = vmatpush.msra.mxu0 %v523
        %3294 = vmatpush.msra.mxu0 %v517
        %3295 = vmatpush.msra.mxu0 %v511
        %3296 = vmatpush.msra.mxu0 %v505
        %3297 = vmatpush.msra.mxu0 %v499
        %3298 = vmatpush.msra.mxu0 %v493
        %3299 = vmatpush.msra.mxu0 %v487
        %3300 = vmatpush.msra.mxu0 %v481
        %3301 = vmatmul.f32.gmra.mxu0 %v327
        %v3302 = vpop.f32.mrf.mxu0
        %v3303 = vadd.f32 %v1075, %v3302
        %3304 = vmatmul.f32.gmra.mxu0 %v333
        %v3305 = vpop.f32.mrf.mxu0
        %v3306 = vadd.f32 %v1075, %v3305
        %3307 = vmatmul.f32.gmra.mxu0 %v339
        %v3308 = vpop.f32.mrf.mxu0
        %v3309 = vadd.f32 %v1075, %v3308
        %3310 = vmatmul.f32.gmra.mxu0 %v345
        %v3311 = vpop.f32.mrf.mxu0
        %v3312 = vadd.f32 %v1075, %v3311
        %3313 = vmatmul.f32.gmra.mxu0 %v351
        %v3314 = vpop.f32.mrf.mxu0
        %v3315 = vadd.f32 %v1075, %v3314
        %3316 = vmatmul.f32.gmra.mxu0 %v357
        %v3317 = vpop.f32.mrf.mxu0
        %v3318 = vadd.f32 %v1075, %v3317
        %3319 = vmatmul.f32.gmra.mxu0 %v363
        %v3320 = vpop.f32.mrf.mxu0
        %v3321 = vadd.f32 %v1075, %v3320
        %3322 = vmatmul.f32.gmra.mxu0 %v369
        %v3323 = vpop.f32.mrf.mxu0
        %v3324 = vadd.f32 %v1075, %v3323
        %3325 = vmatmul.f32.gmra.mxu0 %v375
        %v3326 = vpop.f32.mrf.mxu0
        %v3327 = vadd.f32 %v1075, %v3326
        %3328 = vmatmul.f32.gmra.mxu0 %v381
        %v3329 = vpop.f32.mrf.mxu0
        %v3330 = vadd.f32 %v1075, %v3329
        %3331 = vmatmul.f32.gmra.mxu0 %v387
        %v3332 = vpop.f32.mrf.mxu0
        %v3333 = vadd.f32 %v1075, %v3332
        %3334 = vmatmul.f32.gmra.mxu0 %v393
        %v3335 = vpop.f32.mrf.mxu0
        %v3336 = vadd.f32 %v1075, %v3335
        %3337 = vmatmul.f32.gmra.mxu0 %v399
        %v3338 = vpop.f32.mrf.mxu0
        %v3339 = vadd.f32 %v1075, %v3338
        %3340 = vmatmul.f32.gmra.mxu0 %v405
        %v3341 = vpop.f32.mrf.mxu0
        %v3342 = vadd.f32 %v1075, %v3341
        %3343 = vmatmul.f32.gmra.mxu0 %v411
        %v3344 = vpop.f32.mrf.mxu0
        %v3345 = vadd.f32 %v1075, %v3344
        %3346 = vmatmul.f32.gmra.mxu0 %v417
        %v3347 = vpop.f32.mrf.mxu0
        %v3348 = vadd.f32 %v1075, %v3347
        %3349 = vmatmul.f32.gmra.mxu0 %v423
        %v3350 = vpop.f32.mrf.mxu0
        %v3351 = vadd.f32 %v1075, %v3350
        %3352 = vmatmul.f32.gmra.mxu0 %v429
        %v3353 = vpop.f32.mrf.mxu0
        %v3354 = vadd.f32 %v1075, %v3353
        %3355 = vmatmul.f32.gmra.mxu0 %v435
        %v3356 = vpop.f32.mrf.mxu0
        %v3357 = vadd.f32 %v1075, %v3356
        %3358 = vmatmul.f32.gmra.mxu0 %v441
        %v3359 = vpop.f32.mrf.mxu0
        %v3360 = vadd.f32 %v1075, %v3359
        %3361 = vmatmul.f32.gmra.mxu0 %v447
        %v3362 = vpop.f32.mrf.mxu0
        %v3363 = vadd.f32 %v1075, %v3362
        %3364 = vmatmul.f32.gmra.mxu0 %v453
        %v3365 = vpop.f32.mrf.mxu0
        %v3366 = vadd.f32 %v1075, %v3365
        %3367 = vmatmul.f32.gmra.mxu0 %v459
        %v3368 = vpop.f32.mrf.mxu0
        %v3369 = vadd.f32 %v1075, %v3368
        %3370 = vmatmul.f32.gmra.mxu0 %v465
        %v3371 = vpop.f32.mrf.mxu0
        %v3372 = vadd.f32 %v1075, %v3371
        %3373 = vmatmul.f32.gmra.mxu0 %v471
        %v3374 = vpop.f32.mrf.mxu0
        %v3375 = vadd.f32 %v1075, %v3374
        %3376 = vdwg.mxu0
        %3377 = vmatpush.msra.mxu0 %v667
        %3378 = vmatpush.msra.mxu0 %v661
        %3379 = vmatpush.msra.mxu0 %v655
        %3380 = vmatpush.msra.mxu0 %v649
        %3381 = vmatpush.msra.mxu0 %v643
        %3382 = vmatpush.msra.mxu0 %v637
        %3383 = vmatpush.msra.mxu0 %v631
        %3384 = vmatpush.msra.mxu0 %v625
        %3385 = vmatpush.msra.mxu0 %v619
        %3386 = vmatpush.msra.mxu0 %v613
        %3387 = vmatpush.msra.mxu0 %v607
        %3388 = vmatpush.msra.mxu0 %v601
        %3389 = vmatpush.msra.mxu0 %v595
        %3390 = vmatpush.msra.mxu0 %v589
        %3391 = vmatpush.msra.mxu0 %v583
        %3392 = vmatpush.msra.mxu0 %v577
        %3393 = vmatmul.f32.gmra.mxu0 %v328
        %v3394 = vpop.f32.mrf.mxu0
        %v3395 = vadd.f32 %v3303, %v3394
        %3396 = vmatmul.f32.gmra.mxu0 %v334
        %v3397 = vpop.f32.mrf.mxu0
        %v3398 = vadd.f32 %v3306, %v3397
        %3399 = vmatmul.f32.gmra.mxu0 %v340
        %v3400 = vpop.f32.mrf.mxu0
        %v3401 = vadd.f32 %v3309, %v3400
        %3402 = vmatmul.f32.gmra.mxu0 %v346
        %v3403 = vpop.f32.mrf.mxu0
        %v3404 = vadd.f32 %v3312, %v3403
        %3405 = vmatmul.f32.gmra.mxu0 %v352
        %v3406 = vpop.f32.mrf.mxu0
        %v3407 = vadd.f32 %v3315, %v3406
        %3408 = vmatmul.f32.gmra.mxu0 %v358
        %v3409 = vpop.f32.mrf.mxu0
        %v3410 = vadd.f32 %v3318, %v3409
        %3411 = vmatmul.f32.gmra.mxu0 %v364
        %v3412 = vpop.f32.mrf.mxu0
        %v3413 = vadd.f32 %v3321, %v3412
        %3414 = vmatmul.f32.gmra.mxu0 %v370
        %v3415 = vpop.f32.mrf.mxu0
        %v3416 = vadd.f32 %v3324, %v3415
        %3417 = vmatmul.f32.gmra.mxu0 %v376
        %v3418 = vpop.f32.mrf.mxu0
        %v3419 = vadd.f32 %v3327, %v3418
        %3420 = vmatmul.f32.gmra.mxu0 %v382
        %v3421 = vpop.f32.mrf.mxu0
        %v3422 = vadd.f32 %v3330, %v3421
        %3423 = vmatmul.f32.gmra.mxu0 %v388
        %v3424 = vpop.f32.mrf.mxu0
        %v3425 = vadd.f32 %v3333, %v3424
        %3426 = vmatmul.f32.gmra.mxu0 %v394
        %v3427 = vpop.f32.mrf.mxu0
        %v3428 = vadd.f32 %v3336, %v3427
        %3429 = vmatmul.f32.gmra.mxu0 %v400
        %v3430 = vpop.f32.mrf.mxu0
        %v3431 = vadd.f32 %v3339, %v3430
        %3432 = vmatmul.f32.gmra.mxu0 %v406
        %v3433 = vpop.f32.mrf.mxu0
        %v3434 = vadd.f32 %v3342, %v3433
        %3435 = vmatmul.f32.gmra.mxu0 %v412
        %v3436 = vpop.f32.mrf.mxu0
        %v3437 = vadd.f32 %v3345, %v3436
        %3438 = vmatmul.f32.gmra.mxu0 %v418
        %v3439 = vpop.f32.mrf.mxu0
        %v3440 = vadd.f32 %v3348, %v3439
        %3441 = vmatmul.f32.gmra.mxu0 %v424
        %v3442 = vpop.f32.mrf.mxu0
        %v3443 = vadd.f32 %v3351, %v3442
        %3444 = vmatmul.f32.gmra.mxu0 %v430
        %v3445 = vpop.f32.mrf.mxu0
        %v3446 = vadd.f32 %v3354, %v3445
        %3447 = vmatmul.f32.gmra.mxu0 %v436
        %v3448 = vpop.f32.mrf.mxu0
        %v3449 = vadd.f32 %v3357, %v3448
        %3450 = vmatmul.f32.gmra.mxu0 %v442
        %v3451 = vpop.f32.mrf.mxu0
        %v3452 = vadd.f32 %v3360, %v3451
        %3453 = vmatmul.f32.gmra.mxu0 %v448
        %v3454 = vpop.f32.mrf.mxu0
        %v3455 = vadd.f32 %v3363, %v3454
        %3456 = vmatmul.f32.gmra.mxu0 %v454
        %v3457 = vpop.f32.mrf.mxu0
        %v3458 = vadd.f32 %v3366, %v3457
        %3459 = vmatmul.f32.gmra.mxu0 %v460
        %v3460 = vpop.f32.mrf.mxu0
        %v3461 = vadd.f32 %v3369, %v3460
        %3462 = vmatmul.f32.gmra.mxu0 %v466
        %v3463 = vpop.f32.mrf.mxu0
        %v3464 = vadd.f32 %v3372, %v3463
        %3465 = vmatmul.f32.gmra.mxu0 %v472
        %v3466 = vpop.f32.mrf.mxu0
        %v3467 = vadd.f32 %v3375, %v3466
        %3468 = vdwg.mxu0
        %3469 = vmatpush.msra.mxu0 %v763
        %3470 = vmatpush.msra.mxu0 %v757
        %3471 = vmatpush.msra.mxu0 %v751
        %3472 = vmatpush.msra.mxu0 %v745
        %3473 = vmatpush.msra.mxu0 %v739
        %3474 = vmatpush.msra.mxu0 %v733
        %3475 = vmatpush.msra.mxu0 %v727
        %3476 = vmatpush.msra.mxu0 %v721
        %3477 = vmatpush.msra.mxu0 %v715
        %3478 = vmatpush.msra.mxu0 %v709
        %3479 = vmatpush.msra.mxu0 %v703
        %3480 = vmatpush.msra.mxu0 %v697
        %3481 = vmatpush.msra.mxu0 %v691
        %3482 = vmatpush.msra.mxu0 %v685
        %3483 = vmatpush.msra.mxu0 %v679
        %3484 = vmatpush.msra.mxu0 %v673
        %3485 = vmatmul.f32.gmra.mxu0 %v329
        %v3486 = vpop.f32.mrf.mxu0
        %v3487 = vadd.f32 %v3395, %v3486
        %3488 = vmatmul.f32.gmra.mxu0 %v335
        %v3489 = vpop.f32.mrf.mxu0
        %v3490 = vadd.f32 %v3398, %v3489
        %3491 = vmatmul.f32.gmra.mxu0 %v341
        %v3492 = vpop.f32.mrf.mxu0
        %v3493 = vadd.f32 %v3401, %v3492
        %3494 = vmatmul.f32.gmra.mxu0 %v347
        %v3495 = vpop.f32.mrf.mxu0
        %v3496 = vadd.f32 %v3404, %v3495
        %3497 = vmatmul.f32.gmra.mxu0 %v353
        %v3498 = vpop.f32.mrf.mxu0
        %v3499 = vadd.f32 %v3407, %v3498
        %3500 = vmatmul.f32.gmra.mxu0 %v359
        %v3501 = vpop.f32.mrf.mxu0
        %v3502 = vadd.f32 %v3410, %v3501
        %3503 = vmatmul.f32.gmra.mxu0 %v365
        %v3504 = vpop.f32.mrf.mxu0
        %v3505 = vadd.f32 %v3413, %v3504
        %3506 = vmatmul.f32.gmra.mxu0 %v371
        %v3507 = vpop.f32.mrf.mxu0
        %v3508 = vadd.f32 %v3416, %v3507
        %3509 = vmatmul.f32.gmra.mxu0 %v377
        %v3510 = vpop.f32.mrf.mxu0
        %v3511 = vadd.f32 %v3419, %v3510
        %3512 = vmatmul.f32.gmra.mxu0 %v383
        %v3513 = vpop.f32.mrf.mxu0
        %v3514 = vadd.f32 %v3422, %v3513
        %3515 = vmatmul.f32.gmra.mxu0 %v389
        %v3516 = vpop.f32.mrf.mxu0
        %v3517 = vadd.f32 %v3425, %v3516
        %3518 = vmatmul.f32.gmra.mxu0 %v395
        %v3519 = vpop.f32.mrf.mxu0
        %v3520 = vadd.f32 %v3428, %v3519
        %3521 = vmatmul.f32.gmra.mxu0 %v401
        %v3522 = vpop.f32.mrf.mxu0
        %v3523 = vadd.f32 %v3431, %v3522
        %3524 = vmatmul.f32.gmra.mxu0 %v407
        %v3525 = vpop.f32.mrf.mxu0
        %v3526 = vadd.f32 %v3434, %v3525
        %3527 = vmatmul.f32.gmra.mxu0 %v413
        %v3528 = vpop.f32.mrf.mxu0
        %v3529 = vadd.f32 %v3437, %v3528
        %3530 = vmatmul.f32.gmra.mxu0 %v419
        %v3531 = vpop.f32.mrf.mxu0
        %v3532 = vadd.f32 %v3440, %v3531
        %3533 = vmatmul.f32.gmra.mxu0 %v425
        %v3534 = vpop.f32.mrf.mxu0
        %v3535 = vadd.f32 %v3443, %v3534
        %3536 = vmatmul.f32.gmra.mxu0 %v431
        %v3537 = vpop.f32.mrf.mxu0
        %v3538 = vadd.f32 %v3446, %v3537
        %3539 = vmatmul.f32.gmra.mxu0 %v437
        %v3540 = vpop.f32.mrf.mxu0
        %v3541 = vadd.f32 %v3449, %v3540
        %3542 = vmatmul.f32.gmra.mxu0 %v443
        %v3543 = vpop.f32.mrf.mxu0
        %v3544 = vadd.f32 %v3452, %v3543
        %3545 = vmatmul.f32.gmra.mxu0 %v449
        %v3546 = vpop.f32.mrf.mxu0
        %v3547 = vadd.f32 %v3455, %v3546
        %3548 = vmatmul.f32.gmra.mxu0 %v455
        %v3549 = vpop.f32.mrf.mxu0
        %v3550 = vadd.f32 %v3458, %v3549
        %3551 = vmatmul.f32.gmra.mxu0 %v461
        %v3552 = vpop.f32.mrf.mxu0
        %v3553 = vadd.f32 %v3461, %v3552
        %3554 = vmatmul.f32.gmra.mxu0 %v467
        %v3555 = vpop.f32.mrf.mxu0
        %v3556 = vadd.f32 %v3464, %v3555
        %3557 = vmatmul.f32.gmra.mxu0 %v473
        %v3558 = vpop.f32.mrf.mxu0
        %v3559 = vadd.f32 %v3467, %v3558
        %3560 = vdwg.mxu0
        %3561 = vmatpush.msra.mxu0 %v859
        %3562 = vmatpush.msra.mxu0 %v853
        %3563 = vmatpush.msra.mxu0 %v847
        %3564 = vmatpush.msra.mxu0 %v841
        %3565 = vmatpush.msra.mxu0 %v835
        %3566 = vmatpush.msra.mxu0 %v829
        %3567 = vmatpush.msra.mxu0 %v823
        %3568 = vmatpush.msra.mxu0 %v817
        %3569 = vmatpush.msra.mxu0 %v811
        %3570 = vmatpush.msra.mxu0 %v805
        %3571 = vmatpush.msra.mxu0 %v799
        %3572 = vmatpush.msra.mxu0 %v793
        %3573 = vmatpush.msra.mxu0 %v787
        %3574 = vmatpush.msra.mxu0 %v781
        %3575 = vmatpush.msra.mxu0 %v775
        %3576 = vmatpush.msra.mxu0 %v769
        %3577 = vmatmul.f32.gmra.mxu0 %v330
        %v3578 = vpop.f32.mrf.mxu0
        %v3579 = vadd.f32 %v3487, %v3578
        %3580 = vmatmul.f32.gmra.mxu0 %v336
        %v3581 = vpop.f32.mrf.mxu0
        %v3582 = vadd.f32 %v3490, %v3581
        %3583 = vmatmul.f32.gmra.mxu0 %v342
        %v3584 = vpop.f32.mrf.mxu0
        %v3585 = vadd.f32 %v3493, %v3584
        %3586 = vmatmul.f32.gmra.mxu0 %v348
        %v3587 = vpop.f32.mrf.mxu0
        %v3588 = vadd.f32 %v3496, %v3587
        %3589 = vmatmul.f32.gmra.mxu0 %v354
        %v3590 = vpop.f32.mrf.mxu0
        %v3591 = vadd.f32 %v3499, %v3590
        %3592 = vmatmul.f32.gmra.mxu0 %v360
        %v3593 = vpop.f32.mrf.mxu0
        %v3594 = vadd.f32 %v3502, %v3593
        %3595 = vmatmul.f32.gmra.mxu0 %v366
        %v3596 = vpop.f32.mrf.mxu0
        %v3597 = vadd.f32 %v3505, %v3596
        %3598 = vmatmul.f32.gmra.mxu0 %v372
        %v3599 = vpop.f32.mrf.mxu0
        %v3600 = vadd.f32 %v3508, %v3599
        %3601 = vmatmul.f32.gmra.mxu0 %v378
        %v3602 = vpop.f32.mrf.mxu0
        %v3603 = vadd.f32 %v3511, %v3602
        %3604 = vmatmul.f32.gmra.mxu0 %v384
        %v3605 = vpop.f32.mrf.mxu0
        %v3606 = vadd.f32 %v3514, %v3605
        %3607 = vmatmul.f32.gmra.mxu0 %v390
        %v3608 = vpop.f32.mrf.mxu0
        %v3609 = vadd.f32 %v3517, %v3608
        %3610 = vmatmul.f32.gmra.mxu0 %v396
        %v3611 = vpop.f32.mrf.mxu0
        %v3612 = vadd.f32 %v3520, %v3611
        %3613 = vmatmul.f32.gmra.mxu0 %v402
        %v3614 = vpop.f32.mrf.mxu0
        %v3615 = vadd.f32 %v3523, %v3614
        %3616 = vmatmul.f32.gmra.mxu0 %v408
        %v3617 = vpop.f32.mrf.mxu0
        %v3618 = vadd.f32 %v3526, %v3617
        %3619 = vmatmul.f32.gmra.mxu0 %v414
        %v3620 = vpop.f32.mrf.mxu0
        %v3621 = vadd.f32 %v3529, %v3620
        %3622 = vmatmul.f32.gmra.mxu0 %v420
        %v3623 = vpop.f32.mrf.mxu0
        %v3624 = vadd.f32 %v3532, %v3623
        %3625 = vmatmul.f32.gmra.mxu0 %v426
        %v3626 = vpop.f32.mrf.mxu0
        %v3627 = vadd.f32 %v3535, %v3626
        %3628 = vmatmul.f32.gmra.mxu0 %v432
        %v3629 = vpop.f32.mrf.mxu0
        %v3630 = vadd.f32 %v3538, %v3629
        %3631 = vmatmul.f32.gmra.mxu0 %v438
        %v3632 = vpop.f32.mrf.mxu0
        %v3633 = vadd.f32 %v3541, %v3632
        %3634 = vmatmul.f32.gmra.mxu0 %v444
        %v3635 = vpop.f32.mrf.mxu0
        %v3636 = vadd.f32 %v3544, %v3635
        %3637 = vmatmul.f32.gmra.mxu0 %v450
        %v3638 = vpop.f32.mrf.mxu0
        %v3639 = vadd.f32 %v3547, %v3638
        %3640 = vmatmul.f32.gmra.mxu0 %v456
        %v3641 = vpop.f32.mrf.mxu0
        %v3642 = vadd.f32 %v3550, %v3641
        %3643 = vmatmul.f32.gmra.mxu0 %v462
        %v3644 = vpop.f32.mrf.mxu0
        %v3645 = vadd.f32 %v3553, %v3644
        %3646 = vmatmul.f32.gmra.mxu0 %v468
        %v3647 = vpop.f32.mrf.mxu0
        %v3648 = vadd.f32 %v3556, %v3647
        %3649 = vmatmul.f32.gmra.mxu0 %v474
        %v3650 = vpop.f32.mrf.mxu0
        %v3651 = vadd.f32 %v3559, %v3650
        %3652 = vdwg.mxu0
        %3653 = vmatpush.msra.mxu0 %v955
        %3654 = vmatpush.msra.mxu0 %v949
        %3655 = vmatpush.msra.mxu0 %v943
        %3656 = vmatpush.msra.mxu0 %v937
        %3657 = vmatpush.msra.mxu0 %v931
        %3658 = vmatpush.msra.mxu0 %v925
        %3659 = vmatpush.msra.mxu0 %v919
        %3660 = vmatpush.msra.mxu0 %v913
        %3661 = vmatpush.msra.mxu0 %v907
        %3662 = vmatpush.msra.mxu0 %v901
        %3663 = vmatpush.msra.mxu0 %v895
        %3664 = vmatpush.msra.mxu0 %v889
        %3665 = vmatpush.msra.mxu0 %v883
        %3666 = vmatpush.msra.mxu0 %v877
        %3667 = vmatpush.msra.mxu0 %v871
        %3668 = vmatpush.msra.mxu0 %v865
        %3669 = vmatmul.f32.gmra.mxu0 %v331
        %v3670 = vpop.f32.mrf.mxu0
        %v3671 = vadd.f32 %v3579, %v3670
        %3672 = vmatmul.f32.gmra.mxu0 %v337
        %v3673 = vpop.f32.mrf.mxu0
        %v3674 = vadd.f32 %v3582, %v3673
        %3675 = vmatmul.f32.gmra.mxu0 %v343
        %v3676 = vpop.f32.mrf.mxu0
        %v3677 = vadd.f32 %v3585, %v3676
        %3678 = vmatmul.f32.gmra.mxu0 %v349
        %v3679 = vpop.f32.mrf.mxu0
        %v3680 = vadd.f32 %v3588, %v3679
        %3681 = vmatmul.f32.gmra.mxu0 %v355
        %v3682 = vpop.f32.mrf.mxu0
        %v3683 = vadd.f32 %v3591, %v3682
        %3684 = vmatmul.f32.gmra.mxu0 %v361
        %v3685 = vpop.f32.mrf.mxu0
        %v3686 = vadd.f32 %v3594, %v3685
        %3687 = vmatmul.f32.gmra.mxu0 %v367
        %v3688 = vpop.f32.mrf.mxu0
        %v3689 = vadd.f32 %v3597, %v3688
        %3690 = vmatmul.f32.gmra.mxu0 %v373
        %v3691 = vpop.f32.mrf.mxu0
        %v3692 = vadd.f32 %v3600, %v3691
        %3693 = vmatmul.f32.gmra.mxu0 %v379
        %v3694 = vpop.f32.mrf.mxu0
        %v3695 = vadd.f32 %v3603, %v3694
        %3696 = vmatmul.f32.gmra.mxu0 %v385
        %v3697 = vpop.f32.mrf.mxu0
        %v3698 = vadd.f32 %v3606, %v3697
        %3699 = vmatmul.f32.gmra.mxu0 %v391
        %v3700 = vpop.f32.mrf.mxu0
        %v3701 = vadd.f32 %v3609, %v3700
        %3702 = vmatmul.f32.gmra.mxu0 %v397
        %v3703 = vpop.f32.mrf.mxu0
        %v3704 = vadd.f32 %v3612, %v3703
        %3705 = vmatmul.f32.gmra.mxu0 %v403
        %v3706 = vpop.f32.mrf.mxu0
        %v3707 = vadd.f32 %v3615, %v3706
        %3708 = vmatmul.f32.gmra.mxu0 %v409
        %v3709 = vpop.f32.mrf.mxu0
        %v3710 = vadd.f32 %v3618, %v3709
        %3711 = vmatmul.f32.gmra.mxu0 %v415
        %v3712 = vpop.f32.mrf.mxu0
        %v3713 = vadd.f32 %v3621, %v3712
        %3714 = vmatmul.f32.gmra.mxu0 %v421
        %v3715 = vpop.f32.mrf.mxu0
        %v3716 = vadd.f32 %v3624, %v3715
        %3717 = vmatmul.f32.gmra.mxu0 %v427
        %v3718 = vpop.f32.mrf.mxu0
        %v3719 = vadd.f32 %v3627, %v3718
        %3720 = vmatmul.f32.gmra.mxu0 %v433
        %v3721 = vpop.f32.mrf.mxu0
        %v3722 = vadd.f32 %v3630, %v3721
        %3723 = vmatmul.f32.gmra.mxu0 %v439
        %v3724 = vpop.f32.mrf.mxu0
        %v3725 = vadd.f32 %v3633, %v3724
        %3726 = vmatmul.f32.gmra.mxu0 %v445
        %v3727 = vpop.f32.mrf.mxu0
        %v3728 = vadd.f32 %v3636, %v3727
        %3729 = vmatmul.f32.gmra.mxu0 %v451
        %v3730 = vpop.f32.mrf.mxu0
        %v3731 = vadd.f32 %v3639, %v3730
        %3732 = vmatmul.f32.gmra.mxu0 %v457
        %v3733 = vpop.f32.mrf.mxu0
        %v3734 = vadd.f32 %v3642, %v3733
        %3735 = vmatmul.f32.gmra.mxu0 %v463
        %v3736 = vpop.f32.mrf.mxu0
        %v3737 = vadd.f32 %v3645, %v3736
        %3738 = vmatmul.f32.gmra.mxu0 %v469
        %v3739 = vpop.f32.mrf.mxu0
        %v3740 = vadd.f32 %v3648, %v3739
        %3741 = vmatmul.f32.gmra.mxu0 %v475
        %v3742 = vpop.f32.mrf.mxu0
        %v3743 = vadd.f32 %v3651, %v3742
        %3744 = vdwg.mxu0
        %3745 = vmatpush.msra.mxu0 %v1051
        %3746 = vmatpush.msra.mxu0 %v1045
        %3747 = vmatpush.msra.mxu0 %v1039
        %3748 = vmatpush.msra.mxu0 %v1033
        %3749 = vmatpush.msra.mxu0 %v1027
        %3750 = vmatpush.msra.mxu0 %v1021
        %3751 = vmatpush.msra.mxu0 %v1015
        %3752 = vmatpush.msra.mxu0 %v1009
        %3753 = vmatpush.msra.mxu0 %v1003
        %3754 = vmatpush.msra.mxu0 %v997
        %3755 = vmatpush.msra.mxu0 %v991
        %3756 = vmatpush.msra.mxu0 %v985
        %3757 = vmatpush.msra.mxu0 %v979
        %3758 = vmatpush.msra.mxu0 %v973
        %3759 = vmatpush.msra.mxu0 %v967
        %3760 = vmatpush.msra.mxu0 %v961
        %3761 = vmatmul.f32.gmra.mxu0 %v332
        %v3762 = vpop.f32.mrf.mxu0
        %v3763 = vadd.f32 %v3671, %v3762
        %3764 = vmatmul.f32.gmra.mxu0 %v338
        %v3765 = vpop.f32.mrf.mxu0
        %v3766 = vadd.f32 %v3674, %v3765
        %3767 = vmatmul.f32.gmra.mxu0 %v344
        %v3768 = vpop.f32.mrf.mxu0
        %v3769 = vadd.f32 %v3677, %v3768
        %3770 = vmatmul.f32.gmra.mxu0 %v350
        %v3771 = vpop.f32.mrf.mxu0
        %v3772 = vadd.f32 %v3680, %v3771
        %3773 = vmatmul.f32.gmra.mxu0 %v356
        %v3774 = vpop.f32.mrf.mxu0
        %v3775 = vadd.f32 %v3683, %v3774
        %3776 = vmatmul.f32.gmra.mxu0 %v362
        %v3777 = vpop.f32.mrf.mxu0
        %v3778 = vadd.f32 %v3686, %v3777
        %3779 = vmatmul.f32.gmra.mxu0 %v368
        %v3780 = vpop.f32.mrf.mxu0
        %v3781 = vadd.f32 %v3689, %v3780
        %3782 = vmatmul.f32.gmra.mxu0 %v374
        %v3783 = vpop.f32.mrf.mxu0
        %v3784 = vadd.f32 %v3692, %v3783
        %3785 = vmatmul.f32.gmra.mxu0 %v380
        %v3786 = vpop.f32.mrf.mxu0
        %v3787 = vadd.f32 %v3695, %v3786
        %3788 = vmatmul.f32.gmra.mxu0 %v386
        %v3789 = vpop.f32.mrf.mxu0
        %v3790 = vadd.f32 %v3698, %v3789
        %3791 = vmatmul.f32.gmra.mxu0 %v392
        %v3792 = vpop.f32.mrf.mxu0
        %v3793 = vadd.f32 %v3701, %v3792
        %3794 = vmatmul.f32.gmra.mxu0 %v398
        %v3795 = vpop.f32.mrf.mxu0
        %v3796 = vadd.f32 %v3704, %v3795
        %3797 = vmatmul.f32.gmra.mxu0 %v404
        %v3798 = vpop.f32.mrf.mxu0
        %v3799 = vadd.f32 %v3707, %v3798
        %3800 = vmatmul.f32.gmra.mxu0 %v410
        %v3801 = vpop.f32.mrf.mxu0
        %v3802 = vadd.f32 %v3710, %v3801
        %3803 = vmatmul.f32.gmra.mxu0 %v416
        %v3804 = vpop.f32.mrf.mxu0
        %v3805 = vadd.f32 %v3713, %v3804
        %3806 = vmatmul.f32.gmra.mxu0 %v422
        %v3807 = vpop.f32.mrf.mxu0
        %v3808 = vadd.f32 %v3716, %v3807
        %3809 = vmatmul.f32.gmra.mxu0 %v428
        %v3810 = vpop.f32.mrf.mxu0
        %v3811 = vadd.f32 %v3719, %v3810
        %3812 = vmatmul.f32.gmra.mxu0 %v434
        %v3813 = vpop.f32.mrf.mxu0
        %v3814 = vadd.f32 %v3722, %v3813
        %3815 = vmatmul.f32.gmra.mxu0 %v440
        %v3816 = vpop.f32.mrf.mxu0
        %v3817 = vadd.f32 %v3725, %v3816
        %3818 = vmatmul.f32.gmra.mxu0 %v446
        %v3819 = vpop.f32.mrf.mxu0
        %v3820 = vadd.f32 %v3728, %v3819
        %3821 = vmatmul.f32.gmra.mxu0 %v452
        %v3822 = vpop.f32.mrf.mxu0
        %v3823 = vadd.f32 %v3731, %v3822
        %3824 = vmatmul.f32.gmra.mxu0 %v458
        %v3825 = vpop.f32.mrf.mxu0
        %v3826 = vadd.f32 %v3734, %v3825
        %3827 = vmatmul.f32.gmra.mxu0 %v464
        %v3828 = vpop.f32.mrf.mxu0
        %v3829 = vadd.f32 %v3737, %v3828
        %3830 = vmatmul.f32.gmra.mxu0 %v470
        %v3831 = vpop.f32.mrf.mxu0
        %v3832 = vadd.f32 %v3740, %v3831
        %3833 = vmatmul.f32.gmra.mxu0 %v476
        %v3834 = vpop.f32.mrf.mxu0
        %v3835 = vadd.f32 %v3743, %v3834
        %3836 = vdwg.mxu0
        %3837 = vmatpush.msra.mxu0 %v572
        %3838 = vmatpush.msra.mxu0 %v566
        %3839 = vmatpush.msra.mxu0 %v560
        %3840 = vmatpush.msra.mxu0 %v554
        %3841 = vmatpush.msra.mxu0 %v548
        %3842 = vmatpush.msra.mxu0 %v542
        %3843 = vmatpush.msra.mxu0 %v536
        %3844 = vmatpush.msra.mxu0 %v530
        %3845 = vmatpush.msra.mxu0 %v524
        %3846 = vmatpush.msra.mxu0 %v518
        %3847 = vmatpush.msra.mxu0 %v512
        %3848 = vmatpush.msra.mxu0 %v506
        %3849 = vmatpush.msra.mxu0 %v500
        %3850 = vmatpush.msra.mxu0 %v494
        %3851 = vmatpush.msra.mxu0 %v488
        %3852 = vmatpush.msra.mxu0 %v482
        %3853 = vmatmul.f32.gmra.mxu0 %v327
        %v3854 = vpop.f32.mrf.mxu0
        %v3855 = vadd.f32 %v1076, %v3854
        %3856 = vmatmul.f32.gmra.mxu0 %v333
        %v3857 = vpop.f32.mrf.mxu0
        %v3858 = vadd.f32 %v1076, %v3857
        %3859 = vmatmul.f32.gmra.mxu0 %v339
        %v3860 = vpop.f32.mrf.mxu0
        %v3861 = vadd.f32 %v1076, %v3860
        %3862 = vmatmul.f32.gmra.mxu0 %v345
        %v3863 = vpop.f32.mrf.mxu0
        %v3864 = vadd.f32 %v1076, %v3863
        %3865 = vmatmul.f32.gmra.mxu0 %v351
        %v3866 = vpop.f32.mrf.mxu0
        %v3867 = vadd.f32 %v1076, %v3866
        %3868 = vmatmul.f32.gmra.mxu0 %v357
        %v3869 = vpop.f32.mrf.mxu0
        %v3870 = vadd.f32 %v1076, %v3869
        %3871 = vmatmul.f32.gmra.mxu0 %v363
        %v3872 = vpop.f32.mrf.mxu0
        %v3873 = vadd.f32 %v1076, %v3872
        %3874 = vmatmul.f32.gmra.mxu0 %v369
        %v3875 = vpop.f32.mrf.mxu0
        %v3876 = vadd.f32 %v1076, %v3875
        %3877 = vmatmul.f32.gmra.mxu0 %v375
        %v3878 = vpop.f32.mrf.mxu0
        %v3879 = vadd.f32 %v1076, %v3878
        %3880 = vmatmul.f32.gmra.mxu0 %v381
        %v3881 = vpop.f32.mrf.mxu0
        %v3882 = vadd.f32 %v1076, %v3881
        %3883 = vmatmul.f32.gmra.mxu0 %v387
        %v3884 = vpop.f32.mrf.mxu0
        %v3885 = vadd.f32 %v1076, %v3884
        %3886 = vmatmul.f32.gmra.mxu0 %v393
        %v3887 = vpop.f32.mrf.mxu0
        %v3888 = vadd.f32 %v1076, %v3887
        %3889 = vmatmul.f32.gmra.mxu0 %v399
        %v3890 = vpop.f32.mrf.mxu0
        %v3891 = vadd.f32 %v1076, %v3890
        %3892 = vmatmul.f32.gmra.mxu0 %v405
        %v3893 = vpop.f32.mrf.mxu0
        %v3894 = vadd.f32 %v1076, %v3893
        %3895 = vmatmul.f32.gmra.mxu0 %v411
        %v3896 = vpop.f32.mrf.mxu0
        %v3897 = vadd.f32 %v1076, %v3896
        %3898 = vmatmul.f32.gmra.mxu0 %v417
        %v3899 = vpop.f32.mrf.mxu0
        %v3900 = vadd.f32 %v1076, %v3899
        %3901 = vmatmul.f32.gmra.mxu0 %v423
        %v3902 = vpop.f32.mrf.mxu0
        %v3903 = vadd.f32 %v1076, %v3902
        %3904 = vmatmul.f32.gmra.mxu0 %v429
        %v3905 = vpop.f32.mrf.mxu0
        %v3906 = vadd.f32 %v1076, %v3905
        %3907 = vmatmul.f32.gmra.mxu0 %v435
        %v3908 = vpop.f32.mrf.mxu0
        %v3909 = vadd.f32 %v1076, %v3908
        %3910 = vmatmul.f32.gmra.mxu0 %v441
        %v3911 = vpop.f32.mrf.mxu0
        %v3912 = vadd.f32 %v1076, %v3911
        %3913 = vmatmul.f32.gmra.mxu0 %v447
        %v3914 = vpop.f32.mrf.mxu0
        %v3915 = vadd.f32 %v1076, %v3914
        %3916 = vmatmul.f32.gmra.mxu0 %v453
        %v3917 = vpop.f32.mrf.mxu0
        %v3918 = vadd.f32 %v1076, %v3917
        %3919 = vmatmul.f32.gmra.mxu0 %v459
        %v3920 = vpop.f32.mrf.mxu0
        %v3921 = vadd.f32 %v1076, %v3920
        %3922 = vmatmul.f32.gmra.mxu0 %v465
        %v3923 = vpop.f32.mrf.mxu0
        %v3924 = vadd.f32 %v1076, %v3923
        %3925 = vmatmul.f32.gmra.mxu0 %v471
        %v3926 = vpop.f32.mrf.mxu0
        %v3927 = vadd.f32 %v1076, %v3926
        %3928 = vdwg.mxu0
        %3929 = vmatpush.msra.mxu0 %v668
        %3930 = vmatpush.msra.mxu0 %v662
        %3931 = vmatpush.msra.mxu0 %v656
        %3932 = vmatpush.msra.mxu0 %v650
        %3933 = vmatpush.msra.mxu0 %v644
        %3934 = vmatpush.msra.mxu0 %v638
        %3935 = vmatpush.msra.mxu0 %v632
        %3936 = vmatpush.msra.mxu0 %v626
        %3937 = vmatpush.msra.mxu0 %v620
        %3938 = vmatpush.msra.mxu0 %v614
        %3939 = vmatpush.msra.mxu0 %v608
        %3940 = vmatpush.msra.mxu0 %v602
        %3941 = vmatpush.msra.mxu0 %v596
        %3942 = vmatpush.msra.mxu0 %v590
        %3943 = vmatpush.msra.mxu0 %v584
        %3944 = vmatpush.msra.mxu0 %v578
        %3945 = vmatmul.f32.gmra.mxu0 %v328
        %v3946 = vpop.f32.mrf.mxu0
        %v3947 = vadd.f32 %v3855, %v3946
        %3948 = vmatmul.f32.gmra.mxu0 %v334
        %v3949 = vpop.f32.mrf.mxu0
        %v3950 = vadd.f32 %v3858, %v3949
        %3951 = vmatmul.f32.gmra.mxu0 %v340
        %v3952 = vpop.f32.mrf.mxu0
        %v3953 = vadd.f32 %v3861, %v3952
        %3954 = vmatmul.f32.gmra.mxu0 %v346
        %v3955 = vpop.f32.mrf.mxu0
        %v3956 = vadd.f32 %v3864, %v3955
        %3957 = vmatmul.f32.gmra.mxu0 %v352
        %v3958 = vpop.f32.mrf.mxu0
        %v3959 = vadd.f32 %v3867, %v3958
        %3960 = vmatmul.f32.gmra.mxu0 %v358
        %v3961 = vpop.f32.mrf.mxu0
        %v3962 = vadd.f32 %v3870, %v3961
        %3963 = vmatmul.f32.gmra.mxu0 %v364
        %v3964 = vpop.f32.mrf.mxu0
        %v3965 = vadd.f32 %v3873, %v3964
        %3966 = vmatmul.f32.gmra.mxu0 %v370
        %v3967 = vpop.f32.mrf.mxu0
        %v3968 = vadd.f32 %v3876, %v3967
        %3969 = vmatmul.f32.gmra.mxu0 %v376
        %v3970 = vpop.f32.mrf.mxu0
        %v3971 = vadd.f32 %v3879, %v3970
        %3972 = vmatmul.f32.gmra.mxu0 %v382
        %v3973 = vpop.f32.mrf.mxu0
        %v3974 = vadd.f32 %v3882, %v3973
        %3975 = vmatmul.f32.gmra.mxu0 %v388
        %v3976 = vpop.f32.mrf.mxu0
        %v3977 = vadd.f32 %v3885, %v3976
        %3978 = vmatmul.f32.gmra.mxu0 %v394
        %v3979 = vpop.f32.mrf.mxu0
        %v3980 = vadd.f32 %v3888, %v3979
        %3981 = vmatmul.f32.gmra.mxu0 %v400
        %v3982 = vpop.f32.mrf.mxu0
        %v3983 = vadd.f32 %v3891, %v3982
        %3984 = vmatmul.f32.gmra.mxu0 %v406
        %v3985 = vpop.f32.mrf.mxu0
        %v3986 = vadd.f32 %v3894, %v3985
        %3987 = vmatmul.f32.gmra.mxu0 %v412
        %v3988 = vpop.f32.mrf.mxu0
        %v3989 = vadd.f32 %v3897, %v3988
        %3990 = vmatmul.f32.gmra.mxu0 %v418
        %v3991 = vpop.f32.mrf.mxu0
        %v3992 = vadd.f32 %v3900, %v3991
        %3993 = vmatmul.f32.gmra.mxu0 %v424
        %v3994 = vpop.f32.mrf.mxu0
        %v3995 = vadd.f32 %v3903, %v3994
        %3996 = vmatmul.f32.gmra.mxu0 %v430
        %v3997 = vpop.f32.mrf.mxu0
        %v3998 = vadd.f32 %v3906, %v3997
        %3999 = vmatmul.f32.gmra.mxu0 %v436
        %v4000 = vpop.f32.mrf.mxu0
        %v4001 = vadd.f32 %v3909, %v4000
        %4002 = vmatmul.f32.gmra.mxu0 %v442
        %v4003 = vpop.f32.mrf.mxu0
        %v4004 = vadd.f32 %v3912, %v4003
        %4005 = vmatmul.f32.gmra.mxu0 %v448
        %v4006 = vpop.f32.mrf.mxu0
        %v4007 = vadd.f32 %v3915, %v4006
        %4008 = vmatmul.f32.gmra.mxu0 %v454
        %v4009 = vpop.f32.mrf.mxu0
        %v4010 = vadd.f32 %v3918, %v4009
        %4011 = vmatmul.f32.gmra.mxu0 %v460
        %v4012 = vpop.f32.mrf.mxu0
        %v4013 = vadd.f32 %v3921, %v4012
        %4014 = vmatmul.f32.gmra.mxu0 %v466
        %v4015 = vpop.f32.mrf.mxu0
        %v4016 = vadd.f32 %v3924, %v4015
        %4017 = vmatmul.f32.gmra.mxu0 %v472
        %v4018 = vpop.f32.mrf.mxu0
        %v4019 = vadd.f32 %v3927, %v4018
        %4020 = vdwg.mxu0
        %4021 = vmatpush.msra.mxu0 %v764
        %4022 = vmatpush.msra.mxu0 %v758
        %4023 = vmatpush.msra.mxu0 %v752
        %4024 = vmatpush.msra.mxu0 %v746
        %4025 = vmatpush.msra.mxu0 %v740
        %4026 = vmatpush.msra.mxu0 %v734
        %4027 = vmatpush.msra.mxu0 %v728
        %4028 = vmatpush.msra.mxu0 %v722
        %4029 = vmatpush.msra.mxu0 %v716
        %4030 = vmatpush.msra.mxu0 %v710
        %4031 = vmatpush.msra.mxu0 %v704
        %4032 = vmatpush.msra.mxu0 %v698
        %4033 = vmatpush.msra.mxu0 %v692
        %4034 = vmatpush.msra.mxu0 %v686
        %4035 = vmatpush.msra.mxu0 %v680
        %4036 = vmatpush.msra.mxu0 %v674
        %4037 = vmatmul.f32.gmra.mxu0 %v329
        %v4038 = vpop.f32.mrf.mxu0
        %v4039 = vadd.f32 %v3947, %v4038
        %4040 = vmatmul.f32.gmra.mxu0 %v335
        %v4041 = vpop.f32.mrf.mxu0
        %v4042 = vadd.f32 %v3950, %v4041
        %4043 = vmatmul.f32.gmra.mxu0 %v341
        %v4044 = vpop.f32.mrf.mxu0
        %v4045 = vadd.f32 %v3953, %v4044
        %4046 = vmatmul.f32.gmra.mxu0 %v347
        %v4047 = vpop.f32.mrf.mxu0
        %v4048 = vadd.f32 %v3956, %v4047
        %4049 = vmatmul.f32.gmra.mxu0 %v353
        %v4050 = vpop.f32.mrf.mxu0
        %v4051 = vadd.f32 %v3959, %v4050
        %4052 = vmatmul.f32.gmra.mxu0 %v359
        %v4053 = vpop.f32.mrf.mxu0
        %v4054 = vadd.f32 %v3962, %v4053
        %4055 = vmatmul.f32.gmra.mxu0 %v365
        %v4056 = vpop.f32.mrf.mxu0
        %v4057 = vadd.f32 %v3965, %v4056
        %4058 = vmatmul.f32.gmra.mxu0 %v371
        %v4059 = vpop.f32.mrf.mxu0
        %v4060 = vadd.f32 %v3968, %v4059
        %4061 = vmatmul.f32.gmra.mxu0 %v377
        %v4062 = vpop.f32.mrf.mxu0
        %v4063 = vadd.f32 %v3971, %v4062
        %4064 = vmatmul.f32.gmra.mxu0 %v383
        %v4065 = vpop.f32.mrf.mxu0
        %v4066 = vadd.f32 %v3974, %v4065
        %4067 = vmatmul.f32.gmra.mxu0 %v389
        %v4068 = vpop.f32.mrf.mxu0
        %v4069 = vadd.f32 %v3977, %v4068
        %4070 = vmatmul.f32.gmra.mxu0 %v395
        %v4071 = vpop.f32.mrf.mxu0
        %v4072 = vadd.f32 %v3980, %v4071
        %4073 = vmatmul.f32.gmra.mxu0 %v401
        %v4074 = vpop.f32.mrf.mxu0
        %v4075 = vadd.f32 %v3983, %v4074
        %4076 = vmatmul.f32.gmra.mxu0 %v407
        %v4077 = vpop.f32.mrf.mxu0
        %v4078 = vadd.f32 %v3986, %v4077
        %4079 = vmatmul.f32.gmra.mxu0 %v413
        %v4080 = vpop.f32.mrf.mxu0
        %v4081 = vadd.f32 %v3989, %v4080
        %4082 = vmatmul.f32.gmra.mxu0 %v419
        %v4083 = vpop.f32.mrf.mxu0
        %v4084 = vadd.f32 %v3992, %v4083
        %4085 = vmatmul.f32.gmra.mxu0 %v425
        %v4086 = vpop.f32.mrf.mxu0
        %v4087 = vadd.f32 %v3995, %v4086
        %4088 = vmatmul.f32.gmra.mxu0 %v431
        %v4089 = vpop.f32.mrf.mxu0
        %v4090 = vadd.f32 %v3998, %v4089
        %4091 = vmatmul.f32.gmra.mxu0 %v437
        %v4092 = vpop.f32.mrf.mxu0
        %v4093 = vadd.f32 %v4001, %v4092
        %4094 = vmatmul.f32.gmra.mxu0 %v443
        %v4095 = vpop.f32.mrf.mxu0
        %v4096 = vadd.f32 %v4004, %v4095
        %4097 = vmatmul.f32.gmra.mxu0 %v449
        %v4098 = vpop.f32.mrf.mxu0
        %v4099 = vadd.f32 %v4007, %v4098
        %4100 = vmatmul.f32.gmra.mxu0 %v455
        %v4101 = vpop.f32.mrf.mxu0
        %v4102 = vadd.f32 %v4010, %v4101
        %4103 = vmatmul.f32.gmra.mxu0 %v461
        %v4104 = vpop.f32.mrf.mxu0
        %v4105 = vadd.f32 %v4013, %v4104
        %4106 = vmatmul.f32.gmra.mxu0 %v467
        %v4107 = vpop.f32.mrf.mxu0
        %v4108 = vadd.f32 %v4016, %v4107
        %4109 = vmatmul.f32.gmra.mxu0 %v473
        %v4110 = vpop.f32.mrf.mxu0
        %v4111 = vadd.f32 %v4019, %v4110
        %4112 = vdwg.mxu0
        %4113 = vmatpush.msra.mxu0 %v860
        %4114 = vmatpush.msra.mxu0 %v854
        %4115 = vmatpush.msra.mxu0 %v848
        %4116 = vmatpush.msra.mxu0 %v842
        %4117 = vmatpush.msra.mxu0 %v836
        %4118 = vmatpush.msra.mxu0 %v830
        %4119 = vmatpush.msra.mxu0 %v824
        %4120 = vmatpush.msra.mxu0 %v818
        %4121 = vmatpush.msra.mxu0 %v812
        %4122 = vmatpush.msra.mxu0 %v806
        %4123 = vmatpush.msra.mxu0 %v800
        %4124 = vmatpush.msra.mxu0 %v794
        %4125 = vmatpush.msra.mxu0 %v788
        %4126 = vmatpush.msra.mxu0 %v782
        %4127 = vmatpush.msra.mxu0 %v776
        %4128 = vmatpush.msra.mxu0 %v770
        %4129 = vmatmul.f32.gmra.mxu0 %v330
        %v4130 = vpop.f32.mrf.mxu0
        %v4131 = vadd.f32 %v4039, %v4130
        %4132 = vmatmul.f32.gmra.mxu0 %v336
        %v4133 = vpop.f32.mrf.mxu0
        %v4134 = vadd.f32 %v4042, %v4133
        %4135 = vmatmul.f32.gmra.mxu0 %v342
        %v4136 = vpop.f32.mrf.mxu0
        %v4137 = vadd.f32 %v4045, %v4136
        %4138 = vmatmul.f32.gmra.mxu0 %v348
        %v4139 = vpop.f32.mrf.mxu0
        %v4140 = vadd.f32 %v4048, %v4139
        %4141 = vmatmul.f32.gmra.mxu0 %v354
        %v4142 = vpop.f32.mrf.mxu0
        %v4143 = vadd.f32 %v4051, %v4142
        %4144 = vmatmul.f32.gmra.mxu0 %v360
        %v4145 = vpop.f32.mrf.mxu0
        %v4146 = vadd.f32 %v4054, %v4145
        %4147 = vmatmul.f32.gmra.mxu0 %v366
        %v4148 = vpop.f32.mrf.mxu0
        %v4149 = vadd.f32 %v4057, %v4148
        %4150 = vmatmul.f32.gmra.mxu0 %v372
        %v4151 = vpop.f32.mrf.mxu0
        %v4152 = vadd.f32 %v4060, %v4151
        %4153 = vmatmul.f32.gmra.mxu0 %v378
        %v4154 = vpop.f32.mrf.mxu0
        %v4155 = vadd.f32 %v4063, %v4154
        %4156 = vmatmul.f32.gmra.mxu0 %v384
        %v4157 = vpop.f32.mrf.mxu0
        %v4158 = vadd.f32 %v4066, %v4157
        %4159 = vmatmul.f32.gmra.mxu0 %v390
        %v4160 = vpop.f32.mrf.mxu0
        %v4161 = vadd.f32 %v4069, %v4160
        %4162 = vmatmul.f32.gmra.mxu0 %v396
        %v4163 = vpop.f32.mrf.mxu0
        %v4164 = vadd.f32 %v4072, %v4163
        %4165 = vmatmul.f32.gmra.mxu0 %v402
        %v4166 = vpop.f32.mrf.mxu0
        %v4167 = vadd.f32 %v4075, %v4166
        %4168 = vmatmul.f32.gmra.mxu0 %v408
        %v4169 = vpop.f32.mrf.mxu0
        %v4170 = vadd.f32 %v4078, %v4169
        %4171 = vmatmul.f32.gmra.mxu0 %v414
        %v4172 = vpop.f32.mrf.mxu0
        %v4173 = vadd.f32 %v4081, %v4172
        %4174 = vmatmul.f32.gmra.mxu0 %v420
        %v4175 = vpop.f32.mrf.mxu0
        %v4176 = vadd.f32 %v4084, %v4175
        %4177 = vmatmul.f32.gmra.mxu0 %v426
        %v4178 = vpop.f32.mrf.mxu0
        %v4179 = vadd.f32 %v4087, %v4178
        %4180 = vmatmul.f32.gmra.mxu0 %v432
        %v4181 = vpop.f32.mrf.mxu0
        %v4182 = vadd.f32 %v4090, %v4181
        %4183 = vmatmul.f32.gmra.mxu0 %v438
        %v4184 = vpop.f32.mrf.mxu0
        %v4185 = vadd.f32 %v4093, %v4184
        %4186 = vmatmul.f32.gmra.mxu0 %v444
        %v4187 = vpop.f32.mrf.mxu0
        %v4188 = vadd.f32 %v4096, %v4187
        %4189 = vmatmul.f32.gmra.mxu0 %v450
        %v4190 = vpop.f32.mrf.mxu0
        %v4191 = vadd.f32 %v4099, %v4190
        %4192 = vmatmul.f32.gmra.mxu0 %v456
        %v4193 = vpop.f32.mrf.mxu0
        %v4194 = vadd.f32 %v4102, %v4193
        %4195 = vmatmul.f32.gmra.mxu0 %v462
        %v4196 = vpop.f32.mrf.mxu0
        %v4197 = vadd.f32 %v4105, %v4196
        %4198 = vmatmul.f32.gmra.mxu0 %v468
        %v4199 = vpop.f32.mrf.mxu0
        %v4200 = vadd.f32 %v4108, %v4199
        %4201 = vmatmul.f32.gmra.mxu0 %v474
        %v4202 = vpop.f32.mrf.mxu0
        %v4203 = vadd.f32 %v4111, %v4202
        %4204 = vdwg.mxu0
        %4205 = vmatpush.msra.mxu0 %v956
        %4206 = vmatpush.msra.mxu0 %v950
        %4207 = vmatpush.msra.mxu0 %v944
        %4208 = vmatpush.msra.mxu0 %v938
        %4209 = vmatpush.msra.mxu0 %v932
        %4210 = vmatpush.msra.mxu0 %v926
        %4211 = vmatpush.msra.mxu0 %v920
        %4212 = vmatpush.msra.mxu0 %v914
        %4213 = vmatpush.msra.mxu0 %v908
        %4214 = vmatpush.msra.mxu0 %v902
        %4215 = vmatpush.msra.mxu0 %v896
        %4216 = vmatpush.msra.mxu0 %v890
        %4217 = vmatpush.msra.mxu0 %v884
        %4218 = vmatpush.msra.mxu0 %v878
        %4219 = vmatpush.msra.mxu0 %v872
        %4220 = vmatpush.msra.mxu0 %v866
        %4221 = vmatmul.f32.gmra.mxu0 %v331
        %v4222 = vpop.f32.mrf.mxu0
        %v4223 = vadd.f32 %v4131, %v4222
        %4224 = vmatmul.f32.gmra.mxu0 %v337
        %v4225 = vpop.f32.mrf.mxu0
        %v4226 = vadd.f32 %v4134, %v4225
        %4227 = vmatmul.f32.gmra.mxu0 %v343
        %v4228 = vpop.f32.mrf.mxu0
        %v4229 = vadd.f32 %v4137, %v4228
        %4230 = vmatmul.f32.gmra.mxu0 %v349
        %v4231 = vpop.f32.mrf.mxu0
        %v4232 = vadd.f32 %v4140, %v4231
        %4233 = vmatmul.f32.gmra.mxu0 %v355
        %v4234 = vpop.f32.mrf.mxu0
        %v4235 = vadd.f32 %v4143, %v4234
        %4236 = vmatmul.f32.gmra.mxu0 %v361
        %v4237 = vpop.f32.mrf.mxu0
        %v4238 = vadd.f32 %v4146, %v4237
        %4239 = vmatmul.f32.gmra.mxu0 %v367
        %v4240 = vpop.f32.mrf.mxu0
        %v4241 = vadd.f32 %v4149, %v4240
        %4242 = vmatmul.f32.gmra.mxu0 %v373
        %v4243 = vpop.f32.mrf.mxu0
        %v4244 = vadd.f32 %v4152, %v4243
        %4245 = vmatmul.f32.gmra.mxu0 %v379
        %v4246 = vpop.f32.mrf.mxu0
        %v4247 = vadd.f32 %v4155, %v4246
        %4248 = vmatmul.f32.gmra.mxu0 %v385
        %v4249 = vpop.f32.mrf.mxu0
        %v4250 = vadd.f32 %v4158, %v4249
        %4251 = vmatmul.f32.gmra.mxu0 %v391
        %v4252 = vpop.f32.mrf.mxu0
        %v4253 = vadd.f32 %v4161, %v4252
        %4254 = vmatmul.f32.gmra.mxu0 %v397
        %v4255 = vpop.f32.mrf.mxu0
        %v4256 = vadd.f32 %v4164, %v4255
        %4257 = vmatmul.f32.gmra.mxu0 %v403
        %v4258 = vpop.f32.mrf.mxu0
        %v4259 = vadd.f32 %v4167, %v4258
        %4260 = vmatmul.f32.gmra.mxu0 %v409
        %v4261 = vpop.f32.mrf.mxu0
        %v4262 = vadd.f32 %v4170, %v4261
        %4263 = vmatmul.f32.gmra.mxu0 %v415
        %v4264 = vpop.f32.mrf.mxu0
        %v4265 = vadd.f32 %v4173, %v4264
        %4266 = vmatmul.f32.gmra.mxu0 %v421
        %v4267 = vpop.f32.mrf.mxu0
        %v4268 = vadd.f32 %v4176, %v4267
        %4269 = vmatmul.f32.gmra.mxu0 %v427
        %v4270 = vpop.f32.mrf.mxu0
        %v4271 = vadd.f32 %v4179, %v4270
        %4272 = vmatmul.f32.gmra.mxu0 %v433
        %v4273 = vpop.f32.mrf.mxu0
        %v4274 = vadd.f32 %v4182, %v4273
        %4275 = vmatmul.f32.gmra.mxu0 %v439
        %v4276 = vpop.f32.mrf.mxu0
        %v4277 = vadd.f32 %v4185, %v4276
        %4278 = vmatmul.f32.gmra.mxu0 %v445
        %v4279 = vpop.f32.mrf.mxu0
        %v4280 = vadd.f32 %v4188, %v4279
        %4281 = vmatmul.f32.gmra.mxu0 %v451
        %v4282 = vpop.f32.mrf.mxu0
        %v4283 = vadd.f32 %v4191, %v4282
        %4284 = vmatmul.f32.gmra.mxu0 %v457
        %v4285 = vpop.f32.mrf.mxu0
        %v4286 = vadd.f32 %v4194, %v4285
        %4287 = vmatmul.f32.gmra.mxu0 %v463
        %v4288 = vpop.f32.mrf.mxu0
        %v4289 = vadd.f32 %v4197, %v4288
        %4290 = vmatmul.f32.gmra.mxu0 %v469
        %v4291 = vpop.f32.mrf.mxu0
        %v4292 = vadd.f32 %v4200, %v4291
        %4293 = vmatmul.f32.gmra.mxu0 %v475
        %v4294 = vpop.f32.mrf.mxu0
        %v4295 = vadd.f32 %v4203, %v4294
        %4296 = vdwg.mxu0
        %4297 = vmatpush.msra.mxu0 %v1052
        %4298 = vmatpush.msra.mxu0 %v1046
        %4299 = vmatpush.msra.mxu0 %v1040
        %4300 = vmatpush.msra.mxu0 %v1034
        %4301 = vmatpush.msra.mxu0 %v1028
        %4302 = vmatpush.msra.mxu0 %v1022
        %4303 = vmatpush.msra.mxu0 %v1016
        %4304 = vmatpush.msra.mxu0 %v1010
        %4305 = vmatpush.msra.mxu0 %v1004
        %4306 = vmatpush.msra.mxu0 %v998
        %4307 = vmatpush.msra.mxu0 %v992
        %4308 = vmatpush.msra.mxu0 %v986
        %4309 = vmatpush.msra.mxu0 %v980
        %4310 = vmatpush.msra.mxu0 %v974
        %4311 = vmatpush.msra.mxu0 %v968
        %4312 = vmatpush.msra.mxu0 %v962
        %4313 = vmatmul.f32.gmra.mxu0 %v332
        %v4314 = vpop.f32.mrf.mxu0
        %v4315 = vadd.f32 %v4223, %v4314
        %4316 = vmatmul.f32.gmra.mxu0 %v338
        %v4317 = vpop.f32.mrf.mxu0
        %v4318 = vadd.f32 %v4226, %v4317
        %4319 = vmatmul.f32.gmra.mxu0 %v344
        %v4320 = vpop.f32.mrf.mxu0
        %v4321 = vadd.f32 %v4229, %v4320
        %4322 = vmatmul.f32.gmra.mxu0 %v350
        %v4323 = vpop.f32.mrf.mxu0
        %v4324 = vadd.f32 %v4232, %v4323
        %4325 = vmatmul.f32.gmra.mxu0 %v356
        %v4326 = vpop.f32.mrf.mxu0
        %v4327 = vadd.f32 %v4235, %v4326
        %4328 = vmatmul.f32.gmra.mxu0 %v362
        %v4329 = vpop.f32.mrf.mxu0
        %v4330 = vadd.f32 %v4238, %v4329
        %4331 = vmatmul.f32.gmra.mxu0 %v368
        %v4332 = vpop.f32.mrf.mxu0
        %v4333 = vadd.f32 %v4241, %v4332
        %4334 = vmatmul.f32.gmra.mxu0 %v374
        %v4335 = vpop.f32.mrf.mxu0
        %v4336 = vadd.f32 %v4244, %v4335
        %4337 = vmatmul.f32.gmra.mxu0 %v380
        %v4338 = vpop.f32.mrf.mxu0
        %v4339 = vadd.f32 %v4247, %v4338
        %4340 = vmatmul.f32.gmra.mxu0 %v386
        %v4341 = vpop.f32.mrf.mxu0
        %v4342 = vadd.f32 %v4250, %v4341
        %4343 = vmatmul.f32.gmra.mxu0 %v392
        %v4344 = vpop.f32.mrf.mxu0
        %v4345 = vadd.f32 %v4253, %v4344
        %4346 = vmatmul.f32.gmra.mxu0 %v398
        %v4347 = vpop.f32.mrf.mxu0
        %v4348 = vadd.f32 %v4256, %v4347
        %4349 = vmatmul.f32.gmra.mxu0 %v404
        %v4350 = vpop.f32.mrf.mxu0
        %v4351 = vadd.f32 %v4259, %v4350
        %4352 = vmatmul.f32.gmra.mxu0 %v410
        %v4353 = vpop.f32.mrf.mxu0
        %v4354 = vadd.f32 %v4262, %v4353
        %4355 = vmatmul.f32.gmra.mxu0 %v416
        %v4356 = vpop.f32.mrf.mxu0
        %v4357 = vadd.f32 %v4265, %v4356
        %4358 = vmatmul.f32.gmra.mxu0 %v422
        %v4359 = vpop.f32.mrf.mxu0
        %v4360 = vadd.f32 %v4268, %v4359
        %4361 = vmatmul.f32.gmra.mxu0 %v428
        %v4362 = vpop.f32.mrf.mxu0
        %v4363 = vadd.f32 %v4271, %v4362
        %4364 = vmatmul.f32.gmra.mxu0 %v434
        %v4365 = vpop.f32.mrf.mxu0
        %v4366 = vadd.f32 %v4274, %v4365
        %4367 = vmatmul.f32.gmra.mxu0 %v440
        %v4368 = vpop.f32.mrf.mxu0
        %v4369 = vadd.f32 %v4277, %v4368
        %4370 = vmatmul.f32.gmra.mxu0 %v446
        %v4371 = vpop.f32.mrf.mxu0
        %v4372 = vadd.f32 %v4280, %v4371
        %4373 = vmatmul.f32.gmra.mxu0 %v452
        %v4374 = vpop.f32.mrf.mxu0
        %v4375 = vadd.f32 %v4283, %v4374
        %4376 = vmatmul.f32.gmra.mxu0 %v458
        %v4377 = vpop.f32.mrf.mxu0
        %v4378 = vadd.f32 %v4286, %v4377
        %4379 = vmatmul.f32.gmra.mxu0 %v464
        %v4380 = vpop.f32.mrf.mxu0
        %v4381 = vadd.f32 %v4289, %v4380
        %4382 = vmatmul.f32.gmra.mxu0 %v470
        %v4383 = vpop.f32.mrf.mxu0
        %v4384 = vadd.f32 %v4292, %v4383
        %4385 = vmatmul.f32.gmra.mxu0 %v476
        %v4386 = vpop.f32.mrf.mxu0
        %v4387 = vadd.f32 %v4295, %v4386
        %4388 = vdwg.mxu0
        %v4389 = vld [vmem:[%s268] sm:$0xff]
        %v4390 = vld [vmem:[%s268 + $0x8] sm:$0xff]
        %v4391 = vld [vmem:[%s268 + $0x10] sm:$0xff]
        %v4392 = vld [vmem:[%s268 + $0x18] sm:$0xff]
        %v4393 = vld [vmem:[%s268 + $0x20] sm:$0xff]
        %v4394 = vld [vmem:[%s268 + $0x28] sm:$0xff]
        %v4395 = vld [vmem:[%s268 + $0x30] sm:$0xff]
        %v4396 = vld [vmem:[%s268 + $0x38] sm:$0xff]
        %v4397 = vld [vmem:[%s268 + $0x40] sm:$0xff]
        %v4398 = vld [vmem:[%s268 + $0x48] sm:$0xff]
        %v4399 = vld [vmem:[%s268 + $0x50] sm:$0xff]
        %v4400 = vld [vmem:[%s268 + $0x58] sm:$0xff]
        %v4401 = vld [vmem:[%s268 + $0x60] sm:$0xff]
        %v4402 = vld [vmem:[%s268 + $0x68] sm:$0xff]
        %v4403 = vld [vmem:[%s268 + $0x70] sm:$0xff]
        %v4404 = vld [vmem:[%s268 + $0x78] sm:$0xff]
        %v4405 = vld [vmem:[%s268 + $0x80] sm:$0xff]
        %v4406 = vld [vmem:[%s268 + $0x88] sm:$0xff]
        %v4407 = vld [vmem:[%s268 + $0x90] sm:$0xff]
        %v4408 = vld [vmem:[%s268 + $0x98] sm:$0xff]
        %v4409 = vld [vmem:[%s268 + $0xa0] sm:$0xff]
        %v4410 = vld [vmem:[%s268 + $0xa8] sm:$0xff]
        %v4411 = vld [vmem:[%s268 + $0xb0] sm:$0xff]
        %v4412 = vld [vmem:[%s268 + $0xb8] sm:$0xff]
        %v4413 = vld [vmem:[%s268 + $0xc0] sm:$0xff]
        %v4414 = vld [vmem:[%s268 + $0xc8] sm:$0xff]
        %v4415 = vld [vmem:[%s268 + $0xd0] sm:$0xff]
        %v4416 = vld [vmem:[%s268 + $0xd8] sm:$0xff]
        %v4417 = vld [vmem:[%s268 + $0xe0] sm:$0xff]
        %v4418 = vld [vmem:[%s268 + $0xe8] sm:$0xff]
        %v4419 = vld [vmem:[%s268 + $0xf0] sm:$0xff]
        %v4420 = vld [vmem:[%s268 + $0xf8] sm:$0xff]
        %v4421 = vld [vmem:[%s268 + $0x100] sm:$0xff]
        %v4422 = vld [vmem:[%s268 + $0x108] sm:$0xff]
        %v4423 = vld [vmem:[%s268 + $0x110] sm:$0xff]
        %v4424 = vld [vmem:[%s268 + $0x118] sm:$0xff]
        %v4425 = vld [vmem:[%s268 + $0x120] sm:$0xff]
        %v4426 = vld [vmem:[%s268 + $0x128] sm:$0xff]
        %v4427 = vld [vmem:[%s268 + $0x130] sm:$0xff]
        %v4428 = vld [vmem:[%s268 + $0x138] sm:$0xff]
        %v4429 = vld [vmem:[%s268 + $0x140] sm:$0xff]
        %v4430 = vld [vmem:[%s268 + $0x148] sm:$0xff]
        %v4431 = vld [vmem:[%s268 + $0x150] sm:$0xff]
        %v4432 = vld [vmem:[%s268 + $0x158] sm:$0xff]
        %v4433 = vld [vmem:[%s268 + $0x160] sm:$0xff]
        %v4434 = vld [vmem:[%s268 + $0x168] sm:$0xff]
        %v4435 = vld [vmem:[%s268 + $0x170] sm:$0xff]
        %v4436 = vld [vmem:[%s268 + $0x178] sm:$0xff]
        %v4437 = vld [vmem:[%s268 + $0x180] sm:$0xff]
        %v4438 = vld [vmem:[%s268 + $0x188] sm:$0xff]
        %v4439 = vld [vmem:[%s268 + $0x190] sm:$0xff]
        %v4440 = vld [vmem:[%s268 + $0x198] sm:$0xff]
        %v4441 = vld [vmem:[%s268 + $0x1a0] sm:$0xff]
        %v4442 = vld [vmem:[%s268 + $0x1a8] sm:$0xff]
        %v4443 = vld [vmem:[%s268 + $0x1b0] sm:$0xff]
        %v4444 = vld [vmem:[%s268 + $0x1b8] sm:$0xff]
        %v4445 = vld [vmem:[%s268 + $0x1c0] sm:$0xff]
        %v4446 = vld [vmem:[%s268 + $0x1c8] sm:$0xff]
        %v4447 = vld [vmem:[%s268 + $0x1d0] sm:$0xff]
        %v4448 = vld [vmem:[%s268 + $0x1d8] sm:$0xff]
        %v4449 = vld [vmem:[%s268 + $0x1e0] sm:$0xff]
        %v4450 = vld [vmem:[%s268 + $0x1e8] sm:$0xff]
        %v4451 = vld [vmem:[%s268 + $0x1f0] sm:$0xff]
        %v4452 = vld [vmem:[%s268 + $0x1f8] sm:$0xff]
        %v4453 = vld [vmem:[%s268 + $0x200] sm:$0xff]
        %v4454 = vld [vmem:[%s268 + $0x208] sm:$0xff]
        %v4455 = vld [vmem:[%s268 + $0x210] sm:$0xff]
        %v4456 = vld [vmem:[%s268 + $0x218] sm:$0xff]
        %v4457 = vld [vmem:[%s268 + $0x220] sm:$0xff]
        %v4458 = vld [vmem:[%s268 + $0x228] sm:$0xff]
        %v4459 = vld [vmem:[%s268 + $0x230] sm:$0xff]
        %v4460 = vld [vmem:[%s268 + $0x238] sm:$0xff]
        %v4461 = vld [vmem:[%s268 + $0x240] sm:$0xff]
        %v4462 = vld [vmem:[%s268 + $0x248] sm:$0xff]
        %v4463 = vld [vmem:[%s268 + $0x250] sm:$0xff]
        %v4464 = vld [vmem:[%s268 + $0x258] sm:$0xff]
        %v4465 = vld [vmem:[%s268 + $0x260] sm:$0xff]
        %v4466 = vld [vmem:[%s268 + $0x268] sm:$0xff]
        %v4467 = vld [vmem:[%s268 + $0x270] sm:$0xff]
        %v4468 = vld [vmem:[%s268 + $0x278] sm:$0xff]
        %v4469 = vld [vmem:[%s268 + $0x280] sm:$0xff]
        %v4470 = vld [vmem:[%s268 + $0x288] sm:$0xff]
        %v4471 = vld [vmem:[%s268 + $0x290] sm:$0xff]
        %v4472 = vld [vmem:[%s268 + $0x298] sm:$0xff]
        %v4473 = vld [vmem:[%s268 + $0x2a0] sm:$0xff]
        %v4474 = vld [vmem:[%s268 + $0x2a8] sm:$0xff]
        %v4475 = vld [vmem:[%s268 + $0x2b0] sm:$0xff]
        %v4476 = vld [vmem:[%s268 + $0x2b8] sm:$0xff]
        %v4477 = vld [vmem:[%s268 + $0x2c0] sm:$0xff]
        %v4478 = vld [vmem:[%s268 + $0x2c8] sm:$0xff]
        %v4479 = vld [vmem:[%s268 + $0x2d0] sm:$0xff]
        %v4480 = vld [vmem:[%s268 + $0x2d8] sm:$0xff]
        %v4481 = vld [vmem:[%s268 + $0x2e0] sm:$0xff]
        %v4482 = vld [vmem:[%s268 + $0x2e8] sm:$0xff]
        %v4483 = vld [vmem:[%s268 + $0x2f0] sm:$0xff]
        %v4484 = vld [vmem:[%s268 + $0x2f8] sm:$0xff]
        %v4485 = vld [vmem:[%s268 + $0x300] sm:$0xff]
        %v4486 = vld [vmem:[%s268 + $0x308] sm:$0xff]
        %v4487 = vld [vmem:[%s268 + $0x310] sm:$0xff]
        %v4488 = vld [vmem:[%s268 + $0x318] sm:$0xff]
        %v4489 = vld [vmem:[%s268 + $0x320] sm:$0xff]
        %v4490 = vld [vmem:[%s268 + $0x328] sm:$0xff]
        %v4491 = vld [vmem:[%s268 + $0x330] sm:$0xff]
        %v4492 = vld [vmem:[%s268 + $0x338] sm:$0xff]
        %v4493 = vld [vmem:[%s268 + $0x340] sm:$0xff]
        %v4494 = vld [vmem:[%s268 + $0x348] sm:$0xff]
        %v4495 = vld [vmem:[%s268 + $0x350] sm:$0xff]
        %v4496 = vld [vmem:[%s268 + $0x358] sm:$0xff]
        %v4497 = vld [vmem:[%s268 + $0x360] sm:$0xff]
        %v4498 = vld [vmem:[%s268 + $0x368] sm:$0xff]
        %v4499 = vld [vmem:[%s268 + $0x370] sm:$0xff]
        %v4500 = vld [vmem:[%s268 + $0x378] sm:$0xff]
        %v4501 = vld [vmem:[%s268 + $0x380] sm:$0xff]
        %v4502 = vld [vmem:[%s268 + $0x388] sm:$0xff]
        %v4503 = vld [vmem:[%s268 + $0x390] sm:$0xff]
        %v4504 = vld [vmem:[%s268 + $0x398] sm:$0xff]
        %v4505 = vld [vmem:[%s268 + $0x3a0] sm:$0xff]
        %v4506 = vld [vmem:[%s268 + $0x3a8] sm:$0xff]
        %v4507 = vld [vmem:[%s268 + $0x3b0] sm:$0xff]
        %v4508 = vld [vmem:[%s268 + $0x3b8] sm:$0xff]
        %v4509 = vld [vmem:[%s268 + $0x3c0] sm:$0xff]
        %v4510 = vld [vmem:[%s268 + $0x3c8] sm:$0xff]
        %v4511 = vld [vmem:[%s268 + $0x3d0] sm:$0xff]
        %v4512 = vld [vmem:[%s268 + $0x3d8] sm:$0xff]
        %v4513 = vld [vmem:[%s268 + $0x3e0] sm:$0xff]
        %v4514 = vld [vmem:[%s268 + $0x3e8] sm:$0xff]
        %v4515 = vld [vmem:[%s268 + $0x3f0] sm:$0xff]
        %v4516 = vld [vmem:[%s268 + $0x3f8] sm:$0xff]
        %v4517 = vld [vmem:[%s268 + $0x400] sm:$0xff]
        %v4518 = vld [vmem:[%s268 + $0x408] sm:$0xff]
        %v4519 = vld [vmem:[%s268 + $0x410] sm:$0xff]
        %v4520 = vld [vmem:[%s268 + $0x418] sm:$0xff]
        %v4521 = vld [vmem:[%s268 + $0x420] sm:$0xff]
        %v4522 = vld [vmem:[%s268 + $0x428] sm:$0xff]
        %v4523 = vld [vmem:[%s268 + $0x430] sm:$0xff]
        %v4524 = vld [vmem:[%s268 + $0x438] sm:$0xff]
        %v4525 = vld [vmem:[%s268 + $0x440] sm:$0xff]
        %v4526 = vld [vmem:[%s268 + $0x448] sm:$0xff]
        %v4527 = vld [vmem:[%s268 + $0x450] sm:$0xff]
        %v4528 = vld [vmem:[%s268 + $0x458] sm:$0xff]
        %v4529 = vld [vmem:[%s268 + $0x460] sm:$0xff]
        %v4530 = vld [vmem:[%s268 + $0x468] sm:$0xff]
        %v4531 = vld [vmem:[%s268 + $0x470] sm:$0xff]
        %v4532 = vld [vmem:[%s268 + $0x478] sm:$0xff]
        %v4533 = vld [vmem:[%s268 + $0x480] sm:$0xff]
        %v4534 = vld [vmem:[%s268 + $0x488] sm:$0xff]
        %v4535 = vld [vmem:[%s268 + $0x490] sm:$0xff]
        %v4536 = vld [vmem:[%s268 + $0x498] sm:$0xff]
        %v4537 = vld [vmem:[%s268 + $0x4a0] sm:$0xff]
        %v4538 = vld [vmem:[%s268 + $0x4a8] sm:$0xff]
        %v4539 = vadd.f32 %v1555, %v4389
        %v4540 = vadd.f32 %v2107, %v4390
        %v4541 = vadd.f32 %v2659, %v4391
        %v4542 = vadd.f32 %v3211, %v4392
        %v4543 = vadd.f32 %v3763, %v4393
        %v4544 = vadd.f32 %v4315, %v4394
        %v4545 = vadd.f32 %v1558, %v4395
        %v4546 = vadd.f32 %v2110, %v4396
        %v4547 = vadd.f32 %v2662, %v4397
        %v4548 = vadd.f32 %v3214, %v4398
        %v4549 = vadd.f32 %v3766, %v4399
        %v4550 = vadd.f32 %v4318, %v4400
        %v4551 = vadd.f32 %v1561, %v4401
        %v4552 = vadd.f32 %v2113, %v4402
        %v4553 = vadd.f32 %v2665, %v4403
        %v4554 = vadd.f32 %v3217, %v4404
        %v4555 = vadd.f32 %v3769, %v4405
        %v4556 = vadd.f32 %v4321, %v4406
        %v4557 = vadd.f32 %v1564, %v4407
        %v4558 = vadd.f32 %v2116, %v4408
        %v4559 = vadd.f32 %v2668, %v4409
        %v4560 = vadd.f32 %v3220, %v4410
        %v4561 = vadd.f32 %v3772, %v4411
        %v4562 = vadd.f32 %v4324, %v4412
        %v4563 = vadd.f32 %v1567, %v4413
        %v4564 = vadd.f32 %v2119, %v4414
        %v4565 = vadd.f32 %v2671, %v4415
        %v4566 = vadd.f32 %v3223, %v4416
        %v4567 = vadd.f32 %v3775, %v4417
        %v4568 = vadd.f32 %v4327, %v4418
        %v4569 = vadd.f32 %v1570, %v4419
        %v4570 = vadd.f32 %v2122, %v4420
        %v4571 = vadd.f32 %v2674, %v4421
        %v4572 = vadd.f32 %v3226, %v4422
        %v4573 = vadd.f32 %v3778, %v4423
        %v4574 = vadd.f32 %v4330, %v4424
        %v4575 = vadd.f32 %v1573, %v4425
        %v4576 = vadd.f32 %v2125, %v4426
        %v4577 = vadd.f32 %v2677, %v4427
        %v4578 = vadd.f32 %v3229, %v4428
        %v4579 = vadd.f32 %v3781, %v4429
        %v4580 = vadd.f32 %v4333, %v4430
        %v4581 = vadd.f32 %v1576, %v4431
        %v4582 = vadd.f32 %v2128, %v4432
        %v4583 = vadd.f32 %v2680, %v4433
        %v4584 = vadd.f32 %v3232, %v4434
        %v4585 = vadd.f32 %v3784, %v4435
        %v4586 = vadd.f32 %v4336, %v4436
        %v4587 = vadd.f32 %v1579, %v4437
        %v4588 = vadd.f32 %v2131, %v4438
        %v4589 = vadd.f32 %v2683, %v4439
        %v4590 = vadd.f32 %v3235, %v4440
        %v4591 = vadd.f32 %v3787, %v4441
        %v4592 = vadd.f32 %v4339, %v4442
        %v4593 = vadd.f32 %v1582, %v4443
        %v4594 = vadd.f32 %v2134, %v4444
        %v4595 = vadd.f32 %v2686, %v4445
        %v4596 = vadd.f32 %v3238, %v4446
        %v4597 = vadd.f32 %v3790, %v4447
        %v4598 = vadd.f32 %v4342, %v4448
        %v4599 = vadd.f32 %v1585, %v4449
        %v4600 = vadd.f32 %v2137, %v4450
        %v4601 = vadd.f32 %v2689, %v4451
        %v4602 = vadd.f32 %v3241, %v4452
        %v4603 = vadd.f32 %v3793, %v4453
        %v4604 = vadd.f32 %v4345, %v4454
        %v4605 = vadd.f32 %v1588, %v4455
        %v4606 = vadd.f32 %v2140, %v4456
        %v4607 = vadd.f32 %v2692, %v4457
        %v4608 = vadd.f32 %v3244, %v4458
        %v4609 = vadd.f32 %v3796, %v4459
        %v4610 = vadd.f32 %v4348, %v4460
        %v4611 = vadd.f32 %v1591, %v4461
        %v4612 = vadd.f32 %v2143, %v4462
        %v4613 = vadd.f32 %v2695, %v4463
        %v4614 = vadd.f32 %v3247, %v4464
        %v4615 = vadd.f32 %v3799, %v4465
        %v4616 = vadd.f32 %v4351, %v4466
        %v4617 = vadd.f32 %v1594, %v4467
        %v4618 = vadd.f32 %v2146, %v4468
        %v4619 = vadd.f32 %v2698, %v4469
        %v4620 = vadd.f32 %v3250, %v4470
        %v4621 = vadd.f32 %v3802, %v4471
        %v4622 = vadd.f32 %v4354, %v4472
        %v4623 = vadd.f32 %v1597, %v4473
        %v4624 = vadd.f32 %v2149, %v4474
        %v4625 = vadd.f32 %v2701, %v4475
        %v4626 = vadd.f32 %v3253, %v4476
        %v4627 = vadd.f32 %v3805, %v4477
        %v4628 = vadd.f32 %v4357, %v4478
        %v4629 = vadd.f32 %v1600, %v4479
        %v4630 = vadd.f32 %v2152, %v4480
        %v4631 = vadd.f32 %v2704, %v4481
        %v4632 = vadd.f32 %v3256, %v4482
        %v4633 = vadd.f32 %v3808, %v4483
        %v4634 = vadd.f32 %v4360, %v4484
        %v4635 = vadd.f32 %v1603, %v4485
        %v4636 = vadd.f32 %v2155, %v4486
        %v4637 = vadd.f32 %v2707, %v4487
        %v4638 = vadd.f32 %v3259, %v4488
        %v4639 = vadd.f32 %v3811, %v4489
        %v4640 = vadd.f32 %v4363, %v4490
        %v4641 = vadd.f32 %v1606, %v4491
        %v4642 = vadd.f32 %v2158, %v4492
        %v4643 = vadd.f32 %v2710, %v4493
        %v4644 = vadd.f32 %v3262, %v4494
        %v4645 = vadd.f32 %v3814, %v4495
        %v4646 = vadd.f32 %v4366, %v4496
        %v4647 = vadd.f32 %v1609, %v4497
        %v4648 = vadd.f32 %v2161, %v4498
        %v4649 = vadd.f32 %v2713, %v4499
        %v4650 = vadd.f32 %v3265, %v4500
        %v4651 = vadd.f32 %v3817, %v4501
        %v4652 = vadd.f32 %v4369, %v4502
        %v4653 = vadd.f32 %v1612, %v4503
        %v4654 = vadd.f32 %v2164, %v4504
        %v4655 = vadd.f32 %v2716, %v4505
        %v4656 = vadd.f32 %v3268, %v4506
        %v4657 = vadd.f32 %v3820, %v4507
        %v4658 = vadd.f32 %v4372, %v4508
        %v4659 = vadd.f32 %v1615, %v4509
        %v4660 = vadd.f32 %v2167, %v4510
        %v4661 = vadd.f32 %v2719, %v4511
        %v4662 = vadd.f32 %v3271, %v4512
        %v4663 = vadd.f32 %v3823, %v4513
        %v4664 = vadd.f32 %v4375, %v4514
        %v4665 = vadd.f32 %v1618, %v4515
        %v4666 = vadd.f32 %v2170, %v4516
        %v4667 = vadd.f32 %v2722, %v4517
        %v4668 = vadd.f32 %v3274, %v4518
        %v4669 = vadd.f32 %v3826, %v4519
        %v4670 = vadd.f32 %v4378, %v4520
        %v4671 = vadd.f32 %v1621, %v4521
        %v4672 = vadd.f32 %v2173, %v4522
        %v4673 = vadd.f32 %v2725, %v4523
        %v4674 = vadd.f32 %v3277, %v4524
        %v4675 = vadd.f32 %v3829, %v4525
        %v4676 = vadd.f32 %v4381, %v4526
        %v4677 = vadd.f32 %v1624, %v4527
        %v4678 = vadd.f32 %v2176, %v4528
        %v4679 = vadd.f32 %v2728, %v4529
        %v4680 = vadd.f32 %v3280, %v4530
        %v4681 = vadd.f32 %v3832, %v4531
        %v4682 = vadd.f32 %v4384, %v4532
        %v4683 = vadd.f32 %v1627, %v4533
        %v4684 = vadd.f32 %v2179, %v4534
        %v4685 = vadd.f32 %v2731, %v4535
        %v4686 = vadd.f32 %v3283, %v4536
        %v4687 = vadd.f32 %v3835, %v4537
        %v4688 = vadd.f32 %v4387, %v4538
        %v4689 = vadd.f32 %v4539, %v4540
        %v4690 = vadd.f32 %v4689, %v4541
        %v4691 = vadd.f32 %v4690, %v4542
        %v4692 = vadd.f32 %v4691, %v4543
        %v4693 = vadd.f32 %v4692, %v4544
        %4694 = vadd.xlane.f32.xlu0 %v4693
        %v4695 = vpop.xlane.xlu0 %4694
        %v4696 = vadd.f32 %v4545, %v4546
        %v4697 = vadd.f32 %v4696, %v4547
        %v4698 = vadd.f32 %v4697, %v4548
        %v4699 = vadd.f32 %v4698, %v4549
        %v4700 = vadd.f32 %v4699, %v4550
        %4701 = vadd.xlane.f32.xlu0 %v4700
        %v4702 = vpop.xlane.xlu0 %4701
        %v4703 = vadd.f32 %v4551, %v4552
        %v4704 = vadd.f32 %v4703, %v4553
        %v4705 = vadd.f32 %v4704, %v4554
        %v4706 = vadd.f32 %v4705, %v4555
        %v4707 = vadd.f32 %v4706, %v4556
        %4708 = vadd.xlane.f32.xlu0 %v4707
        %v4709 = vpop.xlane.xlu0 %4708
        %v4710 = vadd.f32 %v4557, %v4558
        %v4711 = vadd.f32 %v4710, %v4559
        %v4712 = vadd.f32 %v4711, %v4560
        %v4713 = vadd.f32 %v4712, %v4561
        %v4714 = vadd.f32 %v4713, %v4562
        %4715 = vadd.xlane.f32.xlu0 %v4714
        %v4716 = vpop.xlane.xlu0 %4715
        %v4717 = vadd.f32 %v4563, %v4564
        %v4718 = vadd.f32 %v4717, %v4565
        %v4719 = vadd.f32 %v4718, %v4566
        %v4720 = vadd.f32 %v4719, %v4567
        %v4721 = vadd.f32 %v4720, %v4568
        %4722 = vadd.xlane.f32.xlu0 %v4721
        %v4723 = vpop.xlane.xlu0 %4722
        %v4724 = vadd.f32 %v4569, %v4570
        %v4725 = vadd.f32 %v4724, %v4571
        %v4726 = vadd.f32 %v4725, %v4572
        %v4727 = vadd.f32 %v4726, %v4573
        %v4728 = vadd.f32 %v4727, %v4574
        %4729 = vadd.xlane.f32.xlu0 %v4728
        %v4730 = vpop.xlane.xlu0 %4729
        %v4731 = vadd.f32 %v4575, %v4576
        %v4732 = vadd.f32 %v4731, %v4577
        %v4733 = vadd.f32 %v4732, %v4578
        %v4734 = vadd.f32 %v4733, %v4579
        %v4735 = vadd.f32 %v4734, %v4580
        %4736 = vadd.xlane.f32.xlu0 %v4735
        %v4737 = vpop.xlane.xlu0 %4736
        %v4738 = vadd.f32 %v4581, %v4582
        %v4739 = vadd.f32 %v4738, %v4583
        %v4740 = vadd.f32 %v4739, %v4584
        %v4741 = vadd.f32 %v4740, %v4585
        %v4742 = vadd.f32 %v4741, %v4586
        %4743 = vadd.xlane.f32.xlu0 %v4742
        %v4744 = vpop.xlane.xlu0 %4743
        %v4745 = vadd.f32 %v4587, %v4588
        %v4746 = vadd.f32 %v4745, %v4589
        %v4747 = vadd.f32 %v4746, %v4590
        %v4748 = vadd.f32 %v4747, %v4591
        %v4749 = vadd.f32 %v4748, %v4592
        %4750 = vadd.xlane.f32.xlu0 %v4749
        %v4751 = vpop.xlane.xlu0 %4750
        %v4752 = vadd.f32 %v4593, %v4594
        %v4753 = vadd.f32 %v4752, %v4595
        %v4754 = vadd.f32 %v4753, %v4596
        %v4755 = vadd.f32 %v4754, %v4597
        %v4756 = vadd.f32 %v4755, %v4598
        %4757 = vadd.xlane.f32.xlu0 %v4756
        %v4758 = vpop.xlane.xlu0 %4757
        %v4759 = vadd.f32 %v4599, %v4600
        %v4760 = vadd.f32 %v4759, %v4601
        %v4761 = vadd.f32 %v4760, %v4602
        %v4762 = vadd.f32 %v4761, %v4603
        %v4763 = vadd.f32 %v4762, %v4604
        %4764 = vadd.xlane.f32.xlu0 %v4763
        %v4765 = vpop.xlane.xlu0 %4764
        %v4766 = vadd.f32 %v4605, %v4606
        %v4767 = vadd.f32 %v4766, %v4607
        %v4768 = vadd.f32 %v4767, %v4608
        %v4769 = vadd.f32 %v4768, %v4609
        %v4770 = vadd.f32 %v4769, %v4610
        %4771 = vadd.xlane.f32.xlu0 %v4770
        %v4772 = vpop.xlane.xlu0 %4771
        %v4773 = vadd.f32 %v4611, %v4612
        %v4774 = vadd.f32 %v4773, %v4613
        %v4775 = vadd.f32 %v4774, %v4614
        %v4776 = vadd.f32 %v4775, %v4615
        %v4777 = vadd.f32 %v4776, %v4616
        %4778 = vadd.xlane.f32.xlu0 %v4777
        %v4779 = vpop.xlane.xlu0 %4778
        %v4780 = vadd.f32 %v4617, %v4618
        %v4781 = vadd.f32 %v4780, %v4619
        %v4782 = vadd.f32 %v4781, %v4620
        %v4783 = vadd.f32 %v4782, %v4621
        %v4784 = vadd.f32 %v4783, %v4622
        %4785 = vadd.xlane.f32.xlu0 %v4784
        %v4786 = vpop.xlane.xlu0 %4785
        %v4787 = vadd.f32 %v4623, %v4624
        %v4788 = vadd.f32 %v4787, %v4625
        %v4789 = vadd.f32 %v4788, %v4626
        %v4790 = vadd.f32 %v4789, %v4627
        %v4791 = vadd.f32 %v4790, %v4628
        %4792 = vadd.xlane.f32.xlu0 %v4791
        %v4793 = vpop.xlane.xlu0 %4792
        %v4794 = vadd.f32 %v4629, %v4630
        %v4795 = vadd.f32 %v4794, %v4631
        %v4796 = vadd.f32 %v4795, %v4632
        %v4797 = vadd.f32 %v4796, %v4633
        %v4798 = vadd.f32 %v4797, %v4634
        %4799 = vadd.xlane.f32.xlu0 %v4798
        %v4800 = vpop.xlane.xlu0 %4799
        %v4801 = vadd.f32 %v4635, %v4636
        %v4802 = vadd.f32 %v4801, %v4637
        %v4803 = vadd.f32 %v4802, %v4638
        %v4804 = vadd.f32 %v4803, %v4639
        %v4805 = vadd.f32 %v4804, %v4640
        %4806 = vadd.xlane.f32.xlu0 %v4805
        %v4807 = vpop.xlane.xlu0 %4806
        %v4808 = vadd.f32 %v4641, %v4642
        %v4809 = vadd.f32 %v4808, %v4643
        %v4810 = vadd.f32 %v4809, %v4644
        %v4811 = vadd.f32 %v4810, %v4645
        %v4812 = vadd.f32 %v4811, %v4646
        %4813 = vadd.xlane.f32.xlu0 %v4812
        %v4814 = vpop.xlane.xlu0 %4813
        %v4815 = vadd.f32 %v4647, %v4648
        %v4816 = vadd.f32 %v4815, %v4649
        %v4817 = vadd.f32 %v4816, %v4650
        %v4818 = vadd.f32 %v4817, %v4651
        %v4819 = vadd.f32 %v4818, %v4652
        %4820 = vadd.xlane.f32.xlu0 %v4819
        %v4821 = vpop.xlane.xlu0 %4820
        %v4822 = vadd.f32 %v4653, %v4654
        %v4823 = vadd.f32 %v4822, %v4655
        %v4824 = vadd.f32 %v4823, %v4656
        %v4825 = vadd.f32 %v4824, %v4657
        %v4826 = vadd.f32 %v4825, %v4658
        %4827 = vadd.xlane.f32.xlu0 %v4826
        %v4828 = vpop.xlane.xlu0 %4827
        %v4829 = vadd.f32 %v4659, %v4660
        %v4830 = vadd.f32 %v4829, %v4661
        %v4831 = vadd.f32 %v4830, %v4662
        %v4832 = vadd.f32 %v4831, %v4663
        %v4833 = vadd.f32 %v4832, %v4664
        %4834 = vadd.xlane.f32.xlu0 %v4833
        %v4835 = vpop.xlane.xlu0 %4834
        %v4836 = vadd.f32 %v4665, %v4666
        %v4837 = vadd.f32 %v4836, %v4667
        %v4838 = vadd.f32 %v4837, %v4668
        %v4839 = vadd.f32 %v4838, %v4669
        %v4840 = vadd.f32 %v4839, %v4670
        %4841 = vadd.xlane.f32.xlu0 %v4840
        %v4842 = vpop.xlane.xlu0 %4841
        %v4843 = vadd.f32 %v4671, %v4672
        %v4844 = vadd.f32 %v4843, %v4673
        %v4845 = vadd.f32 %v4844, %v4674
        %v4846 = vadd.f32 %v4845, %v4675
        %v4847 = vadd.f32 %v4846, %v4676
        %4848 = vadd.xlane.f32.xlu0 %v4847
        %v4849 = vpop.xlane.xlu0 %4848
        %v4850 = vadd.f32 %v4677, %v4678
        %v4851 = vadd.f32 %v4850, %v4679
        %v4852 = vadd.f32 %v4851, %v4680
        %v4853 = vadd.f32 %v4852, %v4681
        %v4854 = vadd.f32 %v4853, %v4682
        %4855 = vadd.xlane.f32.xlu0 %v4854
        %v4856 = vpop.xlane.xlu0 %4855
        %v4857 = vadd.f32 %v4683, %v4684
        %v4858 = vadd.f32 %v4857, %v4685
        %v4859 = vadd.f32 %v4858, %v4686
        %v4860 = vadd.f32 %v4859, %v4687
        %v4861 = vadd.f32 %v4860, %v4688
        %4862 = vadd.xlane.f32.xlu0 %v4861
        %v4863 = vpop.xlane.xlu0 %4862
        %v4864 = vmul.f32 %v4695, 0.0013020834
        %v4865 = vmul.f32 %v4702, 0.0013020834
        %v4866 = vmul.f32 %v4709, 0.0013020834
        %v4867 = vmul.f32 %v4716, 0.0013020834
        %v4868 = vmul.f32 %v4723, 0.0013020834
        %v4869 = vmul.f32 %v4730, 0.0013020834
        %v4870 = vmul.f32 %v4737, 0.0013020834
        %v4871 = vmul.f32 %v4744, 0.0013020834
        %v4872 = vmul.f32 %v4751, 0.0013020834
        %v4873 = vmul.f32 %v4758, 0.0013020834
        %v4874 = vmul.f32 %v4765, 0.0013020834
        %v4875 = vmul.f32 %v4772, 0.0013020834
        %v4876 = vmul.f32 %v4779, 0.0013020834
        %v4877 = vmul.f32 %v4786, 0.0013020834
        %v4878 = vmul.f32 %v4793, 0.0013020834
        %v4879 = vmul.f32 %v4800, 0.0013020834
        %v4880 = vmul.f32 %v4807, 0.0013020834
        %v4881 = vmul.f32 %v4814, 0.0013020834
        %v4882 = vmul.f32 %v4821, 0.0013020834
        %v4883 = vmul.f32 %v4828, 0.0013020834
        %v4884 = vmul.f32 %v4835, 0.0013020834
        %v4885 = vmul.f32 %v4842, 0.0013020834
        %v4886 = vmul.f32 %v4849, 0.0013020834
        %v4887 = vmul.f32 %v4856, 0.0013020834
        %v4888 = vmul.f32 %v4863, 0.0013020834
        %v4889 = vmul.f32 %v4539, %v4539
        %v4890 = vmul.f32 %v4540, %v4540
        %v4891 = vmul.f32 %v4541, %v4541
        %v4892 = vmul.f32 %v4542, %v4542
        %v4893 = vmul.f32 %v4543, %v4543
        %v4894 = vmul.f32 %v4544, %v4544
        %v4895 = vmul.f32 %v4545, %v4545
        %v4896 = vmul.f32 %v4546, %v4546
        %v4897 = vmul.f32 %v4547, %v4547
        %v4898 = vmul.f32 %v4548, %v4548
        %v4899 = vmul.f32 %v4549, %v4549
        %v4900 = vmul.f32 %v4550, %v4550
        %v4901 = vmul.f32 %v4551, %v4551
        %v4902 = vmul.f32 %v4552, %v4552
        %v4903 = vmul.f32 %v4553, %v4553
        %v4904 = vmul.f32 %v4554, %v4554
        %v4905 = vmul.f32 %v4555, %v4555
        %v4906 = vmul.f32 %v4556, %v4556
        %v4907 = vmul.f32 %v4557, %v4557
        %v4908 = vmul.f32 %v4558, %v4558
        %v4909 = vmul.f32 %v4559, %v4559
        %v4910 = vmul.f32 %v4560, %v4560
        %v4911 = vmul.f32 %v4561, %v4561
        %v4912 = vmul.f32 %v4562, %v4562
        %v4913 = vmul.f32 %v4563, %v4563
        %v4914 = vmul.f32 %v4564, %v4564
        %v4915 = vmul.f32 %v4565, %v4565
        %v4916 = vmul.f32 %v4566, %v4566
        %v4917 = vmul.f32 %v4567, %v4567
        %v4918 = vmul.f32 %v4568, %v4568
        %v4919 = vmul.f32 %v4569, %v4569
        %v4920 = vmul.f32 %v4570, %v4570
        %v4921 = vmul.f32 %v4571, %v4571
        %v4922 = vmul.f32 %v4572, %v4572
        %v4923 = vmul.f32 %v4573, %v4573
        %v4924 = vmul.f32 %v4574, %v4574
        %v4925 = vmul.f32 %v4575, %v4575
        %v4926 = vmul.f32 %v4576, %v4576
        %v4927 = vmul.f32 %v4577, %v4577
        %v4928 = vmul.f32 %v4578, %v4578
        %v4929 = vmul.f32 %v4579, %v4579
        %v4930 = vmul.f32 %v4580, %v4580
        %v4931 = vmul.f32 %v4581, %v4581
        %v4932 = vmul.f32 %v4582, %v4582
        %v4933 = vmul.f32 %v4583, %v4583
        %v4934 = vmul.f32 %v4584, %v4584
        %v4935 = vmul.f32 %v4585, %v4585
        %v4936 = vmul.f32 %v4586, %v4586
        %v4937 = vmul.f32 %v4587, %v4587
        %v4938 = vmul.f32 %v4588, %v4588
        %v4939 = vmul.f32 %v4589, %v4589
        %v4940 = vmul.f32 %v4590, %v4590
        %v4941 = vmul.f32 %v4591, %v4591
        %v4942 = vmul.f32 %v4592, %v4592
        %v4943 = vmul.f32 %v4593, %v4593
        %v4944 = vmul.f32 %v4594, %v4594
        %v4945 = vmul.f32 %v4595, %v4595
        %v4946 = vmul.f32 %v4596, %v4596
        %v4947 = vmul.f32 %v4597, %v4597
        %v4948 = vmul.f32 %v4598, %v4598
        %v4949 = vmul.f32 %v4599, %v4599
        %v4950 = vmul.f32 %v4600, %v4600
        %v4951 = vmul.f32 %v4601, %v4601
        %v4952 = vmul.f32 %v4602, %v4602
        %v4953 = vmul.f32 %v4603, %v4603
        %v4954 = vmul.f32 %v4604, %v4604
        %v4955 = vmul.f32 %v4605, %v4605
        %v4956 = vmul.f32 %v4606, %v4606
        %v4957 = vmul.f32 %v4607, %v4607
        %v4958 = vmul.f32 %v4608, %v4608
        %v4959 = vmul.f32 %v4609, %v4609
        %v4960 = vmul.f32 %v4610, %v4610
        %v4961 = vmul.f32 %v4611, %v4611
        %v4962 = vmul.f32 %v4612, %v4612
        %v4963 = vmul.f32 %v4613, %v4613
        %v4964 = vmul.f32 %v4614, %v4614
        %v4965 = vmul.f32 %v4615, %v4615
        %v4966 = vmul.f32 %v4616, %v4616
        %v4967 = vmul.f32 %v4617, %v4617
        %v4968 = vmul.f32 %v4618, %v4618
        %v4969 = vmul.f32 %v4619, %v4619
        %v4970 = vmul.f32 %v4620, %v4620
        %v4971 = vmul.f32 %v4621, %v4621
        %v4972 = vmul.f32 %v4622, %v4622
        %v4973 = vmul.f32 %v4623, %v4623
        %v4974 = vmul.f32 %v4624, %v4624
        %v4975 = vmul.f32 %v4625, %v4625
        %v4976 = vmul.f32 %v4626, %v4626
        %v4977 = vmul.f32 %v4627, %v4627
        %v4978 = vmul.f32 %v4628, %v4628
        %v4979 = vmul.f32 %v4629, %v4629
        %v4980 = vmul.f32 %v4630, %v4630
        %v4981 = vmul.f32 %v4631, %v4631
        %v4982 = vmul.f32 %v4632, %v4632
        %v4983 = vmul.f32 %v4633, %v4633
        %v4984 = vmul.f32 %v4634, %v4634
        %v4985 = vmul.f32 %v4635, %v4635
        %v4986 = vmul.f32 %v4636, %v4636
        %v4987 = vmul.f32 %v4637, %v4637
        %v4988 = vmul.f32 %v4638, %v4638
        %v4989 = vmul.f32 %v4639, %v4639
        %v4990 = vmul.f32 %v4640, %v4640
        %v4991 = vmul.f32 %v4641, %v4641
        %v4992 = vmul.f32 %v4642, %v4642
        %v4993 = vmul.f32 %v4643, %v4643
        %v4994 = vmul.f32 %v4644, %v4644
        %v4995 = vmul.f32 %v4645, %v4645
        %v4996 = vmul.f32 %v4646, %v4646
        %v4997 = vmul.f32 %v4647, %v4647
        %v4998 = vmul.f32 %v4648, %v4648
        %v4999 = vmul.f32 %v4649, %v4649
        %v5000 = vmul.f32 %v4650, %v4650
        %v5001 = vmul.f32 %v4651, %v4651
        %v5002 = vmul.f32 %v4652, %v4652
        %v5003 = vmul.f32 %v4653, %v4653
        %v5004 = vmul.f32 %v4654, %v4654
        %v5005 = vmul.f32 %v4655, %v4655
        %v5006 = vmul.f32 %v4656, %v4656
        %v5007 = vmul.f32 %v4657, %v4657
        %v5008 = vmul.f32 %v4658, %v4658
        %v5009 = vmul.f32 %v4659, %v4659
        %v5010 = vmul.f32 %v4660, %v4660
        %v5011 = vmul.f32 %v4661, %v4661
        %v5012 = vmul.f32 %v4662, %v4662
        %v5013 = vmul.f32 %v4663, %v4663
        %v5014 = vmul.f32 %v4664, %v4664
        %v5015 = vmul.f32 %v4665, %v4665
        %v5016 = vmul.f32 %v4666, %v4666
        %v5017 = vmul.f32 %v4667, %v4667
        %v5018 = vmul.f32 %v4668, %v4668
        %v5019 = vmul.f32 %v4669, %v4669
        %v5020 = vmul.f32 %v4670, %v4670
        %v5021 = vmul.f32 %v4671, %v4671
        %v5022 = vmul.f32 %v4672, %v4672
        %v5023 = vmul.f32 %v4673, %v4673
        %v5024 = vmul.f32 %v4674, %v4674
        %v5025 = vmul.f32 %v4675, %v4675
        %v5026 = vmul.f32 %v4676, %v4676
        %v5027 = vmul.f32 %v4677, %v4677
        %v5028 = vmul.f32 %v4678, %v4678
        %v5029 = vmul.f32 %v4679, %v4679
        %v5030 = vmul.f32 %v4680, %v4680
        %v5031 = vmul.f32 %v4681, %v4681
        %v5032 = vmul.f32 %v4682, %v4682
        %v5033 = vmul.f32 %v4683, %v4683
        %v5034 = vmul.f32 %v4684, %v4684
        %v5035 = vmul.f32 %v4685, %v4685
        %v5036 = vmul.f32 %v4686, %v4686
        %v5037 = vmul.f32 %v4687, %v4687
        %v5038 = vmul.f32 %v4688, %v4688
        %v5039 = vadd.f32 %v4889, %v4890
        %v5040 = vadd.f32 %v5039, %v4891
        %v5041 = vadd.f32 %v5040, %v4892
        %v5042 = vadd.f32 %v5041, %v4893
        %v5043 = vadd.f32 %v5042, %v4894
        %5044 = vadd.xlane.f32.xlu0 %v5043
        %v5045 = vpop.xlane.xlu0 %5044
        %v5046 = vadd.f32 %v4895, %v4896
        %v5047 = vadd.f32 %v5046, %v4897
        %v5048 = vadd.f32 %v5047, %v4898
        %v5049 = vadd.f32 %v5048, %v4899
        %v5050 = vadd.f32 %v5049, %v4900
        %5051 = vadd.xlane.f32.xlu0 %v5050
        %v5052 = vpop.xlane.xlu0 %5051
        %v5053 = vadd.f32 %v4901, %v4902
        %v5054 = vadd.f32 %v5053, %v4903
        %v5055 = vadd.f32 %v5054, %v4904
        %v5056 = vadd.f32 %v5055, %v4905
        %v5057 = vadd.f32 %v5056, %v4906
        %5058 = vadd.xlane.f32.xlu0 %v5057
        %v5059 = vpop.xlane.xlu0 %5058
        %v5060 = vadd.f32 %v4907, %v4908
        %v5061 = vadd.f32 %v5060, %v4909
        %v5062 = vadd.f32 %v5061, %v4910
        %v5063 = vadd.f32 %v5062, %v4911
        %v5064 = vadd.f32 %v5063, %v4912
        %5065 = vadd.xlane.f32.xlu0 %v5064
        %v5066 = vpop.xlane.xlu0 %5065
        %v5067 = vadd.f32 %v4913, %v4914
        %v5068 = vadd.f32 %v5067, %v4915
        %v5069 = vadd.f32 %v5068, %v4916
        %v5070 = vadd.f32 %v5069, %v4917
        %v5071 = vadd.f32 %v5070, %v4918
        %5072 = vadd.xlane.f32.xlu0 %v5071
        %v5073 = vpop.xlane.xlu0 %5072
        %v5074 = vadd.f32 %v4919, %v4920
        %v5075 = vadd.f32 %v5074, %v4921
        %v5076 = vadd.f32 %v5075, %v4922
        %v5077 = vadd.f32 %v5076, %v4923
        %v5078 = vadd.f32 %v5077, %v4924
        %5079 = vadd.xlane.f32.xlu0 %v5078
        %v5080 = vpop.xlane.xlu0 %5079
        %v5081 = vadd.f32 %v4925, %v4926
        %v5082 = vadd.f32 %v5081, %v4927
        %v5083 = vadd.f32 %v5082, %v4928
        %v5084 = vadd.f32 %v5083, %v4929
        %v5085 = vadd.f32 %v5084, %v4930
        %5086 = vadd.xlane.f32.xlu0 %v5085
        %v5087 = vpop.xlane.xlu0 %5086
        %v5088 = vadd.f32 %v4931, %v4932
        %v5089 = vadd.f32 %v5088, %v4933
        %v5090 = vadd.f32 %v5089, %v4934
        %v5091 = vadd.f32 %v5090, %v4935
        %v5092 = vadd.f32 %v5091, %v4936
        %5093 = vadd.xlane.f32.xlu0 %v5092
        %v5094 = vpop.xlane.xlu0 %5093
        %v5095 = vadd.f32 %v4937, %v4938
        %v5096 = vadd.f32 %v5095, %v4939
        %v5097 = vadd.f32 %v5096, %v4940
        %v5098 = vadd.f32 %v5097, %v4941
        %v5099 = vadd.f32 %v5098, %v4942
        %5100 = vadd.xlane.f32.xlu0 %v5099
        %v5101 = vpop.xlane.xlu0 %5100
        %v5102 = vadd.f32 %v4943, %v4944
        %v5103 = vadd.f32 %v5102, %v4945
        %v5104 = vadd.f32 %v5103, %v4946
        %v5105 = vadd.f32 %v5104, %v4947
        %v5106 = vadd.f32 %v5105, %v4948
        %5107 = vadd.xlane.f32.xlu0 %v5106
        %v5108 = vpop.xlane.xlu0 %5107
        %v5109 = vadd.f32 %v4949, %v4950
        %v5110 = vadd.f32 %v5109, %v4951
        %v5111 = vadd.f32 %v5110, %v4952
        %v5112 = vadd.f32 %v5111, %v4953
        %v5113 = vadd.f32 %v5112, %v4954
        %5114 = vadd.xlane.f32.xlu0 %v5113
        %v5115 = vpop.xlane.xlu0 %5114
        %v5116 = vadd.f32 %v4955, %v4956
        %v5117 = vadd.f32 %v5116, %v4957
        %v5118 = vadd.f32 %v5117, %v4958
        %v5119 = vadd.f32 %v5118, %v4959
        %v5120 = vadd.f32 %v5119, %v4960
        %5121 = vadd.xlane.f32.xlu0 %v5120
        %v5122 = vpop.xlane.xlu0 %5121
        %v5123 = vadd.f32 %v4961, %v4962
        %v5124 = vadd.f32 %v5123, %v4963
        %v5125 = vadd.f32 %v5124, %v4964
        %v5126 = vadd.f32 %v5125, %v4965
        %v5127 = vadd.f32 %v5126, %v4966
        %5128 = vadd.xlane.f32.xlu0 %v5127
        %v5129 = vpop.xlane.xlu0 %5128
        %v5130 = vadd.f32 %v4967, %v4968
        %v5131 = vadd.f32 %v5130, %v4969
        %v5132 = vadd.f32 %v5131, %v4970
        %v5133 = vadd.f32 %v5132, %v4971
        %v5134 = vadd.f32 %v5133, %v4972
        %5135 = vadd.xlane.f32.xlu0 %v5134
        %v5136 = vpop.xlane.xlu0 %5135
        %v5137 = vadd.f32 %v4973, %v4974
        %v5138 = vadd.f32 %v5137, %v4975
        %v5139 = vadd.f32 %v5138, %v4976
        %v5140 = vadd.f32 %v5139, %v4977
        %v5141 = vadd.f32 %v5140, %v4978
        %5142 = vadd.xlane.f32.xlu0 %v5141
        %v5143 = vpop.xlane.xlu0 %5142
        %v5144 = vadd.f32 %v4979, %v4980
        %v5145 = vadd.f32 %v5144, %v4981
        %v5146 = vadd.f32 %v5145, %v4982
        %v5147 = vadd.f32 %v5146, %v4983
        %v5148 = vadd.f32 %v5147, %v4984
        %5149 = vadd.xlane.f32.xlu0 %v5148
        %v5150 = vpop.xlane.xlu0 %5149
        %v5151 = vadd.f32 %v4985, %v4986
        %v5152 = vadd.f32 %v5151, %v4987
        %v5153 = vadd.f32 %v5152, %v4988
        %v5154 = vadd.f32 %v5153, %v4989
        %v5155 = vadd.f32 %v5154, %v4990
        %5156 = vadd.xlane.f32.xlu0 %v5155
        %v5157 = vpop.xlane.xlu0 %5156
        %v5158 = vadd.f32 %v4991, %v4992
        %v5159 = vadd.f32 %v5158, %v4993
        %v5160 = vadd.f32 %v5159, %v4994
        %v5161 = vadd.f32 %v5160, %v4995
        %v5162 = vadd.f32 %v5161, %v4996
        %5163 = vadd.xlane.f32.xlu0 %v5162
        %v5164 = vpop.xlane.xlu0 %5163
        %v5165 = vadd.f32 %v4997, %v4998
        %v5166 = vadd.f32 %v5165, %v4999
        %v5167 = vadd.f32 %v5166, %v5000
        %v5168 = vadd.f32 %v5167, %v5001
        %v5169 = vadd.f32 %v5168, %v5002
        %5170 = vadd.xlane.f32.xlu0 %v5169
        %v5171 = vpop.xlane.xlu0 %5170
        %v5172 = vadd.f32 %v5003, %v5004
        %v5173 = vadd.f32 %v5172, %v5005
        %v5174 = vadd.f32 %v5173, %v5006
        %v5175 = vadd.f32 %v5174, %v5007
        %v5176 = vadd.f32 %v5175, %v5008
        %5177 = vadd.xlane.f32.xlu0 %v5176
        %v5178 = vpop.xlane.xlu0 %5177
        %v5179 = vadd.f32 %v5009, %v5010
        %v5180 = vadd.f32 %v5179, %v5011
        %v5181 = vadd.f32 %v5180, %v5012
        %v5182 = vadd.f32 %v5181, %v5013
        %v5183 = vadd.f32 %v5182, %v5014
        %5184 = vadd.xlane.f32.xlu0 %v5183
        %v5185 = vpop.xlane.xlu0 %5184
        %v5186 = vadd.f32 %v5015, %v5016
        %v5187 = vadd.f32 %v5186, %v5017
        %v5188 = vadd.f32 %v5187, %v5018
        %v5189 = vadd.f32 %v5188, %v5019
        %v5190 = vadd.f32 %v5189, %v5020
        %5191 = vadd.xlane.f32.xlu0 %v5190
        %v5192 = vpop.xlane.xlu0 %5191
        %v5193 = vadd.f32 %v5021, %v5022
        %v5194 = vadd.f32 %v5193, %v5023
        %v5195 = vadd.f32 %v5194, %v5024
        %v5196 = vadd.f32 %v5195, %v5025
        %v5197 = vadd.f32 %v5196, %v5026
        %5198 = vadd.xlane.f32.xlu0 %v5197
        %v5199 = vpop.xlane.xlu0 %5198
        %v5200 = vadd.f32 %v5027, %v5028
        %v5201 = vadd.f32 %v5200, %v5029
        %v5202 = vadd.f32 %v5201, %v5030
        %v5203 = vadd.f32 %v5202, %v5031
        %v5204 = vadd.f32 %v5203, %v5032
        %5205 = vadd.xlane.f32.xlu0 %v5204
        %v5206 = vpop.xlane.xlu0 %5205
        %v5207 = vadd.f32 %v5033, %v5034
        %v5208 = vadd.f32 %v5207, %v5035
        %v5209 = vadd.f32 %v5208, %v5036
        %v5210 = vadd.f32 %v5209, %v5037
        %v5211 = vadd.f32 %v5210, %v5038
        %5212 = vadd.xlane.f32.xlu0 %v5211
        %v5213 = vpop.xlane.xlu0 %5212
        %v5214 = vmul.f32 %v5045, 0.0013020834
        %v5215 = vmul.f32 %v5052, 0.0013020834
        %v5216 = vmul.f32 %v5059, 0.0013020834
        %v5217 = vmul.f32 %v5066, 0.0013020834
        %v5218 = vmul.f32 %v5073, 0.0013020834
        %v5219 = vmul.f32 %v5080, 0.0013020834
        %v5220 = vmul.f32 %v5087, 0.0013020834
        %v5221 = vmul.f32 %v5094, 0.0013020834
        %v5222 = vmul.f32 %v5101, 0.0013020834
        %v5223 = vmul.f32 %v5108, 0.0013020834
        %v5224 = vmul.f32 %v5115, 0.0013020834
        %v5225 = vmul.f32 %v5122, 0.0013020834
        %v5226 = vmul.f32 %v5129, 0.0013020834
        %v5227 = vmul.f32 %v5136, 0.0013020834
        %v5228 = vmul.f32 %v5143, 0.0013020834
        %v5229 = vmul.f32 %v5150, 0.0013020834
        %v5230 = vmul.f32 %v5157, 0.0013020834
        %v5231 = vmul.f32 %v5164, 0.0013020834
        %v5232 = vmul.f32 %v5171, 0.0013020834
        %v5233 = vmul.f32 %v5178, 0.0013020834
        %v5234 = vmul.f32 %v5185, 0.0013020834
        %v5235 = vmul.f32 %v5192, 0.0013020834
        %v5236 = vmul.f32 %v5199, 0.0013020834
        %v5237 = vmul.f32 %v5206, 0.0013020834
        %v5238 = vmul.f32 %v5213, 0.0013020834
        %v5239 = vmul.f32 %v4864, %v4864
        %v5240 = vmul.f32 %v4865, %v4865
        %v5241 = vmul.f32 %v4866, %v4866
        %v5242 = vmul.f32 %v4867, %v4867
        %v5243 = vmul.f32 %v4868, %v4868
        %v5244 = vmul.f32 %v4869, %v4869
        %v5245 = vmul.f32 %v4870, %v4870
        %v5246 = vmul.f32 %v4871, %v4871
        %v5247 = vmul.f32 %v4872, %v4872
        %v5248 = vmul.f32 %v4873, %v4873
        %v5249 = vmul.f32 %v4874, %v4874
        %v5250 = vmul.f32 %v4875, %v4875
        %v5251 = vmul.f32 %v4876, %v4876
        %v5252 = vmul.f32 %v4877, %v4877
        %v5253 = vmul.f32 %v4878, %v4878
        %v5254 = vmul.f32 %v4879, %v4879
        %v5255 = vmul.f32 %v4880, %v4880
        %v5256 = vmul.f32 %v4881, %v4881
        %v5257 = vmul.f32 %v4882, %v4882
        %v5258 = vmul.f32 %v4883, %v4883
        %v5259 = vmul.f32 %v4884, %v4884
        %v5260 = vmul.f32 %v4885, %v4885
        %v5261 = vmul.f32 %v4886, %v4886
        %v5262 = vmul.f32 %v4887, %v4887
        %v5263 = vmul.f32 %v4888, %v4888
        %v5264 = vsub.f32 %v5214, %v5239
        %v5265 = vsub.f32 %v5215, %v5240
        %v5266 = vsub.f32 %v5216, %v5241
        %v5267 = vsub.f32 %v5217, %v5242
        %v5268 = vsub.f32 %v5218, %v5243
        %v5269 = vsub.f32 %v5219, %v5244
        %v5270 = vsub.f32 %v5220, %v5245
        %v5271 = vsub.f32 %v5221, %v5246
        %v5272 = vsub.f32 %v5222, %v5247
        %v5273 = vsub.f32 %v5223, %v5248
        %v5274 = vsub.f32 %v5224, %v5249
        %v5275 = vsub.f32 %v5225, %v5250
        %v5276 = vsub.f32 %v5226, %v5251
        %v5277 = vsub.f32 %v5227, %v5252
        %v5278 = vsub.f32 %v5228, %v5253
        %v5279 = vsub.f32 %v5229, %v5254
        %v5280 = vsub.f32 %v5230, %v5255
        %v5281 = vsub.f32 %v5231, %v5256
        %v5282 = vsub.f32 %v5232, %v5257
        %v5283 = vsub.f32 %v5233, %v5258
        %v5284 = vsub.f32 %v5234, %v5259
        %v5285 = vsub.f32 %v5235, %v5260
        %v5286 = vsub.f32 %v5236, %v5261
        %v5287 = vsub.f32 %v5237, %v5262
        %v5288 = vsub.f32 %v5238, %v5263
        %v5289 = vmax.f32 %v5264, 0.0
        %v5290 = vmax.f32 %v5265, 0.0
        %v5291 = vmax.f32 %v5266, 0.0
        %v5292 = vmax.f32 %v5267, 0.0
        %v5293 = vmax.f32 %v5268, 0.0
        %v5294 = vmax.f32 %v5269, 0.0
        %v5295 = vmax.f32 %v5270, 0.0
        %v5296 = vmax.f32 %v5271, 0.0
        %v5297 = vmax.f32 %v5272, 0.0
        %v5298 = vmax.f32 %v5273, 0.0
        %v5299 = vmax.f32 %v5274, 0.0
        %v5300 = vmax.f32 %v5275, 0.0
        %v5301 = vmax.f32 %v5276, 0.0
        %v5302 = vmax.f32 %v5277, 0.0
        %v5303 = vmax.f32 %v5278, 0.0
        %v5304 = vmax.f32 %v5279, 0.0
        %v5305 = vmax.f32 %v5280, 0.0
        %v5306 = vmax.f32 %v5281, 0.0
        %v5307 = vmax.f32 %v5282, 0.0
        %v5308 = vmax.f32 %v5283, 0.0
        %v5309 = vmax.f32 %v5284, 0.0
        %v5310 = vmax.f32 %v5285, 0.0
        %v5311 = vmax.f32 %v5286, 0.0
        %v5312 = vmax.f32 %v5287, 0.0
        %v5313 = vmax.f32 %v5288, 0.0
        %v5314 = vsub.f32 %v4539, %v4864
        %v5315 = vsub.f32 %v4540, %v4864
        %v5316 = vsub.f32 %v4541, %v4864
        %v5317 = vsub.f32 %v4542, %v4864
        %v5318 = vsub.f32 %v4543, %v4864
        %v5319 = vsub.f32 %v4544, %v4864
        %v5320 = vsub.f32 %v4545, %v4865
        %v5321 = vsub.f32 %v4546, %v4865
        %v5322 = vsub.f32 %v4547, %v4865
        %v5323 = vsub.f32 %v4548, %v4865
        %v5324 = vsub.f32 %v4549, %v4865
        %v5325 = vsub.f32 %v4550, %v4865
        %v5326 = vsub.f32 %v4551, %v4866
        %v5327 = vsub.f32 %v4552, %v4866
        %v5328 = vsub.f32 %v4553, %v4866
        %v5329 = vsub.f32 %v4554, %v4866
        %v5330 = vsub.f32 %v4555, %v4866
        %v5331 = vsub.f32 %v4556, %v4866
        %v5332 = vsub.f32 %v4557, %v4867
        %v5333 = vsub.f32 %v4558, %v4867
        %v5334 = vsub.f32 %v4559, %v4867
        %v5335 = vsub.f32 %v4560, %v4867
        %v5336 = vsub.f32 %v4561, %v4867
        %v5337 = vsub.f32 %v4562, %v4867
        %v5338 = vsub.f32 %v4563, %v4868
        %v5339 = vsub.f32 %v4564, %v4868
        %v5340 = vsub.f32 %v4565, %v4868
        %v5341 = vsub.f32 %v4566, %v4868
        %v5342 = vsub.f32 %v4567, %v4868
        %v5343 = vsub.f32 %v4568, %v4868
        %v5344 = vsub.f32 %v4569, %v4869
        %v5345 = vsub.f32 %v4570, %v4869
        %v5346 = vsub.f32 %v4571, %v4869
        %v5347 = vsub.f32 %v4572, %v4869
        %v5348 = vsub.f32 %v4573, %v4869
        %v5349 = vsub.f32 %v4574, %v4869
        %v5350 = vsub.f32 %v4575, %v4870
        %v5351 = vsub.f32 %v4576, %v4870
        %v5352 = vsub.f32 %v4577, %v4870
        %v5353 = vsub.f32 %v4578, %v4870
        %v5354 = vsub.f32 %v4579, %v4870
        %v5355 = vsub.f32 %v4580, %v4870
        %v5356 = vsub.f32 %v4581, %v4871
        %v5357 = vsub.f32 %v4582, %v4871
        %v5358 = vsub.f32 %v4583, %v4871
        %v5359 = vsub.f32 %v4584, %v4871
        %v5360 = vsub.f32 %v4585, %v4871
        %v5361 = vsub.f32 %v4586, %v4871
        %v5362 = vsub.f32 %v4587, %v4872
        %v5363 = vsub.f32 %v4588, %v4872
        %v5364 = vsub.f32 %v4589, %v4872
        %v5365 = vsub.f32 %v4590, %v4872
        %v5366 = vsub.f32 %v4591, %v4872
        %v5367 = vsub.f32 %v4592, %v4872
        %v5368 = vsub.f32 %v4593, %v4873
        %v5369 = vsub.f32 %v4594, %v4873
        %v5370 = vsub.f32 %v4595, %v4873
        %v5371 = vsub.f32 %v4596, %v4873
        %v5372 = vsub.f32 %v4597, %v4873
        %v5373 = vsub.f32 %v4598, %v4873
        %v5374 = vsub.f32 %v4599, %v4874
        %v5375 = vsub.f32 %v4600, %v4874
        %v5376 = vsub.f32 %v4601, %v4874
        %v5377 = vsub.f32 %v4602, %v4874
        %v5378 = vsub.f32 %v4603, %v4874
        %v5379 = vsub.f32 %v4604, %v4874
        %v5380 = vsub.f32 %v4605, %v4875
        %v5381 = vsub.f32 %v4606, %v4875
        %v5382 = vsub.f32 %v4607, %v4875
        %v5383 = vsub.f32 %v4608, %v4875
        %v5384 = vsub.f32 %v4609, %v4875
        %v5385 = vsub.f32 %v4610, %v4875
        %v5386 = vsub.f32 %v4611, %v4876
        %v5387 = vsub.f32 %v4612, %v4876
        %v5388 = vsub.f32 %v4613, %v4876
        %v5389 = vsub.f32 %v4614, %v4876
        %v5390 = vsub.f32 %v4615, %v4876
        %v5391 = vsub.f32 %v4616, %v4876
        %v5392 = vsub.f32 %v4617, %v4877
        %v5393 = vsub.f32 %v4618, %v4877
        %v5394 = vsub.f32 %v4619, %v4877
        %v5395 = vsub.f32 %v4620, %v4877
        %v5396 = vsub.f32 %v4621, %v4877
        %v5397 = vsub.f32 %v4622, %v4877
        %v5398 = vsub.f32 %v4623, %v4878
        %v5399 = vsub.f32 %v4624, %v4878
        %v5400 = vsub.f32 %v4625, %v4878
        %v5401 = vsub.f32 %v4626, %v4878
        %v5402 = vsub.f32 %v4627, %v4878
        %v5403 = vsub.f32 %v4628, %v4878
        %v5404 = vsub.f32 %v4629, %v4879
        %v5405 = vsub.f32 %v4630, %v4879
        %v5406 = vsub.f32 %v4631, %v4879
        %v5407 = vsub.f32 %v4632, %v4879
        %v5408 = vsub.f32 %v4633, %v4879
        %v5409 = vsub.f32 %v4634, %v4879
        %v5410 = vsub.f32 %v4635, %v4880
        %v5411 = vsub.f32 %v4636, %v4880
        %v5412 = vsub.f32 %v4637, %v4880
        %v5413 = vsub.f32 %v4638, %v4880
        %v5414 = vsub.f32 %v4639, %v4880
        %v5415 = vsub.f32 %v4640, %v4880
        %v5416 = vsub.f32 %v4641, %v4881
        %v5417 = vsub.f32 %v4642, %v4881
        %v5418 = vsub.f32 %v4643, %v4881
        %v5419 = vsub.f32 %v4644, %v4881
        %v5420 = vsub.f32 %v4645, %v4881
        %v5421 = vsub.f32 %v4646, %v4881
        %v5422 = vsub.f32 %v4647, %v4882
        %v5423 = vsub.f32 %v4648, %v4882
        %v5424 = vsub.f32 %v4649, %v4882
        %v5425 = vsub.f32 %v4650, %v4882
        %v5426 = vsub.f32 %v4651, %v4882
        %v5427 = vsub.f32 %v4652, %v4882
        %v5428 = vsub.f32 %v4653, %v4883
        %v5429 = vsub.f32 %v4654, %v4883
        %v5430 = vsub.f32 %v4655, %v4883
        %v5431 = vsub.f32 %v4656, %v4883
        %v5432 = vsub.f32 %v4657, %v4883
        %v5433 = vsub.f32 %v4658, %v4883
        %v5434 = vsub.f32 %v4659, %v4884
        %v5435 = vsub.f32 %v4660, %v4884
        %v5436 = vsub.f32 %v4661, %v4884
        %v5437 = vsub.f32 %v4662, %v4884
        %v5438 = vsub.f32 %v4663, %v4884
        %v5439 = vsub.f32 %v4664, %v4884
        %v5440 = vsub.f32 %v4665, %v4885
        %v5441 = vsub.f32 %v4666, %v4885
        %v5442 = vsub.f32 %v4667, %v4885
        %v5443 = vsub.f32 %v4668, %v4885
        %v5444 = vsub.f32 %v4669, %v4885
        %v5445 = vsub.f32 %v4670, %v4885
        %v5446 = vsub.f32 %v4671, %v4886
        %v5447 = vsub.f32 %v4672, %v4886
        %v5448 = vsub.f32 %v4673, %v4886
        %v5449 = vsub.f32 %v4674, %v4886
        %v5450 = vsub.f32 %v4675, %v4886
        %v5451 = vsub.f32 %v4676, %v4886
        %v5452 = vsub.f32 %v4677, %v4887
        %v5453 = vsub.f32 %v4678, %v4887
        %v5454 = vsub.f32 %v4679, %v4887
        %v5455 = vsub.f32 %v4680, %v4887
        %v5456 = vsub.f32 %v4681, %v4887
        %v5457 = vsub.f32 %v4682, %v4887
        %v5458 = vsub.f32 %v4683, %v4888
        %v5459 = vsub.f32 %v4684, %v4888
        %v5460 = vsub.f32 %v4685, %v4888
        %v5461 = vsub.f32 %v4686, %v4888
        %v5462 = vsub.f32 %v4687, %v4888
        %v5463 = vsub.f32 %v4688, %v4888
        %v5464 = vadd.f32 %v5289, 1e-12
        %v5465 = vadd.f32 %v5290, 1e-12
        %v5466 = vadd.f32 %v5291, 1e-12
        %v5467 = vadd.f32 %v5292, 1e-12
        %v5468 = vadd.f32 %v5293, 1e-12
        %v5469 = vadd.f32 %v5294, 1e-12
        %v5470 = vadd.f32 %v5295, 1e-12
        %v5471 = vadd.f32 %v5296, 1e-12
        %v5472 = vadd.f32 %v5297, 1e-12
        %v5473 = vadd.f32 %v5298, 1e-12
        %v5474 = vadd.f32 %v5299, 1e-12
        %v5475 = vadd.f32 %v5300, 1e-12
        %v5476 = vadd.f32 %v5301, 1e-12
        %v5477 = vadd.f32 %v5302, 1e-12
        %v5478 = vadd.f32 %v5303, 1e-12
        %v5479 = vadd.f32 %v5304, 1e-12
        %v5480 = vadd.f32 %v5305, 1e-12
        %v5481 = vadd.f32 %v5306, 1e-12
        %v5482 = vadd.f32 %v5307, 1e-12
        %v5483 = vadd.f32 %v5308, 1e-12
        %v5484 = vadd.f32 %v5309, 1e-12
        %v5485 = vadd.f32 %v5310, 1e-12
        %v5486 = vadd.f32 %v5311, 1e-12
        %v5487 = vadd.f32 %v5312, 1e-12
        %v5488 = vadd.f32 %v5313, 1e-12
        %v5489 = vrsqrt.pop %v5464
        %v5490 = vmul.f32 %v5489, %v5464
        %v5491 = vmul.f32 %v5490, %v5489
        %v5492 = vmul.f32 0.5, %v5491
        %v5493 = vsub.f32 1.5, %v5492
        %v5494 = vmul.f32 %v5489, %v5493
        %vm5495 = vweird.f32 %v5464
        %vm5496 = vweird.f32 %v5489
        %vm5497 = vmor %vm5495, %vm5496
        %v5498 = vsel %vm5497, %v5489, %v5494
        %v5499 = vrsqrt.pop %v5465
        %v5500 = vmul.f32 %v5499, %v5465
        %v5501 = vmul.f32 %v5500, %v5499
        %v5502 = vmul.f32 0.5, %v5501
        %v5503 = vsub.f32 1.5, %v5502
        %v5504 = vmul.f32 %v5499, %v5503
        %vm5505 = vweird.f32 %v5465
        %vm5506 = vweird.f32 %v5499
        %vm5507 = vmor %vm5505, %vm5506
        %v5508 = vsel %vm5507, %v5499, %v5504
        %v5509 = vrsqrt.pop %v5466
        %v5510 = vmul.f32 %v5509, %v5466
        %v5511 = vmul.f32 %v5510, %v5509
        %v5512 = vmul.f32 0.5, %v5511
        %v5513 = vsub.f32 1.5, %v5512
        %v5514 = vmul.f32 %v5509, %v5513
        %vm5515 = vweird.f32 %v5466
        %vm5516 = vweird.f32 %v5509
        %vm5517 = vmor %vm5515, %vm5516
        %v5518 = vsel %vm5517, %v5509, %v5514
        %v5519 = vrsqrt.pop %v5467
        %v5520 = vmul.f32 %v5519, %v5467
        %v5521 = vmul.f32 %v5520, %v5519
        %v5522 = vmul.f32 0.5, %v5521
        %v5523 = vsub.f32 1.5, %v5522
        %v5524 = vmul.f32 %v5519, %v5523
        %vm5525 = vweird.f32 %v5467
        %vm5526 = vweird.f32 %v5519
        %vm5527 = vmor %vm5525, %vm5526
        %v5528 = vsel %vm5527, %v5519, %v5524
        %v5529 = vrsqrt.pop %v5468
        %v5530 = vmul.f32 %v5529, %v5468
        %v5531 = vmul.f32 %v5530, %v5529
        %v5532 = vmul.f32 0.5, %v5531
        %v5533 = vsub.f32 1.5, %v5532
        %v5534 = vmul.f32 %v5529, %v5533
        %vm5535 = vweird.f32 %v5468
        %vm5536 = vweird.f32 %v5529
        %vm5537 = vmor %vm5535, %vm5536
        %v5538 = vsel %vm5537, %v5529, %v5534
        %v5539 = vrsqrt.pop %v5469
        %v5540 = vmul.f32 %v5539, %v5469
        %v5541 = vmul.f32 %v5540, %v5539
        %v5542 = vmul.f32 0.5, %v5541
        %v5543 = vsub.f32 1.5, %v5542
        %v5544 = vmul.f32 %v5539, %v5543
        %vm5545 = vweird.f32 %v5469
        %vm5546 = vweird.f32 %v5539
        %vm5547 = vmor %vm5545, %vm5546
        %v5548 = vsel %vm5547, %v5539, %v5544
        %v5549 = vrsqrt.pop %v5470
        %v5550 = vmul.f32 %v5549, %v5470
        %v5551 = vmul.f32 %v5550, %v5549
        %v5552 = vmul.f32 0.5, %v5551
        %v5553 = vsub.f32 1.5, %v5552
        %v5554 = vmul.f32 %v5549, %v5553
        %vm5555 = vweird.f32 %v5470
        %vm5556 = vweird.f32 %v5549
        %vm5557 = vmor %vm5555, %vm5556
        %v5558 = vsel %vm5557, %v5549, %v5554
        %v5559 = vrsqrt.pop %v5471
        %v5560 = vmul.f32 %v5559, %v5471
        %v5561 = vmul.f32 %v5560, %v5559
        %v5562 = vmul.f32 0.5, %v5561
        %v5563 = vsub.f32 1.5, %v5562
        %v5564 = vmul.f32 %v5559, %v5563
        %vm5565 = vweird.f32 %v5471
        %vm5566 = vweird.f32 %v5559
        %vm5567 = vmor %vm5565, %vm5566
        %v5568 = vsel %vm5567, %v5559, %v5564
        %v5569 = vrsqrt.pop %v5472
        %v5570 = vmul.f32 %v5569, %v5472
        %v5571 = vmul.f32 %v5570, %v5569
        %v5572 = vmul.f32 0.5, %v5571
        %v5573 = vsub.f32 1.5, %v5572
        %v5574 = vmul.f32 %v5569, %v5573
        %vm5575 = vweird.f32 %v5472
        %vm5576 = vweird.f32 %v5569
        %vm5577 = vmor %vm5575, %vm5576
        %v5578 = vsel %vm5577, %v5569, %v5574
        %v5579 = vrsqrt.pop %v5473
        %v5580 = vmul.f32 %v5579, %v5473
        %v5581 = vmul.f32 %v5580, %v5579
        %v5582 = vmul.f32 0.5, %v5581
        %v5583 = vsub.f32 1.5, %v5582
        %v5584 = vmul.f32 %v5579, %v5583
        %vm5585 = vweird.f32 %v5473
        %vm5586 = vweird.f32 %v5579
        %vm5587 = vmor %vm5585, %vm5586
        %v5588 = vsel %vm5587, %v5579, %v5584
        %v5589 = vrsqrt.pop %v5474
        %v5590 = vmul.f32 %v5589, %v5474
        %v5591 = vmul.f32 %v5590, %v5589
        %v5592 = vmul.f32 0.5, %v5591
        %v5593 = vsub.f32 1.5, %v5592
        %v5594 = vmul.f32 %v5589, %v5593
        %vm5595 = vweird.f32 %v5474
        %vm5596 = vweird.f32 %v5589
        %vm5597 = vmor %vm5595, %vm5596
        %v5598 = vsel %vm5597, %v5589, %v5594
        %v5599 = vrsqrt.pop %v5475
        %v5600 = vmul.f32 %v5599, %v5475
        %v5601 = vmul.f32 %v5600, %v5599
        %v5602 = vmul.f32 0.5, %v5601
        %v5603 = vsub.f32 1.5, %v5602
        %v5604 = vmul.f32 %v5599, %v5603
        %vm5605 = vweird.f32 %v5475
        %vm5606 = vweird.f32 %v5599
        %vm5607 = vmor %vm5605, %vm5606
        %v5608 = vsel %vm5607, %v5599, %v5604
        %v5609 = vrsqrt.pop %v5476
        %v5610 = vmul.f32 %v5609, %v5476
        %v5611 = vmul.f32 %v5610, %v5609
        %v5612 = vmul.f32 0.5, %v5611
        %v5613 = vsub.f32 1.5, %v5612
        %v5614 = vmul.f32 %v5609, %v5613
        %vm5615 = vweird.f32 %v5476
        %vm5616 = vweird.f32 %v5609
        %vm5617 = vmor %vm5615, %vm5616
        %v5618 = vsel %vm5617, %v5609, %v5614
        %v5619 = vrsqrt.pop %v5477
        %v5620 = vmul.f32 %v5619, %v5477
        %v5621 = vmul.f32 %v5620, %v5619
        %v5622 = vmul.f32 0.5, %v5621
        %v5623 = vsub.f32 1.5, %v5622
        %v5624 = vmul.f32 %v5619, %v5623
        %vm5625 = vweird.f32 %v5477
        %vm5626 = vweird.f32 %v5619
        %vm5627 = vmor %vm5625, %vm5626
        %v5628 = vsel %vm5627, %v5619, %v5624
        %v5629 = vrsqrt.pop %v5478
        %v5630 = vmul.f32 %v5629, %v5478
        %v5631 = vmul.f32 %v5630, %v5629
        %v5632 = vmul.f32 0.5, %v5631
        %v5633 = vsub.f32 1.5, %v5632
        %v5634 = vmul.f32 %v5629, %v5633
        %vm5635 = vweird.f32 %v5478
        %vm5636 = vweird.f32 %v5629
        %vm5637 = vmor %vm5635, %vm5636
        %v5638 = vsel %vm5637, %v5629, %v5634
        %v5639 = vrsqrt.pop %v5479
        %v5640 = vmul.f32 %v5639, %v5479
        %v5641 = vmul.f32 %v5640, %v5639
        %v5642 = vmul.f32 0.5, %v5641
        %v5643 = vsub.f32 1.5, %v5642
        %v5644 = vmul.f32 %v5639, %v5643
        %vm5645 = vweird.f32 %v5479
        %vm5646 = vweird.f32 %v5639
        %vm5647 = vmor %vm5645, %vm5646
        %v5648 = vsel %vm5647, %v5639, %v5644
        %v5649 = vrsqrt.pop %v5480
        %v5650 = vmul.f32 %v5649, %v5480
        %v5651 = vmul.f32 %v5650, %v5649
        %v5652 = vmul.f32 0.5, %v5651
        %v5653 = vsub.f32 1.5, %v5652
        %v5654 = vmul.f32 %v5649, %v5653
        %vm5655 = vweird.f32 %v5480
        %vm5656 = vweird.f32 %v5649
        %vm5657 = vmor %vm5655, %vm5656
        %v5658 = vsel %vm5657, %v5649, %v5654
        %v5659 = vrsqrt.pop %v5481
        %v5660 = vmul.f32 %v5659, %v5481
        %v5661 = vmul.f32 %v5660, %v5659
        %v5662 = vmul.f32 0.5, %v5661
        %v5663 = vsub.f32 1.5, %v5662
        %v5664 = vmul.f32 %v5659, %v5663
        %vm5665 = vweird.f32 %v5481
        %vm5666 = vweird.f32 %v5659
        %vm5667 = vmor %vm5665, %vm5666
        %v5668 = vsel %vm5667, %v5659, %v5664
        %v5669 = vrsqrt.pop %v5482
        %v5670 = vmul.f32 %v5669, %v5482
        %v5671 = vmul.f32 %v5670, %v5669
        %v5672 = vmul.f32 0.5, %v5671
        %v5673 = vsub.f32 1.5, %v5672
        %v5674 = vmul.f32 %v5669, %v5673
        %vm5675 = vweird.f32 %v5482
        %vm5676 = vweird.f32 %v5669
        %vm5677 = vmor %vm5675, %vm5676
        %v5678 = vsel %vm5677, %v5669, %v5674
        %v5679 = vrsqrt.pop %v5483
        %v5680 = vmul.f32 %v5679, %v5483
        %v5681 = vmul.f32 %v5680, %v5679
        %v5682 = vmul.f32 0.5, %v5681
        %v5683 = vsub.f32 1.5, %v5682
        %v5684 = vmul.f32 %v5679, %v5683
        %vm5685 = vweird.f32 %v5483
        %vm5686 = vweird.f32 %v5679
        %vm5687 = vmor %vm5685, %vm5686
        %v5688 = vsel %vm5687, %v5679, %v5684
        %v5689 = vrsqrt.pop %v5484
        %v5690 = vmul.f32 %v5689, %v5484
        %v5691 = vmul.f32 %v5690, %v5689
        %v5692 = vmul.f32 0.5, %v5691
        %v5693 = vsub.f32 1.5, %v5692
        %v5694 = vmul.f32 %v5689, %v5693
        %vm5695 = vweird.f32 %v5484
        %vm5696 = vweird.f32 %v5689
        %vm5697 = vmor %vm5695, %vm5696
        %v5698 = vsel %vm5697, %v5689, %v5694
        %v5699 = vrsqrt.pop %v5485
        %v5700 = vmul.f32 %v5699, %v5485
        %v5701 = vmul.f32 %v5700, %v5699
        %v5702 = vmul.f32 0.5, %v5701
        %v5703 = vsub.f32 1.5, %v5702
        %v5704 = vmul.f32 %v5699, %v5703
        %vm5705 = vweird.f32 %v5485
        %vm5706 = vweird.f32 %v5699
        %vm5707 = vmor %vm5705, %vm5706
        %v5708 = vsel %vm5707, %v5699, %v5704
        %v5709 = vrsqrt.pop %v5486
        %v5710 = vmul.f32 %v5709, %v5486
        %v5711 = vmul.f32 %v5710, %v5709
        %v5712 = vmul.f32 0.5, %v5711
        %v5713 = vsub.f32 1.5, %v5712
        %v5714 = vmul.f32 %v5709, %v5713
        %vm5715 = vweird.f32 %v5486
        %vm5716 = vweird.f32 %v5709
        %vm5717 = vmor %vm5715, %vm5716
        %v5718 = vsel %vm5717, %v5709, %v5714
        %v5719 = vrsqrt.pop %v5487
        %v5720 = vmul.f32 %v5719, %v5487
        %v5721 = vmul.f32 %v5720, %v5719
        %v5722 = vmul.f32 0.5, %v5721
        %v5723 = vsub.f32 1.5, %v5722
        %v5724 = vmul.f32 %v5719, %v5723
        %vm5725 = vweird.f32 %v5487
        %vm5726 = vweird.f32 %v5719
        %vm5727 = vmor %vm5725, %vm5726
        %v5728 = vsel %vm5727, %v5719, %v5724
        %v5729 = vrsqrt.pop %v5488
        %v5730 = vmul.f32 %v5729, %v5488
        %v5731 = vmul.f32 %v5730, %v5729
        %v5732 = vmul.f32 0.5, %v5731
        %v5733 = vsub.f32 1.5, %v5732
        %v5734 = vmul.f32 %v5729, %v5733
        %vm5735 = vweird.f32 %v5488
        %vm5736 = vweird.f32 %v5729
        %vm5737 = vmor %vm5735, %vm5736
        %v5738 = vsel %vm5737, %v5729, %v5734
        %v5739 = vmul.f32 %v5314, %v5498
        %v5740 = vmul.f32 %v5315, %v5498
        %v5741 = vmul.f32 %v5316, %v5498
        %v5742 = vmul.f32 %v5317, %v5498
        %v5743 = vmul.f32 %v5318, %v5498
        %v5744 = vmul.f32 %v5319, %v5498
        %v5745 = vmul.f32 %v5320, %v5508
        %v5746 = vmul.f32 %v5321, %v5508
        %v5747 = vmul.f32 %v5322, %v5508
        %v5748 = vmul.f32 %v5323, %v5508
        %v5749 = vmul.f32 %v5324, %v5508
        %v5750 = vmul.f32 %v5325, %v5508
        %v5751 = vmul.f32 %v5326, %v5518
        %v5752 = vmul.f32 %v5327, %v5518
        %v5753 = vmul.f32 %v5328, %v5518
        %v5754 = vmul.f32 %v5329, %v5518
        %v5755 = vmul.f32 %v5330, %v5518
        %v5756 = vmul.f32 %v5331, %v5518
        %v5757 = vmul.f32 %v5332, %v5528
        %v5758 = vmul.f32 %v5333, %v5528
        %v5759 = vmul.f32 %v5334, %v5528
        %v5760 = vmul.f32 %v5335, %v5528
        %v5761 = vmul.f32 %v5336, %v5528
        %v5762 = vmul.f32 %v5337, %v5528
        %v5763 = vmul.f32 %v5338, %v5538
        %v5764 = vmul.f32 %v5339, %v5538
        %v5765 = vmul.f32 %v5340, %v5538
        %v5766 = vmul.f32 %v5341, %v5538
        %v5767 = vmul.f32 %v5342, %v5538
        %v5768 = vmul.f32 %v5343, %v5538
        %v5769 = vmul.f32 %v5344, %v5548
        %v5770 = vmul.f32 %v5345, %v5548
        %v5771 = vmul.f32 %v5346, %v5548
        %v5772 = vmul.f32 %v5347, %v5548
        %v5773 = vmul.f32 %v5348, %v5548
        %v5774 = vmul.f32 %v5349, %v5548
        %v5775 = vmul.f32 %v5350, %v5558
        %v5776 = vmul.f32 %v5351, %v5558
        %v5777 = vmul.f32 %v5352, %v5558
        %v5778 = vmul.f32 %v5353, %v5558
        %v5779 = vmul.f32 %v5354, %v5558
        %v5780 = vmul.f32 %v5355, %v5558
        %v5781 = vmul.f32 %v5356, %v5568
        %v5782 = vmul.f32 %v5357, %v5568
        %v5783 = vmul.f32 %v5358, %v5568
        %v5784 = vmul.f32 %v5359, %v5568
        %v5785 = vmul.f32 %v5360, %v5568
        %v5786 = vmul.f32 %v5361, %v5568
        %v5787 = vmul.f32 %v5362, %v5578
        %v5788 = vmul.f32 %v5363, %v5578
        %v5789 = vmul.f32 %v5364, %v5578
        %v5790 = vmul.f32 %v5365, %v5578
        %v5791 = vmul.f32 %v5366, %v5578
        %v5792 = vmul.f32 %v5367, %v5578
        %v5793 = vmul.f32 %v5368, %v5588
        %v5794 = vmul.f32 %v5369, %v5588
        %v5795 = vmul.f32 %v5370, %v5588
        %v5796 = vmul.f32 %v5371, %v5588
        %v5797 = vmul.f32 %v5372, %v5588
        %v5798 = vmul.f32 %v5373, %v5588
        %v5799 = vmul.f32 %v5374, %v5598
        %v5800 = vmul.f32 %v5375, %v5598
        %v5801 = vmul.f32 %v5376, %v5598
        %v5802 = vmul.f32 %v5377, %v5598
        %v5803 = vmul.f32 %v5378, %v5598
        %v5804 = vmul.f32 %v5379, %v5598
        %v5805 = vmul.f32 %v5380, %v5608
        %v5806 = vmul.f32 %v5381, %v5608
        %v5807 = vmul.f32 %v5382, %v5608
        %v5808 = vmul.f32 %v5383, %v5608
        %v5809 = vmul.f32 %v5384, %v5608
        %v5810 = vmul.f32 %v5385, %v5608
        %v5811 = vmul.f32 %v5386, %v5618
        %v5812 = vmul.f32 %v5387, %v5618
        %v5813 = vmul.f32 %v5388, %v5618
        %v5814 = vmul.f32 %v5389, %v5618
        %v5815 = vmul.f32 %v5390, %v5618
        %v5816 = vmul.f32 %v5391, %v5618
        %v5817 = vmul.f32 %v5392, %v5628
        %v5818 = vmul.f32 %v5393, %v5628
        %v5819 = vmul.f32 %v5394, %v5628
        %v5820 = vmul.f32 %v5395, %v5628
        %v5821 = vmul.f32 %v5396, %v5628
        %v5822 = vmul.f32 %v5397, %v5628
        %v5823 = vmul.f32 %v5398, %v5638
        %v5824 = vmul.f32 %v5399, %v5638
        %v5825 = vmul.f32 %v5400, %v5638
        %v5826 = vmul.f32 %v5401, %v5638
        %v5827 = vmul.f32 %v5402, %v5638
        %v5828 = vmul.f32 %v5403, %v5638
        %v5829 = vmul.f32 %v5404, %v5648
        %v5830 = vmul.f32 %v5405, %v5648
        %v5831 = vmul.f32 %v5406, %v5648
        %v5832 = vmul.f32 %v5407, %v5648
        %v5833 = vmul.f32 %v5408, %v5648
        %v5834 = vmul.f32 %v5409, %v5648
        %v5835 = vmul.f32 %v5410, %v5658
        %v5836 = vmul.f32 %v5411, %v5658
        %v5837 = vmul.f32 %v5412, %v5658
        %v5838 = vmul.f32 %v5413, %v5658
        %v5839 = vmul.f32 %v5414, %v5658
        %v5840 = vmul.f32 %v5415, %v5658
        %v5841 = vmul.f32 %v5416, %v5668
        %v5842 = vmul.f32 %v5417, %v5668
        %v5843 = vmul.f32 %v5418, %v5668
        %v5844 = vmul.f32 %v5419, %v5668
        %v5845 = vmul.f32 %v5420, %v5668
        %v5846 = vmul.f32 %v5421, %v5668
        %v5847 = vmul.f32 %v5422, %v5678
        %v5848 = vmul.f32 %v5423, %v5678
        %v5849 = vmul.f32 %v5424, %v5678
        %v5850 = vmul.f32 %v5425, %v5678
        %v5851 = vmul.f32 %v5426, %v5678
        %v5852 = vmul.f32 %v5427, %v5678
        %v5853 = vmul.f32 %v5428, %v5688
        %v5854 = vmul.f32 %v5429, %v5688
        %v5855 = vmul.f32 %v5430, %v5688
        %v5856 = vmul.f32 %v5431, %v5688
        %v5857 = vmul.f32 %v5432, %v5688
        %v5858 = vmul.f32 %v5433, %v5688
        %v5859 = vmul.f32 %v5434, %v5698
        %v5860 = vmul.f32 %v5435, %v5698
        %v5861 = vmul.f32 %v5436, %v5698
        %v5862 = vmul.f32 %v5437, %v5698
        %v5863 = vmul.f32 %v5438, %v5698
        %v5864 = vmul.f32 %v5439, %v5698
        %v5865 = vmul.f32 %v5440, %v5708
        %v5866 = vmul.f32 %v5441, %v5708
        %v5867 = vmul.f32 %v5442, %v5708
        %v5868 = vmul.f32 %v5443, %v5708
        %v5869 = vmul.f32 %v5444, %v5708
        %v5870 = vmul.f32 %v5445, %v5708
        %v5871 = vmul.f32 %v5446, %v5718
        %v5872 = vmul.f32 %v5447, %v5718
        %v5873 = vmul.f32 %v5448, %v5718
        %v5874 = vmul.f32 %v5449, %v5718
        %v5875 = vmul.f32 %v5450, %v5718
        %v5876 = vmul.f32 %v5451, %v5718
        %v5877 = vmul.f32 %v5452, %v5728
        %v5878 = vmul.f32 %v5453, %v5728
        %v5879 = vmul.f32 %v5454, %v5728
        %v5880 = vmul.f32 %v5455, %v5728
        %v5881 = vmul.f32 %v5456, %v5728
        %v5882 = vmul.f32 %v5457, %v5728
        %v5883 = vmul.f32 %v5458, %v5738
        %v5884 = vmul.f32 %v5459, %v5738
        %v5885 = vmul.f32 %v5460, %v5738
        %v5886 = vmul.f32 %v5461, %v5738
        %v5887 = vmul.f32 %v5462, %v5738
        %v5888 = vmul.f32 %v5463, %v5738
        %v5889 = vperm.slane %v1053, 1
        %v5890 = vperm.slane %v1053, 5
        %v5891 = vperm.slane %v1054, 1
        %v5892 = vperm.slane %v1054, 5
        %v5893 = vperm.slane %v1055, 1
        %v5894 = vperm.slane %v1055, 5
        %v5901 = vperm.slane %v5889, 1
        %v5902 = vperm.slane %v5890, 1
        %v5903 = vperm.slane %v5891, 1
        %v5904 = vperm.slane %v5892, 1
        %v5905 = vperm.slane %v5893, 1
        %v5906 = vperm.slane %v5894, 1
        %v5907 = vmul.f32 %v5739, %v5901
        %v5908 = vmul.f32 %v5740, %v5902
        %v5909 = vmul.f32 %v5741, %v5903
        %v5910 = vmul.f32 %v5742, %v5904
        %v5911 = vmul.f32 %v5743, %v5905
        %v5912 = vmul.f32 %v5744, %v5906
        %v5913 = vmul.f32 %v5745, %v5901
        %v5914 = vmul.f32 %v5746, %v5902
        %v5915 = vmul.f32 %v5747, %v5903
        %v5916 = vmul.f32 %v5748, %v5904
        %v5917 = vmul.f32 %v5749, %v5905
        %v5918 = vmul.f32 %v5750, %v5906
        %v5919 = vmul.f32 %v5751, %v5901
        %v5920 = vmul.f32 %v5752, %v5902
        %v5921 = vmul.f32 %v5753, %v5903
        %v5922 = vmul.f32 %v5754, %v5904
        %v5923 = vmul.f32 %v5755, %v5905
        %v5924 = vmul.f32 %v5756, %v5906
        %v5925 = vmul.f32 %v5757, %v5901
        %v5926 = vmul.f32 %v5758, %v5902
        %v5927 = vmul.f32 %v5759, %v5903
        %v5928 = vmul.f32 %v5760, %v5904
        %v5929 = vmul.f32 %v5761, %v5905
        %v5930 = vmul.f32 %v5762, %v5906
        %v5931 = vmul.f32 %v5763, %v5901
        %v5932 = vmul.f32 %v5764, %v5902
        %v5933 = vmul.f32 %v5765, %v5903
        %v5934 = vmul.f32 %v5766, %v5904
        %v5935 = vmul.f32 %v5767, %v5905
        %v5936 = vmul.f32 %v5768, %v5906
        %v5937 = vmul.f32 %v5769, %v5901
        %v5938 = vmul.f32 %v5770, %v5902
        %v5939 = vmul.f32 %v5771, %v5903
        %v5940 = vmul.f32 %v5772, %v5904
        %v5941 = vmul.f32 %v5773, %v5905
        %v5942 = vmul.f32 %v5774, %v5906
        %v5943 = vmul.f32 %v5775, %v5901
        %v5944 = vmul.f32 %v5776, %v5902
        %v5945 = vmul.f32 %v5777, %v5903
        %v5946 = vmul.f32 %v5778, %v5904
        %v5947 = vmul.f32 %v5779, %v5905
        %v5948 = vmul.f32 %v5780, %v5906
        %v5949 = vmul.f32 %v5781, %v5901
        %v5950 = vmul.f32 %v5782, %v5902
        %v5951 = vmul.f32 %v5783, %v5903
        %v5952 = vmul.f32 %v5784, %v5904
        %v5953 = vmul.f32 %v5785, %v5905
        %v5954 = vmul.f32 %v5786, %v5906
        %v5955 = vmul.f32 %v5787, %v5901
        %v5956 = vmul.f32 %v5788, %v5902
        %v5957 = vmul.f32 %v5789, %v5903
        %v5958 = vmul.f32 %v5790, %v5904
        %v5959 = vmul.f32 %v5791, %v5905
        %v5960 = vmul.f32 %v5792, %v5906
        %v5961 = vmul.f32 %v5793, %v5901
        %v5962 = vmul.f32 %v5794, %v5902
        %v5963 = vmul.f32 %v5795, %v5903
        %v5964 = vmul.f32 %v5796, %v5904
        %v5965 = vmul.f32 %v5797, %v5905
        %v5966 = vmul.f32 %v5798, %v5906
        %v5967 = vmul.f32 %v5799, %v5901
        %v5968 = vmul.f32 %v5800, %v5902
        %v5969 = vmul.f32 %v5801, %v5903
        %v5970 = vmul.f32 %v5802, %v5904
        %v5971 = vmul.f32 %v5803, %v5905
        %v5972 = vmul.f32 %v5804, %v5906
        %v5973 = vmul.f32 %v5805, %v5901
        %v5974 = vmul.f32 %v5806, %v5902
        %v5975 = vmul.f32 %v5807, %v5903
        %v5976 = vmul.f32 %v5808, %v5904
        %v5977 = vmul.f32 %v5809, %v5905
        %v5978 = vmul.f32 %v5810, %v5906
        %v5979 = vmul.f32 %v5811, %v5901
        %v5980 = vmul.f32 %v5812, %v5902
        %v5981 = vmul.f32 %v5813, %v5903
        %v5982 = vmul.f32 %v5814, %v5904
        %v5983 = vmul.f32 %v5815, %v5905
        %v5984 = vmul.f32 %v5816, %v5906
        %v5985 = vmul.f32 %v5817, %v5901
        %v5986 = vmul.f32 %v5818, %v5902
        %v5987 = vmul.f32 %v5819, %v5903
        %v5988 = vmul.f32 %v5820, %v5904
        %v5989 = vmul.f32 %v5821, %v5905
        %v5990 = vmul.f32 %v5822, %v5906
        %v5991 = vmul.f32 %v5823, %v5901
        %v5992 = vmul.f32 %v5824, %v5902
        %v5993 = vmul.f32 %v5825, %v5903
        %v5994 = vmul.f32 %v5826, %v5904
        %v5995 = vmul.f32 %v5827, %v5905
        %v5996 = vmul.f32 %v5828, %v5906
        %v5997 = vmul.f32 %v5829, %v5901
        %v5998 = vmul.f32 %v5830, %v5902
        %v5999 = vmul.f32 %v5831, %v5903
        %v6000 = vmul.f32 %v5832, %v5904
        %v6001 = vmul.f32 %v5833, %v5905
        %v6002 = vmul.f32 %v5834, %v5906
        %v6003 = vmul.f32 %v5835, %v5901
        %v6004 = vmul.f32 %v5836, %v5902
        %v6005 = vmul.f32 %v5837, %v5903
        %v6006 = vmul.f32 %v5838, %v5904
        %v6007 = vmul.f32 %v5839, %v5905
        %v6008 = vmul.f32 %v5840, %v5906
        %v6009 = vmul.f32 %v5841, %v5901
        %v6010 = vmul.f32 %v5842, %v5902
        %v6011 = vmul.f32 %v5843, %v5903
        %v6012 = vmul.f32 %v5844, %v5904
        %v6013 = vmul.f32 %v5845, %v5905
        %v6014 = vmul.f32 %v5846, %v5906
        %v6015 = vmul.f32 %v5847, %v5901
        %v6016 = vmul.f32 %v5848, %v5902
        %v6017 = vmul.f32 %v5849, %v5903
        %v6018 = vmul.f32 %v5850, %v5904
        %v6019 = vmul.f32 %v5851, %v5905
        %v6020 = vmul.f32 %v5852, %v5906
        %v6021 = vmul.f32 %v5853, %v5901
        %v6022 = vmul.f32 %v5854, %v5902
        %v6023 = vmul.f32 %v5855, %v5903
        %v6024 = vmul.f32 %v5856, %v5904
        %v6025 = vmul.f32 %v5857, %v5905
        %v6026 = vmul.f32 %v5858, %v5906
        %v6027 = vmul.f32 %v5859, %v5901
        %v6028 = vmul.f32 %v5860, %v5902
        %v6029 = vmul.f32 %v5861, %v5903
        %v6030 = vmul.f32 %v5862, %v5904
        %v6031 = vmul.f32 %v5863, %v5905
        %v6032 = vmul.f32 %v5864, %v5906
        %v6033 = vmul.f32 %v5865, %v5901
        %v6034 = vmul.f32 %v5866, %v5902
        %v6035 = vmul.f32 %v5867, %v5903
        %v6036 = vmul.f32 %v5868, %v5904
        %v6037 = vmul.f32 %v5869, %v5905
        %v6038 = vmul.f32 %v5870, %v5906
        %v6039 = vmul.f32 %v5871, %v5901
        %v6040 = vmul.f32 %v5872, %v5902
        %v6041 = vmul.f32 %v5873, %v5903
        %v6042 = vmul.f32 %v5874, %v5904
        %v6043 = vmul.f32 %v5875, %v5905
        %v6044 = vmul.f32 %v5876, %v5906
        %v6045 = vmul.f32 %v5877, %v5901
        %v6046 = vmul.f32 %v5878, %v5902
        %v6047 = vmul.f32 %v5879, %v5903
        %v6048 = vmul.f32 %v5880, %v5904
        %v6049 = vmul.f32 %v5881, %v5905
        %v6050 = vmul.f32 %v5882, %v5906
        %v6051 = vmul.f32 %v5883, %v5901
        %v6052 = vmul.f32 %v5884, %v5902
        %v6053 = vmul.f32 %v5885, %v5903
        %v6054 = vmul.f32 %v5886, %v5904
        %v6055 = vmul.f32 %v5887, %v5905
        %v6056 = vmul.f32 %v5888, %v5906
        %v6057 = vperm.slane %v1053, 2
        %v6058 = vperm.slane %v1053, 6
        %v6059 = vperm.slane %v1054, 2
        %v6060 = vperm.slane %v1054, 6
        %v6061 = vperm.slane %v1055, 2
        %v6062 = vperm.slane %v1055, 6
        %v6069 = vperm.slane %v6057, 2
        %v6070 = vperm.slane %v6058, 2
        %v6071 = vperm.slane %v6059, 2
        %v6072 = vperm.slane %v6060, 2
        %v6073 = vperm.slane %v6061, 2
        %v6074 = vperm.slane %v6062, 2
        %v6075 = vadd.f32 %v5907, %v6069
        %v6076 = vadd.f32 %v5908, %v6070
        %v6077 = vadd.f32 %v5909, %v6071
        %v6078 = vadd.f32 %v5910, %v6072
        %v6079 = vadd.f32 %v5911, %v6073
        %v6080 = vadd.f32 %v5912, %v6074
        %v6081 = vadd.f32 %v5913, %v6069
        %v6082 = vadd.f32 %v5914, %v6070
        %v6083 = vadd.f32 %v5915, %v6071
        %v6084 = vadd.f32 %v5916, %v6072
        %v6085 = vadd.f32 %v5917, %v6073
        %v6086 = vadd.f32 %v5918, %v6074
        %v6087 = vadd.f32 %v5919, %v6069
        %v6088 = vadd.f32 %v5920, %v6070
        %v6089 = vadd.f32 %v5921, %v6071
        %v6090 = vadd.f32 %v5922, %v6072
        %v6091 = vadd.f32 %v5923, %v6073
        %v6092 = vadd.f32 %v5924, %v6074
        %v6093 = vadd.f32 %v5925, %v6069
        %v6094 = vadd.f32 %v5926, %v6070
        %v6095 = vadd.f32 %v5927, %v6071
        %v6096 = vadd.f32 %v5928, %v6072
        %v6097 = vadd.f32 %v5929, %v6073
        %v6098 = vadd.f32 %v5930, %v6074
        %v6099 = vadd.f32 %v5931, %v6069
        %v6100 = vadd.f32 %v5932, %v6070
        %v6101 = vadd.f32 %v5933, %v6071
        %v6102 = vadd.f32 %v5934, %v6072
        %v6103 = vadd.f32 %v5935, %v6073
        %v6104 = vadd.f32 %v5936, %v6074
        %v6105 = vadd.f32 %v5937, %v6069
        %v6106 = vadd.f32 %v5938, %v6070
        %v6107 = vadd.f32 %v5939, %v6071
        %v6108 = vadd.f32 %v5940, %v6072
        %v6109 = vadd.f32 %v5941, %v6073
        %v6110 = vadd.f32 %v5942, %v6074
        %v6111 = vadd.f32 %v5943, %v6069
        %v6112 = vadd.f32 %v5944, %v6070
        %v6113 = vadd.f32 %v5945, %v6071
        %v6114 = vadd.f32 %v5946, %v6072
        %v6115 = vadd.f32 %v5947, %v6073
        %v6116 = vadd.f32 %v5948, %v6074
        %v6117 = vadd.f32 %v5949, %v6069
        %v6118 = vadd.f32 %v5950, %v6070
        %v6119 = vadd.f32 %v5951, %v6071
        %v6120 = vadd.f32 %v5952, %v6072
        %v6121 = vadd.f32 %v5953, %v6073
        %v6122 = vadd.f32 %v5954, %v6074
        %v6123 = vadd.f32 %v5955, %v6069
        %v6124 = vadd.f32 %v5956, %v6070
        %v6125 = vadd.f32 %v5957, %v6071
        %v6126 = vadd.f32 %v5958, %v6072
        %v6127 = vadd.f32 %v5959, %v6073
        %v6128 = vadd.f32 %v5960, %v6074
        %v6129 = vadd.f32 %v5961, %v6069
        %v6130 = vadd.f32 %v5962, %v6070
        %v6131 = vadd.f32 %v5963, %v6071
        %v6132 = vadd.f32 %v5964, %v6072
        %v6133 = vadd.f32 %v5965, %v6073
        %v6134 = vadd.f32 %v5966, %v6074
        %v6135 = vadd.f32 %v5967, %v6069
        %v6136 = vadd.f32 %v5968, %v6070
        %v6137 = vadd.f32 %v5969, %v6071
        %v6138 = vadd.f32 %v5970, %v6072
        %v6139 = vadd.f32 %v5971, %v6073
        %v6140 = vadd.f32 %v5972, %v6074
        %v6141 = vadd.f32 %v5973, %v6069
        %v6142 = vadd.f32 %v5974, %v6070
        %v6143 = vadd.f32 %v5975, %v6071
        %v6144 = vadd.f32 %v5976, %v6072
        %v6145 = vadd.f32 %v5977, %v6073
        %v6146 = vadd.f32 %v5978, %v6074
        %v6147 = vadd.f32 %v5979, %v6069
        %v6148 = vadd.f32 %v5980, %v6070
        %v6149 = vadd.f32 %v5981, %v6071
        %v6150 = vadd.f32 %v5982, %v6072
        %v6151 = vadd.f32 %v5983, %v6073
        %v6152 = vadd.f32 %v5984, %v6074
        %v6153 = vadd.f32 %v5985, %v6069
        %v6154 = vadd.f32 %v5986, %v6070
        %v6155 = vadd.f32 %v5987, %v6071
        %v6156 = vadd.f32 %v5988, %v6072
        %v6157 = vadd.f32 %v5989, %v6073
        %v6158 = vadd.f32 %v5990, %v6074
        %v6159 = vadd.f32 %v5991, %v6069
        %v6160 = vadd.f32 %v5992, %v6070
        %v6161 = vadd.f32 %v5993, %v6071
        %v6162 = vadd.f32 %v5994, %v6072
        %v6163 = vadd.f32 %v5995, %v6073
        %v6164 = vadd.f32 %v5996, %v6074
        %v6165 = vadd.f32 %v5997, %v6069
        %v6166 = vadd.f32 %v5998, %v6070
        %v6167 = vadd.f32 %v5999, %v6071
        %v6168 = vadd.f32 %v6000, %v6072
        %v6169 = vadd.f32 %v6001, %v6073
        %v6170 = vadd.f32 %v6002, %v6074
        %v6171 = vadd.f32 %v6003, %v6069
        %v6172 = vadd.f32 %v6004, %v6070
        %v6173 = vadd.f32 %v6005, %v6071
        %v6174 = vadd.f32 %v6006, %v6072
        %v6175 = vadd.f32 %v6007, %v6073
        %v6176 = vadd.f32 %v6008, %v6074
        %v6177 = vadd.f32 %v6009, %v6069
        %v6178 = vadd.f32 %v6010, %v6070
        %v6179 = vadd.f32 %v6011, %v6071
        %v6180 = vadd.f32 %v6012, %v6072
        %v6181 = vadd.f32 %v6013, %v6073
        %v6182 = vadd.f32 %v6014, %v6074
        %v6183 = vadd.f32 %v6015, %v6069
        %v6184 = vadd.f32 %v6016, %v6070
        %v6185 = vadd.f32 %v6017, %v6071
        %v6186 = vadd.f32 %v6018, %v6072
        %v6187 = vadd.f32 %v6019, %v6073
        %v6188 = vadd.f32 %v6020, %v6074
        %v6189 = vadd.f32 %v6021, %v6069
        %v6190 = vadd.f32 %v6022, %v6070
        %v6191 = vadd.f32 %v6023, %v6071
        %v6192 = vadd.f32 %v6024, %v6072
        %v6193 = vadd.f32 %v6025, %v6073
        %v6194 = vadd.f32 %v6026, %v6074
        %v6195 = vadd.f32 %v6027, %v6069
        %v6196 = vadd.f32 %v6028, %v6070
        %v6197 = vadd.f32 %v6029, %v6071
        %v6198 = vadd.f32 %v6030, %v6072
        %v6199 = vadd.f32 %v6031, %v6073
        %v6200 = vadd.f32 %v6032, %v6074
        %v6201 = vadd.f32 %v6033, %v6069
        %v6202 = vadd.f32 %v6034, %v6070
        %v6203 = vadd.f32 %v6035, %v6071
        %v6204 = vadd.f32 %v6036, %v6072
        %v6205 = vadd.f32 %v6037, %v6073
        %v6206 = vadd.f32 %v6038, %v6074
        %v6207 = vadd.f32 %v6039, %v6069
        %v6208 = vadd.f32 %v6040, %v6070
        %v6209 = vadd.f32 %v6041, %v6071
        %v6210 = vadd.f32 %v6042, %v6072
        %v6211 = vadd.f32 %v6043, %v6073
        %v6212 = vadd.f32 %v6044, %v6074
        %v6213 = vadd.f32 %v6045, %v6069
        %v6214 = vadd.f32 %v6046, %v6070
        %v6215 = vadd.f32 %v6047, %v6071
        %v6216 = vadd.f32 %v6048, %v6072
        %v6217 = vadd.f32 %v6049, %v6073
        %v6218 = vadd.f32 %v6050, %v6074
        %v6219 = vadd.f32 %v6051, %v6069
        %v6220 = vadd.f32 %v6052, %v6070
        %v6221 = vadd.f32 %v6053, %v6071
        %v6222 = vadd.f32 %v6054, %v6072
        %v6223 = vadd.f32 %v6055, %v6073
        %v6224 = vadd.f32 %v6056, %v6074
        %6225 = vst [vmem:[%s308] sm:$0xff] %v6075
        %6226 = vst [vmem:[%s308 + $0x8] sm:$0xff] %v6076
        %6227 = vst [vmem:[%s308 + $0x10] sm:$0xff] %v6077
        %6228 = vst [vmem:[%s308 + $0x18] sm:$0xff] %v6078
        %6229 = vst [vmem:[%s308 + $0x20] sm:$0xff] %v6079
        %6230 = vst [vmem:[%s308 + $0x28] sm:$0xff] %v6080
        %6231 = vst [vmem:[%s308 + $0x30] sm:$0xff] %v6081
        %6232 = vst [vmem:[%s308 + $0x38] sm:$0xff] %v6082
        %6233 = vst [vmem:[%s308 + $0x40] sm:$0xff] %v6083
        %6234 = vst [vmem:[%s308 + $0x48] sm:$0xff] %v6084
        %6235 = vst [vmem:[%s308 + $0x50] sm:$0xff] %v6085
        %6236 = vst [vmem:[%s308 + $0x58] sm:$0xff] %v6086
        %6237 = vst [vmem:[%s308 + $0x60] sm:$0xff] %v6087
        %6238 = vst [vmem:[%s308 + $0x68] sm:$0xff] %v6088
        %6239 = vst [vmem:[%s308 + $0x70] sm:$0xff] %v6089
        %6240 = vst [vmem:[%s308 + $0x78] sm:$0xff] %v6090
        %6241 = vst [vmem:[%s308 + $0x80] sm:$0xff] %v6091
        %6242 = vst [vmem:[%s308 + $0x88] sm:$0xff] %v6092
        %6243 = vst [vmem:[%s308 + $0x90] sm:$0xff] %v6093
        %6244 = vst [vmem:[%s308 + $0x98] sm:$0xff] %v6094
        %6245 = vst [vmem:[%s308 + $0xa0] sm:$0xff] %v6095
        %6246 = vst [vmem:[%s308 + $0xa8] sm:$0xff] %v6096
        %6247 = vst [vmem:[%s308 + $0xb0] sm:$0xff] %v6097
        %6248 = vst [vmem:[%s308 + $0xb8] sm:$0xff] %v6098
        %6249 = vst [vmem:[%s308 + $0xc0] sm:$0xff] %v6099
        %6250 = vst [vmem:[%s308 + $0xc8] sm:$0xff] %v6100
        %6251 = vst [vmem:[%s308 + $0xd0] sm:$0xff] %v6101
        %6252 = vst [vmem:[%s308 + $0xd8] sm:$0xff] %v6102
        %6253 = vst [vmem:[%s308 + $0xe0] sm:$0xff] %v6103
        %6254 = vst [vmem:[%s308 + $0xe8] sm:$0xff] %v6104
        %6255 = vst [vmem:[%s308 + $0xf0] sm:$0xff] %v6105
        %6256 = vst [vmem:[%s308 + $0xf8] sm:$0xff] %v6106
        %6257 = vst [vmem:[%s308 + $0x100] sm:$0xff] %v6107
        %6258 = vst [vmem:[%s308 + $0x108] sm:$0xff] %v6108
        %6259 = vst [vmem:[%s308 + $0x110] sm:$0xff] %v6109
        %6260 = vst [vmem:[%s308 + $0x118] sm:$0xff] %v6110
        %6261 = vst [vmem:[%s308 + $0x120] sm:$0xff] %v6111
        %6262 = vst [vmem:[%s308 + $0x128] sm:$0xff] %v6112
        %6263 = vst [vmem:[%s308 + $0x130] sm:$0xff] %v6113
        %6264 = vst [vmem:[%s308 + $0x138] sm:$0xff] %v6114
        %6265 = vst [vmem:[%s308 + $0x140] sm:$0xff] %v6115
        %6266 = vst [vmem:[%s308 + $0x148] sm:$0xff] %v6116
        %6267 = vst [vmem:[%s308 + $0x150] sm:$0xff] %v6117
        %6268 = vst [vmem:[%s308 + $0x158] sm:$0xff] %v6118
        %6269 = vst [vmem:[%s308 + $0x160] sm:$0xff] %v6119
        %6270 = vst [vmem:[%s308 + $0x168] sm:$0xff] %v6120
        %6271 = vst [vmem:[%s308 + $0x170] sm:$0xff] %v6121
        %6272 = vst [vmem:[%s308 + $0x178] sm:$0xff] %v6122
        %6273 = vst [vmem:[%s308 + $0x180] sm:$0xff] %v6123
        %6274 = vst [vmem:[%s308 + $0x188] sm:$0xff] %v6124
        %6275 = vst [vmem:[%s308 + $0x190] sm:$0xff] %v6125
        %6276 = vst [vmem:[%s308 + $0x198] sm:$0xff] %v6126
        %6277 = vst [vmem:[%s308 + $0x1a0] sm:$0xff] %v6127
        %6278 = vst [vmem:[%s308 + $0x1a8] sm:$0xff] %v6128
        %6279 = vst [vmem:[%s308 + $0x1b0] sm:$0xff] %v6129
        %6280 = vst [vmem:[%s308 + $0x1b8] sm:$0xff] %v6130
        %6281 = vst [vmem:[%s308 + $0x1c0] sm:$0xff] %v6131
        %6282 = vst [vmem:[%s308 + $0x1c8] sm:$0xff] %v6132
        %6283 = vst [vmem:[%s308 + $0x1d0] sm:$0xff] %v6133
        %6284 = vst [vmem:[%s308 + $0x1d8] sm:$0xff] %v6134
        %6285 = vst [vmem:[%s308 + $0x1e0] sm:$0xff] %v6135
        %6286 = vst [vmem:[%s308 + $0x1e8] sm:$0xff] %v6136
        %6287 = vst [vmem:[%s308 + $0x1f0] sm:$0xff] %v6137
        %6288 = vst [vmem:[%s308 + $0x1f8] sm:$0xff] %v6138
        %6289 = vst [vmem:[%s308 + $0x200] sm:$0xff] %v6139
        %6290 = vst [vmem:[%s308 + $0x208] sm:$0xff] %v6140
        %6291 = vst [vmem:[%s308 + $0x210] sm:$0xff] %v6141
        %6292 = vst [vmem:[%s308 + $0x218] sm:$0xff] %v6142
        %6293 = vst [vmem:[%s308 + $0x220] sm:$0xff] %v6143
        %6294 = vst [vmem:[%s308 + $0x228] sm:$0xff] %v6144
        %6295 = vst [vmem:[%s308 + $0x230] sm:$0xff] %v6145
        %6296 = vst [vmem:[%s308 + $0x238] sm:$0xff] %v6146
        %6297 = vst [vmem:[%s308 + $0x240] sm:$0xff] %v6147
        %6298 = vst [vmem:[%s308 + $0x248] sm:$0xff] %v6148
        %6299 = vst [vmem:[%s308 + $0x250] sm:$0xff] %v6149
        %6300 = vst [vmem:[%s308 + $0x258] sm:$0xff] %v6150
        %6301 = vst [vmem:[%s308 + $0x260] sm:$0xff] %v6151
        %6302 = vst [vmem:[%s308 + $0x268] sm:$0xff] %v6152
        %6303 = vst [vmem:[%s308 + $0x270] sm:$0xff] %v6153
        %6304 = vst [vmem:[%s308 + $0x278] sm:$0xff] %v6154
        %6305 = vst [vmem:[%s308 + $0x280] sm:$0xff] %v6155
        %6306 = vst [vmem:[%s308 + $0x288] sm:$0xff] %v6156
        %6307 = vst [vmem:[%s308 + $0x290] sm:$0xff] %v6157
        %6308 = vst [vmem:[%s308 + $0x298] sm:$0xff] %v6158
        %6309 = vst [vmem:[%s308 + $0x2a0] sm:$0xff] %v6159
        %6310 = vst [vmem:[%s308 + $0x2a8] sm:$0xff] %v6160
        %6311 = vst [vmem:[%s308 + $0x2b0] sm:$0xff] %v6161
        %6312 = vst [vmem:[%s308 + $0x2b8] sm:$0xff] %v6162
        %6313 = vst [vmem:[%s308 + $0x2c0] sm:$0xff] %v6163
        %6314 = vst [vmem:[%s308 + $0x2c8] sm:$0xff] %v6164
        %6315 = vst [vmem:[%s308 + $0x2d0] sm:$0xff] %v6165
        %6316 = vst [vmem:[%s308 + $0x2d8] sm:$0xff] %v6166
        %6317 = vst [vmem:[%s308 + $0x2e0] sm:$0xff] %v6167
        %6318 = vst [vmem:[%s308 + $0x2e8] sm:$0xff] %v6168
        %6319 = vst [vmem:[%s308 + $0x2f0] sm:$0xff] %v6169
        %6320 = vst [vmem:[%s308 + $0x2f8] sm:$0xff] %v6170
        %6321 = vst [vmem:[%s308 + $0x300] sm:$0xff] %v6171
        %6322 = vst [vmem:[%s308 + $0x308] sm:$0xff] %v6172
        %6323 = vst [vmem:[%s308 + $0x310] sm:$0xff] %v6173
        %6324 = vst [vmem:[%s308 + $0x318] sm:$0xff] %v6174
        %6325 = vst [vmem:[%s308 + $0x320] sm:$0xff] %v6175
        %6326 = vst [vmem:[%s308 + $0x328] sm:$0xff] %v6176
        %6327 = vst [vmem:[%s308 + $0x330] sm:$0xff] %v6177
        %6328 = vst [vmem:[%s308 + $0x338] sm:$0xff] %v6178
        %6329 = vst [vmem:[%s308 + $0x340] sm:$0xff] %v6179
        %6330 = vst [vmem:[%s308 + $0x348] sm:$0xff] %v6180
        %6331 = vst [vmem:[%s308 + $0x350] sm:$0xff] %v6181
        %6332 = vst [vmem:[%s308 + $0x358] sm:$0xff] %v6182
        %6333 = vst [vmem:[%s308 + $0x360] sm:$0xff] %v6183
        %6334 = vst [vmem:[%s308 + $0x368] sm:$0xff] %v6184
        %6335 = vst [vmem:[%s308 + $0x370] sm:$0xff] %v6185
        %6336 = vst [vmem:[%s308 + $0x378] sm:$0xff] %v6186
        %6337 = vst [vmem:[%s308 + $0x380] sm:$0xff] %v6187
        %6338 = vst [vmem:[%s308 + $0x388] sm:$0xff] %v6188
        %6339 = vst [vmem:[%s308 + $0x390] sm:$0xff] %v6189
        %6340 = vst [vmem:[%s308 + $0x398] sm:$0xff] %v6190
        %6341 = vst [vmem:[%s308 + $0x3a0] sm:$0xff] %v6191
        %6342 = vst [vmem:[%s308 + $0x3a8] sm:$0xff] %v6192
        %6343 = vst [vmem:[%s308 + $0x3b0] sm:$0xff] %v6193
        %6344 = vst [vmem:[%s308 + $0x3b8] sm:$0xff] %v6194
        %6345 = vst [vmem:[%s308 + $0x3c0] sm:$0xff] %v6195
        %6346 = vst [vmem:[%s308 + $0x3c8] sm:$0xff] %v6196
        %6347 = vst [vmem:[%s308 + $0x3d0] sm:$0xff] %v6197
        %6348 = vst [vmem:[%s308 + $0x3d8] sm:$0xff] %v6198
        %6349 = vst [vmem:[%s308 + $0x3e0] sm:$0xff] %v6199
        %6350 = vst [vmem:[%s308 + $0x3e8] sm:$0xff] %v6200
        %6351 = vst [vmem:[%s308 + $0x3f0] sm:$0xff] %v6201
        %6352 = vst [vmem:[%s308 + $0x3f8] sm:$0xff] %v6202
        %6353 = vst [vmem:[%s308 + $0x400] sm:$0xff] %v6203
        %6354 = vst [vmem:[%s308 + $0x408] sm:$0xff] %v6204
        %6355 = vst [vmem:[%s308 + $0x410] sm:$0xff] %v6205
        %6356 = vst [vmem:[%s308 + $0x418] sm:$0xff] %v6206
        %6357 = vst [vmem:[%s308 + $0x420] sm:$0xff] %v6207
        %6358 = vst [vmem:[%s308 + $0x428] sm:$0xff] %v6208
        %6359 = vst [vmem:[%s308 + $0x430] sm:$0xff] %v6209
        %6360 = vst [vmem:[%s308 + $0x438] sm:$0xff] %v6210
        %6361 = vst [vmem:[%s308 + $0x440] sm:$0xff] %v6211
        %6362 = vst [vmem:[%s308 + $0x448] sm:$0xff] %v6212
        %6363 = vst [vmem:[%s308 + $0x450] sm:$0xff] %v6213
        %6364 = vst [vmem:[%s308 + $0x458] sm:$0xff] %v6214
        %6365 = vst [vmem:[%s308 + $0x460] sm:$0xff] %v6215
        %6366 = vst [vmem:[%s308 + $0x468] sm:$0xff] %v6216
        %6367 = vst [vmem:[%s308 + $0x470] sm:$0xff] %v6217
        %6368 = vst [vmem:[%s308 + $0x478] sm:$0xff] %v6218
        %6369 = vst [vmem:[%s308 + $0x480] sm:$0xff] %v6219
        %6370 = vst [vmem:[%s308 + $0x488] sm:$0xff] %v6220
        %6371 = vst [vmem:[%s308 + $0x490] sm:$0xff] %v6221
        %6372 = vst [vmem:[%s308 + $0x498] sm:$0xff] %v6222
        %6373 = vst [vmem:[%s308 + $0x4a0] sm:$0xff] %v6223
        %6374 = vst [vmem:[%s308 + $0x4a8] sm:$0xff] %v6224
        %s6375 = sand.u32 %s127, 1
        %s6376 = scalar_lea.sflag [#allocation4], %s6375
        %s6377 = sand.u32 %s127, 1
        %s6378 = smul.addr %s6377, 1200
        %s6379 = scalar_lea.vmem [#allocation10], %s6378
        // Predicated region
        $region53: #{tpu_custom_call.1} parent=35 // pred_check
          %p6380 = pneg %p137
        $region54: #{tpu_custom_call.1} parent=35 // pred_check_branch
          %6382 = sbr.rel (%p6380) target = $region56
        $region55: #{tpu_custom_call.1} parent=35 // pred_region
          %s6383 = smul.u32 25, %s25
          %s6384 = ssub.s32 49, %s6383
          %p6385 = scmp.lt.s32.totalorder %s6384, 25
          %s6386 = scalar_select %p6385, %s6384, 25
          %s6387 = smul.u32 8, %s6386
          %s6388 = smul.u32 %s6387, 6
          %s6389 = ssub.s32 1200, %s6388
          %s6390 = sshll.u32 %s6389, 4
          %6391 = vsyncadd %s6376, %s6390
          %p6392 = scmp.ne.s32.totalorder 0, %s6388
          %s6393 = smul.addr %s6383, 6
          %s6394 = smul.addr %s6393, 8
          %s6395 = scalar_lea.hbm %s4, %s6394
          %s6396 = smul.u32 48, %s6386
          %s6397 = sshll.u32 %s6379, 4
          %s6398 = int_to_ptr.vmem [resolvable:$true] %s6397
          %s6399 = sshll.u32 %s6395, 4
          %s6400 = int_to_ptr.hbm [resolvable:$true] %s6399
          %s6401 = sshll.u32 %s6396, 4
          %6405 = dma.vmem_to_hbm [thread:$0]  (%p6392), %s6398, %s6401, %s6400, %s6376, 768, 768, 48
        $region56: #{tpu_custom_call.1} parent=35 // pred_fallthru
          _
      $region36: #{tpu_custom_call.1} parent=5 // pred_fallthru
        _
      %p6406 = scmp.le.s32.totalorder 2, %s20
      // Predicated region
      $region57: #{tpu_custom_call.1} parent=5 // pred_check
        %p6407 = pneg %p6406
      $region58: #{tpu_custom_call.1} parent=5 // pred_check_branch
        %6409 = sbr.rel (%p6407) target = $region60
      $region59: #{tpu_custom_call.1} parent=5 // pred_region
        %s6410 = ssub.s32 %s20, 2
        // Predicated region
        $region61: #{tpu_custom_call.1} parent=59 // pred_check
          %p6411 = pneg %p143
        $region62: #{tpu_custom_call.1} parent=59 // pred_check_branch
          %6413 = sbr.rel (%p6411) target = $region64
        $region63: #{tpu_custom_call.1} parent=59 // pred_region
          %s6414 = sand.u32 %s128, 1
          %s6415 = scalar_lea.sflag [#allocation4], %s6414
          %s6416 = sand.u32 %s128, 1
          %s6417 = smul.addr %s6416, 1200
          %s6418 = scalar_lea.vmem [#allocation10], %s6417
          %6420 = dma.done %s6415, 19200
        $region64: #{tpu_custom_call.1} parent=59 // pred_fallthru
          _
      $region60: #{tpu_custom_call.1} parent=5 // pred_fallthru
        _
    $region6: #{tpu_custom_call.1} parent=1 // loop_footer
      %s24 = sadd.s32 1, %s20
    $region7: #{tpu_custom_call.1} parent=1 // loop_footer_branch
      %19 = sbr.rel target = $region3
    $region8: #{tpu_custom_call.1} parent=1 // loop_exit
      _
    %6421 = vsyncpa [#allocation3], 1
    %s6422 = scalar_lea.sflag [#allocation3], 1
    %6423 = vsyncpa %s6422, 1
    %6424 = vsyncpa [#allocation6], 1
    %s6425 = scalar_lea.sflag [#allocation6], 1
    %6426 = vsyncpa %s6425, 1
    %6427 = vsyncpa [#allocation9], 1
    %6428 = vsyncpa [#allocation4], 1
    %s6429 = scalar_lea.sflag [#allocation4], 1
    %6430 = vsyncpa %s6429, 1

</llo_original>
